<compile_context>
chip_gen: v7x
topology: tpu7x:2x2x1
jax: 0.10.0
libtpu: 0.0.40
codegen_flags: <defaults>
</compile_context>

<pallas_src>
import functools

import jax
import jax.numpy as jnp
from jax.experimental import pallas as pl
from jax.experimental.pallas import tpu as pltpu

LANE = 128


def _round_up(n: int, m: int) -> int:
    return ((n + m - 1) // m) * m


def _make_upsample_onehot(h: int, w: int):
    """(2h*2w, h*w) one-hot matrix: row r has a single 1 at the source pixel
    of upsampled pixel r under nearest-neighbour 2x upsampling."""
    hp, wp = 2 * h, 2 * w
    r = jnp.arange(hp * wp)
    src = (r // wp // 2) * w + (r % wp) // 2
    return (src[:, None] == jnp.arange(h * w)[None, :]).astype(jnp.float32)


def _segnet_up3_kernel(g_ref, x_ref, w1_ref, b1_ref, w2_ref, b2_ref,
                       w3_ref, b3_ref, o_ref, pad_ref, col_ref):
    """Fully fused segnetUp3 forward for one batch image.

    g_ref:   (Hp*Wp, H*W)     one-hot nearest-upsample gather matrix
    x_ref:   (1, H, W, Cp)    un-upsampled input, channels padded to 128
    w*_ref:  (3, 3*Cp, Co*)   BN-folded conv weights, taps grouped per ky
    b*_ref:  (1, Co*)         BN-folded bias
    o_ref:   (1, Hp, Wp, Cop) output (lane-dense channels)
    pad_ref: (Hp+2, Wp+2, Cp) VMEM scratch: zero-bordered activation buffer
    col_ref: (Hp+2, Wp, 3*Cp) VMEM scratch: kx-shifted column gather buffer
    """
    _, H, W, Cp = x_ref.shape
    Hp, Wp = 2 * H, 2 * W
    Cop = o_ref.shape[3]

    # Zero the halo buffer once: the 1-pixel border is never overwritten
    # below, so it supplies the padding=1 zeros for all three convolutions.
    pad_ref[...] = jnp.zeros_like(pad_ref)

    # Nearest-neighbour 2x upsample entirely in VMEM: exact one-hot gather
    # realized as an MXU matmul, written straight into the padded interior.
    x_flat = x_ref[0].reshape(H * W, Cp).astype(jnp.float32)
    x_up = jnp.dot(g_ref[...], x_flat, preferred_element_type=jnp.float32)
    pad_ref[1:Hp + 1, 1:Wp + 1, :] = x_up.reshape(Hp, Wp, Cp)

    def conv3x3_bn_relu(w_ref_, b_ref_):
        cout = w_ref_.shape[2]
        # Gather the three kx-shifted column windows once (lane-concatenated),
        # so each remaining matmul has contraction depth 3*Cp and the ky
        # shifts are free outer-dim slices.
        for kx in range(3):
            col_ref[:, :, kx * Cp:(kx + 1) * Cp] = pad_ref[:, kx:kx + Wp, :]
        acc = jnp.zeros((Hp * Wp, cout), jnp.float32)
        for ky in range(3):
            patch = col_ref[ky:ky + Hp, :, :].reshape(Hp * Wp, 3 * Cp)
            acc = acc + jnp.dot(patch, w_ref_[ky],
                                preferred_element_type=jnp.float32)
        # BN scale is pre-folded into the weights; epilogue = bias + ReLU.
        return jnp.maximum(acc + b_ref_[...], 0.0)

    a1 = conv3x3_bn_relu(w1_ref, b1_ref)                      # (Hp*Wp, Cp)
    pad_ref[1:Hp + 1, 1:Wp + 1, :] = a1.reshape(Hp, Wp, Cp)
    a2 = conv3x3_bn_relu(w2_ref, b2_ref)                      # (Hp*Wp, Cp)
    pad_ref[1:Hp + 1, 1:Wp + 1, :] = a2.reshape(Hp, Wp, Cp)
    a3 = conv3x3_bn_relu(w3_ref, b3_ref)                      # (Hp*Wp, Cop)
    o_ref[...] = a3.reshape(1, Hp, Wp, Cop).astype(o_ref.dtype)


@functools.partial(jax.jit, static_argnames=("out_size",))
def segnet_up3_forward(x_nchw, params, *, out_size):
    N, cin, H, W = x_nchw.shape
    Cp = params["w1"].shape[2]     # padded in_size   (w1: (3, 3*Cp, Cp))
    Cop = params["w3"].shape[2]    # padded out_size  (w3: (3, 3*Cp, Cop))
    Hp, Wp = 2 * H, 2 * W

    # NCHW -> NHWC; zero-pad channels up to the 128-lane boundary.
    x = jnp.transpose(x_nchw, (0, 2, 3, 1))
    x = jnp.pad(x, ((0, 0), (0, 0), (0, 0), (0, Cp - cin))).astype(jnp.float32)

    g = _make_upsample_onehot(H, W)   # constant, folded at compile time

    out = pl.pallas_call(
        _segnet_up3_kernel,
        out_shape=jax.ShapeDtypeStruct((N, Hp, Wp, Cop), jnp.float32),
        grid=(N,),
        in_specs=[
            pl.BlockSpec((Hp * Wp, H * W), lambda n: (0, 0)),
            pl.BlockSpec((1, H, W, Cp), lambda n: (n, 0, 0, 0)),
            pl.BlockSpec((3, 3 * Cp, Cp), lambda n: (0, 0, 0)),
            pl.BlockSpec((1, Cp), lambda n: (0, 0)),
            pl.BlockSpec((3, 3 * Cp, Cp), lambda n: (0, 0, 0)),
            pl.BlockSpec((1, Cp), lambda n: (0, 0)),
            pl.BlockSpec((3, 3 * Cp, Cop), lambda n: (0, 0, 0)),
            pl.BlockSpec((1, Cop), lambda n: (0, 0)),
        ],
        out_specs=pl.BlockSpec((1, Hp, Wp, Cop), lambda n: (n, 0, 0, 0)),
        scratch_shapes=[
            pltpu.VMEM((Hp + 2, Wp + 2, Cp), jnp.float32),
            pltpu.VMEM((Hp + 2, Wp, 3 * Cp), jnp.float32),
        ],
        compiler_params=pltpu.CompilerParams(
            dimension_semantics=("parallel",),
            vmem_limit_bytes=32 * 1024 * 1024,
        ),
    )(g, x, params["w1"], params["b1"], params["w2"], params["b2"],
      params["w3"], params["b3"])

    # Drop channel padding; NHWC -> NCHW to match the PyTorch convention.
    return jnp.transpose(out[..., :out_size], (0, 3, 1, 2))


def _fold_bn_into_conv(w_hwio, conv_bias, gamma, beta, running_mean,
                       running_var, eps=1e-5):
    """Fold eval-mode BatchNorm into the conv: scale -> weights, shift -> bias."""
    scale = gamma / jnp.sqrt(running_var + eps)               # (Cout,)
    w_folded = w_hwio * scale[None, None, None, :]
    b_folded = beta + (conv_bias - running_mean) * scale
    return w_folded, b_folded


def init_params(key, in_size, out_size, dtype=jnp.float32):
    """Random segnetUp3 parameters, BN-folded, lane-padded, kernel-ready.

    Weights are generated directly in HWIO layout (PyTorch OIHW checkpoints
    would need a (2, 3, 1, 0) transpose before this step).
    """
    cp = _round_up(in_size, LANE)
    cop = _round_up(out_size, LANE)
    layer_io = [(in_size, in_size, cp, cp),
                (in_size, in_size, cp, cp),
                (in_size, out_size, cp, cop)]
    params = {}
    for i, (cin, cout, cin_p, cout_p) in enumerate(layer_io, start=1):
        key, kw, kb, kg, kbe, km, kv = jax.random.split(key, 7)
        w = jax.random.normal(kw, (3, 3, cin, cout), dtype) * 0.1
        b = jax.random.normal(kb, (cout,), dtype) * 0.05
        gamma = 1.0 + 0.1 * jax.random.normal(kg, (cout,), dtype)
        beta = 0.05 * jax.random.normal(kbe, (cout,), dtype)
        rmean = 0.05 * jax.random.normal(km, (cout,), dtype)
        rvar = 1.0 + 0.1 * jnp.abs(jax.random.normal(kv, (cout,), dtype))
        w_f, b_f = _fold_bn_into_conv(w, b, gamma, beta, rmean, rvar)
        w_p = jnp.zeros((3, 3, cin_p, cout_p), jnp.float32)
        w_p = w_p.at[:, :, :cin, :cout].set(w_f.astype(jnp.float32))
        b_p = jnp.zeros((1, cout_p), jnp.float32)
        b_p = b_p.at[0, :cout].set(b_f.astype(jnp.float32))
        # Group the 9 taps per ky row shift: (3, 3, Cin_p, Cout_p) ->
        # (3, 3*Cin_p, Cout_p), matching the kx-concatenated patch layout.
        params[f"w{i}"] = w_p.reshape(3, 3 * cin_p, cout_p)
        params[f"b{i}"] = b_p
    return params


def _reference_forward(x_nchw, params, out_size):
    """Pure-XLA reference (same folded/padded params) for correctness checks."""
    cp = params["w1"].shape[2]
    cop = params["w3"].shape[2]
    x = jnp.transpose(x_nchw, (0, 2, 3, 1))
    x = jnp.pad(x, ((0, 0), (0, 0), (0, 0), (0, cp - x.shape[-1])))
    x = jnp.repeat(jnp.repeat(x, 2, axis=1), 2, axis=2)       # nearest 2x
    for i, co in ((1, cp), (2, cp), (3, cop)):
        w = params[f"w{i}"].reshape(3, 3, cp, co)
        x = jax.lax.conv_general_dilated(
            x, w, window_strides=(1, 1), padding="SAME",
            dimension_numbers=("NHWC", "HWIO", "NHWC"),
            precision=jax.lax.Precision.HIGHEST)
        x = jnp.maximum(x + params[f"b{i}"].reshape(1, 1, 1, co), 0.0)
    return jnp.transpose(x[..., :out_size], (0, 3, 1, 2))


if __name__ == "__main__":
    key = jax.random.PRNGKey(0)
    k_x, k_p = jax.random.split(key)

    batch, in_size, out_size, spatial = 2, 4, 8, 8
    x = jax.random.normal(k_x, (batch, in_size, spatial, spatial), jnp.float32)
    params = init_params(k_p, in_size, out_size)

    out = segnet_up3_forward(x, params, out_size=out_size)
    out = jax.block_until_ready(out)

    expected_shape = (batch, out_size, 2 * spatial, 2 * spatial)
    assert out.shape == expected_shape, (out.shape, expected_shape)
    assert out.dtype == jnp.float32
    assert bool(jnp.all(jnp.isfinite(out)))
    assert bool(jnp.all(out >= 0.0))          # ReLU output

    ref = _reference_forward(x, params, out_size)
    assert bool(jnp.allclose(out, ref, rtol=2e-2, atol=2e-2)), float(
        jnp.max(jnp.abs(out - ref)))

    print("KERNEL_OK")
</pallas_src>

<mosaic_0001>
module attributes {stable_mosaic.version = 11 : i64} {
  func.func @_segnet_up3_kernel(%arg0: i32, %arg1: memref<256x64xf32, #tpu.memory_space<vmem>>, %arg2: memref<1x8x8x128xf32, #tpu.memory_space<vmem>>, %arg3: memref<3x384x128xf32, #tpu.memory_space<vmem>>, %arg4: memref<1x128xf32, #tpu.memory_space<vmem>>, %arg5: memref<3x384x128xf32, #tpu.memory_space<vmem>>, %arg6: memref<1x128xf32, #tpu.memory_space<vmem>>, %arg7: memref<3x384x128xf32, #tpu.memory_space<vmem>>, %arg8: memref<1x128xf32, #tpu.memory_space<vmem>>, %arg9: memref<1x16x16x128xf32, #tpu.memory_space<vmem>>, %arg10: memref<18x18x128xf32, #tpu.memory_space<vmem>>, %arg11: memref<18x16x384xf32, #tpu.memory_space<vmem>>) attributes {dimension_semantics = [#tpu.dimension_semantics<parallel>], iteration_bounds = array<i64: 2>, scalar_prefetch = 0 : i64, scratch_operands = 2 : i64, tpu.core_type = #tpu.core_type<tc>, window_params = [{pipeline_mode = #tpu.pipeline_mode<synchronous>, transform_indices = @transform_0, window_bounds = array<i64: 256, 64>}, {transform_indices = @transform_1, window_bounds = array<i64: 1, 8, 8, 128>}, {pipeline_mode = #tpu.pipeline_mode<synchronous>, transform_indices = @transform_2, window_bounds = array<i64: 3, 384, 128>}, {pipeline_mode = #tpu.pipeline_mode<synchronous>, transform_indices = @transform_3, window_bounds = array<i64: 1, 128>}, {pipeline_mode = #tpu.pipeline_mode<synchronous>, transform_indices = @transform_4, window_bounds = array<i64: 3, 384, 128>}, {pipeline_mode = #tpu.pipeline_mode<synchronous>, transform_indices = @transform_5, window_bounds = array<i64: 1, 128>}, {pipeline_mode = #tpu.pipeline_mode<synchronous>, transform_indices = @transform_6, window_bounds = array<i64: 3, 384, 128>}, {pipeline_mode = #tpu.pipeline_mode<synchronous>, transform_indices = @transform_7, window_bounds = array<i64: 1, 128>}, {transform_indices = @transform_8, window_bounds = array<i64: 1, 16, 16, 128>}]} {
    %cst = arith.constant 0.000000e+00 : f32
    %0 = vector.broadcast %cst : f32 to vector<18x18x128xf32>
    %c0 = arith.constant 0 : index
    %c0_0 = arith.constant 0 : index
    %c0_1 = arith.constant 0 : index
    %1 = vector.load %arg10[%c0, %c0_0, %c0_1] : memref<18x18x128xf32, #tpu.memory_space<vmem>>, vector<18x18x128xf32>
    tpu.vector_store %arg10[%c0, %c0_0, %c0_1], %0 {strides = array<i32>} : memref<18x18x128xf32, #tpu.memory_space<vmem>>, vector<18x18x128xf32>,
    %c0_2 = arith.constant 0 : index
    %c0_3 = arith.constant 0 : index
    %c0_4 = arith.constant 0 : index
    %c0_5 = arith.constant 0 : index
    %2 = vector.load %arg2[%c0_2, %c0_3, %c0_4, %c0_5] : memref<1x8x8x128xf32, #tpu.memory_space<vmem>>, vector<1x8x8x128xf32>
    %3 = vector.shape_cast %2 : vector<1x8x8x128xf32> to vector<8x8x128xf32>
    %4 = vector.shape_cast %3 : vector<8x8x128xf32> to vector<64x128xf32>
    %c0_6 = arith.constant 0 : index
    %c0_7 = arith.constant 0 : index
    %5 = vector.load %arg1[%c0_6, %c0_7] : memref<256x64xf32, #tpu.memory_space<vmem>>, vector<256x64xf32>
    %cst_8 = arith.constant dense<0.000000e+00> : vector<256x128xf32>
    %6 = tpu.matmul %5, %4, %cst_8 {dimension_numbers = #tpu.dot_dimension_numbers<[1], [0], [0], [1], [0, 0, 1, 1], [], []>} : vector<256x64xf32>, vector<64x128xf32>, vector<256x128xf32> -> vector<256x128xf32>
    %7 = vector.shape_cast %6 : vector<256x128xf32> to vector<16x16x128xf32>
    %c1 = arith.constant 1 : index
    %c1_9 = arith.constant 1 : index
    %c0_10 = arith.constant 0 : index
    %8 = vector.load %arg10[%c1, %c1_9, %c0_10] : memref<18x18x128xf32, #tpu.memory_space<vmem>>, vector<16x16x128xf32>
    tpu.vector_store %arg10[%c1, %c1_9, %c0_10], %7 {strides = array<i32>} : memref<18x18x128xf32, #tpu.memory_space<vmem>>, vector<16x16x128xf32>,
    %c0_11 = arith.constant 0 : index
    %c0_12 = arith.constant 0 : index
    %c0_13 = arith.constant 0 : index
    %9 = vector.load %arg10[%c0_11, %c0_12, %c0_13] : memref<18x18x128xf32, #tpu.memory_space<vmem>>, vector<18x16x128xf32>
    %c0_14 = arith.constant 0 : index
    %c0_15 = arith.constant 0 : index
    %c0_16 = arith.constant 0 : index
    %10 = vector.load %arg11[%c0_14, %c0_15, %c0_16] : memref<18x16x384xf32, #tpu.memory_space<vmem>>, vector<18x16x128xf32>
    tpu.vector_store %arg11[%c0_14, %c0_15, %c0_16], %9 {strides = array<i32>} : memref<18x16x384xf32, #tpu.memory_space<vmem>>, vector<18x16x128xf32>,
    %c0_17 = arith.constant 0 : index
    %c1_18 = arith.constant 1 : index
    %c0_19 = arith.constant 0 : index
    %11 = vector.load %arg10[%c0_17, %c1_18, %c0_19] : memref<18x18x128xf32, #tpu.memory_space<vmem>>, vector<18x16x128xf32>
    %c0_20 = arith.constant 0 : index
    %c0_21 = arith.constant 0 : index
    %c128 = arith.constant 128 : index
    %12 = vector.load %arg11[%c0_20, %c0_21, %c128] : memref<18x16x384xf32, #tpu.memory_space<vmem>>, vector<18x16x128xf32>
    tpu.vector_store %arg11[%c0_20, %c0_21, %c128], %11 {strides = array<i32>} : memref<18x16x384xf32, #tpu.memory_space<vmem>>, vector<18x16x128xf32>,
    %c0_22 = arith.constant 0 : index
    %c2 = arith.constant 2 : index
    %c0_23 = arith.constant 0 : index
    %13 = vector.load %arg10[%c0_22, %c2, %c0_23] : memref<18x18x128xf32, #tpu.memory_space<vmem>>, vector<18x16x128xf32>
    %c0_24 = arith.constant 0 : index
    %c0_25 = arith.constant 0 : index
    %c256 = arith.constant 256 : index
    %14 = vector.load %arg11[%c0_24, %c0_25, %c256] : memref<18x16x384xf32, #tpu.memory_space<vmem>>, vector<18x16x128xf32>
    tpu.vector_store %arg11[%c0_24, %c0_25, %c256], %13 {strides = array<i32>} : memref<18x16x384xf32, #tpu.memory_space<vmem>>, vector<18x16x128xf32>,
    %cst_26 = arith.constant 0.000000e+00 : f32
    %15 = vector.broadcast %cst_26 : f32 to vector<256x128xf32>
    %c0_27 = arith.constant 0 : index
    %c0_28 = arith.constant 0 : index
    %c0_29 = arith.constant 0 : index
    %16 = vector.load %arg11[%c0_27, %c0_28, %c0_29] : memref<18x16x384xf32, #tpu.memory_space<vmem>>, vector<16x16x384xf32>
    %17 = vector.shape_cast %16 : vector<16x16x384xf32> to vector<256x384xf32>
    %c0_30 = arith.constant 0 : index
    %c0_31 = arith.constant 0 : index
    %c0_32 = arith.constant 0 : index
    %18 = vector.load %arg3[%c0_30, %c0_31, %c0_32] : memref<3x384x128xf32, #tpu.memory_space<vmem>>, vector<1x384x128xf32>
    %19 = vector.shape_cast %18 : vector<1x384x128xf32> to vector<384x128xf32>
    %cst_33 = arith.constant dense<0.000000e+00> : vector<256x128xf32>
    %20 = tpu.matmul %17, %19, %cst_33 {dimension_numbers = #tpu.dot_dimension_numbers<[1], [0], [0], [1], [0, 0, 1, 1], [], []>} : vector<256x384xf32>, vector<384x128xf32>, vector<256x128xf32> -> vector<256x128xf32>
    %21 = arith.addf %15, %20 : vector<256x128xf32>
    %c1_34 = arith.constant 1 : index
    %c0_35 = arith.constant 0 : index
    %c0_36 = arith.constant 0 : index
    %22 = vector.load %arg11[%c1_34, %c0_35, %c0_36] : memref<18x16x384xf32, #tpu.memory_space<vmem>>, vector<16x16x384xf32>
    %23 = vector.shape_cast %22 : vector<16x16x384xf32> to vector<256x384xf32>
    %c1_37 = arith.constant 1 : index
    %c0_38 = arith.constant 0 : index
    %c0_39 = arith.constant 0 : index
    %24 = vector.load %arg3[%c1_37, %c0_38, %c0_39] : memref<3x384x128xf32, #tpu.memory_space<vmem>>, vector<1x384x128xf32>
    %25 = vector.shape_cast %24 : vector<1x384x128xf32> to vector<384x128xf32>
    %cst_40 = arith.constant dense<0.000000e+00> : vector<256x128xf32>
    %26 = tpu.matmul %23, %25, %cst_40 {dimension_numbers = #tpu.dot_dimension_numbers<[1], [0], [0], [1], [0, 0, 1, 1], [], []>} : vector<256x384xf32>, vector<384x128xf32>, vector<256x128xf32> -> vector<256x128xf32>
    %27 = arith.addf %21, %26 : vector<256x128xf32>
    %c2_41 = arith.constant 2 : index
    %c0_42 = arith.constant 0 : index
    %c0_43 = arith.constant 0 : index
    %28 = vector.load %arg11[%c2_41, %c0_42, %c0_43] : memref<18x16x384xf32, #tpu.memory_space<vmem>>, vector<16x16x384xf32>
    %29 = vector.shape_cast %28 : vector<16x16x384xf32> to vector<256x384xf32>
    %c2_44 = arith.constant 2 : index
    %c0_45 = arith.constant 0 : index
    %c0_46 = arith.constant 0 : index
    %30 = vector.load %arg3[%c2_44, %c0_45, %c0_46] : memref<3x384x128xf32, #tpu.memory_space<vmem>>, vector<1x384x128xf32>
    %31 = vector.shape_cast %30 : vector<1x384x128xf32> to vector<384x128xf32>
    %cst_47 = arith.constant dense<0.000000e+00> : vector<256x128xf32>
    %32 = tpu.matmul %29, %31, %cst_47 {dimension_numbers = #tpu.dot_dimension_numbers<[1], [0], [0], [1], [0, 0, 1, 1], [], []>} : vector<256x384xf32>, vector<384x128xf32>, vector<256x128xf32> -> vector<256x128xf32>
    %33 = arith.addf %27, %32 : vector<256x128xf32>
    %c0_48 = arith.constant 0 : index
    %c0_49 = arith.constant 0 : index
    %34 = vector.load %arg4[%c0_48, %c0_49] : memref<1x128xf32, #tpu.memory_space<vmem>>, vector<1x128xf32>
    %35 = vector.broadcast %34 : vector<1x128xf32> to vector<256x128xf32>
    %36 = arith.addf %33, %35 : vector<256x128xf32>
    %cst_50 = arith.constant 0.000000e+00 : f32
    %37 = vector.broadcast %cst_50 : f32 to vector<256x128xf32>
    %38 = arith.maximumf %36, %37 : vector<256x128xf32>
    %39 = vector.shape_cast %38 : vector<256x128xf32> to vector<16x16x128xf32>
    %c1_51 = arith.constant 1 : index
    %c1_52 = arith.constant 1 : index
    %c0_53 = arith.constant 0 : index
    %40 = vector.load %arg10[%c1_51, %c1_52, %c0_53] : memref<18x18x128xf32, #tpu.memory_space<vmem>>, vector<16x16x128xf32>
    tpu.vector_store %arg10[%c1_51, %c1_52, %c0_53], %39 {strides = array<i32>} : memref<18x18x128xf32, #tpu.memory_space<vmem>>, vector<16x16x128xf32>,
    %c0_54 = arith.constant 0 : index
    %c0_55 = arith.constant 0 : index
    %c0_56 = arith.constant 0 : index
    %41 = vector.load %arg10[%c0_54, %c0_55, %c0_56] : memref<18x18x128xf32, #tpu.memory_space<vmem>>, vector<18x16x128xf32>
    %c0_57 = arith.constant 0 : index
    %c0_58 = arith.constant 0 : index
    %c0_59 = arith.constant 0 : index
    %42 = vector.load %arg11[%c0_57, %c0_58, %c0_59] : memref<18x16x384xf32, #tpu.memory_space<vmem>>, vector<18x16x128xf32>
    tpu.vector_store %arg11[%c0_57, %c0_58, %c0_59], %41 {strides = array<i32>} : memref<18x16x384xf32, #tpu.memory_space<vmem>>, vector<18x16x128xf32>,
    %c0_60 = arith.constant 0 : index
    %c1_61 = arith.constant 1 : index
    %c0_62 = arith.constant 0 : index
    %43 = vector.load %arg10[%c0_60, %c1_61, %c0_62] : memref<18x18x128xf32, #tpu.memory_space<vmem>>, vector<18x16x128xf32>
    %c0_63 = arith.constant 0 : index
    %c0_64 = arith.constant 0 : index
    %c128_65 = arith.constant 128 : index
    %44 = vector.load %arg11[%c0_63, %c0_64, %c128_65] : memref<18x16x384xf32, #tpu.memory_space<vmem>>, vector<18x16x128xf32>
    tpu.vector_store %arg11[%c0_63, %c0_64, %c128_65], %43 {strides = array<i32>} : memref<18x16x384xf32, #tpu.memory_space<vmem>>, vector<18x16x128xf32>,
    %c0_66 = arith.constant 0 : index
    %c2_67 = arith.constant 2 : index
    %c0_68 = arith.constant 0 : index
    %45 = vector.load %arg10[%c0_66, %c2_67, %c0_68] : memref<18x18x128xf32, #tpu.memory_space<vmem>>, vector<18x16x128xf32>
    %c0_69 = arith.constant 0 : index
    %c0_70 = arith.constant 0 : index
    %c256_71 = arith.constant 256 : index
    %46 = vector.load %arg11[%c0_69, %c0_70, %c256_71] : memref<18x16x384xf32, #tpu.memory_space<vmem>>, vector<18x16x128xf32>
    tpu.vector_store %arg11[%c0_69, %c0_70, %c256_71], %45 {strides = array<i32>} : memref<18x16x384xf32, #tpu.memory_space<vmem>>, vector<18x16x128xf32>,
    %cst_72 = arith.constant 0.000000e+00 : f32
    %47 = vector.broadcast %cst_72 : f32 to vector<256x128xf32>
    %c0_73 = arith.constant 0 : index
    %c0_74 = arith.constant 0 : index
    %c0_75 = arith.constant 0 : index
    %48 = vector.load %arg11[%c0_73, %c0_74, %c0_75] : memref<18x16x384xf32, #tpu.memory_space<vmem>>, vector<16x16x384xf32>
    %49 = vector.shape_cast %48 : vector<16x16x384xf32> to vector<256x384xf32>
    %c0_76 = arith.constant 0 : index
    %c0_77 = arith.constant 0 : index
    %c0_78 = arith.constant 0 : index
    %50 = vector.load %arg5[%c0_76, %c0_77, %c0_78] : memref<3x384x128xf32, #tpu.memory_space<vmem>>, vector<1x384x128xf32>
    %51 = vector.shape_cast %50 : vector<1x384x128xf32> to vector<384x128xf32>
    %cst_79 = arith.constant dense<0.000000e+00> : vector<256x128xf32>
    %52 = tpu.matmul %49, %51, %cst_79 {dimension_numbers = #tpu.dot_dimension_numbers<[1], [0], [0], [1], [0, 0, 1, 1], [], []>} : vector<256x384xf32>, vector<384x128xf32>, vector<256x128xf32> -> vector<256x128xf32>
    %53 = arith.addf %47, %52 : vector<256x128xf32>
    %c1_80 = arith.constant 1 : index
    %c0_81 = arith.constant 0 : index
    %c0_82 = arith.constant 0 : index
    %54 = vector.load %arg11[%c1_80, %c0_81, %c0_82] : memref<18x16x384xf32, #tpu.memory_space<vmem>>, vector<16x16x384xf32>
    %55 = vector.shape_cast %54 : vector<16x16x384xf32> to vector<256x384xf32>
    %c1_83 = arith.constant 1 : index
    %c0_84 = arith.constant 0 : index
    %c0_85 = arith.constant 0 : index
    %56 = vector.load %arg5[%c1_83, %c0_84, %c0_85] : memref<3x384x128xf32, #tpu.memory_space<vmem>>, vector<1x384x128xf32>
    %57 = vector.shape_cast %56 : vector<1x384x128xf32> to vector<384x128xf32>
    %cst_86 = arith.constant dense<0.000000e+00> : vector<256x128xf32>
    %58 = tpu.matmul %55, %57, %cst_86 {dimension_numbers = #tpu.dot_dimension_numbers<[1], [0], [0], [1], [0, 0, 1, 1], [], []>} : vector<256x384xf32>, vector<384x128xf32>, vector<256x128xf32> -> vector<256x128xf32>
    %59 = arith.addf %53, %58 : vector<256x128xf32>
    %c2_87 = arith.constant 2 : index
    %c0_88 = arith.constant 0 : index
    %c0_89 = arith.constant 0 : index
    %60 = vector.load %arg11[%c2_87, %c0_88, %c0_89] : memref<18x16x384xf32, #tpu.memory_space<vmem>>, vector<16x16x384xf32>
    %61 = vector.shape_cast %60 : vector<16x16x384xf32> to vector<256x384xf32>
    %c2_90 = arith.constant 2 : index
    %c0_91 = arith.constant 0 : index
    %c0_92 = arith.constant 0 : index
    %62 = vector.load %arg5[%c2_90, %c0_91, %c0_92] : memref<3x384x128xf32, #tpu.memory_space<vmem>>, vector<1x384x128xf32>
    %63 = vector.shape_cast %62 : vector<1x384x128xf32> to vector<384x128xf32>
    %cst_93 = arith.constant dense<0.000000e+00> : vector<256x128xf32>
    %64 = tpu.matmul %61, %63, %cst_93 {dimension_numbers = #tpu.dot_dimension_numbers<[1], [0], [0], [1], [0, 0, 1, 1], [], []>} : vector<256x384xf32>, vector<384x128xf32>, vector<256x128xf32> -> vector<256x128xf32>
    %65 = arith.addf %59, %64 : vector<256x128xf32>
    %c0_94 = arith.constant 0 : index
    %c0_95 = arith.constant 0 : index
    %66 = vector.load %arg6[%c0_94, %c0_95] : memref<1x128xf32, #tpu.memory_space<vmem>>, vector<1x128xf32>
    %67 = vector.broadcast %66 : vector<1x128xf32> to vector<256x128xf32>
    %68 = arith.addf %65, %67 : vector<256x128xf32>
    %cst_96 = arith.constant 0.000000e+00 : f32
    %69 = vector.broadcast %cst_96 : f32 to vector<256x128xf32>
    %70 = arith.maximumf %68, %69 : vector<256x128xf32>
    %71 = vector.shape_cast %70 : vector<256x128xf32> to vector<16x16x128xf32>
    %c1_97 = arith.constant 1 : index
    %c1_98 = arith.constant 1 : index
    %c0_99 = arith.constant 0 : index
    %72 = vector.load %arg10[%c1_97, %c1_98, %c0_99] : memref<18x18x128xf32, #tpu.memory_space<vmem>>, vector<16x16x128xf32>
    tpu.vector_store %arg10[%c1_97, %c1_98, %c0_99], %71 {strides = array<i32>} : memref<18x18x128xf32, #tpu.memory_space<vmem>>, vector<16x16x128xf32>,
    %c0_100 = arith.constant 0 : index
    %c0_101 = arith.constant 0 : index
    %c0_102 = arith.constant 0 : index
    %73 = vector.load %arg10[%c0_100, %c0_101, %c0_102] : memref<18x18x128xf32, #tpu.memory_space<vmem>>, vector<18x16x128xf32>
    %c0_103 = arith.constant 0 : index
    %c0_104 = arith.constant 0 : index
    %c0_105 = arith.constant 0 : index
    %74 = vector.load %arg11[%c0_103, %c0_104, %c0_105] : memref<18x16x384xf32, #tpu.memory_space<vmem>>, vector<18x16x128xf32>
    tpu.vector_store %arg11[%c0_103, %c0_104, %c0_105], %73 {strides = array<i32>} : memref<18x16x384xf32, #tpu.memory_space<vmem>>, vector<18x16x128xf32>,
    %c0_106 = arith.constant 0 : index
    %c1_107 = arith.constant 1 : index
    %c0_108 = arith.constant 0 : index
    %75 = vector.load %arg10[%c0_106, %c1_107, %c0_108] : memref<18x18x128xf32, #tpu.memory_space<vmem>>, vector<18x16x128xf32>
    %c0_109 = arith.constant 0 : index
    %c0_110 = arith.constant 0 : index
    %c128_111 = arith.constant 128 : index
    %76 = vector.load %arg11[%c0_109, %c0_110, %c128_111] : memref<18x16x384xf32, #tpu.memory_space<vmem>>, vector<18x16x128xf32>
    tpu.vector_store %arg11[%c0_109, %c0_110, %c128_111], %75 {strides = array<i32>} : memref<18x16x384xf32, #tpu.memory_space<vmem>>, vector<18x16x128xf32>,
    %c0_112 = arith.constant 0 : index
    %c2_113 = arith.constant 2 : index
    %c0_114 = arith.constant 0 : index
    %77 = vector.load %arg10[%c0_112, %c2_113, %c0_114] : memref<18x18x128xf32, #tpu.memory_space<vmem>>, vector<18x16x128xf32>
    %c0_115 = arith.constant 0 : index
    %c0_116 = arith.constant 0 : index
    %c256_117 = arith.constant 256 : index
    %78 = vector.load %arg11[%c0_115, %c0_116, %c256_117] : memref<18x16x384xf32, #tpu.memory_space<vmem>>, vector<18x16x128xf32>
    tpu.vector_store %arg11[%c0_115, %c0_116, %c256_117], %77 {strides = array<i32>} : memref<18x16x384xf32, #tpu.memory_space<vmem>>, vector<18x16x128xf32>,
    %cst_118 = arith.constant 0.000000e+00 : f32
    %79 = vector.broadcast %cst_118 : f32 to vector<256x128xf32>
    %c0_119 = arith.constant 0 : index
    %c0_120 = arith.constant 0 : index
    %c0_121 = arith.constant 0 : index
    %80 = vector.load %arg11[%c0_119, %c0_120, %c0_121] : memref<18x16x384xf32, #tpu.memory_space<vmem>>, vector<16x16x384xf32>
    %81 = vector.shape_cast %80 : vector<16x16x384xf32> to vector<256x384xf32>
    %c0_122 = arith.constant 0 : index
    %c0_123 = arith.constant 0 : index
    %c0_124 = arith.constant 0 : index
    %82 = vector.load %arg7[%c0_122, %c0_123, %c0_124] : memref<3x384x128xf32, #tpu.memory_space<vmem>>, vector<1x384x128xf32>
    %83 = vector.shape_cast %82 : vector<1x384x128xf32> to vector<384x128xf32>
    %cst_125 = arith.constant dense<0.000000e+00> : vector<256x128xf32>
    %84 = tpu.matmul %81, %83, %cst_125 {dimension_numbers = #tpu.dot_dimension_numbers<[1], [0], [0], [1], [0, 0, 1, 1], [], []>} : vector<256x384xf32>, vector<384x128xf32>, vector<256x128xf32> -> vector<256x128xf32>
    %85 = arith.addf %79, %84 : vector<256x128xf32>
    %c1_126 = arith.constant 1 : index
    %c0_127 = arith.constant 0 : index
    %c0_128 = arith.constant 0 : index
    %86 = vector.load %arg11[%c1_126, %c0_127, %c0_128] : memref<18x16x384xf32, #tpu.memory_space<vmem>>, vector<16x16x384xf32>
    %87 = vector.shape_cast %86 : vector<16x16x384xf32> to vector<256x384xf32>
    %c1_129 = arith.constant 1 : index
    %c0_130 = arith.constant 0 : index
    %c0_131 = arith.constant 0 : index
    %88 = vector.load %arg7[%c1_129, %c0_130, %c0_131] : memref<3x384x128xf32, #tpu.memory_space<vmem>>, vector<1x384x128xf32>
    %89 = vector.shape_cast %88 : vector<1x384x128xf32> to vector<384x128xf32>
    %cst_132 = arith.constant dense<0.000000e+00> : vector<256x128xf32>
    %90 = tpu.matmul %87, %89, %cst_132 {dimension_numbers = #tpu.dot_dimension_numbers<[1], [0], [0], [1], [0, 0, 1, 1], [], []>} : vector<256x384xf32>, vector<384x128xf32>, vector<256x128xf32> -> vector<256x128xf32>
    %91 = arith.addf %85, %90 : vector<256x128xf32>
    %c2_133 = arith.constant 2 : index
    %c0_134 = arith.constant 0 : index
    %c0_135 = arith.constant 0 : index
    %92 = vector.load %arg11[%c2_133, %c0_134, %c0_135] : memref<18x16x384xf32, #tpu.memory_space<vmem>>, vector<16x16x384xf32>
    %93 = vector.shape_cast %92 : vector<16x16x384xf32> to vector<256x384xf32>
    %c2_136 = arith.constant 2 : index
    %c0_137 = arith.constant 0 : index
    %c0_138 = arith.constant 0 : index
    %94 = vector.load %arg7[%c2_136, %c0_137, %c0_138] : memref<3x384x128xf32, #tpu.memory_space<vmem>>, vector<1x384x128xf32>
    %95 = vector.shape_cast %94 : vector<1x384x128xf32> to vector<384x128xf32>
    %cst_139 = arith.constant dense<0.000000e+00> : vector<256x128xf32>
    %96 = tpu.matmul %93, %95, %cst_139 {dimension_numbers = #tpu.dot_dimension_numbers<[1], [0], [0], [1], [0, 0, 1, 1], [], []>} : vector<256x384xf32>, vector<384x128xf32>, vector<256x128xf32> -> vector<256x128xf32>
    %97 = arith.addf %91, %96 : vector<256x128xf32>
    %c0_140 = arith.constant 0 : index
    %c0_141 = arith.constant 0 : index
    %98 = vector.load %arg8[%c0_140, %c0_141] : memref<1x128xf32, #tpu.memory_space<vmem>>, vector<1x128xf32>
    %99 = vector.broadcast %98 : vector<1x128xf32> to vector<256x128xf32>
    %100 = arith.addf %97, %99 : vector<256x128xf32>
    %cst_142 = arith.constant 0.000000e+00 : f32
    %101 = vector.broadcast %cst_142 : f32 to vector<256x128xf32>
    %102 = arith.maximumf %100, %101 : vector<256x128xf32>
    %103 = vector.shape_cast %102 : vector<256x128xf32> to vector<1x16x16x128xf32>
    %c0_143 = arith.constant 0 : index
    %c0_144 = arith.constant 0 : index
    %c0_145 = arith.constant 0 : index
    %c0_146 = arith.constant 0 : index
    %104 = vector.load %arg9[%c0_143, %c0_144, %c0_145, %c0_146] : memref<1x16x16x128xf32, #tpu.memory_space<vmem>>, vector<1x16x16x128xf32>
    tpu.vector_store %arg9[%c0_143, %c0_144, %c0_145, %c0_146], %103 {strides = array<i32>} : memref<1x16x16x128xf32, #tpu.memory_space<vmem>>, vector<1x16x16x128xf32>,
    return
  }
  func.func @transform_0(%arg0: i32) -> (i32, i32) {
    %c0_i32 = arith.constant 0 : i32
    %c0_i32_0 = arith.constant 0 : i32
    %c0_i32_1 = arith.constant 0 : i32
    return %c0_i32, %c0_i32_0 : i32, i32
  }
  func.func @transform_1(%arg0: i32) -> (i32, i32, i32, i32) {
    %c0_i32 = arith.constant 0 : i32
    %c0_i32_0 = arith.constant 0 : i32
    %c0_i32_1 = arith.constant 0 : i32
    %c0_i32_2 = arith.constant 0 : i32
    return %arg0, %c0_i32, %c0_i32_0, %c0_i32_1 : i32, i32, i32, i32
  }
  func.func @transform_2(%arg0: i32) -> (i32, i32, i32) {
    %c0_i32 = arith.constant 0 : i32
    %c0_i32_0 = arith.constant 0 : i32
    %c0_i32_1 = arith.constant 0 : i32
    %c0_i32_2 = arith.constant 0 : i32
    return %c0_i32, %c0_i32_0, %c0_i32_1 : i32, i32, i32
  }
  func.func @transform_3(%arg0: i32) -> (i32, i32) {
    %c0_i32 = arith.constant 0 : i32
    %c0_i32_0 = arith.constant 0 : i32
    %c0_i32_1 = arith.constant 0 : i32
    return %c0_i32, %c0_i32_0 : i32, i32
  }
  func.func @transform_4(%arg0: i32) -> (i32, i32, i32) {
    %c0_i32 = arith.constant 0 : i32
    %c0_i32_0 = arith.constant 0 : i32
    %c0_i32_1 = arith.constant 0 : i32
    %c0_i32_2 = arith.constant 0 : i32
    return %c0_i32, %c0_i32_0, %c0_i32_1 : i32, i32, i32
  }
  func.func @transform_5(%arg0: i32) -> (i32, i32) {
    %c0_i32 = arith.constant 0 : i32
    %c0_i32_0 = arith.constant 0 : i32
    %c0_i32_1 = arith.constant 0 : i32
    return %c0_i32, %c0_i32_0 : i32, i32
  }
  func.func @transform_6(%arg0: i32) -> (i32, i32, i32) {
    %c0_i32 = arith.constant 0 : i32
    %c0_i32_0 = arith.constant 0 : i32
    %c0_i32_1 = arith.constant 0 : i32
    %c0_i32_2 = arith.constant 0 : i32
    return %c0_i32, %c0_i32_0, %c0_i32_1 : i32, i32, i32
  }
  func.func @transform_7(%arg0: i32) -> (i32, i32) {
    %c0_i32 = arith.constant 0 : i32
    %c0_i32_0 = arith.constant 0 : i32
    %c0_i32_1 = arith.constant 0 : i32
    return %c0_i32, %c0_i32_0 : i32, i32
  }
  func.func @transform_8(%arg0: i32) -> (i32, i32, i32, i32) {
    %c0_i32 = arith.constant 0 : i32
    %c0_i32_0 = arith.constant 0 : i32
    %c0_i32_1 = arith.constant 0 : i32
    %c0_i32_2 = arith.constant 0 : i32
    return %arg0, %c0_i32, %c0_i32_0, %c0_i32_1 : i32, i32, i32, i32
  }
}

</mosaic_0001>

<llo_original>
// kernel: segnet_up3_forward.1
$region0: #{segnet_up3_forward.1}
  #allocation0 [shape = 'u32[]', space=smem, size = 0x4, offset = 0x4, fixed_abs, tag = 'smem constant byte address 0x4 - core index']
  #allocation1 [shape = 'u32[144,128]{1,0:T(1,128)}', space=vmem, size = 0x12000, scoped, tag = 'internal scratch']
  #allocation2 [shape = 'f32[18,18,128]{2,1,0:T(8,128)}', space=vmem, size = 0x36000, scoped, tag = 'scratch operand']
  #allocation3 [shape = 'f32[18,16,384]{2,1,0:T(8,128)}', space=vmem, size = 0x6c000, scoped, tag = 'scratch operand']
  %s0 = inlined_call_operand.vmem [shape: f32[256,64], index: 0, kind: input, shape index: {}]
  %s1 = inlined_call_operand.vmem [shape: f32[2,8,8,128], index: 1, kind: input, shape index: {}]
  %s2 = inlined_call_operand.hbm [shape: f32[3,384,128], index: 2, kind: input, shape index: {}]
  %s3 = inlined_call_operand.vmem [shape: f32[1,128], index: 3, kind: input, shape index: {}]
  %s4 = inlined_call_operand.hbm [shape: f32[3,384,128], index: 4, kind: input, shape index: {}]
  %s5 = inlined_call_operand.vmem [shape: f32[1,128], index: 5, kind: input, shape index: {}]
  %s6 = inlined_call_operand.hbm [shape: f32[3,384,128], index: 6, kind: input, shape index: {}]
  %s7 = inlined_call_operand.vmem [shape: f32[1,128], index: 7, kind: input, shape index: {}]
  %s8 = inlined_call_operand.vmem [shape: f32[2,16,16,128], index: 8, kind: output, shape index: {}]
  %s9 = sld [smem:[#allocation0]]
  $region77: #{segnet_up3_forward.1} parent=0
    _
  %s11 = ssub.s32 1, %s9
  %s12 = scalar_select 0, %s11, %s9
  $region1: #{segnet_up3_forward.1} parent=0
    #allocation4 [shape = 'u8[589824]{0}', space=vmem, size = 0x90000, scoped, tag = 'input window, operand 2, single buffered']
    #allocation5 [shape = 's32[2]{0}', space=sflag, size = 0x8, scoped, tag = 'scoped memory for segnet_up3_forward.1']
    #allocation6 [shape = 'u8[589824]{0}', space=vmem, size = 0x90000, scoped, tag = 'input window, operand 4, single buffered']
    #allocation7 [shape = 's32[1]{0}', space=sflag, size = 0x4, scoped, tag = 'scoped memory for segnet_up3_forward.1']
    #allocation8 [shape = 'u8[589824]{0}', space=vmem, size = 0x90000, scoped, tag = 'input window, operand 6, single buffered']
    %13 = vsyncpa [#allocation5], 0
    %14 = vsyncpa [#allocation7], 0
    loop: start=0, step=1, limit=4
    $region2: #{segnet_up3_forward.1} parent=1 // loop_pre_header
      _
    $region3: #{segnet_up3_forward.1} parent=1 // loop_header
      %s16 = sphi 0, %s20
      %p17 = scmp.ge.s32.totalorder %s16, 4
      %s24 = sphi 0, %s24
      %s26 = sphi 0, %s24
      %s27 = sphi 0, %s26
      %s41 = sphi 0, %s27
      %s47 = sphi 0, %s49
      %s50 = sphi 0, %s47
      %s51 = sphi 0, %s50
      %s67 = sphi 0, %s51
      %s71 = sphi 0, %s71
      %s73 = sphi 0, %s71
      %s74 = sphi 0, %s73
      %s88 = sphi 0, %s74
      %s92 = sphi 0, %s92
      %s94 = sphi 0, %s92
      %s95 = sphi 0, %s94
      %s109 = sphi 0, %s95
      %s113 = sphi 0, %s113
      %s115 = sphi 0, %s113
      %s116 = sphi 0, %s115
      %s130 = sphi 0, %s116
      %s134 = sphi 0, %s134
      %s136 = sphi 0, %s134
      %s137 = sphi 0, %s136
      %s151 = sphi 0, %s137
      %s155 = sphi 0, %s155
      %s157 = sphi 0, %s155
      %s158 = sphi 0, %s157
      %s172 = sphi 0, %s158
      %s176 = sphi 0, %s176
      %s178 = sphi 0, %s176
      %s179 = sphi 0, %s178
      %s193 = sphi 0, %s179
      %s199 = sphi 0, %s201
      %s202 = sphi 0, %s199
      %s203 = sphi 0, %s202
      %s219 = sphi 0, %s203
    $region4: #{segnet_up3_forward.1} parent=1 // loop_header_branch
      %19 = sbr.rel (%p17) target = $region8
    $region5: #{segnet_up3_forward.1} parent=1 // loop_body
      %s21 = ssub.s32 %s16, 1
      %s22 = ssub.s32 %s16, 2
      %s23 = sadd.s32 %s16, 1
      %s25 = sadd.s32 %s24, 1
      %p28 = scmp.eq.s32.totalorder %s16, 1
      %p29 = scmp.ne.s32.totalorder %s24, %s26
      %p30 = scmp.eq.s32.totalorder %s16, 0
      %p31 = por %p29, %p30
      %p32 = scmp.ne.s32.totalorder %s24, %s26
      %p33 = scmp.eq.s32.totalorder %s21, 1
      %p34 = por %p32, %p33
      %p35 = scmp.ne.s32.totalorder %s26, %s27
      %p36 = scmp.eq.s32.totalorder %s21, 0
      %p37 = por %p35, %p36
      %p38 = scmp.ne.s32.totalorder %s26, %s27
      %p39 = scmp.eq.s32.totalorder %s22, 1
      %p40 = por %p38, %p39
      %p42 = scmp.ne.s32.totalorder %s27, %s41
      %p43 = scmp.eq.s32.totalorder %s22, 0
      %p44 = por %p42, %p43
      %s45 = ssub.s32 %s16, %s23
      %p46 = scmp.eq.s32.totalorder %s45, 0
      %s48 = sadd.s32 %s47, 1
      %s49 = scalar_select %p46, %s47, %s48
      %p52 = pneg %p46
      %p53 = scmp.eq.s32.totalorder %s16, 1
      %p54 = por %p52, %p53
      %p55 = scmp.ne.s32.totalorder %s47, %s50
      %p56 = scmp.eq.s32.totalorder %s16, 0
      %p57 = por %p55, %p56
      %p58 = scmp.ne.s32.totalorder %s47, %s50
      %p59 = scmp.eq.s32.totalorder %s21, 1
      %p60 = por %p58, %p59
      %p61 = scmp.ne.s32.totalorder %s50, %s51
      %p62 = scmp.eq.s32.totalorder %s21, 0
      %p63 = por %p61, %p62
      %p64 = scmp.ne.s32.totalorder %s50, %s51
      %p65 = scmp.eq.s32.totalorder %s22, 1
      %p66 = por %p64, %p65
      %p68 = scmp.ne.s32.totalorder %s51, %s67
      %p69 = scmp.eq.s32.totalorder %s22, 0
      %p70 = por %p68, %p69
      %s72 = sadd.s32 %s71, 1
      %p75 = scmp.eq.s32.totalorder %s16, 1
      %p76 = scmp.ne.s32.totalorder %s71, %s73
      %p77 = scmp.eq.s32.totalorder %s16, 0
      %p78 = por %p76, %p77
      %p79 = scmp.ne.s32.totalorder %s71, %s73
      %p80 = scmp.eq.s32.totalorder %s21, 1
      %p81 = por %p79, %p80
      %p82 = scmp.ne.s32.totalorder %s73, %s74
      %p83 = scmp.eq.s32.totalorder %s21, 0
      %p84 = por %p82, %p83
      %p85 = scmp.ne.s32.totalorder %s73, %s74
      %p86 = scmp.eq.s32.totalorder %s22, 1
      %p87 = por %p85, %p86
      %p89 = scmp.ne.s32.totalorder %s74, %s88
      %p90 = scmp.eq.s32.totalorder %s22, 0
      %p91 = por %p89, %p90
      %s93 = sadd.s32 %s92, 1
      %p96 = scmp.eq.s32.totalorder %s16, 1
      %p97 = scmp.ne.s32.totalorder %s92, %s94
      %p98 = scmp.eq.s32.totalorder %s16, 0
      %p99 = por %p97, %p98
      %p100 = scmp.ne.s32.totalorder %s92, %s94
      %p101 = scmp.eq.s32.totalorder %s21, 1
      %p102 = por %p100, %p101
      %p103 = scmp.ne.s32.totalorder %s94, %s95
      %p104 = scmp.eq.s32.totalorder %s21, 0
      %p105 = por %p103, %p104
      %p106 = scmp.ne.s32.totalorder %s94, %s95
      %p107 = scmp.eq.s32.totalorder %s22, 1
      %p108 = por %p106, %p107
      %p110 = scmp.ne.s32.totalorder %s95, %s109
      %p111 = scmp.eq.s32.totalorder %s22, 0
      %p112 = por %p110, %p111
      %s114 = sadd.s32 %s113, 1
      %p117 = scmp.eq.s32.totalorder %s16, 1
      %p118 = scmp.ne.s32.totalorder %s113, %s115
      %p119 = scmp.eq.s32.totalorder %s16, 0
      %p120 = por %p118, %p119
      %p121 = scmp.ne.s32.totalorder %s113, %s115
      %p122 = scmp.eq.s32.totalorder %s21, 1
      %p123 = por %p121, %p122
      %p124 = scmp.ne.s32.totalorder %s115, %s116
      %p125 = scmp.eq.s32.totalorder %s21, 0
      %p126 = por %p124, %p125
      %p127 = scmp.ne.s32.totalorder %s115, %s116
      %p128 = scmp.eq.s32.totalorder %s22, 1
      %p129 = por %p127, %p128
      %p131 = scmp.ne.s32.totalorder %s116, %s130
      %p132 = scmp.eq.s32.totalorder %s22, 0
      %p133 = por %p131, %p132
      %s135 = sadd.s32 %s134, 1
      %p138 = scmp.eq.s32.totalorder %s16, 1
      %p139 = scmp.ne.s32.totalorder %s134, %s136
      %p140 = scmp.eq.s32.totalorder %s16, 0
      %p141 = por %p139, %p140
      %p142 = scmp.ne.s32.totalorder %s134, %s136
      %p143 = scmp.eq.s32.totalorder %s21, 1
      %p144 = por %p142, %p143
      %p145 = scmp.ne.s32.totalorder %s136, %s137
      %p146 = scmp.eq.s32.totalorder %s21, 0
      %p147 = por %p145, %p146
      %p148 = scmp.ne.s32.totalorder %s136, %s137
      %p149 = scmp.eq.s32.totalorder %s22, 1
      %p150 = por %p148, %p149
      %p152 = scmp.ne.s32.totalorder %s137, %s151
      %p153 = scmp.eq.s32.totalorder %s22, 0
      %p154 = por %p152, %p153
      %s156 = sadd.s32 %s155, 1
      %p159 = scmp.eq.s32.totalorder %s16, 1
      %p160 = scmp.ne.s32.totalorder %s155, %s157
      %p161 = scmp.eq.s32.totalorder %s16, 0
      %p162 = por %p160, %p161
      %p163 = scmp.ne.s32.totalorder %s155, %s157
      %p164 = scmp.eq.s32.totalorder %s21, 1
      %p165 = por %p163, %p164
      %p166 = scmp.ne.s32.totalorder %s157, %s158
      %p167 = scmp.eq.s32.totalorder %s21, 0
      %p168 = por %p166, %p167
      %p169 = scmp.ne.s32.totalorder %s157, %s158
      %p170 = scmp.eq.s32.totalorder %s22, 1
      %p171 = por %p169, %p170
      %p173 = scmp.ne.s32.totalorder %s158, %s172
      %p174 = scmp.eq.s32.totalorder %s22, 0
      %p175 = por %p173, %p174
      %s177 = sadd.s32 %s176, 1
      %p180 = scmp.eq.s32.totalorder %s16, 1
      %p181 = scmp.ne.s32.totalorder %s176, %s178
      %p182 = scmp.eq.s32.totalorder %s16, 0
      %p183 = por %p181, %p182
      %p184 = scmp.ne.s32.totalorder %s176, %s178
      %p185 = scmp.eq.s32.totalorder %s21, 1
      %p186 = por %p184, %p185
      %p187 = scmp.ne.s32.totalorder %s178, %s179
      %p188 = scmp.eq.s32.totalorder %s21, 0
      %p189 = por %p187, %p188
      %p190 = scmp.ne.s32.totalorder %s178, %s179
      %p191 = scmp.eq.s32.totalorder %s22, 1
      %p192 = por %p190, %p191
      %p194 = scmp.ne.s32.totalorder %s179, %s193
      %p195 = scmp.eq.s32.totalorder %s22, 0
      %p196 = por %p194, %p195
      %s197 = ssub.s32 %s16, %s23
      %p198 = scmp.eq.s32.totalorder %s197, 0
      %s200 = sadd.s32 %s199, 1
      %s201 = scalar_select %p198, %s199, %s200
      %p204 = pneg %p198
      %p205 = scmp.eq.s32.totalorder %s16, 1
      %p206 = por %p204, %p205
      %p207 = scmp.ne.s32.totalorder %s199, %s202
      %p208 = scmp.eq.s32.totalorder %s16, 0
      %p209 = por %p207, %p208
      %p210 = scmp.ne.s32.totalorder %s199, %s202
      %p211 = scmp.eq.s32.totalorder %s21, 1
      %p212 = por %p210, %p211
      %p213 = scmp.ne.s32.totalorder %s202, %s203
      %p214 = scmp.eq.s32.totalorder %s21, 0
      %p215 = por %p213, %p214
      %p216 = scmp.ne.s32.totalorder %s202, %s203
      %p217 = scmp.eq.s32.totalorder %s22, 1
      %p218 = por %p216, %p217
      %p220 = scmp.ne.s32.totalorder %s203, %s219
      %p221 = scmp.eq.s32.totalorder %s22, 0
      %p222 = por %p220, %p221
      %p223 = scmp.le.s32.totalorder 1, %s16
      %p224 = scmp.lt.s32.totalorder %s16, 3
      %p225 = pnand %p223, %p224
      %p226 = pneg %p225
      // Predicated region
      $region9: #{segnet_up3_forward.1} parent=5 // pred_check
        _
      $region10: #{segnet_up3_forward.1} parent=5 // pred_check_branch
        %228 = sbr.rel (%p225) target = $region12
      $region11: #{segnet_up3_forward.1} parent=5 // pred_region
        %s229 = ssub.s32 %s16, 1
        // Predicated region
        $region13: #{segnet_up3_forward.1} parent=11 // pred_check
          %p230 = pneg %p37
        $region14: #{segnet_up3_forward.1} parent=11 // pred_check_branch
          %232 = sbr.rel (%p230) target = $region16
        $region15: #{segnet_up3_forward.1} parent=11 // pred_region
          _
        $region16: #{segnet_up3_forward.1} parent=11 // pred_fallthru
          _
        // Predicated region
        $region17: #{segnet_up3_forward.1} parent=11 // pred_check
          %p233 = pneg %p84
        $region18: #{segnet_up3_forward.1} parent=11 // pred_check_branch
          %235 = sbr.rel (%p233) target = $region20
        $region19: #{segnet_up3_forward.1} parent=11 // pred_region
          %s237 = ssub.s32 18432, 18432
          %238 = vsyncadd [#allocation5], %s237
          %s239 = sshll.u32 [#allocation4], 4
          %s240 = int_to_ptr.vmem [resolvable:$true] %s239
          %245 = dma.hbm_to_vmem [thread:$0]  %s2, 18432, %s240, [#allocation5], 128, 128, 8
        $region20: #{segnet_up3_forward.1} parent=11 // pred_fallthru
          _
        // Predicated region
        $region21: #{segnet_up3_forward.1} parent=11 // pred_check
          %p246 = pneg %p105
        $region22: #{segnet_up3_forward.1} parent=11 // pred_check_branch
          %248 = sbr.rel (%p246) target = $region24
        $region23: #{segnet_up3_forward.1} parent=11 // pred_region
          _
        $region24: #{segnet_up3_forward.1} parent=11 // pred_fallthru
          _
        // Predicated region
        $region25: #{segnet_up3_forward.1} parent=11 // pred_check
          %p249 = pneg %p126
        $region26: #{segnet_up3_forward.1} parent=11 // pred_check_branch
          %251 = sbr.rel (%p249) target = $region28
        $region27: #{segnet_up3_forward.1} parent=11 // pred_region
          %s253 = ssub.s32 18432, 18432
          %254 = vsyncadd [#allocation7], %s253
          %s255 = sshll.u32 [#allocation6], 4
          %s256 = int_to_ptr.vmem [resolvable:$true] %s255
          %261 = dma.hbm_to_vmem [thread:$0]  %s4, 18432, %s256, [#allocation7], 128, 128, 8
        $region28: #{segnet_up3_forward.1} parent=11 // pred_fallthru
          _
        // Predicated region
        $region29: #{segnet_up3_forward.1} parent=11 // pred_check
          %p262 = pneg %p147
        $region30: #{segnet_up3_forward.1} parent=11 // pred_check_branch
          %264 = sbr.rel (%p262) target = $region32
        $region31: #{segnet_up3_forward.1} parent=11 // pred_region
          _
        $region32: #{segnet_up3_forward.1} parent=11 // pred_fallthru
          _
        // Predicated region
        $region33: #{segnet_up3_forward.1} parent=11 // pred_check
          %p265 = pneg %p168
        $region34: #{segnet_up3_forward.1} parent=11 // pred_check_branch
          %267 = sbr.rel (%p265) target = $region36
        $region35: #{segnet_up3_forward.1} parent=11 // pred_region
          %s269 = ssub.s32 18432, 18432
          %270 = vsyncadd [#allocation7], %s269
          %s271 = sshll.u32 [#allocation8], 4
          %s272 = int_to_ptr.vmem [resolvable:$true] %s271
          %277 = dma.hbm_to_vmem [thread:$0]  %s6, 18432, %s272, [#allocation7], 128, 128, 8
        $region36: #{segnet_up3_forward.1} parent=11 // pred_fallthru
          _
        // Predicated region
        $region37: #{segnet_up3_forward.1} parent=11 // pred_check
          %p278 = pneg %p189
        $region38: #{segnet_up3_forward.1} parent=11 // pred_check_branch
          %280 = sbr.rel (%p278) target = $region40
        $region39: #{segnet_up3_forward.1} parent=11 // pred_region
          _
        $region40: #{segnet_up3_forward.1} parent=11 // pred_fallthru
          _
      $region12: #{segnet_up3_forward.1} parent=5 // pred_fallthru
        _
      %p281 = scmp.lt.s32.totalorder %s16, 2
      // Predicated region
      $region41: #{segnet_up3_forward.1} parent=5 // pred_check
        %p282 = pneg %p281
      $region42: #{segnet_up3_forward.1} parent=5 // pred_check_branch
        %284 = sbr.rel (%p282) target = $region44
      $region43: #{segnet_up3_forward.1} parent=5 // pred_region
        // Predicated region
        $region45: #{segnet_up3_forward.1} parent=43 // pred_check
          %p285 = pneg %p57
        $region46: #{segnet_up3_forward.1} parent=43 // pred_check_branch
          %287 = sbr.rel (%p285) target = $region48
        $region47: #{segnet_up3_forward.1} parent=43 // pred_region
          %p288 = scmp.lt.s32.totalorder %s16, 1
          %s289 = scalar_select %p288, %s16, 1
          %s290 = smul.addr %s289, 8
          %s291 = smul.addr %s290, 8
          %s292 = scalar_lea.vmem %s1, %s291
        $region48: #{segnet_up3_forward.1} parent=43 // pred_fallthru
          _
      $region44: #{segnet_up3_forward.1} parent=5 // pred_fallthru
        _
      %p293 = scmp.le.s32.totalorder 1, %s16
      %p294 = scmp.lt.s32.totalorder %s16, 3
      %p295 = pnand %p293, %p294
      %p296 = pneg %p295
      // Predicated region
      $region49: #{segnet_up3_forward.1} parent=5 // pred_check
        _
      $region50: #{segnet_up3_forward.1} parent=5 // pred_check_branch
        %298 = sbr.rel (%p295) target = $region52
      $region51: #{segnet_up3_forward.1} parent=5 // pred_region
        %s299 = ssub.s32 %s16, 1
        // Predicated region
        $region53: #{segnet_up3_forward.1} parent=51 // pred_check
          %p300 = pneg %p84
        $region54: #{segnet_up3_forward.1} parent=51 // pred_check_branch
          %302 = sbr.rel (%p300) target = $region56
        $region55: #{segnet_up3_forward.1} parent=51 // pred_region
          %303 = dma.done [#allocation5], 18432
        $region56: #{segnet_up3_forward.1} parent=51 // pred_fallthru
          _
        // Predicated region
        $region57: #{segnet_up3_forward.1} parent=51 // pred_check
          %p304 = pneg %p126
        $region58: #{segnet_up3_forward.1} parent=51 // pred_check_branch
          %306 = sbr.rel (%p304) target = $region60
        $region59: #{segnet_up3_forward.1} parent=51 // pred_region
          %307 = dma.done [#allocation7], 18432
        $region60: #{segnet_up3_forward.1} parent=51 // pred_fallthru
          _
        // Predicated region
        $region61: #{segnet_up3_forward.1} parent=51 // pred_check
          %p308 = pneg %p168
        $region62: #{segnet_up3_forward.1} parent=51 // pred_check_branch
          %310 = sbr.rel (%p308) target = $region64
        $region63: #{segnet_up3_forward.1} parent=51 // pred_region
          %311 = dma.done [#allocation7], 18432
        $region64: #{segnet_up3_forward.1} parent=51 // pred_fallthru
          _
        %p312 = pneg %p37
        %p313 = pneg %p34
        %p314 = scmp.lt.s32.totalorder %s21, 1
        %s315 = scalar_select %p314, %s21, 1
        %s316 = smul.addr %s315, 8
        %s317 = smul.addr %s316, 8
        %s318 = scalar_lea.vmem %s1, %s317
        %p319 = pneg %p63
        %p320 = pneg %p60
        %p321 = pneg %p84
        %p322 = pneg %p81
        %p323 = pneg %p105
        %p324 = pneg %p102
        %p325 = pneg %p126
        %p326 = pneg %p123
        %p327 = pneg %p147
        %p328 = pneg %p144
        %p329 = pneg %p168
        %p330 = pneg %p165
        %p331 = pneg %p189
        %p332 = pneg %p186
        %p333 = pneg %p215
        %p334 = pneg %p212
        %p335 = scmp.lt.s32.totalorder %s21, 1
        %s336 = scalar_select %p335, %s21, 1
        %s337 = smul.addr %s336, 32
        %s338 = smul.addr %s337, 8
        %s339 = scalar_lea.vmem %s8, %s338
        %p340 = scmp.lt.s32.totalorder %s21, 1
        %s341 = scalar_select %p340, %s21, 1
        %s342 = smul.addr %s341, 8
        %s343 = smul.addr %s342, 8
        %s344 = scalar_lea.vmem %s1, %s343
        %p345 = scmp.lt.s32.totalorder %s21, 1
        %s346 = scalar_select %p345, %s21, 1
        %s347 = smul.addr %s346, 32
        %s348 = smul.addr %s347, 8
        %s349 = scalar_lea.vmem %s8, %s348
        %350 = vst [vmem:[#allocation2] sm:$0xff] 0.0
        %351 = vst [vmem:[#allocation2 + $0x8] sm:$0xff] 0.0
        %352 = vst [vmem:[#allocation2 + $0x10] sm:$0x3] 0.0
        %353 = vst [vmem:[#allocation2 + $0x18] sm:$0xff] 0.0
        %354 = vst [vmem:[#allocation2 + $0x20] sm:$0xff] 0.0
        %355 = vst [vmem:[#allocation2 + $0x28] sm:$0x3] 0.0
        %356 = vst [vmem:[#allocation2 + $0x30] sm:$0xff] 0.0
        %357 = vst [vmem:[#allocation2 + $0x38] sm:$0xff] 0.0
        %358 = vst [vmem:[#allocation2 + $0x40] sm:$0x3] 0.0
        %359 = vst [vmem:[#allocation2 + $0x48] sm:$0xff] 0.0
        %360 = vst [vmem:[#allocation2 + $0x50] sm:$0xff] 0.0
        %361 = vst [vmem:[#allocation2 + $0x58] sm:$0x3] 0.0
        %362 = vst [vmem:[#allocation2 + $0x60] sm:$0xff] 0.0
        %363 = vst [vmem:[#allocation2 + $0x68] sm:$0xff] 0.0
        %364 = vst [vmem:[#allocation2 + $0x70] sm:$0x3] 0.0
        %365 = vst [vmem:[#allocation2 + $0x78] sm:$0xff] 0.0
        %366 = vst [vmem:[#allocation2 + $0x80] sm:$0xff] 0.0
        %367 = vst [vmem:[#allocation2 + $0x88] sm:$0x3] 0.0
        %368 = vst [vmem:[#allocation2 + $0x90] sm:$0xff] 0.0
        %369 = vst [vmem:[#allocation2 + $0x98] sm:$0xff] 0.0
        %370 = vst [vmem:[#allocation2 + $0xa0] sm:$0x3] 0.0
        %371 = vst [vmem:[#allocation2 + $0xa8] sm:$0xff] 0.0
        %372 = vst [vmem:[#allocation2 + $0xb0] sm:$0xff] 0.0
        %373 = vst [vmem:[#allocation2 + $0xb8] sm:$0x3] 0.0
        %374 = vst [vmem:[#allocation2 + $0xc0] sm:$0xff] 0.0
        %375 = vst [vmem:[#allocation2 + $0xc8] sm:$0xff] 0.0
        %376 = vst [vmem:[#allocation2 + $0xd0] sm:$0x3] 0.0
        %377 = vst [vmem:[#allocation2 + $0xd8] sm:$0xff] 0.0
        %378 = vst [vmem:[#allocation2 + $0xe0] sm:$0xff] 0.0
        %379 = vst [vmem:[#allocation2 + $0xe8] sm:$0x3] 0.0
        %380 = vst [vmem:[#allocation2 + $0xf0] sm:$0xff] 0.0
        %381 = vst [vmem:[#allocation2 + $0xf8] sm:$0xff] 0.0
        %382 = vst [vmem:[#allocation2 + $0x100] sm:$0x3] 0.0
        %383 = vst [vmem:[#allocation2 + $0x108] sm:$0xff] 0.0
        %384 = vst [vmem:[#allocation2 + $0x110] sm:$0xff] 0.0
        %385 = vst [vmem:[#allocation2 + $0x118] sm:$0x3] 0.0
        %386 = vst [vmem:[#allocation2 + $0x120] sm:$0xff] 0.0
        %387 = vst [vmem:[#allocation2 + $0x128] sm:$0xff] 0.0
        %388 = vst [vmem:[#allocation2 + $0x130] sm:$0x3] 0.0
        %389 = vst [vmem:[#allocation2 + $0x138] sm:$0xff] 0.0
        %390 = vst [vmem:[#allocation2 + $0x140] sm:$0xff] 0.0
        %391 = vst [vmem:[#allocation2 + $0x148] sm:$0x3] 0.0
        %392 = vst [vmem:[#allocation2 + $0x150] sm:$0xff] 0.0
        %393 = vst [vmem:[#allocation2 + $0x158] sm:$0xff] 0.0
        %394 = vst [vmem:[#allocation2 + $0x160] sm:$0x3] 0.0
        %395 = vst [vmem:[#allocation2 + $0x168] sm:$0xff] 0.0
        %396 = vst [vmem:[#allocation2 + $0x170] sm:$0xff] 0.0
        %397 = vst [vmem:[#allocation2 + $0x178] sm:$0x3] 0.0
        %398 = vst [vmem:[#allocation2 + $0x180] sm:$0xff] 0.0
        %399 = vst [vmem:[#allocation2 + $0x188] sm:$0xff] 0.0
        %400 = vst [vmem:[#allocation2 + $0x190] sm:$0x3] 0.0
        %401 = vst [vmem:[#allocation2 + $0x198] sm:$0xff] 0.0
        %402 = vst [vmem:[#allocation2 + $0x1a0] sm:$0xff] 0.0
        %403 = vst [vmem:[#allocation2 + $0x1a8] sm:$0x3] 0.0
        %v404 = vld [vmem:[%s344] sm:$0xff]
        %v405 = vld [vmem:[%s344 + $0x8] sm:$0xff]
        %v406 = vld [vmem:[%s344 + $0x10] sm:$0xff]
        %v407 = vld [vmem:[%s344 + $0x18] sm:$0xff]
        %v408 = vld [vmem:[%s344 + $0x20] sm:$0xff]
        %v409 = vld [vmem:[%s344 + $0x28] sm:$0xff]
        %v410 = vld [vmem:[%s344 + $0x30] sm:$0xff]
        %v411 = vld [vmem:[%s344 + $0x38] sm:$0xff]
        %v412 = vld [vmem:[%s0] sm:$0xff]
        %v413 = vld [vmem:[%s0 + $0x8] sm:$0xff]
        %v414 = vld [vmem:[%s0 + $0x10] sm:$0xff]
        %v415 = vld [vmem:[%s0 + $0x18] sm:$0xff]
        %v416 = vld [vmem:[%s0 + $0x20] sm:$0xff]
        %v417 = vld [vmem:[%s0 + $0x28] sm:$0xff]
        %v418 = vld [vmem:[%s0 + $0x30] sm:$0xff]
        %v419 = vld [vmem:[%s0 + $0x38] sm:$0xff]
        %v420 = vld [vmem:[%s0 + $0x40] sm:$0xff]
        %v421 = vld [vmem:[%s0 + $0x48] sm:$0xff]
        %v422 = vld [vmem:[%s0 + $0x50] sm:$0xff]
        %v423 = vld [vmem:[%s0 + $0x58] sm:$0xff]
        %v424 = vld [vmem:[%s0 + $0x60] sm:$0xff]
        %v425 = vld [vmem:[%s0 + $0x68] sm:$0xff]
        %v426 = vld [vmem:[%s0 + $0x70] sm:$0xff]
        %v427 = vld [vmem:[%s0 + $0x78] sm:$0xff]
        %v428 = vld [vmem:[%s0 + $0x80] sm:$0xff]
        %v429 = vld [vmem:[%s0 + $0x88] sm:$0xff]
        %v430 = vld [vmem:[%s0 + $0x90] sm:$0xff]
        %v431 = vld [vmem:[%s0 + $0x98] sm:$0xff]
        %v432 = vld [vmem:[%s0 + $0xa0] sm:$0xff]
        %v433 = vld [vmem:[%s0 + $0xa8] sm:$0xff]
        %v434 = vld [vmem:[%s0 + $0xb0] sm:$0xff]
        %v435 = vld [vmem:[%s0 + $0xb8] sm:$0xff]
        %v436 = vld [vmem:[%s0 + $0xc0] sm:$0xff]
        %v437 = vld [vmem:[%s0 + $0xc8] sm:$0xff]
        %v438 = vld [vmem:[%s0 + $0xd0] sm:$0xff]
        %v439 = vld [vmem:[%s0 + $0xd8] sm:$0xff]
        %v440 = vld [vmem:[%s0 + $0xe0] sm:$0xff]
        %v441 = vld [vmem:[%s0 + $0xe8] sm:$0xff]
        %v442 = vld [vmem:[%s0 + $0xf0] sm:$0xff]
        %v443 = vld [vmem:[%s0 + $0xf8] sm:$0xff]
        %vm444 = vcmask 523264
        %v446 = vsel %vm444, %v412, 0
        %v449 = vsel %vm444, %v413, 0
        %v452 = vsel %vm444, %v414, 0
        %v455 = vsel %vm444, %v415, 0
        %v458 = vsel %vm444, %v416, 0
        %v461 = vsel %vm444, %v417, 0
        %v464 = vsel %vm444, %v418, 0
        %v467 = vsel %vm444, %v419, 0
        %v470 = vsel %vm444, %v420, 0
        %v473 = vsel %vm444, %v421, 0
        %v476 = vsel %vm444, %v422, 0
        %v479 = vsel %vm444, %v423, 0
        %v482 = vsel %vm444, %v424, 0
        %v485 = vsel %vm444, %v425, 0
        %v488 = vsel %vm444, %v426, 0
        %v491 = vsel %vm444, %v427, 0
        %v494 = vsel %vm444, %v428, 0
        %v497 = vsel %vm444, %v429, 0
        %v500 = vsel %vm444, %v430, 0
        %v503 = vsel %vm444, %v431, 0
        %v506 = vsel %vm444, %v432, 0
        %v509 = vsel %vm444, %v433, 0
        %v512 = vsel %vm444, %v434, 0
        %v515 = vsel %vm444, %v435, 0
        %v518 = vsel %vm444, %v436, 0
        %v521 = vsel %vm444, %v437, 0
        %v524 = vsel %vm444, %v438, 0
        %v527 = vsel %vm444, %v439, 0
        %v530 = vsel %vm444, %v440, 0
        %v533 = vsel %vm444, %v441, 0
        %v536 = vsel %vm444, %v442, 0
        %v539 = vsel %vm444, %v443, 0
        %541 = vmatprep.subr.mxu0 0.0
        %542 = vmatpush1.msra.mxu0 %v404
        %543 = vmatprep.subr.mxu0 0.0
        %544 = vmatpush1.msra.mxu0 %v405
        %545 = vmatprep.subr.mxu0 0.0
        %546 = vmatpush1.msra.mxu0 %v406
        %547 = vmatprep.subr.mxu0 0.0
        %548 = vmatpush1.msra.mxu0 %v407
        %549 = vmatprep.subr.mxu0 0.0
        %550 = vmatpush1.msra.mxu0 %v408
        %551 = vmatprep.subr.mxu0 0.0
        %552 = vmatpush1.msra.mxu0 %v409
        %553 = vmatprep.subr.mxu0 0.0
        %554 = vmatpush1.msra.mxu0 %v410
        %555 = vmatprep.subr.mxu0 0.0
        %556 = vmatpush1.msra.mxu0 %v411
        %557 = vmatprep.subr.mxu0 0.0
        %558 = vmatpush1.msra.mxu0 0.0
        %559 = vmatprep.subr.mxu0 0.0
        %560 = vmatpush1.msra.mxu0 0.0
        %561 = vmatprep.subr.mxu0 0.0
        %562 = vmatpush1.msra.mxu0 0.0
        %563 = vmatprep.subr.mxu0 0.0
        %564 = vmatpush1.msra.mxu0 0.0
        %565 = vmatprep.subr.mxu0 0.0
        %566 = vmatpush1.msra.mxu0 0.0
        %567 = vmatprep.subr.mxu0 0.0
        %568 = vmatpush1.msra.mxu0 0.0
        %569 = vmatprep.subr.mxu0 0.0
        %570 = vmatpush1.msra.mxu0 0.0
        %571 = vmatprep.subr.mxu0 0.0
        %572 = vmatpush1.msra.mxu0 0.0
        %573 = vmatprep.subr.mxu0 0.0
        %574 = vmatpush1.msra.mxu0 0.0
        %575 = vmatprep.subr.mxu0 0.0
        %576 = vmatpush1.msra.mxu0 0.0
        %577 = vmatprep.subr.mxu0 0.0
        %578 = vmatpush1.msra.mxu0 0.0
        %579 = vmatprep.subr.mxu0 0.0
        %580 = vmatpush1.msra.mxu0 0.0
        %581 = vmatprep.subr.mxu0 0.0
        %582 = vmatpush1.msra.mxu0 0.0
        %583 = vmatprep.subr.mxu0 0.0
        %584 = vmatpush1.msra.mxu0 0.0
        %585 = vmatprep.subr.mxu0 0.0
        %586 = vmatpush1.msra.mxu0 0.0
        %587 = vmatprep.subr.mxu0 0.0
        %588 = vmatpush1.msra.mxu0 0.0
        %589 = vmatprep.subr.mxu0 0.0
        %590 = vmatpush1.msra.mxu0 0.0
        %591 = vmatprep.subr.mxu0 0.0
        %592 = vmatpush1.msra.mxu0 0.0
        %593 = vmatprep.subr.mxu0 0.0
        %594 = vmatpush1.msra.mxu0 0.0
        %595 = vmatprep.subr.mxu0 0.0
        %596 = vmatpush1.msra.mxu0 0.0
        %597 = vmatprep.subr.mxu0 0.0
        %598 = vmatpush1.msra.mxu0 0.0
        %599 = vmatprep.subr.mxu0 0.0
        %600 = vmatpush1.msra.mxu0 0.0
        %601 = vmatprep.subr.mxu0 0.0
        %602 = vmatpush1.msra.mxu0 0.0
        %603 = vmatprep.subr.mxu0 0.0
        %604 = vmatpush1.msra.mxu0 0.0
        %605 = vmatprep.mubr.f32.mxu0 0.0
        %606 = vmatmul.mubr.f32.gmra.mrb[0].mxu0 %v446
        %v607 = vpop.f32.mrb[0].mxu0
        %v608 = vadd.f32 0.0, %v607
        %v609 = vpop.f32.mrb[0].mxu0
        %610 = vmatprep.mubr.f32.mxu0 0.0
        %611 = vmatmul.mubr.f32.gmra.mrb[0].mxu0 %v449
        %v612 = vpop.f32.mrb[0].mxu0
        %v613 = vadd.f32 0.0, %v612
        %v614 = vpop.f32.mrb[0].mxu0
        %615 = vmatprep.mubr.f32.mxu0 0.0
        %616 = vmatmul.mubr.f32.gmra.mrb[0].mxu0 %v452
        %v617 = vpop.f32.mrb[0].mxu0
        %v618 = vadd.f32 0.0, %v617
        %v619 = vpop.f32.mrb[0].mxu0
        %620 = vmatprep.mubr.f32.mxu0 0.0
        %621 = vmatmul.mubr.f32.gmra.mrb[0].mxu0 %v455
        %v622 = vpop.f32.mrb[0].mxu0
        %v623 = vadd.f32 0.0, %v622
        %v624 = vpop.f32.mrb[0].mxu0
        %625 = vmatprep.mubr.f32.mxu0 0.0
        %626 = vmatmul.mubr.f32.gmra.mrb[0].mxu0 %v458
        %v627 = vpop.f32.mrb[0].mxu0
        %v628 = vadd.f32 0.0, %v627
        %v629 = vpop.f32.mrb[0].mxu0
        %630 = vmatprep.mubr.f32.mxu0 0.0
        %631 = vmatmul.mubr.f32.gmra.mrb[0].mxu0 %v461
        %v632 = vpop.f32.mrb[0].mxu0
        %v633 = vadd.f32 0.0, %v632
        %v634 = vpop.f32.mrb[0].mxu0
        %635 = vmatprep.mubr.f32.mxu0 0.0
        %636 = vmatmul.mubr.f32.gmra.mrb[0].mxu0 %v464
        %v637 = vpop.f32.mrb[0].mxu0
        %v638 = vadd.f32 0.0, %v637
        %v639 = vpop.f32.mrb[0].mxu0
        %640 = vmatprep.mubr.f32.mxu0 0.0
        %641 = vmatmul.mubr.f32.gmra.mrb[0].mxu0 %v467
        %v642 = vpop.f32.mrb[0].mxu0
        %v643 = vadd.f32 0.0, %v642
        %v644 = vpop.f32.mrb[0].mxu0
        %645 = vmatprep.mubr.f32.mxu0 0.0
        %646 = vmatmul.mubr.f32.gmra.mrb[0].mxu0 %v470
        %v647 = vpop.f32.mrb[0].mxu0
        %v648 = vadd.f32 0.0, %v647
        %v649 = vpop.f32.mrb[0].mxu0
        %650 = vmatprep.mubr.f32.mxu0 0.0
        %651 = vmatmul.mubr.f32.gmra.mrb[0].mxu0 %v473
        %v652 = vpop.f32.mrb[0].mxu0
        %v653 = vadd.f32 0.0, %v652
        %v654 = vpop.f32.mrb[0].mxu0
        %655 = vmatprep.mubr.f32.mxu0 0.0
        %656 = vmatmul.mubr.f32.gmra.mrb[0].mxu0 %v476
        %v657 = vpop.f32.mrb[0].mxu0
        %v658 = vadd.f32 0.0, %v657
        %v659 = vpop.f32.mrb[0].mxu0
        %660 = vmatprep.mubr.f32.mxu0 0.0
        %661 = vmatmul.mubr.f32.gmra.mrb[0].mxu0 %v479
        %v662 = vpop.f32.mrb[0].mxu0
        %v663 = vadd.f32 0.0, %v662
        %v664 = vpop.f32.mrb[0].mxu0
        %665 = vmatprep.mubr.f32.mxu0 0.0
        %666 = vmatmul.mubr.f32.gmra.mrb[0].mxu0 %v482
        %v667 = vpop.f32.mrb[0].mxu0
        %v668 = vadd.f32 0.0, %v667
        %v669 = vpop.f32.mrb[0].mxu0
        %670 = vmatprep.mubr.f32.mxu0 0.0
        %671 = vmatmul.mubr.f32.gmra.mrb[0].mxu0 %v485
        %v672 = vpop.f32.mrb[0].mxu0
        %v673 = vadd.f32 0.0, %v672
        %v674 = vpop.f32.mrb[0].mxu0
        %675 = vmatprep.mubr.f32.mxu0 0.0
        %676 = vmatmul.mubr.f32.gmra.mrb[0].mxu0 %v488
        %v677 = vpop.f32.mrb[0].mxu0
        %v678 = vadd.f32 0.0, %v677
        %v679 = vpop.f32.mrb[0].mxu0
        %680 = vmatprep.mubr.f32.mxu0 0.0
        %681 = vmatmul.mubr.f32.gmra.mrb[0].mxu0 %v491
        %v682 = vpop.f32.mrb[0].mxu0
        %v683 = vadd.f32 0.0, %v682
        %v684 = vpop.f32.mrb[0].mxu0
        %685 = vmatprep.mubr.f32.mxu0 0.0
        %686 = vmatmul.mubr.f32.gmra.mrb[0].mxu0 %v494
        %v687 = vpop.f32.mrb[0].mxu0
        %v688 = vadd.f32 0.0, %v687
        %v689 = vpop.f32.mrb[0].mxu0
        %690 = vmatprep.mubr.f32.mxu0 0.0
        %691 = vmatmul.mubr.f32.gmra.mrb[0].mxu0 %v497
        %v692 = vpop.f32.mrb[0].mxu0
        %v693 = vadd.f32 0.0, %v692
        %v694 = vpop.f32.mrb[0].mxu0
        %695 = vmatprep.mubr.f32.mxu0 0.0
        %696 = vmatmul.mubr.f32.gmra.mrb[0].mxu0 %v500
        %v697 = vpop.f32.mrb[0].mxu0
        %v698 = vadd.f32 0.0, %v697
        %v699 = vpop.f32.mrb[0].mxu0
        %700 = vmatprep.mubr.f32.mxu0 0.0
        %701 = vmatmul.mubr.f32.gmra.mrb[0].mxu0 %v503
        %v702 = vpop.f32.mrb[0].mxu0
        %v703 = vadd.f32 0.0, %v702
        %v704 = vpop.f32.mrb[0].mxu0
        %705 = vmatprep.mubr.f32.mxu0 0.0
        %706 = vmatmul.mubr.f32.gmra.mrb[0].mxu0 %v506
        %v707 = vpop.f32.mrb[0].mxu0
        %v708 = vadd.f32 0.0, %v707
        %v709 = vpop.f32.mrb[0].mxu0
        %710 = vmatprep.mubr.f32.mxu0 0.0
        %711 = vmatmul.mubr.f32.gmra.mrb[0].mxu0 %v509
        %v712 = vpop.f32.mrb[0].mxu0
        %v713 = vadd.f32 0.0, %v712
        %v714 = vpop.f32.mrb[0].mxu0
        %715 = vmatprep.mubr.f32.mxu0 0.0
        %716 = vmatmul.mubr.f32.gmra.mrb[0].mxu0 %v512
        %v717 = vpop.f32.mrb[0].mxu0
        %v718 = vadd.f32 0.0, %v717
        %v719 = vpop.f32.mrb[0].mxu0
        %720 = vmatprep.mubr.f32.mxu0 0.0
        %721 = vmatmul.mubr.f32.gmra.mrb[0].mxu0 %v515
        %v722 = vpop.f32.mrb[0].mxu0
        %v723 = vadd.f32 0.0, %v722
        %v724 = vpop.f32.mrb[0].mxu0
        %725 = vmatprep.mubr.f32.mxu0 0.0
        %726 = vmatmul.mubr.f32.gmra.mrb[0].mxu0 %v518
        %v727 = vpop.f32.mrb[0].mxu0
        %v728 = vadd.f32 0.0, %v727
        %v729 = vpop.f32.mrb[0].mxu0
        %730 = vmatprep.mubr.f32.mxu0 0.0
        %731 = vmatmul.mubr.f32.gmra.mrb[0].mxu0 %v521
        %v732 = vpop.f32.mrb[0].mxu0
        %v733 = vadd.f32 0.0, %v732
        %v734 = vpop.f32.mrb[0].mxu0
        %735 = vmatprep.mubr.f32.mxu0 0.0
        %736 = vmatmul.mubr.f32.gmra.mrb[0].mxu0 %v524
        %v737 = vpop.f32.mrb[0].mxu0
        %v738 = vadd.f32 0.0, %v737
        %v739 = vpop.f32.mrb[0].mxu0
        %740 = vmatprep.mubr.f32.mxu0 0.0
        %741 = vmatmul.mubr.f32.gmra.mrb[0].mxu0 %v527
        %v742 = vpop.f32.mrb[0].mxu0
        %v743 = vadd.f32 0.0, %v742
        %v744 = vpop.f32.mrb[0].mxu0
        %745 = vmatprep.mubr.f32.mxu0 0.0
        %746 = vmatmul.mubr.f32.gmra.mrb[0].mxu0 %v530
        %v747 = vpop.f32.mrb[0].mxu0
        %v748 = vadd.f32 0.0, %v747
        %v749 = vpop.f32.mrb[0].mxu0
        %750 = vmatprep.mubr.f32.mxu0 0.0
        %751 = vmatmul.mubr.f32.gmra.mrb[0].mxu0 %v533
        %v752 = vpop.f32.mrb[0].mxu0
        %v753 = vadd.f32 0.0, %v752
        %v754 = vpop.f32.mrb[0].mxu0
        %755 = vmatprep.mubr.f32.mxu0 0.0
        %756 = vmatmul.mubr.f32.gmra.mrb[0].mxu0 %v536
        %v757 = vpop.f32.mrb[0].mxu0
        %v758 = vadd.f32 0.0, %v757
        %v759 = vpop.f32.mrb[0].mxu0
        %760 = vmatprep.mubr.f32.mxu0 0.0
        %761 = vmatmul.mubr.f32.gmra.mrb[0].mxu0 %v539
        %v762 = vpop.f32.mrb[0].mxu0
        %v763 = vadd.f32 0.0, %v762
        %v764 = vpop.f32.mrb[0].mxu0
        %765 = vdwg.mxu0
        %s766 = scalar_lea.vmem [#allocation2], 24
        %767 = vst [vmem:[%s766 + $0x1] sm:$0xff] %v608
        %768 = vst [vmem:[%s766 + $0x9] sm:$0xff] %v613
        %769 = vst [vmem:[%s766 + $0x19] sm:$0xff] %v618
        %770 = vst [vmem:[%s766 + $0x21] sm:$0xff] %v623
        %771 = vst [vmem:[%s766 + $0x31] sm:$0xff] %v628
        %772 = vst [vmem:[%s766 + $0x39] sm:$0xff] %v633
        %773 = vst [vmem:[%s766 + $0x49] sm:$0xff] %v638
        %774 = vst [vmem:[%s766 + $0x51] sm:$0xff] %v643
        %775 = vst [vmem:[%s766 + $0x61] sm:$0xff] %v648
        %776 = vst [vmem:[%s766 + $0x69] sm:$0xff] %v653
        %777 = vst [vmem:[%s766 + $0x79] sm:$0xff] %v658
        %778 = vst [vmem:[%s766 + $0x81] sm:$0xff] %v663
        %779 = vst [vmem:[%s766 + $0x91] sm:$0xff] %v668
        %780 = vst [vmem:[%s766 + $0x99] sm:$0xff] %v673
        %781 = vst [vmem:[%s766 + $0xa9] sm:$0xff] %v678
        %782 = vst [vmem:[%s766 + $0xb1] sm:$0xff] %v683
        %783 = vst [vmem:[%s766 + $0xc1] sm:$0xff] %v688
        %784 = vst [vmem:[%s766 + $0xc9] sm:$0xff] %v693
        %785 = vst [vmem:[%s766 + $0xd9] sm:$0xff] %v698
        %786 = vst [vmem:[%s766 + $0xe1] sm:$0xff] %v703
        %787 = vst [vmem:[%s766 + $0xf1] sm:$0xff] %v708
        %788 = vst [vmem:[%s766 + $0xf9] sm:$0xff] %v713
        %789 = vst [vmem:[%s766 + $0x109] sm:$0xff] %v718
        %790 = vst [vmem:[%s766 + $0x111] sm:$0xff] %v723
        %791 = vst [vmem:[%s766 + $0x121] sm:$0xff] %v728
        %792 = vst [vmem:[%s766 + $0x129] sm:$0xff] %v733
        %793 = vst [vmem:[%s766 + $0x139] sm:$0xff] %v738
        %794 = vst [vmem:[%s766 + $0x141] sm:$0xff] %v743
        %795 = vst [vmem:[%s766 + $0x151] sm:$0xff] %v748
        %796 = vst [vmem:[%s766 + $0x159] sm:$0xff] %v753
        %797 = vst [vmem:[%s766 + $0x169] sm:$0xff] %v758
        %798 = vst [vmem:[%s766 + $0x171] sm:$0xff] %v763
        %v799 = vld [vmem:[#allocation2] sm:$0xff]
        %v800 = vld [vmem:[#allocation2 + $0x8] sm:$0xff]
        %v801 = vld [vmem:[#allocation2 + $0x18] sm:$0xff]
        %v802 = vld [vmem:[#allocation2 + $0x20] sm:$0xff]
        %v803 = vld [vmem:[#allocation2 + $0x30] sm:$0xff]
        %v804 = vld [vmem:[#allocation2 + $0x38] sm:$0xff]
        %v805 = vld [vmem:[#allocation2 + $0x48] sm:$0xff]
        %v806 = vld [vmem:[#allocation2 + $0x50] sm:$0xff]
        %v807 = vld [vmem:[#allocation2 + $0x60] sm:$0xff]
        %v808 = vld [vmem:[#allocation2 + $0x68] sm:$0xff]
        %v809 = vld [vmem:[#allocation2 + $0x78] sm:$0xff]
        %v810 = vld [vmem:[#allocation2 + $0x80] sm:$0xff]
        %v811 = vld [vmem:[#allocation2 + $0x90] sm:$0xff]
        %v812 = vld [vmem:[#allocation2 + $0x98] sm:$0xff]
        %v813 = vld [vmem:[#allocation2 + $0xa8] sm:$0xff]
        %v814 = vld [vmem:[#allocation2 + $0xb0] sm:$0xff]
        %v815 = vld [vmem:[#allocation2 + $0xc0] sm:$0xff]
        %v816 = vld [vmem:[#allocation2 + $0xc8] sm:$0xff]
        %v817 = vld [vmem:[#allocation2 + $0xd8] sm:$0xff]
        %v818 = vld [vmem:[#allocation2 + $0xe0] sm:$0xff]
        %v819 = vld [vmem:[#allocation2 + $0xf0] sm:$0xff]
        %v820 = vld [vmem:[#allocation2 + $0xf8] sm:$0xff]
        %v821 = vld [vmem:[#allocation2 + $0x108] sm:$0xff]
        %v822 = vld [vmem:[#allocation2 + $0x110] sm:$0xff]
        %v823 = vld [vmem:[#allocation2 + $0x120] sm:$0xff]
        %v824 = vld [vmem:[#allocation2 + $0x128] sm:$0xff]
        %v825 = vld [vmem:[#allocation2 + $0x138] sm:$0xff]
        %v826 = vld [vmem:[#allocation2 + $0x140] sm:$0xff]
        %v827 = vld [vmem:[#allocation2 + $0x150] sm:$0xff]
        %v828 = vld [vmem:[#allocation2 + $0x158] sm:$0xff]
        %v829 = vld [vmem:[#allocation2 + $0x168] sm:$0xff]
        %v830 = vld [vmem:[#allocation2 + $0x170] sm:$0xff]
        %v831 = vld [vmem:[#allocation2 + $0x180] sm:$0xff]
        %v832 = vld [vmem:[#allocation2 + $0x188] sm:$0xff]
        %v833 = vld [vmem:[#allocation2 + $0x198] sm:$0xff]
        %v834 = vld [vmem:[#allocation2 + $0x1a0] sm:$0xff]
        %835 = vst [vmem:[#allocation3] sm:$0xff] %v799
        %836 = vst [vmem:[#allocation3 + $0x18] sm:$0xff] %v800
        %837 = vst [vmem:[#allocation3 + $0x30] sm:$0xff] %v801
        %838 = vst [vmem:[#allocation3 + $0x48] sm:$0xff] %v802
        %839 = vst [vmem:[#allocation3 + $0x60] sm:$0xff] %v803
        %840 = vst [vmem:[#allocation3 + $0x78] sm:$0xff] %v804
        %841 = vst [vmem:[#allocation3 + $0x90] sm:$0xff] %v805
        %842 = vst [vmem:[#allocation3 + $0xa8] sm:$0xff] %v806
        %843 = vst [vmem:[#allocation3 + $0xc0] sm:$0xff] %v807
        %844 = vst [vmem:[#allocation3 + $0xd8] sm:$0xff] %v808
        %845 = vst [vmem:[#allocation3 + $0xf0] sm:$0xff] %v809
        %846 = vst [vmem:[#allocation3 + $0x108] sm:$0xff] %v810
        %847 = vst [vmem:[#allocation3 + $0x120] sm:$0xff] %v811
        %848 = vst [vmem:[#allocation3 + $0x138] sm:$0xff] %v812
        %849 = vst [vmem:[#allocation3 + $0x150] sm:$0xff] %v813
        %850 = vst [vmem:[#allocation3 + $0x168] sm:$0xff] %v814
        %851 = vst [vmem:[#allocation3 + $0x180] sm:$0xff] %v815
        %852 = vst [vmem:[#allocation3 + $0x198] sm:$0xff] %v816
        %853 = vst [vmem:[#allocation3 + $0x1b0] sm:$0xff] %v817
        %854 = vst [vmem:[#allocation3 + $0x1c8] sm:$0xff] %v818
        %855 = vst [vmem:[#allocation3 + $0x1e0] sm:$0xff] %v819
        %856 = vst [vmem:[#allocation3 + $0x1f8] sm:$0xff] %v820
        %857 = vst [vmem:[#allocation3 + $0x210] sm:$0xff] %v821
        %858 = vst [vmem:[#allocation3 + $0x228] sm:$0xff] %v822
        %859 = vst [vmem:[#allocation3 + $0x240] sm:$0xff] %v823
        %860 = vst [vmem:[#allocation3 + $0x258] sm:$0xff] %v824
        %861 = vst [vmem:[#allocation3 + $0x270] sm:$0xff] %v825
        %862 = vst [vmem:[#allocation3 + $0x288] sm:$0xff] %v826
        %863 = vst [vmem:[#allocation3 + $0x2a0] sm:$0xff] %v827
        %864 = vst [vmem:[#allocation3 + $0x2b8] sm:$0xff] %v828
        %865 = vst [vmem:[#allocation3 + $0x2d0] sm:$0xff] %v829
        %866 = vst [vmem:[#allocation3 + $0x2e8] sm:$0xff] %v830
        %867 = vst [vmem:[#allocation3 + $0x300] sm:$0xff] %v831
        %868 = vst [vmem:[#allocation3 + $0x318] sm:$0xff] %v832
        %869 = vst [vmem:[#allocation3 + $0x330] sm:$0xff] %v833
        %870 = vst [vmem:[#allocation3 + $0x348] sm:$0xff] %v834
        %v871 = vld [vmem:[#allocation2 + $0x1] sm:$0xff]
        %v872 = vld [vmem:[#allocation2 + $0x9] sm:$0xff]
        %v873 = vld [vmem:[#allocation2 + $0x19] sm:$0xff]
        %v874 = vld [vmem:[#allocation2 + $0x21] sm:$0xff]
        %v875 = vld [vmem:[#allocation2 + $0x31] sm:$0xff]
        %v876 = vld [vmem:[#allocation2 + $0x39] sm:$0xff]
        %v877 = vld [vmem:[#allocation2 + $0x49] sm:$0xff]
        %v878 = vld [vmem:[#allocation2 + $0x51] sm:$0xff]
        %v879 = vld [vmem:[#allocation2 + $0x61] sm:$0xff]
        %v880 = vld [vmem:[#allocation2 + $0x69] sm:$0xff]
        %v881 = vld [vmem:[#allocation2 + $0x79] sm:$0xff]
        %v882 = vld [vmem:[#allocation2 + $0x81] sm:$0xff]
        %v883 = vld [vmem:[#allocation2 + $0x91] sm:$0xff]
        %v884 = vld [vmem:[#allocation2 + $0x99] sm:$0xff]
        %v885 = vld [vmem:[#allocation2 + $0xa9] sm:$0xff]
        %v886 = vld [vmem:[#allocation2 + $0xb1] sm:$0xff]
        %v887 = vld [vmem:[#allocation2 + $0xc1] sm:$0xff]
        %v888 = vld [vmem:[#allocation2 + $0xc9] sm:$0xff]
        %v889 = vld [vmem:[#allocation2 + $0xd9] sm:$0xff]
        %v890 = vld [vmem:[#allocation2 + $0xe1] sm:$0xff]
        %v891 = vld [vmem:[#allocation2 + $0xf1] sm:$0xff]
        %v892 = vld [vmem:[#allocation2 + $0xf9] sm:$0xff]
        %v893 = vld [vmem:[#allocation2 + $0x109] sm:$0xff]
        %v894 = vld [vmem:[#allocation2 + $0x111] sm:$0xff]
        %v895 = vld [vmem:[#allocation2 + $0x121] sm:$0xff]
        %v896 = vld [vmem:[#allocation2 + $0x129] sm:$0xff]
        %v897 = vld [vmem:[#allocation2 + $0x139] sm:$0xff]
        %v898 = vld [vmem:[#allocation2 + $0x141] sm:$0xff]
        %v899 = vld [vmem:[#allocation2 + $0x151] sm:$0xff]
        %v900 = vld [vmem:[#allocation2 + $0x159] sm:$0xff]
        %v901 = vld [vmem:[#allocation2 + $0x169] sm:$0xff]
        %v902 = vld [vmem:[#allocation2 + $0x171] sm:$0xff]
        %v903 = vld [vmem:[#allocation2 + $0x181] sm:$0xff]
        %v904 = vld [vmem:[#allocation2 + $0x189] sm:$0xff]
        %v905 = vld [vmem:[#allocation2 + $0x199] sm:$0xff]
        %v906 = vld [vmem:[#allocation2 + $0x1a1] sm:$0xff]
        %907 = vst [vmem:[#allocation3 + $0x8] sm:$0xff] %v871
        %908 = vst [vmem:[#allocation3 + $0x20] sm:$0xff] %v872
        %909 = vst [vmem:[#allocation3 + $0x38] sm:$0xff] %v873
        %910 = vst [vmem:[#allocation3 + $0x50] sm:$0xff] %v874
        %911 = vst [vmem:[#allocation3 + $0x68] sm:$0xff] %v875
        %912 = vst [vmem:[#allocation3 + $0x80] sm:$0xff] %v876
        %913 = vst [vmem:[#allocation3 + $0x98] sm:$0xff] %v877
        %914 = vst [vmem:[#allocation3 + $0xb0] sm:$0xff] %v878
        %915 = vst [vmem:[#allocation3 + $0xc8] sm:$0xff] %v879
        %916 = vst [vmem:[#allocation3 + $0xe0] sm:$0xff] %v880
        %917 = vst [vmem:[#allocation3 + $0xf8] sm:$0xff] %v881
        %918 = vst [vmem:[#allocation3 + $0x110] sm:$0xff] %v882
        %919 = vst [vmem:[#allocation3 + $0x128] sm:$0xff] %v883
        %920 = vst [vmem:[#allocation3 + $0x140] sm:$0xff] %v884
        %921 = vst [vmem:[#allocation3 + $0x158] sm:$0xff] %v885
        %922 = vst [vmem:[#allocation3 + $0x170] sm:$0xff] %v886
        %923 = vst [vmem:[#allocation3 + $0x188] sm:$0xff] %v887
        %924 = vst [vmem:[#allocation3 + $0x1a0] sm:$0xff] %v888
        %925 = vst [vmem:[#allocation3 + $0x1b8] sm:$0xff] %v889
        %926 = vst [vmem:[#allocation3 + $0x1d0] sm:$0xff] %v890
        %927 = vst [vmem:[#allocation3 + $0x1e8] sm:$0xff] %v891
        %928 = vst [vmem:[#allocation3 + $0x200] sm:$0xff] %v892
        %929 = vst [vmem:[#allocation3 + $0x218] sm:$0xff] %v893
        %930 = vst [vmem:[#allocation3 + $0x230] sm:$0xff] %v894
        %931 = vst [vmem:[#allocation3 + $0x248] sm:$0xff] %v895
        %932 = vst [vmem:[#allocation3 + $0x260] sm:$0xff] %v896
        %933 = vst [vmem:[#allocation3 + $0x278] sm:$0xff] %v897
        %934 = vst [vmem:[#allocation3 + $0x290] sm:$0xff] %v898
        %935 = vst [vmem:[#allocation3 + $0x2a8] sm:$0xff] %v899
        %936 = vst [vmem:[#allocation3 + $0x2c0] sm:$0xff] %v900
        %937 = vst [vmem:[#allocation3 + $0x2d8] sm:$0xff] %v901
        %938 = vst [vmem:[#allocation3 + $0x2f0] sm:$0xff] %v902
        %939 = vst [vmem:[#allocation3 + $0x308] sm:$0xff] %v903
        %940 = vst [vmem:[#allocation3 + $0x320] sm:$0xff] %v904
        %941 = vst [vmem:[#allocation3 + $0x338] sm:$0xff] %v905
        %942 = vst [vmem:[#allocation3 + $0x350] sm:$0xff] %v906
        %v943 = vld [vmem:[#allocation2 + $0x2] sm:$0xff]
        %v944 = vld [vmem:[#allocation2 + $0xa] sm:$0xff]
        %v945 = vld [vmem:[#allocation2 + $0x1a] sm:$0xff]
        %v946 = vld [vmem:[#allocation2 + $0x22] sm:$0xff]
        %v947 = vld [vmem:[#allocation2 + $0x32] sm:$0xff]
        %v948 = vld [vmem:[#allocation2 + $0x3a] sm:$0xff]
        %v949 = vld [vmem:[#allocation2 + $0x4a] sm:$0xff]
        %v950 = vld [vmem:[#allocation2 + $0x52] sm:$0xff]
        %v951 = vld [vmem:[#allocation2 + $0x62] sm:$0xff]
        %v952 = vld [vmem:[#allocation2 + $0x6a] sm:$0xff]
        %v953 = vld [vmem:[#allocation2 + $0x7a] sm:$0xff]
        %v954 = vld [vmem:[#allocation2 + $0x82] sm:$0xff]
        %v955 = vld [vmem:[#allocation2 + $0x92] sm:$0xff]
        %v956 = vld [vmem:[#allocation2 + $0x9a] sm:$0xff]
        %v957 = vld [vmem:[#allocation2 + $0xaa] sm:$0xff]
        %v958 = vld [vmem:[#allocation2 + $0xb2] sm:$0xff]
        %v959 = vld [vmem:[#allocation2 + $0xc2] sm:$0xff]
        %v960 = vld [vmem:[#allocation2 + $0xca] sm:$0xff]
        %v961 = vld [vmem:[#allocation2 + $0xda] sm:$0xff]
        %v962 = vld [vmem:[#allocation2 + $0xe2] sm:$0xff]
        %v963 = vld [vmem:[#allocation2 + $0xf2] sm:$0xff]
        %v964 = vld [vmem:[#allocation2 + $0xfa] sm:$0xff]
        %v965 = vld [vmem:[#allocation2 + $0x10a] sm:$0xff]
        %v966 = vld [vmem:[#allocation2 + $0x112] sm:$0xff]
        %v967 = vld [vmem:[#allocation2 + $0x122] sm:$0xff]
        %v968 = vld [vmem:[#allocation2 + $0x12a] sm:$0xff]
        %v969 = vld [vmem:[#allocation2 + $0x13a] sm:$0xff]
        %v970 = vld [vmem:[#allocation2 + $0x142] sm:$0xff]
        %v971 = vld [vmem:[#allocation2 + $0x152] sm:$0xff]
        %v972 = vld [vmem:[#allocation2 + $0x15a] sm:$0xff]
        %v973 = vld [vmem:[#allocation2 + $0x16a] sm:$0xff]
        %v974 = vld [vmem:[#allocation2 + $0x172] sm:$0xff]
        %v975 = vld [vmem:[#allocation2 + $0x182] sm:$0xff]
        %v976 = vld [vmem:[#allocation2 + $0x18a] sm:$0xff]
        %v977 = vld [vmem:[#allocation2 + $0x19a] sm:$0xff]
        %v978 = vld [vmem:[#allocation2 + $0x1a2] sm:$0xff]
        %979 = vst [vmem:[#allocation3 + $0x10] sm:$0xff] %v943
        %980 = vst [vmem:[#allocation3 + $0x28] sm:$0xff] %v944
        %981 = vst [vmem:[#allocation3 + $0x40] sm:$0xff] %v945
        %982 = vst [vmem:[#allocation3 + $0x58] sm:$0xff] %v946
        %983 = vst [vmem:[#allocation3 + $0x70] sm:$0xff] %v947
        %984 = vst [vmem:[#allocation3 + $0x88] sm:$0xff] %v948
        %985 = vst [vmem:[#allocation3 + $0xa0] sm:$0xff] %v949
        %986 = vst [vmem:[#allocation3 + $0xb8] sm:$0xff] %v950
        %987 = vst [vmem:[#allocation3 + $0xd0] sm:$0xff] %v951
        %988 = vst [vmem:[#allocation3 + $0xe8] sm:$0xff] %v952
        %989 = vst [vmem:[#allocation3 + $0x100] sm:$0xff] %v953
        %990 = vst [vmem:[#allocation3 + $0x118] sm:$0xff] %v954
        %991 = vst [vmem:[#allocation3 + $0x130] sm:$0xff] %v955
        %992 = vst [vmem:[#allocation3 + $0x148] sm:$0xff] %v956
        %993 = vst [vmem:[#allocation3 + $0x160] sm:$0xff] %v957
        %994 = vst [vmem:[#allocation3 + $0x178] sm:$0xff] %v958
        %995 = vst [vmem:[#allocation3 + $0x190] sm:$0xff] %v959
        %996 = vst [vmem:[#allocation3 + $0x1a8] sm:$0xff] %v960
        %997 = vst [vmem:[#allocation3 + $0x1c0] sm:$0xff] %v961
        %998 = vst [vmem:[#allocation3 + $0x1d8] sm:$0xff] %v962
        %999 = vst [vmem:[#allocation3 + $0x1f0] sm:$0xff] %v963
        %1000 = vst [vmem:[#allocation3 + $0x208] sm:$0xff] %v964
        %1001 = vst [vmem:[#allocation3 + $0x220] sm:$0xff] %v965
        %1002 = vst [vmem:[#allocation3 + $0x238] sm:$0xff] %v966
        %1003 = vst [vmem:[#allocation3 + $0x250] sm:$0xff] %v967
        %1004 = vst [vmem:[#allocation3 + $0x268] sm:$0xff] %v968
        %1005 = vst [vmem:[#allocation3 + $0x280] sm:$0xff] %v969
        %1006 = vst [vmem:[#allocation3 + $0x298] sm:$0xff] %v970
        %1007 = vst [vmem:[#allocation3 + $0x2b0] sm:$0xff] %v971
        %1008 = vst [vmem:[#allocation3 + $0x2c8] sm:$0xff] %v972
        %1009 = vst [vmem:[#allocation3 + $0x2e0] sm:$0xff] %v973
        %1010 = vst [vmem:[#allocation3 + $0x2f8] sm:$0xff] %v974
        %1011 = vst [vmem:[#allocation3 + $0x310] sm:$0xff] %v975
        %1012 = vst [vmem:[#allocation3 + $0x328] sm:$0xff] %v976
        %1013 = vst [vmem:[#allocation3 + $0x340] sm:$0xff] %v977
        %1014 = vst [vmem:[#allocation3 + $0x358] sm:$0xff] %v978
        %v1015 = vld [vmem:[#allocation3] sm:$0xff]
        %v1016 = vld [vmem:[#allocation3 + $0x8] sm:$0xff]
        %v1017 = vld [vmem:[#allocation3 + $0x10] sm:$0xff]
        %v1018 = vld [vmem:[#allocation3 + $0x18] sm:$0xff]
        %v1019 = vld [vmem:[#allocation3 + $0x20] sm:$0xff]
        %v1020 = vld [vmem:[#allocation3 + $0x28] sm:$0xff]
        %v1021 = vld [vmem:[#allocation3 + $0x30] sm:$0xff]
        %v1022 = vld [vmem:[#allocation3 + $0x38] sm:$0xff]
        %v1023 = vld [vmem:[#allocation3 + $0x40] sm:$0xff]
        %v1024 = vld [vmem:[#allocation3 + $0x48] sm:$0xff]
        %v1025 = vld [vmem:[#allocation3 + $0x50] sm:$0xff]
        %v1026 = vld [vmem:[#allocation3 + $0x58] sm:$0xff]
        %v1027 = vld [vmem:[#allocation3 + $0x60] sm:$0xff]
        %v1028 = vld [vmem:[#allocation3 + $0x68] sm:$0xff]
        %v1029 = vld [vmem:[#allocation3 + $0x70] sm:$0xff]
        %v1030 = vld [vmem:[#allocation3 + $0x78] sm:$0xff]
        %v1031 = vld [vmem:[#allocation3 + $0x80] sm:$0xff]
        %v1032 = vld [vmem:[#allocation3 + $0x88] sm:$0xff]
        %v1033 = vld [vmem:[#allocation3 + $0x90] sm:$0xff]
        %v1034 = vld [vmem:[#allocation3 + $0x98] sm:$0xff]
        %v1035 = vld [vmem:[#allocation3 + $0xa0] sm:$0xff]
        %v1036 = vld [vmem:[#allocation3 + $0xa8] sm:$0xff]
        %v1037 = vld [vmem:[#allocation3 + $0xb0] sm:$0xff]
        %v1038 = vld [vmem:[#allocation3 + $0xb8] sm:$0xff]
        %v1039 = vld [vmem:[#allocation3 + $0xc0] sm:$0xff]
        %v1040 = vld [vmem:[#allocation3 + $0xc8] sm:$0xff]
        %v1041 = vld [vmem:[#allocation3 + $0xd0] sm:$0xff]
        %v1042 = vld [vmem:[#allocation3 + $0xd8] sm:$0xff]
        %v1043 = vld [vmem:[#allocation3 + $0xe0] sm:$0xff]
        %v1044 = vld [vmem:[#allocation3 + $0xe8] sm:$0xff]
        %v1045 = vld [vmem:[#allocation3 + $0xf0] sm:$0xff]
        %v1046 = vld [vmem:[#allocation3 + $0xf8] sm:$0xff]
        %v1047 = vld [vmem:[#allocation3 + $0x100] sm:$0xff]
        %v1048 = vld [vmem:[#allocation3 + $0x108] sm:$0xff]
        %v1049 = vld [vmem:[#allocation3 + $0x110] sm:$0xff]
        %v1050 = vld [vmem:[#allocation3 + $0x118] sm:$0xff]
        %v1051 = vld [vmem:[#allocation3 + $0x120] sm:$0xff]
        %v1052 = vld [vmem:[#allocation3 + $0x128] sm:$0xff]
        %v1053 = vld [vmem:[#allocation3 + $0x130] sm:$0xff]
        %v1054 = vld [vmem:[#allocation3 + $0x138] sm:$0xff]
        %v1055 = vld [vmem:[#allocation3 + $0x140] sm:$0xff]
        %v1056 = vld [vmem:[#allocation3 + $0x148] sm:$0xff]
        %v1057 = vld [vmem:[#allocation3 + $0x150] sm:$0xff]
        %v1058 = vld [vmem:[#allocation3 + $0x158] sm:$0xff]
        %v1059 = vld [vmem:[#allocation3 + $0x160] sm:$0xff]
        %v1060 = vld [vmem:[#allocation3 + $0x168] sm:$0xff]
        %v1061 = vld [vmem:[#allocation3 + $0x170] sm:$0xff]
        %v1062 = vld [vmem:[#allocation3 + $0x178] sm:$0xff]
        %v1063 = vld [vmem:[#allocation3 + $0x180] sm:$0xff]
        %v1064 = vld [vmem:[#allocation3 + $0x188] sm:$0xff]
        %v1065 = vld [vmem:[#allocation3 + $0x190] sm:$0xff]
        %v1066 = vld [vmem:[#allocation3 + $0x198] sm:$0xff]
        %v1067 = vld [vmem:[#allocation3 + $0x1a0] sm:$0xff]
        %v1068 = vld [vmem:[#allocation3 + $0x1a8] sm:$0xff]
        %v1069 = vld [vmem:[#allocation3 + $0x1b0] sm:$0xff]
        %v1070 = vld [vmem:[#allocation3 + $0x1b8] sm:$0xff]
        %v1071 = vld [vmem:[#allocation3 + $0x1c0] sm:$0xff]
        %v1072 = vld [vmem:[#allocation3 + $0x1c8] sm:$0xff]
        %v1073 = vld [vmem:[#allocation3 + $0x1d0] sm:$0xff]
        %v1074 = vld [vmem:[#allocation3 + $0x1d8] sm:$0xff]
        %v1075 = vld [vmem:[#allocation3 + $0x1e0] sm:$0xff]
        %v1076 = vld [vmem:[#allocation3 + $0x1e8] sm:$0xff]
        %v1077 = vld [vmem:[#allocation3 + $0x1f0] sm:$0xff]
        %v1078 = vld [vmem:[#allocation3 + $0x1f8] sm:$0xff]
        %v1079 = vld [vmem:[#allocation3 + $0x200] sm:$0xff]
        %v1080 = vld [vmem:[#allocation3 + $0x208] sm:$0xff]
        %v1081 = vld [vmem:[#allocation3 + $0x210] sm:$0xff]
        %v1082 = vld [vmem:[#allocation3 + $0x218] sm:$0xff]
        %v1083 = vld [vmem:[#allocation3 + $0x220] sm:$0xff]
        %v1084 = vld [vmem:[#allocation3 + $0x228] sm:$0xff]
        %v1085 = vld [vmem:[#allocation3 + $0x230] sm:$0xff]
        %v1086 = vld [vmem:[#allocation3 + $0x238] sm:$0xff]
        %v1087 = vld [vmem:[#allocation3 + $0x240] sm:$0xff]
        %v1088 = vld [vmem:[#allocation3 + $0x248] sm:$0xff]
        %v1089 = vld [vmem:[#allocation3 + $0x250] sm:$0xff]
        %v1090 = vld [vmem:[#allocation3 + $0x258] sm:$0xff]
        %v1091 = vld [vmem:[#allocation3 + $0x260] sm:$0xff]
        %v1092 = vld [vmem:[#allocation3 + $0x268] sm:$0xff]
        %v1093 = vld [vmem:[#allocation3 + $0x270] sm:$0xff]
        %v1094 = vld [vmem:[#allocation3 + $0x278] sm:$0xff]
        %v1095 = vld [vmem:[#allocation3 + $0x280] sm:$0xff]
        %v1096 = vld [vmem:[#allocation3 + $0x288] sm:$0xff]
        %v1097 = vld [vmem:[#allocation3 + $0x290] sm:$0xff]
        %v1098 = vld [vmem:[#allocation3 + $0x298] sm:$0xff]
        %v1099 = vld [vmem:[#allocation3 + $0x2a0] sm:$0xff]
        %v1100 = vld [vmem:[#allocation3 + $0x2a8] sm:$0xff]
        %v1101 = vld [vmem:[#allocation3 + $0x2b0] sm:$0xff]
        %v1102 = vld [vmem:[#allocation3 + $0x2b8] sm:$0xff]
        %v1103 = vld [vmem:[#allocation3 + $0x2c0] sm:$0xff]
        %v1104 = vld [vmem:[#allocation3 + $0x2c8] sm:$0xff]
        %v1105 = vld [vmem:[#allocation3 + $0x2d0] sm:$0xff]
        %v1106 = vld [vmem:[#allocation3 + $0x2d8] sm:$0xff]
        %v1107 = vld [vmem:[#allocation3 + $0x2e0] sm:$0xff]
        %v1108 = vld [vmem:[#allocation3 + $0x2e8] sm:$0xff]
        %v1109 = vld [vmem:[#allocation3 + $0x2f0] sm:$0xff]
        %v1110 = vld [vmem:[#allocation3 + $0x2f8] sm:$0xff]
        %v1111 = vld [vmem:[#allocation4] sm:$0xff]
        %v1112 = vld [vmem:[#allocation4 + $0x8] sm:$0xff]
        %v1113 = vld [vmem:[#allocation4 + $0x10] sm:$0xff]
        %v1114 = vld [vmem:[#allocation4 + $0x18] sm:$0xff]
        %v1115 = vld [vmem:[#allocation4 + $0x20] sm:$0xff]
        %v1116 = vld [vmem:[#allocation4 + $0x28] sm:$0xff]
        %v1117 = vld [vmem:[#allocation4 + $0x30] sm:$0xff]
        %v1118 = vld [vmem:[#allocation4 + $0x38] sm:$0xff]
        %v1119 = vld [vmem:[#allocation4 + $0x40] sm:$0xff]
        %v1120 = vld [vmem:[#allocation4 + $0x48] sm:$0xff]
        %v1121 = vld [vmem:[#allocation4 + $0x50] sm:$0xff]
        %v1122 = vld [vmem:[#allocation4 + $0x58] sm:$0xff]
        %v1123 = vld [vmem:[#allocation4 + $0x60] sm:$0xff]
        %v1124 = vld [vmem:[#allocation4 + $0x68] sm:$0xff]
        %v1125 = vld [vmem:[#allocation4 + $0x70] sm:$0xff]
        %v1126 = vld [vmem:[#allocation4 + $0x78] sm:$0xff]
        %v1127 = vld [vmem:[#allocation4 + $0x80] sm:$0xff]
        %v1128 = vld [vmem:[#allocation4 + $0x88] sm:$0xff]
        %v1129 = vld [vmem:[#allocation4 + $0x90] sm:$0xff]
        %v1130 = vld [vmem:[#allocation4 + $0x98] sm:$0xff]
        %v1131 = vld [vmem:[#allocation4 + $0xa0] sm:$0xff]
        %v1132 = vld [vmem:[#allocation4 + $0xa8] sm:$0xff]
        %v1133 = vld [vmem:[#allocation4 + $0xb0] sm:$0xff]
        %v1134 = vld [vmem:[#allocation4 + $0xb8] sm:$0xff]
        %v1135 = vld [vmem:[#allocation4 + $0xc0] sm:$0xff]
        %v1136 = vld [vmem:[#allocation4 + $0xc8] sm:$0xff]
        %v1137 = vld [vmem:[#allocation4 + $0xd0] sm:$0xff]
        %v1138 = vld [vmem:[#allocation4 + $0xd8] sm:$0xff]
        %v1139 = vld [vmem:[#allocation4 + $0xe0] sm:$0xff]
        %v1140 = vld [vmem:[#allocation4 + $0xe8] sm:$0xff]
        %v1141 = vld [vmem:[#allocation4 + $0xf0] sm:$0xff]
        %v1142 = vld [vmem:[#allocation4 + $0xf8] sm:$0xff]
        %v1143 = vld [vmem:[#allocation4 + $0x100] sm:$0xff]
        %v1144 = vld [vmem:[#allocation4 + $0x108] sm:$0xff]
        %v1145 = vld [vmem:[#allocation4 + $0x110] sm:$0xff]
        %v1146 = vld [vmem:[#allocation4 + $0x118] sm:$0xff]
        %v1147 = vld [vmem:[#allocation4 + $0x120] sm:$0xff]
        %v1148 = vld [vmem:[#allocation4 + $0x128] sm:$0xff]
        %v1149 = vld [vmem:[#allocation4 + $0x130] sm:$0xff]
        %v1150 = vld [vmem:[#allocation4 + $0x138] sm:$0xff]
        %v1151 = vld [vmem:[#allocation4 + $0x140] sm:$0xff]
        %v1152 = vld [vmem:[#allocation4 + $0x148] sm:$0xff]
        %v1153 = vld [vmem:[#allocation4 + $0x150] sm:$0xff]
        %v1154 = vld [vmem:[#allocation4 + $0x158] sm:$0xff]
        %v1155 = vld [vmem:[#allocation4 + $0x160] sm:$0xff]
        %v1156 = vld [vmem:[#allocation4 + $0x168] sm:$0xff]
        %v1157 = vld [vmem:[#allocation4 + $0x170] sm:$0xff]
        %v1158 = vld [vmem:[#allocation4 + $0x178] sm:$0xff]
        %s1159 = scalar_lea.vmem [#allocation3], 48
        %v1160 = vld [vmem:[%s1159] sm:$0xff]
        %v1161 = vld [vmem:[%s1159 + $0x8] sm:$0xff]
        %v1162 = vld [vmem:[%s1159 + $0x10] sm:$0xff]
        %v1163 = vld [vmem:[%s1159 + $0x18] sm:$0xff]
        %v1164 = vld [vmem:[%s1159 + $0x20] sm:$0xff]
        %v1165 = vld [vmem:[%s1159 + $0x28] sm:$0xff]
        %v1166 = vld [vmem:[%s1159 + $0x30] sm:$0xff]
        %v1167 = vld [vmem:[%s1159 + $0x38] sm:$0xff]
        %v1168 = vld [vmem:[%s1159 + $0x40] sm:$0xff]
        %v1169 = vld [vmem:[%s1159 + $0x48] sm:$0xff]
        %v1170 = vld [vmem:[%s1159 + $0x50] sm:$0xff]
        %v1171 = vld [vmem:[%s1159 + $0x58] sm:$0xff]
        %v1172 = vld [vmem:[%s1159 + $0x60] sm:$0xff]
        %v1173 = vld [vmem:[%s1159 + $0x68] sm:$0xff]
        %v1174 = vld [vmem:[%s1159 + $0x70] sm:$0xff]
        %v1175 = vld [vmem:[%s1159 + $0x78] sm:$0xff]
        %v1176 = vld [vmem:[%s1159 + $0x80] sm:$0xff]
        %v1177 = vld [vmem:[%s1159 + $0x88] sm:$0xff]
        %v1178 = vld [vmem:[%s1159 + $0x90] sm:$0xff]
        %v1179 = vld [vmem:[%s1159 + $0x98] sm:$0xff]
        %v1180 = vld [vmem:[%s1159 + $0xa0] sm:$0xff]
        %v1181 = vld [vmem:[%s1159 + $0xa8] sm:$0xff]
        %v1182 = vld [vmem:[%s1159 + $0xb0] sm:$0xff]
        %v1183 = vld [vmem:[%s1159 + $0xb8] sm:$0xff]
        %v1184 = vld [vmem:[%s1159 + $0xc0] sm:$0xff]
        %v1185 = vld [vmem:[%s1159 + $0xc8] sm:$0xff]
        %v1186 = vld [vmem:[%s1159 + $0xd0] sm:$0xff]
        %v1187 = vld [vmem:[%s1159 + $0xd8] sm:$0xff]
        %v1188 = vld [vmem:[%s1159 + $0xe0] sm:$0xff]
        %v1189 = vld [vmem:[%s1159 + $0xe8] sm:$0xff]
        %v1190 = vld [vmem:[%s1159 + $0xf0] sm:$0xff]
        %v1191 = vld [vmem:[%s1159 + $0xf8] sm:$0xff]
        %v1192 = vld [vmem:[%s1159 + $0x100] sm:$0xff]
        %v1193 = vld [vmem:[%s1159 + $0x108] sm:$0xff]
        %v1194 = vld [vmem:[%s1159 + $0x110] sm:$0xff]
        %v1195 = vld [vmem:[%s1159 + $0x118] sm:$0xff]
        %v1196 = vld [vmem:[%s1159 + $0x120] sm:$0xff]
        %v1197 = vld [vmem:[%s1159 + $0x128] sm:$0xff]
        %v1198 = vld [vmem:[%s1159 + $0x130] sm:$0xff]
        %v1199 = vld [vmem:[%s1159 + $0x138] sm:$0xff]
        %v1200 = vld [vmem:[%s1159 + $0x140] sm:$0xff]
        %v1201 = vld [vmem:[%s1159 + $0x148] sm:$0xff]
        %v1202 = vld [vmem:[%s1159 + $0x150] sm:$0xff]
        %v1203 = vld [vmem:[%s1159 + $0x158] sm:$0xff]
        %v1204 = vld [vmem:[%s1159 + $0x160] sm:$0xff]
        %v1205 = vld [vmem:[%s1159 + $0x168] sm:$0xff]
        %v1206 = vld [vmem:[%s1159 + $0x170] sm:$0xff]
        %v1207 = vld [vmem:[%s1159 + $0x178] sm:$0xff]
        %v1208 = vld [vmem:[%s1159 + $0x180] sm:$0xff]
        %v1209 = vld [vmem:[%s1159 + $0x188] sm:$0xff]
        %v1210 = vld [vmem:[%s1159 + $0x190] sm:$0xff]
        %v1211 = vld [vmem:[%s1159 + $0x198] sm:$0xff]
        %v1212 = vld [vmem:[%s1159 + $0x1a0] sm:$0xff]
        %v1213 = vld [vmem:[%s1159 + $0x1a8] sm:$0xff]
        %v1214 = vld [vmem:[%s1159 + $0x1b0] sm:$0xff]
        %v1215 = vld [vmem:[%s1159 + $0x1b8] sm:$0xff]
        %v1216 = vld [vmem:[%s1159 + $0x1c0] sm:$0xff]
        %v1217 = vld [vmem:[%s1159 + $0x1c8] sm:$0xff]
        %v1218 = vld [vmem:[%s1159 + $0x1d0] sm:$0xff]
        %v1219 = vld [vmem:[%s1159 + $0x1d8] sm:$0xff]
        %v1220 = vld [vmem:[%s1159 + $0x1e0] sm:$0xff]
        %v1221 = vld [vmem:[%s1159 + $0x1e8] sm:$0xff]
        %v1222 = vld [vmem:[%s1159 + $0x1f0] sm:$0xff]
        %v1223 = vld [vmem:[%s1159 + $0x1f8] sm:$0xff]
        %v1224 = vld [vmem:[%s1159 + $0x200] sm:$0xff]
        %v1225 = vld [vmem:[%s1159 + $0x208] sm:$0xff]
        %v1226 = vld [vmem:[%s1159 + $0x210] sm:$0xff]
        %v1227 = vld [vmem:[%s1159 + $0x218] sm:$0xff]
        %v1228 = vld [vmem:[%s1159 + $0x220] sm:$0xff]
        %v1229 = vld [vmem:[%s1159 + $0x228] sm:$0xff]
        %v1230 = vld [vmem:[%s1159 + $0x230] sm:$0xff]
        %v1231 = vld [vmem:[%s1159 + $0x238] sm:$0xff]
        %v1232 = vld [vmem:[%s1159 + $0x240] sm:$0xff]
        %v1233 = vld [vmem:[%s1159 + $0x248] sm:$0xff]
        %v1234 = vld [vmem:[%s1159 + $0x250] sm:$0xff]
        %v1235 = vld [vmem:[%s1159 + $0x258] sm:$0xff]
        %v1236 = vld [vmem:[%s1159 + $0x260] sm:$0xff]
        %v1237 = vld [vmem:[%s1159 + $0x268] sm:$0xff]
        %v1238 = vld [vmem:[%s1159 + $0x270] sm:$0xff]
        %v1239 = vld [vmem:[%s1159 + $0x278] sm:$0xff]
        %v1240 = vld [vmem:[%s1159 + $0x280] sm:$0xff]
        %v1241 = vld [vmem:[%s1159 + $0x288] sm:$0xff]
        %v1242 = vld [vmem:[%s1159 + $0x290] sm:$0xff]
        %v1243 = vld [vmem:[%s1159 + $0x298] sm:$0xff]
        %v1244 = vld [vmem:[%s1159 + $0x2a0] sm:$0xff]
        %v1245 = vld [vmem:[%s1159 + $0x2a8] sm:$0xff]
        %v1246 = vld [vmem:[%s1159 + $0x2b0] sm:$0xff]
        %v1247 = vld [vmem:[%s1159 + $0x2b8] sm:$0xff]
        %v1248 = vld [vmem:[%s1159 + $0x2c0] sm:$0xff]
        %v1249 = vld [vmem:[%s1159 + $0x2c8] sm:$0xff]
        %v1250 = vld [vmem:[%s1159 + $0x2d0] sm:$0xff]
        %v1251 = vld [vmem:[%s1159 + $0x2d8] sm:$0xff]
        %v1252 = vld [vmem:[%s1159 + $0x2e0] sm:$0xff]
        %v1253 = vld [vmem:[%s1159 + $0x2e8] sm:$0xff]
        %v1254 = vld [vmem:[%s1159 + $0x2f0] sm:$0xff]
        %v1255 = vld [vmem:[%s1159 + $0x2f8] sm:$0xff]
        %s1256 = scalar_lea.vmem [#allocation4], 384
        %v1257 = vld [vmem:[%s1256] sm:$0xff]
        %v1258 = vld [vmem:[%s1256 + $0x8] sm:$0xff]
        %v1259 = vld [vmem:[%s1256 + $0x10] sm:$0xff]
        %v1260 = vld [vmem:[%s1256 + $0x18] sm:$0xff]
        %v1261 = vld [vmem:[%s1256 + $0x20] sm:$0xff]
        %v1262 = vld [vmem:[%s1256 + $0x28] sm:$0xff]
        %v1263 = vld [vmem:[%s1256 + $0x30] sm:$0xff]
        %v1264 = vld [vmem:[%s1256 + $0x38] sm:$0xff]
        %v1265 = vld [vmem:[%s1256 + $0x40] sm:$0xff]
        %v1266 = vld [vmem:[%s1256 + $0x48] sm:$0xff]
        %v1267 = vld [vmem:[%s1256 + $0x50] sm:$0xff]
        %v1268 = vld [vmem:[%s1256 + $0x58] sm:$0xff]
        %v1269 = vld [vmem:[%s1256 + $0x60] sm:$0xff]
        %v1270 = vld [vmem:[%s1256 + $0x68] sm:$0xff]
        %v1271 = vld [vmem:[%s1256 + $0x70] sm:$0xff]
        %v1272 = vld [vmem:[%s1256 + $0x78] sm:$0xff]
        %v1273 = vld [vmem:[%s1256 + $0x80] sm:$0xff]
        %v1274 = vld [vmem:[%s1256 + $0x88] sm:$0xff]
        %v1275 = vld [vmem:[%s1256 + $0x90] sm:$0xff]
        %v1276 = vld [vmem:[%s1256 + $0x98] sm:$0xff]
        %v1277 = vld [vmem:[%s1256 + $0xa0] sm:$0xff]
        %v1278 = vld [vmem:[%s1256 + $0xa8] sm:$0xff]
        %v1279 = vld [vmem:[%s1256 + $0xb0] sm:$0xff]
        %v1280 = vld [vmem:[%s1256 + $0xb8] sm:$0xff]
        %v1281 = vld [vmem:[%s1256 + $0xc0] sm:$0xff]
        %v1282 = vld [vmem:[%s1256 + $0xc8] sm:$0xff]
        %v1283 = vld [vmem:[%s1256 + $0xd0] sm:$0xff]
        %v1284 = vld [vmem:[%s1256 + $0xd8] sm:$0xff]
        %v1285 = vld [vmem:[%s1256 + $0xe0] sm:$0xff]
        %v1286 = vld [vmem:[%s1256 + $0xe8] sm:$0xff]
        %v1287 = vld [vmem:[%s1256 + $0xf0] sm:$0xff]
        %v1288 = vld [vmem:[%s1256 + $0xf8] sm:$0xff]
        %v1289 = vld [vmem:[%s1256 + $0x100] sm:$0xff]
        %v1290 = vld [vmem:[%s1256 + $0x108] sm:$0xff]
        %v1291 = vld [vmem:[%s1256 + $0x110] sm:$0xff]
        %v1292 = vld [vmem:[%s1256 + $0x118] sm:$0xff]
        %v1293 = vld [vmem:[%s1256 + $0x120] sm:$0xff]
        %v1294 = vld [vmem:[%s1256 + $0x128] sm:$0xff]
        %v1295 = vld [vmem:[%s1256 + $0x130] sm:$0xff]
        %v1296 = vld [vmem:[%s1256 + $0x138] sm:$0xff]
        %v1297 = vld [vmem:[%s1256 + $0x140] sm:$0xff]
        %v1298 = vld [vmem:[%s1256 + $0x148] sm:$0xff]
        %v1299 = vld [vmem:[%s1256 + $0x150] sm:$0xff]
        %v1300 = vld [vmem:[%s1256 + $0x158] sm:$0xff]
        %v1301 = vld [vmem:[%s1256 + $0x160] sm:$0xff]
        %v1302 = vld [vmem:[%s1256 + $0x168] sm:$0xff]
        %v1303 = vld [vmem:[%s1256 + $0x170] sm:$0xff]
        %v1304 = vld [vmem:[%s1256 + $0x178] sm:$0xff]
        %1305 = vmatprep.subr.mxu0 0.0
        %1306 = vmatpush1.msra.mxu0 %v1257
        %1307 = vmatprep.subr.mxu0 0.0
        %1308 = vmatpush1.msra.mxu0 %v1258
        %1309 = vmatprep.subr.mxu0 0.0
        %1310 = vmatpush1.msra.mxu0 %v1259
        %1311 = vmatprep.subr.mxu0 0.0
        %1312 = vmatpush1.msra.mxu0 %v1260
        %1313 = vmatprep.subr.mxu0 0.0
        %1314 = vmatpush1.msra.mxu0 %v1261
        %1315 = vmatprep.subr.mxu0 0.0
        %1316 = vmatpush1.msra.mxu0 %v1262
        %1317 = vmatprep.subr.mxu0 0.0
        %1318 = vmatpush1.msra.mxu0 %v1263
        %1319 = vmatprep.subr.mxu0 0.0
        %1320 = vmatpush1.msra.mxu0 %v1264
        %1321 = vmatprep.subr.mxu0 0.0
        %1322 = vmatpush1.msra.mxu0 %v1265
        %1323 = vmatprep.subr.mxu0 0.0
        %1324 = vmatpush1.msra.mxu0 %v1266
        %1325 = vmatprep.subr.mxu0 0.0
        %1326 = vmatpush1.msra.mxu0 %v1267
        %1327 = vmatprep.subr.mxu0 0.0
        %1328 = vmatpush1.msra.mxu0 %v1268
        %1329 = vmatprep.subr.mxu0 0.0
        %1330 = vmatpush1.msra.mxu0 %v1269
        %1331 = vmatprep.subr.mxu0 0.0
        %1332 = vmatpush1.msra.mxu0 %v1270
        %1333 = vmatprep.subr.mxu0 0.0
        %1334 = vmatpush1.msra.mxu0 %v1271
        %1335 = vmatprep.subr.mxu0 0.0
        %1336 = vmatpush1.msra.mxu0 %v1272
        %1337 = vmatprep.subr.mxu0 0.0
        %1338 = vmatpush1.msra.mxu0 %v1273
        %1339 = vmatprep.subr.mxu0 0.0
        %1340 = vmatpush1.msra.mxu0 %v1274
        %1341 = vmatprep.subr.mxu0 0.0
        %1342 = vmatpush1.msra.mxu0 %v1275
        %1343 = vmatprep.subr.mxu0 0.0
        %1344 = vmatpush1.msra.mxu0 %v1276
        %1345 = vmatprep.subr.mxu0 0.0
        %1346 = vmatpush1.msra.mxu0 %v1277
        %1347 = vmatprep.subr.mxu0 0.0
        %1348 = vmatpush1.msra.mxu0 %v1278
        %1349 = vmatprep.subr.mxu0 0.0
        %1350 = vmatpush1.msra.mxu0 %v1279
        %1351 = vmatprep.subr.mxu0 0.0
        %1352 = vmatpush1.msra.mxu0 %v1280
        %1353 = vmatprep.subr.mxu0 0.0
        %1354 = vmatpush1.msra.mxu0 %v1281
        %1355 = vmatprep.subr.mxu0 0.0
        %1356 = vmatpush1.msra.mxu0 %v1282
        %1357 = vmatprep.subr.mxu0 0.0
        %1358 = vmatpush1.msra.mxu0 %v1283
        %1359 = vmatprep.subr.mxu0 0.0
        %1360 = vmatpush1.msra.mxu0 %v1284
        %1361 = vmatprep.subr.mxu0 0.0
        %1362 = vmatpush1.msra.mxu0 %v1285
        %1363 = vmatprep.subr.mxu0 0.0
        %1364 = vmatpush1.msra.mxu0 %v1286
        %1365 = vmatprep.subr.mxu0 0.0
        %1366 = vmatpush1.msra.mxu0 %v1287
        %1367 = vmatprep.subr.mxu0 0.0
        %1368 = vmatpush1.msra.mxu0 %v1288
        %1369 = vmatprep.mubr.f32.mxu0 %v1161
        %1370 = vmatmul.mubr.f32.gmra.mrb[0].mxu0 %v1160
        %v1371 = vpop.f32.mrb[0].mxu0
        %v1372 = vadd.f32 0.0, %v1371
        %v1373 = vpop.f32.mrb[0].mxu0
        %1374 = vmatprep.mubr.f32.mxu0 %v1164
        %1375 = vmatmul.mubr.f32.gmra.mrb[0].mxu0 %v1163
        %v1376 = vpop.f32.mrb[0].mxu0
        %v1377 = vadd.f32 0.0, %v1376
        %v1378 = vpop.f32.mrb[0].mxu0
        %1379 = vmatprep.mubr.f32.mxu0 %v1167
        %1380 = vmatmul.mubr.f32.gmra.mrb[0].mxu0 %v1166
        %v1381 = vpop.f32.mrb[0].mxu0
        %v1382 = vadd.f32 0.0, %v1381
        %v1383 = vpop.f32.mrb[0].mxu0
        %1384 = vmatprep.mubr.f32.mxu0 %v1170
        %1385 = vmatmul.mubr.f32.gmra.mrb[0].mxu0 %v1169
        %v1386 = vpop.f32.mrb[0].mxu0
        %v1387 = vadd.f32 0.0, %v1386
        %v1388 = vpop.f32.mrb[0].mxu0
        %1389 = vmatprep.mubr.f32.mxu0 %v1173
        %1390 = vmatmul.mubr.f32.gmra.mrb[0].mxu0 %v1172
        %v1391 = vpop.f32.mrb[0].mxu0
        %v1392 = vadd.f32 0.0, %v1391
        %v1393 = vpop.f32.mrb[0].mxu0
        %1394 = vmatprep.mubr.f32.mxu0 %v1176
        %1395 = vmatmul.mubr.f32.gmra.mrb[0].mxu0 %v1175
        %v1396 = vpop.f32.mrb[0].mxu0
        %v1397 = vadd.f32 0.0, %v1396
        %v1398 = vpop.f32.mrb[0].mxu0
        %1399 = vmatprep.mubr.f32.mxu0 %v1179
        %1400 = vmatmul.mubr.f32.gmra.mrb[0].mxu0 %v1178
        %v1401 = vpop.f32.mrb[0].mxu0
        %v1402 = vadd.f32 0.0, %v1401
        %v1403 = vpop.f32.mrb[0].mxu0
        %1404 = vmatprep.mubr.f32.mxu0 %v1182
        %1405 = vmatmul.mubr.f32.gmra.mrb[0].mxu0 %v1181
        %v1406 = vpop.f32.mrb[0].mxu0
        %v1407 = vadd.f32 0.0, %v1406
        %v1408 = vpop.f32.mrb[0].mxu0
        %1409 = vmatprep.mubr.f32.mxu0 %v1185
        %1410 = vmatmul.mubr.f32.gmra.mrb[0].mxu0 %v1184
        %v1411 = vpop.f32.mrb[0].mxu0
        %v1412 = vadd.f32 0.0, %v1411
        %v1413 = vpop.f32.mrb[0].mxu0
        %1414 = vmatprep.mubr.f32.mxu0 %v1188
        %1415 = vmatmul.mubr.f32.gmra.mrb[0].mxu0 %v1187
        %v1416 = vpop.f32.mrb[0].mxu0
        %v1417 = vadd.f32 0.0, %v1416
        %v1418 = vpop.f32.mrb[0].mxu0
        %1419 = vmatprep.mubr.f32.mxu0 %v1191
        %1420 = vmatmul.mubr.f32.gmra.mrb[0].mxu0 %v1190
        %v1421 = vpop.f32.mrb[0].mxu0
        %v1422 = vadd.f32 0.0, %v1421
        %v1423 = vpop.f32.mrb[0].mxu0
        %1424 = vmatprep.mubr.f32.mxu0 %v1194
        %1425 = vmatmul.mubr.f32.gmra.mrb[0].mxu0 %v1193
        %v1426 = vpop.f32.mrb[0].mxu0
        %v1427 = vadd.f32 0.0, %v1426
        %v1428 = vpop.f32.mrb[0].mxu0
        %1429 = vmatprep.mubr.f32.mxu0 %v1197
        %1430 = vmatmul.mubr.f32.gmra.mrb[0].mxu0 %v1196
        %v1431 = vpop.f32.mrb[0].mxu0
        %v1432 = vadd.f32 0.0, %v1431
        %v1433 = vpop.f32.mrb[0].mxu0
        %1434 = vmatprep.mubr.f32.mxu0 %v1200
        %1435 = vmatmul.mubr.f32.gmra.mrb[0].mxu0 %v1199
        %v1436 = vpop.f32.mrb[0].mxu0
        %v1437 = vadd.f32 0.0, %v1436
        %v1438 = vpop.f32.mrb[0].mxu0
        %1439 = vmatprep.mubr.f32.mxu0 %v1203
        %1440 = vmatmul.mubr.f32.gmra.mrb[0].mxu0 %v1202
        %v1441 = vpop.f32.mrb[0].mxu0
        %v1442 = vadd.f32 0.0, %v1441
        %v1443 = vpop.f32.mrb[0].mxu0
        %1444 = vmatprep.mubr.f32.mxu0 %v1206
        %1445 = vmatmul.mubr.f32.gmra.mrb[0].mxu0 %v1205
        %v1446 = vpop.f32.mrb[0].mxu0
        %v1447 = vadd.f32 0.0, %v1446
        %v1448 = vpop.f32.mrb[0].mxu0
        %1449 = vmatprep.mubr.f32.mxu0 %v1209
        %1450 = vmatmul.mubr.f32.gmra.mrb[0].mxu0 %v1208
        %v1451 = vpop.f32.mrb[0].mxu0
        %v1452 = vadd.f32 0.0, %v1451
        %v1453 = vpop.f32.mrb[0].mxu0
        %1454 = vmatprep.mubr.f32.mxu0 %v1212
        %1455 = vmatmul.mubr.f32.gmra.mrb[0].mxu0 %v1211
        %v1456 = vpop.f32.mrb[0].mxu0
        %v1457 = vadd.f32 0.0, %v1456
        %v1458 = vpop.f32.mrb[0].mxu0
        %1459 = vmatprep.mubr.f32.mxu0 %v1215
        %1460 = vmatmul.mubr.f32.gmra.mrb[0].mxu0 %v1214
        %v1461 = vpop.f32.mrb[0].mxu0
        %v1462 = vadd.f32 0.0, %v1461
        %v1463 = vpop.f32.mrb[0].mxu0
        %1464 = vmatprep.mubr.f32.mxu0 %v1218
        %1465 = vmatmul.mubr.f32.gmra.mrb[0].mxu0 %v1217
        %v1466 = vpop.f32.mrb[0].mxu0
        %v1467 = vadd.f32 0.0, %v1466
        %v1468 = vpop.f32.mrb[0].mxu0
        %1469 = vmatprep.mubr.f32.mxu0 %v1221
        %1470 = vmatmul.mubr.f32.gmra.mrb[0].mxu0 %v1220
        %v1471 = vpop.f32.mrb[0].mxu0
        %v1472 = vadd.f32 0.0, %v1471
        %v1473 = vpop.f32.mrb[0].mxu0
        %1474 = vmatprep.mubr.f32.mxu0 %v1224
        %1475 = vmatmul.mubr.f32.gmra.mrb[0].mxu0 %v1223
        %v1476 = vpop.f32.mrb[0].mxu0
        %v1477 = vadd.f32 0.0, %v1476
        %v1478 = vpop.f32.mrb[0].mxu0
        %1479 = vmatprep.mubr.f32.mxu0 %v1227
        %1480 = vmatmul.mubr.f32.gmra.mrb[0].mxu0 %v1226
        %v1481 = vpop.f32.mrb[0].mxu0
        %v1482 = vadd.f32 0.0, %v1481
        %v1483 = vpop.f32.mrb[0].mxu0
        %1484 = vmatprep.mubr.f32.mxu0 %v1230
        %1485 = vmatmul.mubr.f32.gmra.mrb[0].mxu0 %v1229
        %v1486 = vpop.f32.mrb[0].mxu0
        %v1487 = vadd.f32 0.0, %v1486
        %v1488 = vpop.f32.mrb[0].mxu0
        %1489 = vmatprep.mubr.f32.mxu0 %v1233
        %1490 = vmatmul.mubr.f32.gmra.mrb[0].mxu0 %v1232
        %v1491 = vpop.f32.mrb[0].mxu0
        %v1492 = vadd.f32 0.0, %v1491
        %v1493 = vpop.f32.mrb[0].mxu0
        %1494 = vmatprep.mubr.f32.mxu0 %v1236
        %1495 = vmatmul.mubr.f32.gmra.mrb[0].mxu0 %v1235
        %v1496 = vpop.f32.mrb[0].mxu0
        %v1497 = vadd.f32 0.0, %v1496
        %v1498 = vpop.f32.mrb[0].mxu0
        %1499 = vmatprep.mubr.f32.mxu0 %v1239
        %1500 = vmatmul.mubr.f32.gmra.mrb[0].mxu0 %v1238
        %v1501 = vpop.f32.mrb[0].mxu0
        %v1502 = vadd.f32 0.0, %v1501
        %v1503 = vpop.f32.mrb[0].mxu0
        %1504 = vmatprep.mubr.f32.mxu0 %v1242
        %1505 = vmatmul.mubr.f32.gmra.mrb[0].mxu0 %v1241
        %v1506 = vpop.f32.mrb[0].mxu0
        %v1507 = vadd.f32 0.0, %v1506
        %v1508 = vpop.f32.mrb[0].mxu0
        %1509 = vmatprep.mubr.f32.mxu0 %v1245
        %1510 = vmatmul.mubr.f32.gmra.mrb[0].mxu0 %v1244
        %v1511 = vpop.f32.mrb[0].mxu0
        %v1512 = vadd.f32 0.0, %v1511
        %v1513 = vpop.f32.mrb[0].mxu0
        %1514 = vmatprep.mubr.f32.mxu0 %v1248
        %1515 = vmatmul.mubr.f32.gmra.mrb[0].mxu0 %v1247
        %v1516 = vpop.f32.mrb[0].mxu0
        %v1517 = vadd.f32 0.0, %v1516
        %v1518 = vpop.f32.mrb[0].mxu0
        %1519 = vmatprep.mubr.f32.mxu0 %v1251
        %1520 = vmatmul.mubr.f32.gmra.mrb[0].mxu0 %v1250
        %v1521 = vpop.f32.mrb[0].mxu0
        %v1522 = vadd.f32 0.0, %v1521
        %v1523 = vpop.f32.mrb[0].mxu0
        %1524 = vmatprep.mubr.f32.mxu0 %v1254
        %1525 = vmatmul.mubr.f32.gmra.mrb[0].mxu0 %v1253
        %v1526 = vpop.f32.mrb[0].mxu0
        %v1527 = vadd.f32 0.0, %v1526
        %v1528 = vpop.f32.mrb[0].mxu0
        %1529 = vdwg.mxu0
        %1530 = vmatprep.subr.mxu0 0.0
        %1531 = vmatpush1.msra.mxu0 %v1289
        %1532 = vmatprep.subr.mxu0 0.0
        %1533 = vmatpush1.msra.mxu0 %v1290
        %1534 = vmatprep.subr.mxu0 0.0
        %1535 = vmatpush1.msra.mxu0 %v1291
        %1536 = vmatprep.subr.mxu0 0.0
        %1537 = vmatpush1.msra.mxu0 %v1292
        %1538 = vmatprep.subr.mxu0 0.0
        %1539 = vmatpush1.msra.mxu0 %v1293
        %1540 = vmatprep.subr.mxu0 0.0
        %1541 = vmatpush1.msra.mxu0 %v1294
        %1542 = vmatprep.subr.mxu0 0.0
        %1543 = vmatpush1.msra.mxu0 %v1295
        %1544 = vmatprep.subr.mxu0 0.0
        %1545 = vmatpush1.msra.mxu0 %v1296
        %1546 = vmatprep.subr.mxu0 0.0
        %1547 = vmatpush1.msra.mxu0 %v1297
        %1548 = vmatprep.subr.mxu0 0.0
        %1549 = vmatpush1.msra.mxu0 %v1298
        %1550 = vmatprep.subr.mxu0 0.0
        %1551 = vmatpush1.msra.mxu0 %v1299
        %1552 = vmatprep.subr.mxu0 0.0
        %1553 = vmatpush1.msra.mxu0 %v1300
        %1554 = vmatprep.subr.mxu0 0.0
        %1555 = vmatpush1.msra.mxu0 %v1301
        %1556 = vmatprep.subr.mxu0 0.0
        %1557 = vmatpush1.msra.mxu0 %v1302
        %1558 = vmatprep.subr.mxu0 0.0
        %1559 = vmatpush1.msra.mxu0 %v1303
        %1560 = vmatprep.subr.mxu0 0.0
        %1561 = vmatpush1.msra.mxu0 %v1304
        %1562 = vmatprep.subr.mxu0 0.0
        %1563 = vmatpush1.msra.mxu0 0.0
        %1564 = vmatprep.subr.mxu0 0.0
        %1565 = vmatpush1.msra.mxu0 0.0
        %1566 = vmatprep.subr.mxu0 0.0
        %1567 = vmatpush1.msra.mxu0 0.0
        %1568 = vmatprep.subr.mxu0 0.0
        %1569 = vmatpush1.msra.mxu0 0.0
        %1570 = vmatprep.subr.mxu0 0.0
        %1571 = vmatpush1.msra.mxu0 0.0
        %1572 = vmatprep.subr.mxu0 0.0
        %1573 = vmatpush1.msra.mxu0 0.0
        %1574 = vmatprep.subr.mxu0 0.0
        %1575 = vmatpush1.msra.mxu0 0.0
        %1576 = vmatprep.subr.mxu0 0.0
        %1577 = vmatpush1.msra.mxu0 0.0
        %1578 = vmatprep.subr.mxu0 0.0
        %1579 = vmatpush1.msra.mxu0 0.0
        %1580 = vmatprep.subr.mxu0 0.0
        %1581 = vmatpush1.msra.mxu0 0.0
        %1582 = vmatprep.subr.mxu0 0.0
        %1583 = vmatpush1.msra.mxu0 0.0
        %1584 = vmatprep.subr.mxu0 0.0
        %1585 = vmatpush1.msra.mxu0 0.0
        %1586 = vmatprep.subr.mxu0 0.0
        %1587 = vmatpush1.msra.mxu0 0.0
        %1588 = vmatprep.subr.mxu0 0.0
        %1589 = vmatpush1.msra.mxu0 0.0
        %1590 = vmatprep.subr.mxu0 0.0
        %1591 = vmatpush1.msra.mxu0 0.0
        %1592 = vmatprep.subr.mxu0 0.0
        %1593 = vmatpush1.msra.mxu0 0.0
        %1594 = vmatprep.mubr.f32.mxu0 0.0
        %1595 = vmatmul.mubr.f32.gmra.mrb[0].mxu0 %v1162
        %v1596 = vpop.f32.mrb[0].mxu0
        %v1597 = vadd.f32 %v1372, %v1596
        %v1598 = vpop.f32.mrb[0].mxu0
        %1599 = vmatprep.mubr.f32.mxu0 0.0
        %1600 = vmatmul.mubr.f32.gmra.mrb[0].mxu0 %v1165
        %v1601 = vpop.f32.mrb[0].mxu0
        %v1602 = vadd.f32 %v1377, %v1601
        %v1603 = vpop.f32.mrb[0].mxu0
        %1604 = vmatprep.mubr.f32.mxu0 0.0
        %1605 = vmatmul.mubr.f32.gmra.mrb[0].mxu0 %v1168
        %v1606 = vpop.f32.mrb[0].mxu0
        %v1607 = vadd.f32 %v1382, %v1606
        %v1608 = vpop.f32.mrb[0].mxu0
        %1609 = vmatprep.mubr.f32.mxu0 0.0
        %1610 = vmatmul.mubr.f32.gmra.mrb[0].mxu0 %v1171
        %v1611 = vpop.f32.mrb[0].mxu0
        %v1612 = vadd.f32 %v1387, %v1611
        %v1613 = vpop.f32.mrb[0].mxu0
        %1614 = vmatprep.mubr.f32.mxu0 0.0
        %1615 = vmatmul.mubr.f32.gmra.mrb[0].mxu0 %v1174
        %v1616 = vpop.f32.mrb[0].mxu0
        %v1617 = vadd.f32 %v1392, %v1616
        %v1618 = vpop.f32.mrb[0].mxu0
        %1619 = vmatprep.mubr.f32.mxu0 0.0
        %1620 = vmatmul.mubr.f32.gmra.mrb[0].mxu0 %v1177
        %v1621 = vpop.f32.mrb[0].mxu0
        %v1622 = vadd.f32 %v1397, %v1621
        %v1623 = vpop.f32.mrb[0].mxu0
        %1624 = vmatprep.mubr.f32.mxu0 0.0
        %1625 = vmatmul.mubr.f32.gmra.mrb[0].mxu0 %v1180
        %v1626 = vpop.f32.mrb[0].mxu0
        %v1627 = vadd.f32 %v1402, %v1626
        %v1628 = vpop.f32.mrb[0].mxu0
        %1629 = vmatprep.mubr.f32.mxu0 0.0
        %1630 = vmatmul.mubr.f32.gmra.mrb[0].mxu0 %v1183
        %v1631 = vpop.f32.mrb[0].mxu0
        %v1632 = vadd.f32 %v1407, %v1631
        %v1633 = vpop.f32.mrb[0].mxu0
        %1634 = vmatprep.mubr.f32.mxu0 0.0
        %1635 = vmatmul.mubr.f32.gmra.mrb[0].mxu0 %v1186
        %v1636 = vpop.f32.mrb[0].mxu0
        %v1637 = vadd.f32 %v1412, %v1636
        %v1638 = vpop.f32.mrb[0].mxu0
        %1639 = vmatprep.mubr.f32.mxu0 0.0
        %1640 = vmatmul.mubr.f32.gmra.mrb[0].mxu0 %v1189
        %v1641 = vpop.f32.mrb[0].mxu0
        %v1642 = vadd.f32 %v1417, %v1641
        %v1643 = vpop.f32.mrb[0].mxu0
        %1644 = vmatprep.mubr.f32.mxu0 0.0
        %1645 = vmatmul.mubr.f32.gmra.mrb[0].mxu0 %v1192
        %v1646 = vpop.f32.mrb[0].mxu0
        %v1647 = vadd.f32 %v1422, %v1646
        %v1648 = vpop.f32.mrb[0].mxu0
        %1649 = vmatprep.mubr.f32.mxu0 0.0
        %1650 = vmatmul.mubr.f32.gmra.mrb[0].mxu0 %v1195
        %v1651 = vpop.f32.mrb[0].mxu0
        %v1652 = vadd.f32 %v1427, %v1651
        %v1653 = vpop.f32.mrb[0].mxu0
        %1654 = vmatprep.mubr.f32.mxu0 0.0
        %1655 = vmatmul.mubr.f32.gmra.mrb[0].mxu0 %v1198
        %v1656 = vpop.f32.mrb[0].mxu0
        %v1657 = vadd.f32 %v1432, %v1656
        %v1658 = vpop.f32.mrb[0].mxu0
        %1659 = vmatprep.mubr.f32.mxu0 0.0
        %1660 = vmatmul.mubr.f32.gmra.mrb[0].mxu0 %v1201
        %v1661 = vpop.f32.mrb[0].mxu0
        %v1662 = vadd.f32 %v1437, %v1661
        %v1663 = vpop.f32.mrb[0].mxu0
        %1664 = vmatprep.mubr.f32.mxu0 0.0
        %1665 = vmatmul.mubr.f32.gmra.mrb[0].mxu0 %v1204
        %v1666 = vpop.f32.mrb[0].mxu0
        %v1667 = vadd.f32 %v1442, %v1666
        %v1668 = vpop.f32.mrb[0].mxu0
        %1669 = vmatprep.mubr.f32.mxu0 0.0
        %1670 = vmatmul.mubr.f32.gmra.mrb[0].mxu0 %v1207
        %v1671 = vpop.f32.mrb[0].mxu0
        %v1672 = vadd.f32 %v1447, %v1671
        %v1673 = vpop.f32.mrb[0].mxu0
        %1674 = vmatprep.mubr.f32.mxu0 0.0
        %1675 = vmatmul.mubr.f32.gmra.mrb[0].mxu0 %v1210
        %v1676 = vpop.f32.mrb[0].mxu0
        %v1677 = vadd.f32 %v1452, %v1676
        %v1678 = vpop.f32.mrb[0].mxu0
        %1679 = vmatprep.mubr.f32.mxu0 0.0
        %1680 = vmatmul.mubr.f32.gmra.mrb[0].mxu0 %v1213
        %v1681 = vpop.f32.mrb[0].mxu0
        %v1682 = vadd.f32 %v1457, %v1681
        %v1683 = vpop.f32.mrb[0].mxu0
        %1684 = vmatprep.mubr.f32.mxu0 0.0
        %1685 = vmatmul.mubr.f32.gmra.mrb[0].mxu0 %v1216
        %v1686 = vpop.f32.mrb[0].mxu0
        %v1687 = vadd.f32 %v1462, %v1686
        %v1688 = vpop.f32.mrb[0].mxu0
        %1689 = vmatprep.mubr.f32.mxu0 0.0
        %1690 = vmatmul.mubr.f32.gmra.mrb[0].mxu0 %v1219
        %v1691 = vpop.f32.mrb[0].mxu0
        %v1692 = vadd.f32 %v1467, %v1691
        %v1693 = vpop.f32.mrb[0].mxu0
        %1694 = vmatprep.mubr.f32.mxu0 0.0
        %1695 = vmatmul.mubr.f32.gmra.mrb[0].mxu0 %v1222
        %v1696 = vpop.f32.mrb[0].mxu0
        %v1697 = vadd.f32 %v1472, %v1696
        %v1698 = vpop.f32.mrb[0].mxu0
        %1699 = vmatprep.mubr.f32.mxu0 0.0
        %1700 = vmatmul.mubr.f32.gmra.mrb[0].mxu0 %v1225
        %v1701 = vpop.f32.mrb[0].mxu0
        %v1702 = vadd.f32 %v1477, %v1701
        %v1703 = vpop.f32.mrb[0].mxu0
        %1704 = vmatprep.mubr.f32.mxu0 0.0
        %1705 = vmatmul.mubr.f32.gmra.mrb[0].mxu0 %v1228
        %v1706 = vpop.f32.mrb[0].mxu0
        %v1707 = vadd.f32 %v1482, %v1706
        %v1708 = vpop.f32.mrb[0].mxu0
        %1709 = vmatprep.mubr.f32.mxu0 0.0
        %1710 = vmatmul.mubr.f32.gmra.mrb[0].mxu0 %v1231
        %v1711 = vpop.f32.mrb[0].mxu0
        %v1712 = vadd.f32 %v1487, %v1711
        %v1713 = vpop.f32.mrb[0].mxu0
        %1714 = vmatprep.mubr.f32.mxu0 0.0
        %1715 = vmatmul.mubr.f32.gmra.mrb[0].mxu0 %v1234
        %v1716 = vpop.f32.mrb[0].mxu0
        %v1717 = vadd.f32 %v1492, %v1716
        %v1718 = vpop.f32.mrb[0].mxu0
        %1719 = vmatprep.mubr.f32.mxu0 0.0
        %1720 = vmatmul.mubr.f32.gmra.mrb[0].mxu0 %v1237
        %v1721 = vpop.f32.mrb[0].mxu0
        %v1722 = vadd.f32 %v1497, %v1721
        %v1723 = vpop.f32.mrb[0].mxu0
        %1724 = vmatprep.mubr.f32.mxu0 0.0
        %1725 = vmatmul.mubr.f32.gmra.mrb[0].mxu0 %v1240
        %v1726 = vpop.f32.mrb[0].mxu0
        %v1727 = vadd.f32 %v1502, %v1726
        %v1728 = vpop.f32.mrb[0].mxu0
        %1729 = vmatprep.mubr.f32.mxu0 0.0
        %1730 = vmatmul.mubr.f32.gmra.mrb[0].mxu0 %v1243
        %v1731 = vpop.f32.mrb[0].mxu0
        %v1732 = vadd.f32 %v1507, %v1731
        %v1733 = vpop.f32.mrb[0].mxu0
        %1734 = vmatprep.mubr.f32.mxu0 0.0
        %1735 = vmatmul.mubr.f32.gmra.mrb[0].mxu0 %v1246
        %v1736 = vpop.f32.mrb[0].mxu0
        %v1737 = vadd.f32 %v1512, %v1736
        %v1738 = vpop.f32.mrb[0].mxu0
        %1739 = vmatprep.mubr.f32.mxu0 0.0
        %1740 = vmatmul.mubr.f32.gmra.mrb[0].mxu0 %v1249
        %v1741 = vpop.f32.mrb[0].mxu0
        %v1742 = vadd.f32 %v1517, %v1741
        %v1743 = vpop.f32.mrb[0].mxu0
        %1744 = vmatprep.mubr.f32.mxu0 0.0
        %1745 = vmatmul.mubr.f32.gmra.mrb[0].mxu0 %v1252
        %v1746 = vpop.f32.mrb[0].mxu0
        %v1747 = vadd.f32 %v1522, %v1746
        %v1748 = vpop.f32.mrb[0].mxu0
        %1749 = vmatprep.mubr.f32.mxu0 0.0
        %1750 = vmatmul.mubr.f32.gmra.mrb[0].mxu0 %v1255
        %v1751 = vpop.f32.mrb[0].mxu0
        %v1752 = vadd.f32 %v1527, %v1751
        %v1753 = vpop.f32.mrb[0].mxu0
        %1754 = vdwg.mxu0
        %1755 = vmatprep.subr.mxu0 0.0
        %1756 = vmatpush1.msra.mxu0 %v1111
        %1757 = vmatprep.subr.mxu0 0.0
        %1758 = vmatpush1.msra.mxu0 %v1112
        %1759 = vmatprep.subr.mxu0 0.0
        %1760 = vmatpush1.msra.mxu0 %v1113
        %1761 = vmatprep.subr.mxu0 0.0
        %1762 = vmatpush1.msra.mxu0 %v1114
        %1763 = vmatprep.subr.mxu0 0.0
        %1764 = vmatpush1.msra.mxu0 %v1115
        %1765 = vmatprep.subr.mxu0 0.0
        %1766 = vmatpush1.msra.mxu0 %v1116
        %1767 = vmatprep.subr.mxu0 0.0
        %1768 = vmatpush1.msra.mxu0 %v1117
        %1769 = vmatprep.subr.mxu0 0.0
        %1770 = vmatpush1.msra.mxu0 %v1118
        %1771 = vmatprep.subr.mxu0 0.0
        %1772 = vmatpush1.msra.mxu0 %v1119
        %1773 = vmatprep.subr.mxu0 0.0
        %1774 = vmatpush1.msra.mxu0 %v1120
        %1775 = vmatprep.subr.mxu0 0.0
        %1776 = vmatpush1.msra.mxu0 %v1121
        %1777 = vmatprep.subr.mxu0 0.0
        %1778 = vmatpush1.msra.mxu0 %v1122
        %1779 = vmatprep.subr.mxu0 0.0
        %1780 = vmatpush1.msra.mxu0 %v1123
        %1781 = vmatprep.subr.mxu0 0.0
        %1782 = vmatpush1.msra.mxu0 %v1124
        %1783 = vmatprep.subr.mxu0 0.0
        %1784 = vmatpush1.msra.mxu0 %v1125
        %1785 = vmatprep.subr.mxu0 0.0
        %1786 = vmatpush1.msra.mxu0 %v1126
        %1787 = vmatprep.subr.mxu0 0.0
        %1788 = vmatpush1.msra.mxu0 %v1127
        %1789 = vmatprep.subr.mxu0 0.0
        %1790 = vmatpush1.msra.mxu0 %v1128
        %1791 = vmatprep.subr.mxu0 0.0
        %1792 = vmatpush1.msra.mxu0 %v1129
        %1793 = vmatprep.subr.mxu0 0.0
        %1794 = vmatpush1.msra.mxu0 %v1130
        %1795 = vmatprep.subr.mxu0 0.0
        %1796 = vmatpush1.msra.mxu0 %v1131
        %1797 = vmatprep.subr.mxu0 0.0
        %1798 = vmatpush1.msra.mxu0 %v1132
        %1799 = vmatprep.subr.mxu0 0.0
        %1800 = vmatpush1.msra.mxu0 %v1133
        %1801 = vmatprep.subr.mxu0 0.0
        %1802 = vmatpush1.msra.mxu0 %v1134
        %1803 = vmatprep.subr.mxu0 0.0
        %1804 = vmatpush1.msra.mxu0 %v1135
        %1805 = vmatprep.subr.mxu0 0.0
        %1806 = vmatpush1.msra.mxu0 %v1136
        %1807 = vmatprep.subr.mxu0 0.0
        %1808 = vmatpush1.msra.mxu0 %v1137
        %1809 = vmatprep.subr.mxu0 0.0
        %1810 = vmatpush1.msra.mxu0 %v1138
        %1811 = vmatprep.subr.mxu0 0.0
        %1812 = vmatpush1.msra.mxu0 %v1139
        %1813 = vmatprep.subr.mxu0 0.0
        %1814 = vmatpush1.msra.mxu0 %v1140
        %1815 = vmatprep.subr.mxu0 0.0
        %1816 = vmatpush1.msra.mxu0 %v1141
        %1817 = vmatprep.subr.mxu0 0.0
        %1818 = vmatpush1.msra.mxu0 %v1142
        %1819 = vmatprep.mubr.f32.mxu0 %v1016
        %1820 = vmatmul.mubr.f32.gmra.mrb[0].mxu0 %v1015
        %v1821 = vpop.f32.mrb[0].mxu0
        %v1822 = vadd.f32 %v1597, %v1821
        %v1823 = vpop.f32.mrb[0].mxu0
        %1824 = vmatprep.mubr.f32.mxu0 %v1019
        %1825 = vmatmul.mubr.f32.gmra.mrb[0].mxu0 %v1018
        %v1826 = vpop.f32.mrb[0].mxu0
        %v1827 = vadd.f32 %v1602, %v1826
        %v1828 = vpop.f32.mrb[0].mxu0
        %1829 = vmatprep.mubr.f32.mxu0 %v1022
        %1830 = vmatmul.mubr.f32.gmra.mrb[0].mxu0 %v1021
        %v1831 = vpop.f32.mrb[0].mxu0
        %v1832 = vadd.f32 %v1607, %v1831
        %v1833 = vpop.f32.mrb[0].mxu0
        %1834 = vmatprep.mubr.f32.mxu0 %v1025
        %1835 = vmatmul.mubr.f32.gmra.mrb[0].mxu0 %v1024
        %v1836 = vpop.f32.mrb[0].mxu0
        %v1837 = vadd.f32 %v1612, %v1836
        %v1838 = vpop.f32.mrb[0].mxu0
        %1839 = vmatprep.mubr.f32.mxu0 %v1028
        %1840 = vmatmul.mubr.f32.gmra.mrb[0].mxu0 %v1027
        %v1841 = vpop.f32.mrb[0].mxu0
        %v1842 = vadd.f32 %v1617, %v1841
        %v1843 = vpop.f32.mrb[0].mxu0
        %1844 = vmatprep.mubr.f32.mxu0 %v1031
        %1845 = vmatmul.mubr.f32.gmra.mrb[0].mxu0 %v1030
        %v1846 = vpop.f32.mrb[0].mxu0
        %v1847 = vadd.f32 %v1622, %v1846
        %v1848 = vpop.f32.mrb[0].mxu0
        %1849 = vmatprep.mubr.f32.mxu0 %v1034
        %1850 = vmatmul.mubr.f32.gmra.mrb[0].mxu0 %v1033
        %v1851 = vpop.f32.mrb[0].mxu0
        %v1852 = vadd.f32 %v1627, %v1851
        %v1853 = vpop.f32.mrb[0].mxu0
        %1854 = vmatprep.mubr.f32.mxu0 %v1037
        %1855 = vmatmul.mubr.f32.gmra.mrb[0].mxu0 %v1036
        %v1856 = vpop.f32.mrb[0].mxu0
        %v1857 = vadd.f32 %v1632, %v1856
        %v1858 = vpop.f32.mrb[0].mxu0
        %1859 = vmatprep.mubr.f32.mxu0 %v1040
        %1860 = vmatmul.mubr.f32.gmra.mrb[0].mxu0 %v1039
        %v1861 = vpop.f32.mrb[0].mxu0
        %v1862 = vadd.f32 %v1637, %v1861
        %v1863 = vpop.f32.mrb[0].mxu0
        %1864 = vmatprep.mubr.f32.mxu0 %v1043
        %1865 = vmatmul.mubr.f32.gmra.mrb[0].mxu0 %v1042
        %v1866 = vpop.f32.mrb[0].mxu0
        %v1867 = vadd.f32 %v1642, %v1866
        %v1868 = vpop.f32.mrb[0].mxu0
        %1869 = vmatprep.mubr.f32.mxu0 %v1046
        %1870 = vmatmul.mubr.f32.gmra.mrb[0].mxu0 %v1045
        %v1871 = vpop.f32.mrb[0].mxu0
        %v1872 = vadd.f32 %v1647, %v1871
        %v1873 = vpop.f32.mrb[0].mxu0
        %1874 = vmatprep.mubr.f32.mxu0 %v1049
        %1875 = vmatmul.mubr.f32.gmra.mrb[0].mxu0 %v1048
        %v1876 = vpop.f32.mrb[0].mxu0
        %v1877 = vadd.f32 %v1652, %v1876
        %v1878 = vpop.f32.mrb[0].mxu0
        %1879 = vmatprep.mubr.f32.mxu0 %v1052
        %1880 = vmatmul.mubr.f32.gmra.mrb[0].mxu0 %v1051
        %v1881 = vpop.f32.mrb[0].mxu0
        %v1882 = vadd.f32 %v1657, %v1881
        %v1883 = vpop.f32.mrb[0].mxu0
        %1884 = vmatprep.mubr.f32.mxu0 %v1055
        %1885 = vmatmul.mubr.f32.gmra.mrb[0].mxu0 %v1054
        %v1886 = vpop.f32.mrb[0].mxu0
        %v1887 = vadd.f32 %v1662, %v1886
        %v1888 = vpop.f32.mrb[0].mxu0
        %1889 = vmatprep.mubr.f32.mxu0 %v1058
        %1890 = vmatmul.mubr.f32.gmra.mrb[0].mxu0 %v1057
        %v1891 = vpop.f32.mrb[0].mxu0
        %v1892 = vadd.f32 %v1667, %v1891
        %v1893 = vpop.f32.mrb[0].mxu0
        %1894 = vmatprep.mubr.f32.mxu0 %v1061
        %1895 = vmatmul.mubr.f32.gmra.mrb[0].mxu0 %v1060
        %v1896 = vpop.f32.mrb[0].mxu0
        %v1897 = vadd.f32 %v1672, %v1896
        %v1898 = vpop.f32.mrb[0].mxu0
        %1899 = vmatprep.mubr.f32.mxu0 %v1064
        %1900 = vmatmul.mubr.f32.gmra.mrb[0].mxu0 %v1063
        %v1901 = vpop.f32.mrb[0].mxu0
        %v1902 = vadd.f32 %v1677, %v1901
        %v1903 = vpop.f32.mrb[0].mxu0
        %1904 = vmatprep.mubr.f32.mxu0 %v1067
        %1905 = vmatmul.mubr.f32.gmra.mrb[0].mxu0 %v1066
        %v1906 = vpop.f32.mrb[0].mxu0
        %v1907 = vadd.f32 %v1682, %v1906
        %v1908 = vpop.f32.mrb[0].mxu0
        %1909 = vmatprep.mubr.f32.mxu0 %v1070
        %1910 = vmatmul.mubr.f32.gmra.mrb[0].mxu0 %v1069
        %v1911 = vpop.f32.mrb[0].mxu0
        %v1912 = vadd.f32 %v1687, %v1911
        %v1913 = vpop.f32.mrb[0].mxu0
        %1914 = vmatprep.mubr.f32.mxu0 %v1073
        %1915 = vmatmul.mubr.f32.gmra.mrb[0].mxu0 %v1072
        %v1916 = vpop.f32.mrb[0].mxu0
        %v1917 = vadd.f32 %v1692, %v1916
        %v1918 = vpop.f32.mrb[0].mxu0
        %1919 = vmatprep.mubr.f32.mxu0 %v1076
        %1920 = vmatmul.mubr.f32.gmra.mrb[0].mxu0 %v1075
        %v1921 = vpop.f32.mrb[0].mxu0
        %v1922 = vadd.f32 %v1697, %v1921
        %v1923 = vpop.f32.mrb[0].mxu0
        %1924 = vmatprep.mubr.f32.mxu0 %v1079
        %1925 = vmatmul.mubr.f32.gmra.mrb[0].mxu0 %v1078
        %v1926 = vpop.f32.mrb[0].mxu0
        %v1927 = vadd.f32 %v1702, %v1926
        %v1928 = vpop.f32.mrb[0].mxu0
        %1929 = vmatprep.mubr.f32.mxu0 %v1082
        %1930 = vmatmul.mubr.f32.gmra.mrb[0].mxu0 %v1081
        %v1931 = vpop.f32.mrb[0].mxu0
        %v1932 = vadd.f32 %v1707, %v1931
        %v1933 = vpop.f32.mrb[0].mxu0
        %1934 = vmatprep.mubr.f32.mxu0 %v1085
        %1935 = vmatmul.mubr.f32.gmra.mrb[0].mxu0 %v1084
        %v1936 = vpop.f32.mrb[0].mxu0
        %v1937 = vadd.f32 %v1712, %v1936
        %v1938 = vpop.f32.mrb[0].mxu0
        %1939 = vmatprep.mubr.f32.mxu0 %v1088
        %1940 = vmatmul.mubr.f32.gmra.mrb[0].mxu0 %v1087
        %v1941 = vpop.f32.mrb[0].mxu0
        %v1942 = vadd.f32 %v1717, %v1941
        %v1943 = vpop.f32.mrb[0].mxu0
        %1944 = vmatprep.mubr.f32.mxu0 %v1091
        %1945 = vmatmul.mubr.f32.gmra.mrb[0].mxu0 %v1090
        %v1946 = vpop.f32.mrb[0].mxu0
        %v1947 = vadd.f32 %v1722, %v1946
        %v1948 = vpop.f32.mrb[0].mxu0
        %1949 = vmatprep.mubr.f32.mxu0 %v1094
        %1950 = vmatmul.mubr.f32.gmra.mrb[0].mxu0 %v1093
        %v1951 = vpop.f32.mrb[0].mxu0
        %v1952 = vadd.f32 %v1727, %v1951
        %v1953 = vpop.f32.mrb[0].mxu0
        %1954 = vmatprep.mubr.f32.mxu0 %v1097
        %1955 = vmatmul.mubr.f32.gmra.mrb[0].mxu0 %v1096
        %v1956 = vpop.f32.mrb[0].mxu0
        %v1957 = vadd.f32 %v1732, %v1956
        %v1958 = vpop.f32.mrb[0].mxu0
        %1959 = vmatprep.mubr.f32.mxu0 %v1100
        %1960 = vmatmul.mubr.f32.gmra.mrb[0].mxu0 %v1099
        %v1961 = vpop.f32.mrb[0].mxu0
        %v1962 = vadd.f32 %v1737, %v1961
        %v1963 = vpop.f32.mrb[0].mxu0
        %1964 = vmatprep.mubr.f32.mxu0 %v1103
        %1965 = vmatmul.mubr.f32.gmra.mrb[0].mxu0 %v1102
        %v1966 = vpop.f32.mrb[0].mxu0
        %v1967 = vadd.f32 %v1742, %v1966
        %v1968 = vpop.f32.mrb[0].mxu0
        %1969 = vmatprep.mubr.f32.mxu0 %v1106
        %1970 = vmatmul.mubr.f32.gmra.mrb[0].mxu0 %v1105
        %v1971 = vpop.f32.mrb[0].mxu0
        %v1972 = vadd.f32 %v1747, %v1971
        %v1973 = vpop.f32.mrb[0].mxu0
        %1974 = vmatprep.mubr.f32.mxu0 %v1109
        %1975 = vmatmul.mubr.f32.gmra.mrb[0].mxu0 %v1108
        %v1976 = vpop.f32.mrb[0].mxu0
        %v1977 = vadd.f32 %v1752, %v1976
        %v1978 = vpop.f32.mrb[0].mxu0
        %1979 = vdwg.mxu0
        %1980 = vmatprep.subr.mxu0 0.0
        %1981 = vmatpush1.msra.mxu0 %v1143
        %1982 = vmatprep.subr.mxu0 0.0
        %1983 = vmatpush1.msra.mxu0 %v1144
        %1984 = vmatprep.subr.mxu0 0.0
        %1985 = vmatpush1.msra.mxu0 %v1145
        %1986 = vmatprep.subr.mxu0 0.0
        %1987 = vmatpush1.msra.mxu0 %v1146
        %1988 = vmatprep.subr.mxu0 0.0
        %1989 = vmatpush1.msra.mxu0 %v1147
        %1990 = vmatprep.subr.mxu0 0.0
        %1991 = vmatpush1.msra.mxu0 %v1148
        %1992 = vmatprep.subr.mxu0 0.0
        %1993 = vmatpush1.msra.mxu0 %v1149
        %1994 = vmatprep.subr.mxu0 0.0
        %1995 = vmatpush1.msra.mxu0 %v1150
        %1996 = vmatprep.subr.mxu0 0.0
        %1997 = vmatpush1.msra.mxu0 %v1151
        %1998 = vmatprep.subr.mxu0 0.0
        %1999 = vmatpush1.msra.mxu0 %v1152
        %2000 = vmatprep.subr.mxu0 0.0
        %2001 = vmatpush1.msra.mxu0 %v1153
        %2002 = vmatprep.subr.mxu0 0.0
        %2003 = vmatpush1.msra.mxu0 %v1154
        %2004 = vmatprep.subr.mxu0 0.0
        %2005 = vmatpush1.msra.mxu0 %v1155
        %2006 = vmatprep.subr.mxu0 0.0
        %2007 = vmatpush1.msra.mxu0 %v1156
        %2008 = vmatprep.subr.mxu0 0.0
        %2009 = vmatpush1.msra.mxu0 %v1157
        %2010 = vmatprep.subr.mxu0 0.0
        %2011 = vmatpush1.msra.mxu0 %v1158
        %2012 = vmatprep.subr.mxu0 0.0
        %2013 = vmatpush1.msra.mxu0 0.0
        %2014 = vmatprep.subr.mxu0 0.0
        %2015 = vmatpush1.msra.mxu0 0.0
        %2016 = vmatprep.subr.mxu0 0.0
        %2017 = vmatpush1.msra.mxu0 0.0
        %2018 = vmatprep.subr.mxu0 0.0
        %2019 = vmatpush1.msra.mxu0 0.0
        %2020 = vmatprep.subr.mxu0 0.0
        %2021 = vmatpush1.msra.mxu0 0.0
        %2022 = vmatprep.subr.mxu0 0.0
        %2023 = vmatpush1.msra.mxu0 0.0
        %2024 = vmatprep.subr.mxu0 0.0
        %2025 = vmatpush1.msra.mxu0 0.0
        %2026 = vmatprep.subr.mxu0 0.0
        %2027 = vmatpush1.msra.mxu0 0.0
        %2028 = vmatprep.subr.mxu0 0.0
        %2029 = vmatpush1.msra.mxu0 0.0
        %2030 = vmatprep.subr.mxu0 0.0
        %2031 = vmatpush1.msra.mxu0 0.0
        %2032 = vmatprep.subr.mxu0 0.0
        %2033 = vmatpush1.msra.mxu0 0.0
        %2034 = vmatprep.subr.mxu0 0.0
        %2035 = vmatpush1.msra.mxu0 0.0
        %2036 = vmatprep.subr.mxu0 0.0
        %2037 = vmatpush1.msra.mxu0 0.0
        %2038 = vmatprep.subr.mxu0 0.0
        %2039 = vmatpush1.msra.mxu0 0.0
        %2040 = vmatprep.subr.mxu0 0.0
        %2041 = vmatpush1.msra.mxu0 0.0
        %2042 = vmatprep.subr.mxu0 0.0
        %2043 = vmatpush1.msra.mxu0 0.0
        %2044 = vmatprep.mubr.f32.mxu0 0.0
        %2045 = vmatmul.mubr.f32.gmra.mrb[0].mxu0 %v1017
        %v2046 = vpop.f32.mrb[0].mxu0
        %v2047 = vadd.f32 %v1822, %v2046
        %v2048 = vpop.f32.mrb[0].mxu0
        %2049 = vmatprep.mubr.f32.mxu0 0.0
        %2050 = vmatmul.mubr.f32.gmra.mrb[0].mxu0 %v1020
        %v2051 = vpop.f32.mrb[0].mxu0
        %v2052 = vadd.f32 %v1827, %v2051
        %v2053 = vpop.f32.mrb[0].mxu0
        %2054 = vmatprep.mubr.f32.mxu0 0.0
        %2055 = vmatmul.mubr.f32.gmra.mrb[0].mxu0 %v1023
        %v2056 = vpop.f32.mrb[0].mxu0
        %v2057 = vadd.f32 %v1832, %v2056
        %v2058 = vpop.f32.mrb[0].mxu0
        %2059 = vmatprep.mubr.f32.mxu0 0.0
        %2060 = vmatmul.mubr.f32.gmra.mrb[0].mxu0 %v1026
        %v2061 = vpop.f32.mrb[0].mxu0
        %v2062 = vadd.f32 %v1837, %v2061
        %v2063 = vpop.f32.mrb[0].mxu0
        %2064 = vmatprep.mubr.f32.mxu0 0.0
        %2065 = vmatmul.mubr.f32.gmra.mrb[0].mxu0 %v1029
        %v2066 = vpop.f32.mrb[0].mxu0
        %v2067 = vadd.f32 %v1842, %v2066
        %v2068 = vpop.f32.mrb[0].mxu0
        %2069 = vmatprep.mubr.f32.mxu0 0.0
        %2070 = vmatmul.mubr.f32.gmra.mrb[0].mxu0 %v1032
        %v2071 = vpop.f32.mrb[0].mxu0
        %v2072 = vadd.f32 %v1847, %v2071
        %v2073 = vpop.f32.mrb[0].mxu0
        %2074 = vmatprep.mubr.f32.mxu0 0.0
        %2075 = vmatmul.mubr.f32.gmra.mrb[0].mxu0 %v1035
        %v2076 = vpop.f32.mrb[0].mxu0
        %v2077 = vadd.f32 %v1852, %v2076
        %v2078 = vpop.f32.mrb[0].mxu0
        %2079 = vmatprep.mubr.f32.mxu0 0.0
        %2080 = vmatmul.mubr.f32.gmra.mrb[0].mxu0 %v1038
        %v2081 = vpop.f32.mrb[0].mxu0
        %v2082 = vadd.f32 %v1857, %v2081
        %v2083 = vpop.f32.mrb[0].mxu0
        %2084 = vmatprep.mubr.f32.mxu0 0.0
        %2085 = vmatmul.mubr.f32.gmra.mrb[0].mxu0 %v1041
        %v2086 = vpop.f32.mrb[0].mxu0
        %v2087 = vadd.f32 %v1862, %v2086
        %v2088 = vpop.f32.mrb[0].mxu0
        %2089 = vmatprep.mubr.f32.mxu0 0.0
        %2090 = vmatmul.mubr.f32.gmra.mrb[0].mxu0 %v1044
        %v2091 = vpop.f32.mrb[0].mxu0
        %v2092 = vadd.f32 %v1867, %v2091
        %v2093 = vpop.f32.mrb[0].mxu0
        %2094 = vmatprep.mubr.f32.mxu0 0.0
        %2095 = vmatmul.mubr.f32.gmra.mrb[0].mxu0 %v1047
        %v2096 = vpop.f32.mrb[0].mxu0
        %v2097 = vadd.f32 %v1872, %v2096
        %v2098 = vpop.f32.mrb[0].mxu0
        %2099 = vmatprep.mubr.f32.mxu0 0.0
        %2100 = vmatmul.mubr.f32.gmra.mrb[0].mxu0 %v1050
        %v2101 = vpop.f32.mrb[0].mxu0
        %v2102 = vadd.f32 %v1877, %v2101
        %v2103 = vpop.f32.mrb[0].mxu0
        %2104 = vmatprep.mubr.f32.mxu0 0.0
        %2105 = vmatmul.mubr.f32.gmra.mrb[0].mxu0 %v1053
        %v2106 = vpop.f32.mrb[0].mxu0
        %v2107 = vadd.f32 %v1882, %v2106
        %v2108 = vpop.f32.mrb[0].mxu0
        %2109 = vmatprep.mubr.f32.mxu0 0.0
        %2110 = vmatmul.mubr.f32.gmra.mrb[0].mxu0 %v1056
        %v2111 = vpop.f32.mrb[0].mxu0
        %v2112 = vadd.f32 %v1887, %v2111
        %v2113 = vpop.f32.mrb[0].mxu0
        %2114 = vmatprep.mubr.f32.mxu0 0.0
        %2115 = vmatmul.mubr.f32.gmra.mrb[0].mxu0 %v1059
        %v2116 = vpop.f32.mrb[0].mxu0
        %v2117 = vadd.f32 %v1892, %v2116
        %v2118 = vpop.f32.mrb[0].mxu0
        %2119 = vmatprep.mubr.f32.mxu0 0.0
        %2120 = vmatmul.mubr.f32.gmra.mrb[0].mxu0 %v1062
        %v2121 = vpop.f32.mrb[0].mxu0
        %v2122 = vadd.f32 %v1897, %v2121
        %v2123 = vpop.f32.mrb[0].mxu0
        %2124 = vmatprep.mubr.f32.mxu0 0.0
        %2125 = vmatmul.mubr.f32.gmra.mrb[0].mxu0 %v1065
        %v2126 = vpop.f32.mrb[0].mxu0
        %v2127 = vadd.f32 %v1902, %v2126
        %v2128 = vpop.f32.mrb[0].mxu0
        %2129 = vmatprep.mubr.f32.mxu0 0.0
        %2130 = vmatmul.mubr.f32.gmra.mrb[0].mxu0 %v1068
        %v2131 = vpop.f32.mrb[0].mxu0
        %v2132 = vadd.f32 %v1907, %v2131
        %v2133 = vpop.f32.mrb[0].mxu0
        %2134 = vmatprep.mubr.f32.mxu0 0.0
        %2135 = vmatmul.mubr.f32.gmra.mrb[0].mxu0 %v1071
        %v2136 = vpop.f32.mrb[0].mxu0
        %v2137 = vadd.f32 %v1912, %v2136
        %v2138 = vpop.f32.mrb[0].mxu0
        %2139 = vmatprep.mubr.f32.mxu0 0.0
        %2140 = vmatmul.mubr.f32.gmra.mrb[0].mxu0 %v1074
        %v2141 = vpop.f32.mrb[0].mxu0
        %v2142 = vadd.f32 %v1917, %v2141
        %v2143 = vpop.f32.mrb[0].mxu0
        %2144 = vmatprep.mubr.f32.mxu0 0.0
        %2145 = vmatmul.mubr.f32.gmra.mrb[0].mxu0 %v1077
        %v2146 = vpop.f32.mrb[0].mxu0
        %v2147 = vadd.f32 %v1922, %v2146
        %v2148 = vpop.f32.mrb[0].mxu0
        %2149 = vmatprep.mubr.f32.mxu0 0.0
        %2150 = vmatmul.mubr.f32.gmra.mrb[0].mxu0 %v1080
        %v2151 = vpop.f32.mrb[0].mxu0
        %v2152 = vadd.f32 %v1927, %v2151
        %v2153 = vpop.f32.mrb[0].mxu0
        %2154 = vmatprep.mubr.f32.mxu0 0.0
        %2155 = vmatmul.mubr.f32.gmra.mrb[0].mxu0 %v1083
        %v2156 = vpop.f32.mrb[0].mxu0
        %v2157 = vadd.f32 %v1932, %v2156
        %v2158 = vpop.f32.mrb[0].mxu0
        %2159 = vmatprep.mubr.f32.mxu0 0.0
        %2160 = vmatmul.mubr.f32.gmra.mrb[0].mxu0 %v1086
        %v2161 = vpop.f32.mrb[0].mxu0
        %v2162 = vadd.f32 %v1937, %v2161
        %v2163 = vpop.f32.mrb[0].mxu0
        %2164 = vmatprep.mubr.f32.mxu0 0.0
        %2165 = vmatmul.mubr.f32.gmra.mrb[0].mxu0 %v1089
        %v2166 = vpop.f32.mrb[0].mxu0
        %v2167 = vadd.f32 %v1942, %v2166
        %v2168 = vpop.f32.mrb[0].mxu0
        %2169 = vmatprep.mubr.f32.mxu0 0.0
        %2170 = vmatmul.mubr.f32.gmra.mrb[0].mxu0 %v1092
        %v2171 = vpop.f32.mrb[0].mxu0
        %v2172 = vadd.f32 %v1947, %v2171
        %v2173 = vpop.f32.mrb[0].mxu0
        %2174 = vmatprep.mubr.f32.mxu0 0.0
        %2175 = vmatmul.mubr.f32.gmra.mrb[0].mxu0 %v1095
        %v2176 = vpop.f32.mrb[0].mxu0
        %v2177 = vadd.f32 %v1952, %v2176
        %v2178 = vpop.f32.mrb[0].mxu0
        %2179 = vmatprep.mubr.f32.mxu0 0.0
        %2180 = vmatmul.mubr.f32.gmra.mrb[0].mxu0 %v1098
        %v2181 = vpop.f32.mrb[0].mxu0
        %v2182 = vadd.f32 %v1957, %v2181
        %v2183 = vpop.f32.mrb[0].mxu0
        %2184 = vmatprep.mubr.f32.mxu0 0.0
        %2185 = vmatmul.mubr.f32.gmra.mrb[0].mxu0 %v1101
        %v2186 = vpop.f32.mrb[0].mxu0
        %v2187 = vadd.f32 %v1962, %v2186
        %v2188 = vpop.f32.mrb[0].mxu0
        %2189 = vmatprep.mubr.f32.mxu0 0.0
        %2190 = vmatmul.mubr.f32.gmra.mrb[0].mxu0 %v1104
        %v2191 = vpop.f32.mrb[0].mxu0
        %v2192 = vadd.f32 %v1967, %v2191
        %v2193 = vpop.f32.mrb[0].mxu0
        %2194 = vmatprep.mubr.f32.mxu0 0.0
        %2195 = vmatmul.mubr.f32.gmra.mrb[0].mxu0 %v1107
        %v2196 = vpop.f32.mrb[0].mxu0
        %v2197 = vadd.f32 %v1972, %v2196
        %v2198 = vpop.f32.mrb[0].mxu0
        %2199 = vmatprep.mubr.f32.mxu0 0.0
        %2200 = vmatmul.mubr.f32.gmra.mrb[0].mxu0 %v1110
        %v2201 = vpop.f32.mrb[0].mxu0
        %v2202 = vadd.f32 %v1977, %v2201
        %v2203 = vpop.f32.mrb[0].mxu0
        %2204 = vdwg.mxu0
        %s2205 = scalar_lea.vmem [#allocation3], 96
        %v2206 = vld [vmem:[%s2205] sm:$0xff]
        %v2207 = vld [vmem:[%s2205 + $0x8] sm:$0xff]
        %v2208 = vld [vmem:[%s2205 + $0x10] sm:$0xff]
        %v2209 = vld [vmem:[%s2205 + $0x18] sm:$0xff]
        %v2210 = vld [vmem:[%s2205 + $0x20] sm:$0xff]
        %v2211 = vld [vmem:[%s2205 + $0x28] sm:$0xff]
        %v2212 = vld [vmem:[%s2205 + $0x30] sm:$0xff]
        %v2213 = vld [vmem:[%s2205 + $0x38] sm:$0xff]
        %v2214 = vld [vmem:[%s2205 + $0x40] sm:$0xff]
        %v2215 = vld [vmem:[%s2205 + $0x48] sm:$0xff]
        %v2216 = vld [vmem:[%s2205 + $0x50] sm:$0xff]
        %v2217 = vld [vmem:[%s2205 + $0x58] sm:$0xff]
        %v2218 = vld [vmem:[%s2205 + $0x60] sm:$0xff]
        %v2219 = vld [vmem:[%s2205 + $0x68] sm:$0xff]
        %v2220 = vld [vmem:[%s2205 + $0x70] sm:$0xff]
        %v2221 = vld [vmem:[%s2205 + $0x78] sm:$0xff]
        %v2222 = vld [vmem:[%s2205 + $0x80] sm:$0xff]
        %v2223 = vld [vmem:[%s2205 + $0x88] sm:$0xff]
        %v2224 = vld [vmem:[%s2205 + $0x90] sm:$0xff]
        %v2225 = vld [vmem:[%s2205 + $0x98] sm:$0xff]
        %v2226 = vld [vmem:[%s2205 + $0xa0] sm:$0xff]
        %v2227 = vld [vmem:[%s2205 + $0xa8] sm:$0xff]
        %v2228 = vld [vmem:[%s2205 + $0xb0] sm:$0xff]
        %v2229 = vld [vmem:[%s2205 + $0xb8] sm:$0xff]
        %v2230 = vld [vmem:[%s2205 + $0xc0] sm:$0xff]
        %v2231 = vld [vmem:[%s2205 + $0xc8] sm:$0xff]
        %v2232 = vld [vmem:[%s2205 + $0xd0] sm:$0xff]
        %v2233 = vld [vmem:[%s2205 + $0xd8] sm:$0xff]
        %v2234 = vld [vmem:[%s2205 + $0xe0] sm:$0xff]
        %v2235 = vld [vmem:[%s2205 + $0xe8] sm:$0xff]
        %v2236 = vld [vmem:[%s2205 + $0xf0] sm:$0xff]
        %v2237 = vld [vmem:[%s2205 + $0xf8] sm:$0xff]
        %v2238 = vld [vmem:[%s2205 + $0x100] sm:$0xff]
        %v2239 = vld [vmem:[%s2205 + $0x108] sm:$0xff]
        %v2240 = vld [vmem:[%s2205 + $0x110] sm:$0xff]
        %v2241 = vld [vmem:[%s2205 + $0x118] sm:$0xff]
        %v2242 = vld [vmem:[%s2205 + $0x120] sm:$0xff]
        %v2243 = vld [vmem:[%s2205 + $0x128] sm:$0xff]
        %v2244 = vld [vmem:[%s2205 + $0x130] sm:$0xff]
        %v2245 = vld [vmem:[%s2205 + $0x138] sm:$0xff]
        %v2246 = vld [vmem:[%s2205 + $0x140] sm:$0xff]
        %v2247 = vld [vmem:[%s2205 + $0x148] sm:$0xff]
        %v2248 = vld [vmem:[%s2205 + $0x150] sm:$0xff]
        %v2249 = vld [vmem:[%s2205 + $0x158] sm:$0xff]
        %v2250 = vld [vmem:[%s2205 + $0x160] sm:$0xff]
        %v2251 = vld [vmem:[%s2205 + $0x168] sm:$0xff]
        %v2252 = vld [vmem:[%s2205 + $0x170] sm:$0xff]
        %v2253 = vld [vmem:[%s2205 + $0x178] sm:$0xff]
        %v2254 = vld [vmem:[%s2205 + $0x180] sm:$0xff]
        %v2255 = vld [vmem:[%s2205 + $0x188] sm:$0xff]
        %v2256 = vld [vmem:[%s2205 + $0x190] sm:$0xff]
        %v2257 = vld [vmem:[%s2205 + $0x198] sm:$0xff]
        %v2258 = vld [vmem:[%s2205 + $0x1a0] sm:$0xff]
        %v2259 = vld [vmem:[%s2205 + $0x1a8] sm:$0xff]
        %v2260 = vld [vmem:[%s2205 + $0x1b0] sm:$0xff]
        %v2261 = vld [vmem:[%s2205 + $0x1b8] sm:$0xff]
        %v2262 = vld [vmem:[%s2205 + $0x1c0] sm:$0xff]
        %v2263 = vld [vmem:[%s2205 + $0x1c8] sm:$0xff]
        %v2264 = vld [vmem:[%s2205 + $0x1d0] sm:$0xff]
        %v2265 = vld [vmem:[%s2205 + $0x1d8] sm:$0xff]
        %v2266 = vld [vmem:[%s2205 + $0x1e0] sm:$0xff]
        %v2267 = vld [vmem:[%s2205 + $0x1e8] sm:$0xff]
        %v2268 = vld [vmem:[%s2205 + $0x1f0] sm:$0xff]
        %v2269 = vld [vmem:[%s2205 + $0x1f8] sm:$0xff]
        %v2270 = vld [vmem:[%s2205 + $0x200] sm:$0xff]
        %v2271 = vld [vmem:[%s2205 + $0x208] sm:$0xff]
        %v2272 = vld [vmem:[%s2205 + $0x210] sm:$0xff]
        %v2273 = vld [vmem:[%s2205 + $0x218] sm:$0xff]
        %v2274 = vld [vmem:[%s2205 + $0x220] sm:$0xff]
        %v2275 = vld [vmem:[%s2205 + $0x228] sm:$0xff]
        %v2276 = vld [vmem:[%s2205 + $0x230] sm:$0xff]
        %v2277 = vld [vmem:[%s2205 + $0x238] sm:$0xff]
        %v2278 = vld [vmem:[%s2205 + $0x240] sm:$0xff]
        %v2279 = vld [vmem:[%s2205 + $0x248] sm:$0xff]
        %v2280 = vld [vmem:[%s2205 + $0x250] sm:$0xff]
        %v2281 = vld [vmem:[%s2205 + $0x258] sm:$0xff]
        %v2282 = vld [vmem:[%s2205 + $0x260] sm:$0xff]
        %v2283 = vld [vmem:[%s2205 + $0x268] sm:$0xff]
        %v2284 = vld [vmem:[%s2205 + $0x270] sm:$0xff]
        %v2285 = vld [vmem:[%s2205 + $0x278] sm:$0xff]
        %v2286 = vld [vmem:[%s2205 + $0x280] sm:$0xff]
        %v2287 = vld [vmem:[%s2205 + $0x288] sm:$0xff]
        %v2288 = vld [vmem:[%s2205 + $0x290] sm:$0xff]
        %v2289 = vld [vmem:[%s2205 + $0x298] sm:$0xff]
        %v2290 = vld [vmem:[%s2205 + $0x2a0] sm:$0xff]
        %v2291 = vld [vmem:[%s2205 + $0x2a8] sm:$0xff]
        %v2292 = vld [vmem:[%s2205 + $0x2b0] sm:$0xff]
        %v2293 = vld [vmem:[%s2205 + $0x2b8] sm:$0xff]
        %v2294 = vld [vmem:[%s2205 + $0x2c0] sm:$0xff]
        %v2295 = vld [vmem:[%s2205 + $0x2c8] sm:$0xff]
        %v2296 = vld [vmem:[%s2205 + $0x2d0] sm:$0xff]
        %v2297 = vld [vmem:[%s2205 + $0x2d8] sm:$0xff]
        %v2298 = vld [vmem:[%s2205 + $0x2e0] sm:$0xff]
        %v2299 = vld [vmem:[%s2205 + $0x2e8] sm:$0xff]
        %v2300 = vld [vmem:[%s2205 + $0x2f0] sm:$0xff]
        %v2301 = vld [vmem:[%s2205 + $0x2f8] sm:$0xff]
        %s2302 = scalar_lea.vmem [#allocation4], 768
        %v2303 = vld [vmem:[%s2302] sm:$0xff]
        %v2304 = vld [vmem:[%s2302 + $0x8] sm:$0xff]
        %v2305 = vld [vmem:[%s2302 + $0x10] sm:$0xff]
        %v2306 = vld [vmem:[%s2302 + $0x18] sm:$0xff]
        %v2307 = vld [vmem:[%s2302 + $0x20] sm:$0xff]
        %v2308 = vld [vmem:[%s2302 + $0x28] sm:$0xff]
        %v2309 = vld [vmem:[%s2302 + $0x30] sm:$0xff]
        %v2310 = vld [vmem:[%s2302 + $0x38] sm:$0xff]
        %v2311 = vld [vmem:[%s2302 + $0x40] sm:$0xff]
        %v2312 = vld [vmem:[%s2302 + $0x48] sm:$0xff]
        %v2313 = vld [vmem:[%s2302 + $0x50] sm:$0xff]
        %v2314 = vld [vmem:[%s2302 + $0x58] sm:$0xff]
        %v2315 = vld [vmem:[%s2302 + $0x60] sm:$0xff]
        %v2316 = vld [vmem:[%s2302 + $0x68] sm:$0xff]
        %v2317 = vld [vmem:[%s2302 + $0x70] sm:$0xff]
        %v2318 = vld [vmem:[%s2302 + $0x78] sm:$0xff]
        %v2319 = vld [vmem:[%s2302 + $0x80] sm:$0xff]
        %v2320 = vld [vmem:[%s2302 + $0x88] sm:$0xff]
        %v2321 = vld [vmem:[%s2302 + $0x90] sm:$0xff]
        %v2322 = vld [vmem:[%s2302 + $0x98] sm:$0xff]
        %v2323 = vld [vmem:[%s2302 + $0xa0] sm:$0xff]
        %v2324 = vld [vmem:[%s2302 + $0xa8] sm:$0xff]
        %v2325 = vld [vmem:[%s2302 + $0xb0] sm:$0xff]
        %v2326 = vld [vmem:[%s2302 + $0xb8] sm:$0xff]
        %v2327 = vld [vmem:[%s2302 + $0xc0] sm:$0xff]
        %v2328 = vld [vmem:[%s2302 + $0xc8] sm:$0xff]
        %v2329 = vld [vmem:[%s2302 + $0xd0] sm:$0xff]
        %v2330 = vld [vmem:[%s2302 + $0xd8] sm:$0xff]
        %v2331 = vld [vmem:[%s2302 + $0xe0] sm:$0xff]
        %v2332 = vld [vmem:[%s2302 + $0xe8] sm:$0xff]
        %v2333 = vld [vmem:[%s2302 + $0xf0] sm:$0xff]
        %v2334 = vld [vmem:[%s2302 + $0xf8] sm:$0xff]
        %v2335 = vld [vmem:[%s2302 + $0x100] sm:$0xff]
        %v2336 = vld [vmem:[%s2302 + $0x108] sm:$0xff]
        %v2337 = vld [vmem:[%s2302 + $0x110] sm:$0xff]
        %v2338 = vld [vmem:[%s2302 + $0x118] sm:$0xff]
        %v2339 = vld [vmem:[%s2302 + $0x120] sm:$0xff]
        %v2340 = vld [vmem:[%s2302 + $0x128] sm:$0xff]
        %v2341 = vld [vmem:[%s2302 + $0x130] sm:$0xff]
        %v2342 = vld [vmem:[%s2302 + $0x138] sm:$0xff]
        %v2343 = vld [vmem:[%s2302 + $0x140] sm:$0xff]
        %v2344 = vld [vmem:[%s2302 + $0x148] sm:$0xff]
        %v2345 = vld [vmem:[%s2302 + $0x150] sm:$0xff]
        %v2346 = vld [vmem:[%s2302 + $0x158] sm:$0xff]
        %v2347 = vld [vmem:[%s2302 + $0x160] sm:$0xff]
        %v2348 = vld [vmem:[%s2302 + $0x168] sm:$0xff]
        %v2349 = vld [vmem:[%s2302 + $0x170] sm:$0xff]
        %v2350 = vld [vmem:[%s2302 + $0x178] sm:$0xff]
        %2351 = vmatprep.subr.mxu0 0.0
        %2352 = vmatpush1.msra.mxu0 %v2303
        %2353 = vmatprep.subr.mxu0 0.0
        %2354 = vmatpush1.msra.mxu0 %v2304
        %2355 = vmatprep.subr.mxu0 0.0
        %2356 = vmatpush1.msra.mxu0 %v2305
        %2357 = vmatprep.subr.mxu0 0.0
        %2358 = vmatpush1.msra.mxu0 %v2306
        %2359 = vmatprep.subr.mxu0 0.0
        %2360 = vmatpush1.msra.mxu0 %v2307
        %2361 = vmatprep.subr.mxu0 0.0
        %2362 = vmatpush1.msra.mxu0 %v2308
        %2363 = vmatprep.subr.mxu0 0.0
        %2364 = vmatpush1.msra.mxu0 %v2309
        %2365 = vmatprep.subr.mxu0 0.0
        %2366 = vmatpush1.msra.mxu0 %v2310
        %2367 = vmatprep.subr.mxu0 0.0
        %2368 = vmatpush1.msra.mxu0 %v2311
        %2369 = vmatprep.subr.mxu0 0.0
        %2370 = vmatpush1.msra.mxu0 %v2312
        %2371 = vmatprep.subr.mxu0 0.0
        %2372 = vmatpush1.msra.mxu0 %v2313
        %2373 = vmatprep.subr.mxu0 0.0
        %2374 = vmatpush1.msra.mxu0 %v2314
        %2375 = vmatprep.subr.mxu0 0.0
        %2376 = vmatpush1.msra.mxu0 %v2315
        %2377 = vmatprep.subr.mxu0 0.0
        %2378 = vmatpush1.msra.mxu0 %v2316
        %2379 = vmatprep.subr.mxu0 0.0
        %2380 = vmatpush1.msra.mxu0 %v2317
        %2381 = vmatprep.subr.mxu0 0.0
        %2382 = vmatpush1.msra.mxu0 %v2318
        %2383 = vmatprep.subr.mxu0 0.0
        %2384 = vmatpush1.msra.mxu0 %v2319
        %2385 = vmatprep.subr.mxu0 0.0
        %2386 = vmatpush1.msra.mxu0 %v2320
        %2387 = vmatprep.subr.mxu0 0.0
        %2388 = vmatpush1.msra.mxu0 %v2321
        %2389 = vmatprep.subr.mxu0 0.0
        %2390 = vmatpush1.msra.mxu0 %v2322
        %2391 = vmatprep.subr.mxu0 0.0
        %2392 = vmatpush1.msra.mxu0 %v2323
        %2393 = vmatprep.subr.mxu0 0.0
        %2394 = vmatpush1.msra.mxu0 %v2324
        %2395 = vmatprep.subr.mxu0 0.0
        %2396 = vmatpush1.msra.mxu0 %v2325
        %2397 = vmatprep.subr.mxu0 0.0
        %2398 = vmatpush1.msra.mxu0 %v2326
        %2399 = vmatprep.subr.mxu0 0.0
        %2400 = vmatpush1.msra.mxu0 %v2327
        %2401 = vmatprep.subr.mxu0 0.0
        %2402 = vmatpush1.msra.mxu0 %v2328
        %2403 = vmatprep.subr.mxu0 0.0
        %2404 = vmatpush1.msra.mxu0 %v2329
        %2405 = vmatprep.subr.mxu0 0.0
        %2406 = vmatpush1.msra.mxu0 %v2330
        %2407 = vmatprep.subr.mxu0 0.0
        %2408 = vmatpush1.msra.mxu0 %v2331
        %2409 = vmatprep.subr.mxu0 0.0
        %2410 = vmatpush1.msra.mxu0 %v2332
        %2411 = vmatprep.subr.mxu0 0.0
        %2412 = vmatpush1.msra.mxu0 %v2333
        %2413 = vmatprep.subr.mxu0 0.0
        %2414 = vmatpush1.msra.mxu0 %v2334
        %2415 = vmatprep.mubr.f32.mxu0 %v2207
        %2416 = vmatmul.mubr.f32.gmra.mrb[0].mxu0 %v2206
        %v2417 = vpop.f32.mrb[0].mxu0
        %v2418 = vadd.f32 0.0, %v2417
        %v2419 = vpop.f32.mrb[0].mxu0
        %2420 = vmatprep.mubr.f32.mxu0 %v2210
        %2421 = vmatmul.mubr.f32.gmra.mrb[0].mxu0 %v2209
        %v2422 = vpop.f32.mrb[0].mxu0
        %v2423 = vadd.f32 0.0, %v2422
        %v2424 = vpop.f32.mrb[0].mxu0
        %2425 = vmatprep.mubr.f32.mxu0 %v2213
        %2426 = vmatmul.mubr.f32.gmra.mrb[0].mxu0 %v2212
        %v2427 = vpop.f32.mrb[0].mxu0
        %v2428 = vadd.f32 0.0, %v2427
        %v2429 = vpop.f32.mrb[0].mxu0
        %2430 = vmatprep.mubr.f32.mxu0 %v2216
        %2431 = vmatmul.mubr.f32.gmra.mrb[0].mxu0 %v2215
        %v2432 = vpop.f32.mrb[0].mxu0
        %v2433 = vadd.f32 0.0, %v2432
        %v2434 = vpop.f32.mrb[0].mxu0
        %2435 = vmatprep.mubr.f32.mxu0 %v2219
        %2436 = vmatmul.mubr.f32.gmra.mrb[0].mxu0 %v2218
        %v2437 = vpop.f32.mrb[0].mxu0
        %v2438 = vadd.f32 0.0, %v2437
        %v2439 = vpop.f32.mrb[0].mxu0
        %2440 = vmatprep.mubr.f32.mxu0 %v2222
        %2441 = vmatmul.mubr.f32.gmra.mrb[0].mxu0 %v2221
        %v2442 = vpop.f32.mrb[0].mxu0
        %v2443 = vadd.f32 0.0, %v2442
        %v2444 = vpop.f32.mrb[0].mxu0
        %2445 = vmatprep.mubr.f32.mxu0 %v2225
        %2446 = vmatmul.mubr.f32.gmra.mrb[0].mxu0 %v2224
        %v2447 = vpop.f32.mrb[0].mxu0
        %v2448 = vadd.f32 0.0, %v2447
        %v2449 = vpop.f32.mrb[0].mxu0
        %2450 = vmatprep.mubr.f32.mxu0 %v2228
        %2451 = vmatmul.mubr.f32.gmra.mrb[0].mxu0 %v2227
        %v2452 = vpop.f32.mrb[0].mxu0
        %v2453 = vadd.f32 0.0, %v2452
        %v2454 = vpop.f32.mrb[0].mxu0
        %2455 = vmatprep.mubr.f32.mxu0 %v2231
        %2456 = vmatmul.mubr.f32.gmra.mrb[0].mxu0 %v2230
        %v2457 = vpop.f32.mrb[0].mxu0
        %v2458 = vadd.f32 0.0, %v2457
        %v2459 = vpop.f32.mrb[0].mxu0
        %2460 = vmatprep.mubr.f32.mxu0 %v2234
        %2461 = vmatmul.mubr.f32.gmra.mrb[0].mxu0 %v2233
        %v2462 = vpop.f32.mrb[0].mxu0
        %v2463 = vadd.f32 0.0, %v2462
        %v2464 = vpop.f32.mrb[0].mxu0
        %2465 = vmatprep.mubr.f32.mxu0 %v2237
        %2466 = vmatmul.mubr.f32.gmra.mrb[0].mxu0 %v2236
        %v2467 = vpop.f32.mrb[0].mxu0
        %v2468 = vadd.f32 0.0, %v2467
        %v2469 = vpop.f32.mrb[0].mxu0
        %2470 = vmatprep.mubr.f32.mxu0 %v2240
        %2471 = vmatmul.mubr.f32.gmra.mrb[0].mxu0 %v2239
        %v2472 = vpop.f32.mrb[0].mxu0
        %v2473 = vadd.f32 0.0, %v2472
        %v2474 = vpop.f32.mrb[0].mxu0
        %2475 = vmatprep.mubr.f32.mxu0 %v2243
        %2476 = vmatmul.mubr.f32.gmra.mrb[0].mxu0 %v2242
        %v2477 = vpop.f32.mrb[0].mxu0
        %v2478 = vadd.f32 0.0, %v2477
        %v2479 = vpop.f32.mrb[0].mxu0
        %2480 = vmatprep.mubr.f32.mxu0 %v2246
        %2481 = vmatmul.mubr.f32.gmra.mrb[0].mxu0 %v2245
        %v2482 = vpop.f32.mrb[0].mxu0
        %v2483 = vadd.f32 0.0, %v2482
        %v2484 = vpop.f32.mrb[0].mxu0
        %2485 = vmatprep.mubr.f32.mxu0 %v2249
        %2486 = vmatmul.mubr.f32.gmra.mrb[0].mxu0 %v2248
        %v2487 = vpop.f32.mrb[0].mxu0
        %v2488 = vadd.f32 0.0, %v2487
        %v2489 = vpop.f32.mrb[0].mxu0
        %2490 = vmatprep.mubr.f32.mxu0 %v2252
        %2491 = vmatmul.mubr.f32.gmra.mrb[0].mxu0 %v2251
        %v2492 = vpop.f32.mrb[0].mxu0
        %v2493 = vadd.f32 0.0, %v2492
        %v2494 = vpop.f32.mrb[0].mxu0
        %2495 = vmatprep.mubr.f32.mxu0 %v2255
        %2496 = vmatmul.mubr.f32.gmra.mrb[0].mxu0 %v2254
        %v2497 = vpop.f32.mrb[0].mxu0
        %v2498 = vadd.f32 0.0, %v2497
        %v2499 = vpop.f32.mrb[0].mxu0
        %2500 = vmatprep.mubr.f32.mxu0 %v2258
        %2501 = vmatmul.mubr.f32.gmra.mrb[0].mxu0 %v2257
        %v2502 = vpop.f32.mrb[0].mxu0
        %v2503 = vadd.f32 0.0, %v2502
        %v2504 = vpop.f32.mrb[0].mxu0
        %2505 = vmatprep.mubr.f32.mxu0 %v2261
        %2506 = vmatmul.mubr.f32.gmra.mrb[0].mxu0 %v2260
        %v2507 = vpop.f32.mrb[0].mxu0
        %v2508 = vadd.f32 0.0, %v2507
        %v2509 = vpop.f32.mrb[0].mxu0
        %2510 = vmatprep.mubr.f32.mxu0 %v2264
        %2511 = vmatmul.mubr.f32.gmra.mrb[0].mxu0 %v2263
        %v2512 = vpop.f32.mrb[0].mxu0
        %v2513 = vadd.f32 0.0, %v2512
        %v2514 = vpop.f32.mrb[0].mxu0
        %2515 = vmatprep.mubr.f32.mxu0 %v2267
        %2516 = vmatmul.mubr.f32.gmra.mrb[0].mxu0 %v2266
        %v2517 = vpop.f32.mrb[0].mxu0
        %v2518 = vadd.f32 0.0, %v2517
        %v2519 = vpop.f32.mrb[0].mxu0
        %2520 = vmatprep.mubr.f32.mxu0 %v2270
        %2521 = vmatmul.mubr.f32.gmra.mrb[0].mxu0 %v2269
        %v2522 = vpop.f32.mrb[0].mxu0
        %v2523 = vadd.f32 0.0, %v2522
        %v2524 = vpop.f32.mrb[0].mxu0
        %2525 = vmatprep.mubr.f32.mxu0 %v2273
        %2526 = vmatmul.mubr.f32.gmra.mrb[0].mxu0 %v2272
        %v2527 = vpop.f32.mrb[0].mxu0
        %v2528 = vadd.f32 0.0, %v2527
        %v2529 = vpop.f32.mrb[0].mxu0
        %2530 = vmatprep.mubr.f32.mxu0 %v2276
        %2531 = vmatmul.mubr.f32.gmra.mrb[0].mxu0 %v2275
        %v2532 = vpop.f32.mrb[0].mxu0
        %v2533 = vadd.f32 0.0, %v2532
        %v2534 = vpop.f32.mrb[0].mxu0
        %2535 = vmatprep.mubr.f32.mxu0 %v2279
        %2536 = vmatmul.mubr.f32.gmra.mrb[0].mxu0 %v2278
        %v2537 = vpop.f32.mrb[0].mxu0
        %v2538 = vadd.f32 0.0, %v2537
        %v2539 = vpop.f32.mrb[0].mxu0
        %2540 = vmatprep.mubr.f32.mxu0 %v2282
        %2541 = vmatmul.mubr.f32.gmra.mrb[0].mxu0 %v2281
        %v2542 = vpop.f32.mrb[0].mxu0
        %v2543 = vadd.f32 0.0, %v2542
        %v2544 = vpop.f32.mrb[0].mxu0
        %2545 = vmatprep.mubr.f32.mxu0 %v2285
        %2546 = vmatmul.mubr.f32.gmra.mrb[0].mxu0 %v2284
        %v2547 = vpop.f32.mrb[0].mxu0
        %v2548 = vadd.f32 0.0, %v2547
        %v2549 = vpop.f32.mrb[0].mxu0
        %2550 = vmatprep.mubr.f32.mxu0 %v2288
        %2551 = vmatmul.mubr.f32.gmra.mrb[0].mxu0 %v2287
        %v2552 = vpop.f32.mrb[0].mxu0
        %v2553 = vadd.f32 0.0, %v2552
        %v2554 = vpop.f32.mrb[0].mxu0
        %2555 = vmatprep.mubr.f32.mxu0 %v2291
        %2556 = vmatmul.mubr.f32.gmra.mrb[0].mxu0 %v2290
        %v2557 = vpop.f32.mrb[0].mxu0
        %v2558 = vadd.f32 0.0, %v2557
        %v2559 = vpop.f32.mrb[0].mxu0
        %2560 = vmatprep.mubr.f32.mxu0 %v2294
        %2561 = vmatmul.mubr.f32.gmra.mrb[0].mxu0 %v2293
        %v2562 = vpop.f32.mrb[0].mxu0
        %v2563 = vadd.f32 0.0, %v2562
        %v2564 = vpop.f32.mrb[0].mxu0
        %2565 = vmatprep.mubr.f32.mxu0 %v2297
        %2566 = vmatmul.mubr.f32.gmra.mrb[0].mxu0 %v2296
        %v2567 = vpop.f32.mrb[0].mxu0
        %v2568 = vadd.f32 0.0, %v2567
        %v2569 = vpop.f32.mrb[0].mxu0
        %2570 = vmatprep.mubr.f32.mxu0 %v2300
        %2571 = vmatmul.mubr.f32.gmra.mrb[0].mxu0 %v2299
        %v2572 = vpop.f32.mrb[0].mxu0
        %v2573 = vadd.f32 0.0, %v2572
        %v2574 = vpop.f32.mrb[0].mxu0
        %2575 = vdwg.mxu0
        %2576 = vmatprep.subr.mxu0 0.0
        %2577 = vmatpush1.msra.mxu0 %v2335
        %2578 = vmatprep.subr.mxu0 0.0
        %2579 = vmatpush1.msra.mxu0 %v2336
        %2580 = vmatprep.subr.mxu0 0.0
        %2581 = vmatpush1.msra.mxu0 %v2337
        %2582 = vmatprep.subr.mxu0 0.0
        %2583 = vmatpush1.msra.mxu0 %v2338
        %2584 = vmatprep.subr.mxu0 0.0
        %2585 = vmatpush1.msra.mxu0 %v2339
        %2586 = vmatprep.subr.mxu0 0.0
        %2587 = vmatpush1.msra.mxu0 %v2340
        %2588 = vmatprep.subr.mxu0 0.0
        %2589 = vmatpush1.msra.mxu0 %v2341
        %2590 = vmatprep.subr.mxu0 0.0
        %2591 = vmatpush1.msra.mxu0 %v2342
        %2592 = vmatprep.subr.mxu0 0.0
        %2593 = vmatpush1.msra.mxu0 %v2343
        %2594 = vmatprep.subr.mxu0 0.0
        %2595 = vmatpush1.msra.mxu0 %v2344
        %2596 = vmatprep.subr.mxu0 0.0
        %2597 = vmatpush1.msra.mxu0 %v2345
        %2598 = vmatprep.subr.mxu0 0.0
        %2599 = vmatpush1.msra.mxu0 %v2346
        %2600 = vmatprep.subr.mxu0 0.0
        %2601 = vmatpush1.msra.mxu0 %v2347
        %2602 = vmatprep.subr.mxu0 0.0
        %2603 = vmatpush1.msra.mxu0 %v2348
        %2604 = vmatprep.subr.mxu0 0.0
        %2605 = vmatpush1.msra.mxu0 %v2349
        %2606 = vmatprep.subr.mxu0 0.0
        %2607 = vmatpush1.msra.mxu0 %v2350
        %2608 = vmatprep.subr.mxu0 0.0
        %2609 = vmatpush1.msra.mxu0 0.0
        %2610 = vmatprep.subr.mxu0 0.0
        %2611 = vmatpush1.msra.mxu0 0.0
        %2612 = vmatprep.subr.mxu0 0.0
        %2613 = vmatpush1.msra.mxu0 0.0
        %2614 = vmatprep.subr.mxu0 0.0
        %2615 = vmatpush1.msra.mxu0 0.0
        %2616 = vmatprep.subr.mxu0 0.0
        %2617 = vmatpush1.msra.mxu0 0.0
        %2618 = vmatprep.subr.mxu0 0.0
        %2619 = vmatpush1.msra.mxu0 0.0
        %2620 = vmatprep.subr.mxu0 0.0
        %2621 = vmatpush1.msra.mxu0 0.0
        %2622 = vmatprep.subr.mxu0 0.0
        %2623 = vmatpush1.msra.mxu0 0.0
        %2624 = vmatprep.subr.mxu0 0.0
        %2625 = vmatpush1.msra.mxu0 0.0
        %2626 = vmatprep.subr.mxu0 0.0
        %2627 = vmatpush1.msra.mxu0 0.0
        %2628 = vmatprep.subr.mxu0 0.0
        %2629 = vmatpush1.msra.mxu0 0.0
        %2630 = vmatprep.subr.mxu0 0.0
        %2631 = vmatpush1.msra.mxu0 0.0
        %2632 = vmatprep.subr.mxu0 0.0
        %2633 = vmatpush1.msra.mxu0 0.0
        %2634 = vmatprep.subr.mxu0 0.0
        %2635 = vmatpush1.msra.mxu0 0.0
        %2636 = vmatprep.subr.mxu0 0.0
        %2637 = vmatpush1.msra.mxu0 0.0
        %2638 = vmatprep.subr.mxu0 0.0
        %2639 = vmatpush1.msra.mxu0 0.0
        %2640 = vmatprep.mubr.f32.mxu0 0.0
        %2641 = vmatmul.mubr.f32.gmra.mrb[0].mxu0 %v2208
        %v2642 = vpop.f32.mrb[0].mxu0
        %v2643 = vadd.f32 %v2418, %v2642
        %v2644 = vpop.f32.mrb[0].mxu0
        %2645 = vmatprep.mubr.f32.mxu0 0.0
        %2646 = vmatmul.mubr.f32.gmra.mrb[0].mxu0 %v2211
        %v2647 = vpop.f32.mrb[0].mxu0
        %v2648 = vadd.f32 %v2423, %v2647
        %v2649 = vpop.f32.mrb[0].mxu0
        %2650 = vmatprep.mubr.f32.mxu0 0.0
        %2651 = vmatmul.mubr.f32.gmra.mrb[0].mxu0 %v2214
        %v2652 = vpop.f32.mrb[0].mxu0
        %v2653 = vadd.f32 %v2428, %v2652
        %v2654 = vpop.f32.mrb[0].mxu0
        %2655 = vmatprep.mubr.f32.mxu0 0.0
        %2656 = vmatmul.mubr.f32.gmra.mrb[0].mxu0 %v2217
        %v2657 = vpop.f32.mrb[0].mxu0
        %v2658 = vadd.f32 %v2433, %v2657
        %v2659 = vpop.f32.mrb[0].mxu0
        %2660 = vmatprep.mubr.f32.mxu0 0.0
        %2661 = vmatmul.mubr.f32.gmra.mrb[0].mxu0 %v2220
        %v2662 = vpop.f32.mrb[0].mxu0
        %v2663 = vadd.f32 %v2438, %v2662
        %v2664 = vpop.f32.mrb[0].mxu0
        %2665 = vmatprep.mubr.f32.mxu0 0.0
        %2666 = vmatmul.mubr.f32.gmra.mrb[0].mxu0 %v2223
        %v2667 = vpop.f32.mrb[0].mxu0
        %v2668 = vadd.f32 %v2443, %v2667
        %v2669 = vpop.f32.mrb[0].mxu0
        %2670 = vmatprep.mubr.f32.mxu0 0.0
        %2671 = vmatmul.mubr.f32.gmra.mrb[0].mxu0 %v2226
        %v2672 = vpop.f32.mrb[0].mxu0
        %v2673 = vadd.f32 %v2448, %v2672
        %v2674 = vpop.f32.mrb[0].mxu0
        %2675 = vmatprep.mubr.f32.mxu0 0.0
        %2676 = vmatmul.mubr.f32.gmra.mrb[0].mxu0 %v2229
        %v2677 = vpop.f32.mrb[0].mxu0
        %v2678 = vadd.f32 %v2453, %v2677
        %v2679 = vpop.f32.mrb[0].mxu0
        %2680 = vmatprep.mubr.f32.mxu0 0.0
        %2681 = vmatmul.mubr.f32.gmra.mrb[0].mxu0 %v2232
        %v2682 = vpop.f32.mrb[0].mxu0
        %v2683 = vadd.f32 %v2458, %v2682
        %v2684 = vpop.f32.mrb[0].mxu0
        %2685 = vmatprep.mubr.f32.mxu0 0.0
        %2686 = vmatmul.mubr.f32.gmra.mrb[0].mxu0 %v2235
        %v2687 = vpop.f32.mrb[0].mxu0
        %v2688 = vadd.f32 %v2463, %v2687
        %v2689 = vpop.f32.mrb[0].mxu0
        %2690 = vmatprep.mubr.f32.mxu0 0.0
        %2691 = vmatmul.mubr.f32.gmra.mrb[0].mxu0 %v2238
        %v2692 = vpop.f32.mrb[0].mxu0
        %v2693 = vadd.f32 %v2468, %v2692
        %v2694 = vpop.f32.mrb[0].mxu0
        %2695 = vmatprep.mubr.f32.mxu0 0.0
        %2696 = vmatmul.mubr.f32.gmra.mrb[0].mxu0 %v2241
        %v2697 = vpop.f32.mrb[0].mxu0
        %v2698 = vadd.f32 %v2473, %v2697
        %v2699 = vpop.f32.mrb[0].mxu0
        %2700 = vmatprep.mubr.f32.mxu0 0.0
        %2701 = vmatmul.mubr.f32.gmra.mrb[0].mxu0 %v2244
        %v2702 = vpop.f32.mrb[0].mxu0
        %v2703 = vadd.f32 %v2478, %v2702
        %v2704 = vpop.f32.mrb[0].mxu0
        %2705 = vmatprep.mubr.f32.mxu0 0.0
        %2706 = vmatmul.mubr.f32.gmra.mrb[0].mxu0 %v2247
        %v2707 = vpop.f32.mrb[0].mxu0
        %v2708 = vadd.f32 %v2483, %v2707
        %v2709 = vpop.f32.mrb[0].mxu0
        %2710 = vmatprep.mubr.f32.mxu0 0.0
        %2711 = vmatmul.mubr.f32.gmra.mrb[0].mxu0 %v2250
        %v2712 = vpop.f32.mrb[0].mxu0
        %v2713 = vadd.f32 %v2488, %v2712
        %v2714 = vpop.f32.mrb[0].mxu0
        %2715 = vmatprep.mubr.f32.mxu0 0.0
        %2716 = vmatmul.mubr.f32.gmra.mrb[0].mxu0 %v2253
        %v2717 = vpop.f32.mrb[0].mxu0
        %v2718 = vadd.f32 %v2493, %v2717
        %v2719 = vpop.f32.mrb[0].mxu0
        %2720 = vmatprep.mubr.f32.mxu0 0.0
        %2721 = vmatmul.mubr.f32.gmra.mrb[0].mxu0 %v2256
        %v2722 = vpop.f32.mrb[0].mxu0
        %v2723 = vadd.f32 %v2498, %v2722
        %v2724 = vpop.f32.mrb[0].mxu0
        %2725 = vmatprep.mubr.f32.mxu0 0.0
        %2726 = vmatmul.mubr.f32.gmra.mrb[0].mxu0 %v2259
        %v2727 = vpop.f32.mrb[0].mxu0
        %v2728 = vadd.f32 %v2503, %v2727
        %v2729 = vpop.f32.mrb[0].mxu0
        %2730 = vmatprep.mubr.f32.mxu0 0.0
        %2731 = vmatmul.mubr.f32.gmra.mrb[0].mxu0 %v2262
        %v2732 = vpop.f32.mrb[0].mxu0
        %v2733 = vadd.f32 %v2508, %v2732
        %v2734 = vpop.f32.mrb[0].mxu0
        %2735 = vmatprep.mubr.f32.mxu0 0.0
        %2736 = vmatmul.mubr.f32.gmra.mrb[0].mxu0 %v2265
        %v2737 = vpop.f32.mrb[0].mxu0
        %v2738 = vadd.f32 %v2513, %v2737
        %v2739 = vpop.f32.mrb[0].mxu0
        %2740 = vmatprep.mubr.f32.mxu0 0.0
        %2741 = vmatmul.mubr.f32.gmra.mrb[0].mxu0 %v2268
        %v2742 = vpop.f32.mrb[0].mxu0
        %v2743 = vadd.f32 %v2518, %v2742
        %v2744 = vpop.f32.mrb[0].mxu0
        %2745 = vmatprep.mubr.f32.mxu0 0.0
        %2746 = vmatmul.mubr.f32.gmra.mrb[0].mxu0 %v2271
        %v2747 = vpop.f32.mrb[0].mxu0
        %v2748 = vadd.f32 %v2523, %v2747
        %v2749 = vpop.f32.mrb[0].mxu0
        %2750 = vmatprep.mubr.f32.mxu0 0.0
        %2751 = vmatmul.mubr.f32.gmra.mrb[0].mxu0 %v2274
        %v2752 = vpop.f32.mrb[0].mxu0
        %v2753 = vadd.f32 %v2528, %v2752
        %v2754 = vpop.f32.mrb[0].mxu0
        %2755 = vmatprep.mubr.f32.mxu0 0.0
        %2756 = vmatmul.mubr.f32.gmra.mrb[0].mxu0 %v2277
        %v2757 = vpop.f32.mrb[0].mxu0
        %v2758 = vadd.f32 %v2533, %v2757
        %v2759 = vpop.f32.mrb[0].mxu0
        %2760 = vmatprep.mubr.f32.mxu0 0.0
        %2761 = vmatmul.mubr.f32.gmra.mrb[0].mxu0 %v2280
        %v2762 = vpop.f32.mrb[0].mxu0
        %v2763 = vadd.f32 %v2538, %v2762
        %v2764 = vpop.f32.mrb[0].mxu0
        %2765 = vmatprep.mubr.f32.mxu0 0.0
        %2766 = vmatmul.mubr.f32.gmra.mrb[0].mxu0 %v2283
        %v2767 = vpop.f32.mrb[0].mxu0
        %v2768 = vadd.f32 %v2543, %v2767
        %v2769 = vpop.f32.mrb[0].mxu0
        %2770 = vmatprep.mubr.f32.mxu0 0.0
        %2771 = vmatmul.mubr.f32.gmra.mrb[0].mxu0 %v2286
        %v2772 = vpop.f32.mrb[0].mxu0
        %v2773 = vadd.f32 %v2548, %v2772
        %v2774 = vpop.f32.mrb[0].mxu0
        %2775 = vmatprep.mubr.f32.mxu0 0.0
        %2776 = vmatmul.mubr.f32.gmra.mrb[0].mxu0 %v2289
        %v2777 = vpop.f32.mrb[0].mxu0
        %v2778 = vadd.f32 %v2553, %v2777
        %v2779 = vpop.f32.mrb[0].mxu0
        %2780 = vmatprep.mubr.f32.mxu0 0.0
        %2781 = vmatmul.mubr.f32.gmra.mrb[0].mxu0 %v2292
        %v2782 = vpop.f32.mrb[0].mxu0
        %v2783 = vadd.f32 %v2558, %v2782
        %v2784 = vpop.f32.mrb[0].mxu0
        %2785 = vmatprep.mubr.f32.mxu0 0.0
        %2786 = vmatmul.mubr.f32.gmra.mrb[0].mxu0 %v2295
        %v2787 = vpop.f32.mrb[0].mxu0
        %v2788 = vadd.f32 %v2563, %v2787
        %v2789 = vpop.f32.mrb[0].mxu0
        %2790 = vmatprep.mubr.f32.mxu0 0.0
        %2791 = vmatmul.mubr.f32.gmra.mrb[0].mxu0 %v2298
        %v2792 = vpop.f32.mrb[0].mxu0
        %v2793 = vadd.f32 %v2568, %v2792
        %v2794 = vpop.f32.mrb[0].mxu0
        %2795 = vmatprep.mubr.f32.mxu0 0.0
        %2796 = vmatmul.mubr.f32.gmra.mrb[0].mxu0 %v2301
        %v2797 = vpop.f32.mrb[0].mxu0
        %v2798 = vadd.f32 %v2573, %v2797
        %v2799 = vpop.f32.mrb[0].mxu0
        %2800 = vdwg.mxu0
        %v2801 = vadd.f32 %v2047, %v2643
        %v2802 = vadd.f32 %v2052, %v2648
        %v2803 = vadd.f32 %v2057, %v2653
        %v2804 = vadd.f32 %v2062, %v2658
        %v2805 = vadd.f32 %v2067, %v2663
        %v2806 = vadd.f32 %v2072, %v2668
        %v2807 = vadd.f32 %v2077, %v2673
        %v2808 = vadd.f32 %v2082, %v2678
        %v2809 = vadd.f32 %v2087, %v2683
        %v2810 = vadd.f32 %v2092, %v2688
        %v2811 = vadd.f32 %v2097, %v2693
        %v2812 = vadd.f32 %v2102, %v2698
        %v2813 = vadd.f32 %v2107, %v2703
        %v2814 = vadd.f32 %v2112, %v2708
        %v2815 = vadd.f32 %v2117, %v2713
        %v2816 = vadd.f32 %v2122, %v2718
        %v2817 = vadd.f32 %v2127, %v2723
        %v2818 = vadd.f32 %v2132, %v2728
        %v2819 = vadd.f32 %v2137, %v2733
        %v2820 = vadd.f32 %v2142, %v2738
        %v2821 = vadd.f32 %v2147, %v2743
        %v2822 = vadd.f32 %v2152, %v2748
        %v2823 = vadd.f32 %v2157, %v2753
        %v2824 = vadd.f32 %v2162, %v2758
        %v2825 = vadd.f32 %v2167, %v2763
        %v2826 = vadd.f32 %v2172, %v2768
        %v2827 = vadd.f32 %v2177, %v2773
        %v2828 = vadd.f32 %v2182, %v2778
        %v2829 = vadd.f32 %v2187, %v2783
        %v2830 = vadd.f32 %v2192, %v2788
        %v2831 = vadd.f32 %v2197, %v2793
        %v2832 = vadd.f32 %v2202, %v2798
        %v2833 = vld [vmem:[%s3] sm:$0x1]
        %v2835 = vlaneseq
        %v2836 = vshrl.u32 %v2835, 7
        %v2837 = vsub.s32 0, %v2836
        %v2838 = vrot.slane %v2833, %v2837
        %v2840 = vadd.f32 %v2801, %v2838
        %v2841 = vadd.f32 %v2802, %v2838
        %v2842 = vadd.f32 %v2803, %v2838
        %v2843 = vadd.f32 %v2804, %v2838
        %v2844 = vadd.f32 %v2805, %v2838
        %v2845 = vadd.f32 %v2806, %v2838
        %v2846 = vadd.f32 %v2807, %v2838
        %v2847 = vadd.f32 %v2808, %v2838
        %v2848 = vadd.f32 %v2809, %v2838
        %v2849 = vadd.f32 %v2810, %v2838
        %v2850 = vadd.f32 %v2811, %v2838
        %v2851 = vadd.f32 %v2812, %v2838
        %v2852 = vadd.f32 %v2813, %v2838
        %v2853 = vadd.f32 %v2814, %v2838
        %v2854 = vadd.f32 %v2815, %v2838
        %v2855 = vadd.f32 %v2816, %v2838
        %v2856 = vadd.f32 %v2817, %v2838
        %v2857 = vadd.f32 %v2818, %v2838
        %v2858 = vadd.f32 %v2819, %v2838
        %v2859 = vadd.f32 %v2820, %v2838
        %v2860 = vadd.f32 %v2821, %v2838
        %v2861 = vadd.f32 %v2822, %v2838
        %v2862 = vadd.f32 %v2823, %v2838
        %v2863 = vadd.f32 %v2824, %v2838
        %v2864 = vadd.f32 %v2825, %v2838
        %v2865 = vadd.f32 %v2826, %v2838
        %v2866 = vadd.f32 %v2827, %v2838
        %v2867 = vadd.f32 %v2828, %v2838
        %v2868 = vadd.f32 %v2829, %v2838
        %v2869 = vadd.f32 %v2830, %v2838
        %v2870 = vadd.f32 %v2831, %v2838
        %v2871 = vadd.f32 %v2832, %v2838
        %v2872 = vmax.f32 %v2840, 0.0
        %v2873 = vmax.f32 %v2841, 0.0
        %v2874 = vmax.f32 %v2842, 0.0
        %v2875 = vmax.f32 %v2843, 0.0
        %v2876 = vmax.f32 %v2844, 0.0
        %v2877 = vmax.f32 %v2845, 0.0
        %v2878 = vmax.f32 %v2846, 0.0
        %v2879 = vmax.f32 %v2847, 0.0
        %v2880 = vmax.f32 %v2848, 0.0
        %v2881 = vmax.f32 %v2849, 0.0
        %v2882 = vmax.f32 %v2850, 0.0
        %v2883 = vmax.f32 %v2851, 0.0
        %v2884 = vmax.f32 %v2852, 0.0
        %v2885 = vmax.f32 %v2853, 0.0
        %v2886 = vmax.f32 %v2854, 0.0
        %v2887 = vmax.f32 %v2855, 0.0
        %v2888 = vmax.f32 %v2856, 0.0
        %v2889 = vmax.f32 %v2857, 0.0
        %v2890 = vmax.f32 %v2858, 0.0
        %v2891 = vmax.f32 %v2859, 0.0
        %v2892 = vmax.f32 %v2860, 0.0
        %v2893 = vmax.f32 %v2861, 0.0
        %v2894 = vmax.f32 %v2862, 0.0
        %v2895 = vmax.f32 %v2863, 0.0
        %v2896 = vmax.f32 %v2864, 0.0
        %v2897 = vmax.f32 %v2865, 0.0
        %v2898 = vmax.f32 %v2866, 0.0
        %v2899 = vmax.f32 %v2867, 0.0
        %v2900 = vmax.f32 %v2868, 0.0
        %v2901 = vmax.f32 %v2869, 0.0
        %v2902 = vmax.f32 %v2870, 0.0
        %v2903 = vmax.f32 %v2871, 0.0
        %2904 = vst [vmem:[%s766 + $0x1] sm:$0xff] %v2872
        %2905 = vst [vmem:[%s766 + $0x9] sm:$0xff] %v2873
        %2906 = vst [vmem:[%s766 + $0x19] sm:$0xff] %v2874
        %2907 = vst [vmem:[%s766 + $0x21] sm:$0xff] %v2875
        %2908 = vst [vmem:[%s766 + $0x31] sm:$0xff] %v2876
        %2909 = vst [vmem:[%s766 + $0x39] sm:$0xff] %v2877
        %2910 = vst [vmem:[%s766 + $0x49] sm:$0xff] %v2878
        %2911 = vst [vmem:[%s766 + $0x51] sm:$0xff] %v2879
        %2912 = vst [vmem:[%s766 + $0x61] sm:$0xff] %v2880
        %2913 = vst [vmem:[%s766 + $0x69] sm:$0xff] %v2881
        %2914 = vst [vmem:[%s766 + $0x79] sm:$0xff] %v2882
        %2915 = vst [vmem:[%s766 + $0x81] sm:$0xff] %v2883
        %2916 = vst [vmem:[%s766 + $0x91] sm:$0xff] %v2884
        %2917 = vst [vmem:[%s766 + $0x99] sm:$0xff] %v2885
        %2918 = vst [vmem:[%s766 + $0xa9] sm:$0xff] %v2886
        %2919 = vst [vmem:[%s766 + $0xb1] sm:$0xff] %v2887
        %2920 = vst [vmem:[%s766 + $0xc1] sm:$0xff] %v2888
        %2921 = vst [vmem:[%s766 + $0xc9] sm:$0xff] %v2889
        %2922 = vst [vmem:[%s766 + $0xd9] sm:$0xff] %v2890
        %2923 = vst [vmem:[%s766 + $0xe1] sm:$0xff] %v2891
        %2924 = vst [vmem:[%s766 + $0xf1] sm:$0xff] %v2892
        %2925 = vst [vmem:[%s766 + $0xf9] sm:$0xff] %v2893
        %2926 = vst [vmem:[%s766 + $0x109] sm:$0xff] %v2894
        %2927 = vst [vmem:[%s766 + $0x111] sm:$0xff] %v2895
        %2928 = vst [vmem:[%s766 + $0x121] sm:$0xff] %v2896
        %2929 = vst [vmem:[%s766 + $0x129] sm:$0xff] %v2897
        %2930 = vst [vmem:[%s766 + $0x139] sm:$0xff] %v2898
        %2931 = vst [vmem:[%s766 + $0x141] sm:$0xff] %v2899
        %2932 = vst [vmem:[%s766 + $0x151] sm:$0xff] %v2900
        %2933 = vst [vmem:[%s766 + $0x159] sm:$0xff] %v2901
        %2934 = vst [vmem:[%s766 + $0x169] sm:$0xff] %v2902
        %2935 = vst [vmem:[%s766 + $0x171] sm:$0xff] %v2903
        %v2936 = vld [vmem:[#allocation2] sm:$0xff]
        %v2937 = vld [vmem:[#allocation2 + $0x8] sm:$0xff]
        %v2938 = vld [vmem:[#allocation2 + $0x18] sm:$0xff]
        %v2939 = vld [vmem:[#allocation2 + $0x20] sm:$0xff]
        %v2940 = vld [vmem:[#allocation2 + $0x30] sm:$0xff]
        %v2941 = vld [vmem:[#allocation2 + $0x38] sm:$0xff]
        %v2942 = vld [vmem:[#allocation2 + $0x48] sm:$0xff]
        %v2943 = vld [vmem:[#allocation2 + $0x50] sm:$0xff]
        %v2944 = vld [vmem:[#allocation2 + $0x60] sm:$0xff]
        %v2945 = vld [vmem:[#allocation2 + $0x68] sm:$0xff]
        %v2946 = vld [vmem:[#allocation2 + $0x78] sm:$0xff]
        %v2947 = vld [vmem:[#allocation2 + $0x80] sm:$0xff]
        %v2948 = vld [vmem:[#allocation2 + $0x90] sm:$0xff]
        %v2949 = vld [vmem:[#allocation2 + $0x98] sm:$0xff]
        %v2950 = vld [vmem:[#allocation2 + $0xa8] sm:$0xff]
        %v2951 = vld [vmem:[#allocation2 + $0xb0] sm:$0xff]
        %v2952 = vld [vmem:[#allocation2 + $0xc0] sm:$0xff]
        %v2953 = vld [vmem:[#allocation2 + $0xc8] sm:$0xff]
        %v2954 = vld [vmem:[#allocation2 + $0xd8] sm:$0xff]
        %v2955 = vld [vmem:[#allocation2 + $0xe0] sm:$0xff]
        %v2956 = vld [vmem:[#allocation2 + $0xf0] sm:$0xff]
        %v2957 = vld [vmem:[#allocation2 + $0xf8] sm:$0xff]
        %v2958 = vld [vmem:[#allocation2 + $0x108] sm:$0xff]
        %v2959 = vld [vmem:[#allocation2 + $0x110] sm:$0xff]
        %v2960 = vld [vmem:[#allocation2 + $0x120] sm:$0xff]
        %v2961 = vld [vmem:[#allocation2 + $0x128] sm:$0xff]
        %v2962 = vld [vmem:[#allocation2 + $0x138] sm:$0xff]
        %v2963 = vld [vmem:[#allocation2 + $0x140] sm:$0xff]
        %v2964 = vld [vmem:[#allocation2 + $0x150] sm:$0xff]
        %v2965 = vld [vmem:[#allocation2 + $0x158] sm:$0xff]
        %v2966 = vld [vmem:[#allocation2 + $0x168] sm:$0xff]
        %v2967 = vld [vmem:[#allocation2 + $0x170] sm:$0xff]
        %v2968 = vld [vmem:[#allocation2 + $0x180] sm:$0xff]
        %v2969 = vld [vmem:[#allocation2 + $0x188] sm:$0xff]
        %v2970 = vld [vmem:[#allocation2 + $0x198] sm:$0xff]
        %v2971 = vld [vmem:[#allocation2 + $0x1a0] sm:$0xff]
        %2972 = vst [vmem:[#allocation3] sm:$0xff] %v2936
        %2973 = vst [vmem:[#allocation3 + $0x18] sm:$0xff] %v2937
        %2974 = vst [vmem:[#allocation3 + $0x30] sm:$0xff] %v2938
        %2975 = vst [vmem:[#allocation3 + $0x48] sm:$0xff] %v2939
        %2976 = vst [vmem:[#allocation3 + $0x60] sm:$0xff] %v2940
        %2977 = vst [vmem:[#allocation3 + $0x78] sm:$0xff] %v2941
        %2978 = vst [vmem:[#allocation3 + $0x90] sm:$0xff] %v2942
        %2979 = vst [vmem:[#allocation3 + $0xa8] sm:$0xff] %v2943
        %2980 = vst [vmem:[#allocation3 + $0xc0] sm:$0xff] %v2944
        %2981 = vst [vmem:[#allocation3 + $0xd8] sm:$0xff] %v2945
        %2982 = vst [vmem:[#allocation3 + $0xf0] sm:$0xff] %v2946
        %2983 = vst [vmem:[#allocation3 + $0x108] sm:$0xff] %v2947
        %2984 = vst [vmem:[#allocation3 + $0x120] sm:$0xff] %v2948
        %2985 = vst [vmem:[#allocation3 + $0x138] sm:$0xff] %v2949
        %2986 = vst [vmem:[#allocation3 + $0x150] sm:$0xff] %v2950
        %2987 = vst [vmem:[#allocation3 + $0x168] sm:$0xff] %v2951
        %2988 = vst [vmem:[#allocation3 + $0x180] sm:$0xff] %v2952
        %2989 = vst [vmem:[#allocation3 + $0x198] sm:$0xff] %v2953
        %2990 = vst [vmem:[#allocation3 + $0x1b0] sm:$0xff] %v2954
        %2991 = vst [vmem:[#allocation3 + $0x1c8] sm:$0xff] %v2955
        %2992 = vst [vmem:[#allocation3 + $0x1e0] sm:$0xff] %v2956
        %2993 = vst [vmem:[#allocation3 + $0x1f8] sm:$0xff] %v2957
        %2994 = vst [vmem:[#allocation3 + $0x210] sm:$0xff] %v2958
        %2995 = vst [vmem:[#allocation3 + $0x228] sm:$0xff] %v2959
        %2996 = vst [vmem:[#allocation3 + $0x240] sm:$0xff] %v2960
        %2997 = vst [vmem:[#allocation3 + $0x258] sm:$0xff] %v2961
        %2998 = vst [vmem:[#allocation3 + $0x270] sm:$0xff] %v2962
        %2999 = vst [vmem:[#allocation3 + $0x288] sm:$0xff] %v2963
        %3000 = vst [vmem:[#allocation3 + $0x2a0] sm:$0xff] %v2964
        %3001 = vst [vmem:[#allocation3 + $0x2b8] sm:$0xff] %v2965
        %3002 = vst [vmem:[#allocation3 + $0x2d0] sm:$0xff] %v2966
        %3003 = vst [vmem:[#allocation3 + $0x2e8] sm:$0xff] %v2967
        %3004 = vst [vmem:[#allocation3 + $0x300] sm:$0xff] %v2968
        %3005 = vst [vmem:[#allocation3 + $0x318] sm:$0xff] %v2969
        %3006 = vst [vmem:[#allocation3 + $0x330] sm:$0xff] %v2970
        %3007 = vst [vmem:[#allocation3 + $0x348] sm:$0xff] %v2971
        %v3008 = vld [vmem:[#allocation2 + $0x1] sm:$0xff]
        %v3009 = vld [vmem:[#allocation2 + $0x9] sm:$0xff]
        %v3010 = vld [vmem:[#allocation2 + $0x19] sm:$0xff]
        %v3011 = vld [vmem:[#allocation2 + $0x21] sm:$0xff]
        %v3012 = vld [vmem:[#allocation2 + $0x31] sm:$0xff]
        %v3013 = vld [vmem:[#allocation2 + $0x39] sm:$0xff]
        %v3014 = vld [vmem:[#allocation2 + $0x49] sm:$0xff]
        %v3015 = vld [vmem:[#allocation2 + $0x51] sm:$0xff]
        %v3016 = vld [vmem:[#allocation2 + $0x61] sm:$0xff]
        %v3017 = vld [vmem:[#allocation2 + $0x69] sm:$0xff]
        %v3018 = vld [vmem:[#allocation2 + $0x79] sm:$0xff]
        %v3019 = vld [vmem:[#allocation2 + $0x81] sm:$0xff]
        %v3020 = vld [vmem:[#allocation2 + $0x91] sm:$0xff]
        %v3021 = vld [vmem:[#allocation2 + $0x99] sm:$0xff]
        %v3022 = vld [vmem:[#allocation2 + $0xa9] sm:$0xff]
        %v3023 = vld [vmem:[#allocation2 + $0xb1] sm:$0xff]
        %v3024 = vld [vmem:[#allocation2 + $0xc1] sm:$0xff]
        %v3025 = vld [vmem:[#allocation2 + $0xc9] sm:$0xff]
        %v3026 = vld [vmem:[#allocation2 + $0xd9] sm:$0xff]
        %v3027 = vld [vmem:[#allocation2 + $0xe1] sm:$0xff]
        %v3028 = vld [vmem:[#allocation2 + $0xf1] sm:$0xff]
        %v3029 = vld [vmem:[#allocation2 + $0xf9] sm:$0xff]
        %v3030 = vld [vmem:[#allocation2 + $0x109] sm:$0xff]
        %v3031 = vld [vmem:[#allocation2 + $0x111] sm:$0xff]
        %v3032 = vld [vmem:[#allocation2 + $0x121] sm:$0xff]
        %v3033 = vld [vmem:[#allocation2 + $0x129] sm:$0xff]
        %v3034 = vld [vmem:[#allocation2 + $0x139] sm:$0xff]
        %v3035 = vld [vmem:[#allocation2 + $0x141] sm:$0xff]
        %v3036 = vld [vmem:[#allocation2 + $0x151] sm:$0xff]
        %v3037 = vld [vmem:[#allocation2 + $0x159] sm:$0xff]
        %v3038 = vld [vmem:[#allocation2 + $0x169] sm:$0xff]
        %v3039 = vld [vmem:[#allocation2 + $0x171] sm:$0xff]
        %v3040 = vld [vmem:[#allocation2 + $0x181] sm:$0xff]
        %v3041 = vld [vmem:[#allocation2 + $0x189] sm:$0xff]
        %v3042 = vld [vmem:[#allocation2 + $0x199] sm:$0xff]
        %v3043 = vld [vmem:[#allocation2 + $0x1a1] sm:$0xff]
        %3044 = vst [vmem:[#allocation3 + $0x8] sm:$0xff] %v3008
        %3045 = vst [vmem:[#allocation3 + $0x20] sm:$0xff] %v3009
        %3046 = vst [vmem:[#allocation3 + $0x38] sm:$0xff] %v3010
        %3047 = vst [vmem:[#allocation3 + $0x50] sm:$0xff] %v3011
        %3048 = vst [vmem:[#allocation3 + $0x68] sm:$0xff] %v3012
        %3049 = vst [vmem:[#allocation3 + $0x80] sm:$0xff] %v3013
        %3050 = vst [vmem:[#allocation3 + $0x98] sm:$0xff] %v3014
        %3051 = vst [vmem:[#allocation3 + $0xb0] sm:$0xff] %v3015
        %3052 = vst [vmem:[#allocation3 + $0xc8] sm:$0xff] %v3016
        %3053 = vst [vmem:[#allocation3 + $0xe0] sm:$0xff] %v3017
        %3054 = vst [vmem:[#allocation3 + $0xf8] sm:$0xff] %v3018
        %3055 = vst [vmem:[#allocation3 + $0x110] sm:$0xff] %v3019
        %3056 = vst [vmem:[#allocation3 + $0x128] sm:$0xff] %v3020
        %3057 = vst [vmem:[#allocation3 + $0x140] sm:$0xff] %v3021
        %3058 = vst [vmem:[#allocation3 + $0x158] sm:$0xff] %v3022
        %3059 = vst [vmem:[#allocation3 + $0x170] sm:$0xff] %v3023
        %3060 = vst [vmem:[#allocation3 + $0x188] sm:$0xff] %v3024
        %3061 = vst [vmem:[#allocation3 + $0x1a0] sm:$0xff] %v3025
        %3062 = vst [vmem:[#allocation3 + $0x1b8] sm:$0xff] %v3026
        %3063 = vst [vmem:[#allocation3 + $0x1d0] sm:$0xff] %v3027
        %3064 = vst [vmem:[#allocation3 + $0x1e8] sm:$0xff] %v3028
        %3065 = vst [vmem:[#allocation3 + $0x200] sm:$0xff] %v3029
        %3066 = vst [vmem:[#allocation3 + $0x218] sm:$0xff] %v3030
        %3067 = vst [vmem:[#allocation3 + $0x230] sm:$0xff] %v3031
        %3068 = vst [vmem:[#allocation3 + $0x248] sm:$0xff] %v3032
        %3069 = vst [vmem:[#allocation3 + $0x260] sm:$0xff] %v3033
        %3070 = vst [vmem:[#allocation3 + $0x278] sm:$0xff] %v3034
        %3071 = vst [vmem:[#allocation3 + $0x290] sm:$0xff] %v3035
        %3072 = vst [vmem:[#allocation3 + $0x2a8] sm:$0xff] %v3036
        %3073 = vst [vmem:[#allocation3 + $0x2c0] sm:$0xff] %v3037
        %3074 = vst [vmem:[#allocation3 + $0x2d8] sm:$0xff] %v3038
        %3075 = vst [vmem:[#allocation3 + $0x2f0] sm:$0xff] %v3039
        %3076 = vst [vmem:[#allocation3 + $0x308] sm:$0xff] %v3040
        %3077 = vst [vmem:[#allocation3 + $0x320] sm:$0xff] %v3041
        %3078 = vst [vmem:[#allocation3 + $0x338] sm:$0xff] %v3042
        %3079 = vst [vmem:[#allocation3 + $0x350] sm:$0xff] %v3043
        %v3080 = vld [vmem:[#allocation2 + $0x2] sm:$0xff]
        %v3081 = vld [vmem:[#allocation2 + $0xa] sm:$0xff]
        %v3082 = vld [vmem:[#allocation2 + $0x1a] sm:$0xff]
        %v3083 = vld [vmem:[#allocation2 + $0x22] sm:$0xff]
        %v3084 = vld [vmem:[#allocation2 + $0x32] sm:$0xff]
        %v3085 = vld [vmem:[#allocation2 + $0x3a] sm:$0xff]
        %v3086 = vld [vmem:[#allocation2 + $0x4a] sm:$0xff]
        %v3087 = vld [vmem:[#allocation2 + $0x52] sm:$0xff]
        %v3088 = vld [vmem:[#allocation2 + $0x62] sm:$0xff]
        %v3089 = vld [vmem:[#allocation2 + $0x6a] sm:$0xff]
        %v3090 = vld [vmem:[#allocation2 + $0x7a] sm:$0xff]
        %v3091 = vld [vmem:[#allocation2 + $0x82] sm:$0xff]
        %v3092 = vld [vmem:[#allocation2 + $0x92] sm:$0xff]
        %v3093 = vld [vmem:[#allocation2 + $0x9a] sm:$0xff]
        %v3094 = vld [vmem:[#allocation2 + $0xaa] sm:$0xff]
        %v3095 = vld [vmem:[#allocation2 + $0xb2] sm:$0xff]
        %v3096 = vld [vmem:[#allocation2 + $0xc2] sm:$0xff]
        %v3097 = vld [vmem:[#allocation2 + $0xca] sm:$0xff]
        %v3098 = vld [vmem:[#allocation2 + $0xda] sm:$0xff]
        %v3099 = vld [vmem:[#allocation2 + $0xe2] sm:$0xff]
        %v3100 = vld [vmem:[#allocation2 + $0xf2] sm:$0xff]
        %v3101 = vld [vmem:[#allocation2 + $0xfa] sm:$0xff]
        %v3102 = vld [vmem:[#allocation2 + $0x10a] sm:$0xff]
        %v3103 = vld [vmem:[#allocation2 + $0x112] sm:$0xff]
        %v3104 = vld [vmem:[#allocation2 + $0x122] sm:$0xff]
        %v3105 = vld [vmem:[#allocation2 + $0x12a] sm:$0xff]
        %v3106 = vld [vmem:[#allocation2 + $0x13a] sm:$0xff]
        %v3107 = vld [vmem:[#allocation2 + $0x142] sm:$0xff]
        %v3108 = vld [vmem:[#allocation2 + $0x152] sm:$0xff]
        %v3109 = vld [vmem:[#allocation2 + $0x15a] sm:$0xff]
        %v3110 = vld [vmem:[#allocation2 + $0x16a] sm:$0xff]
        %v3111 = vld [vmem:[#allocation2 + $0x172] sm:$0xff]
        %v3112 = vld [vmem:[#allocation2 + $0x182] sm:$0xff]
        %v3113 = vld [vmem:[#allocation2 + $0x18a] sm:$0xff]
        %v3114 = vld [vmem:[#allocation2 + $0x19a] sm:$0xff]
        %v3115 = vld [vmem:[#allocation2 + $0x1a2] sm:$0xff]
        %3116 = vst [vmem:[#allocation3 + $0x10] sm:$0xff] %v3080
        %3117 = vst [vmem:[#allocation3 + $0x28] sm:$0xff] %v3081
        %3118 = vst [vmem:[#allocation3 + $0x40] sm:$0xff] %v3082
        %3119 = vst [vmem:[#allocation3 + $0x58] sm:$0xff] %v3083
        %3120 = vst [vmem:[#allocation3 + $0x70] sm:$0xff] %v3084
        %3121 = vst [vmem:[#allocation3 + $0x88] sm:$0xff] %v3085
        %3122 = vst [vmem:[#allocation3 + $0xa0] sm:$0xff] %v3086
        %3123 = vst [vmem:[#allocation3 + $0xb8] sm:$0xff] %v3087
        %3124 = vst [vmem:[#allocation3 + $0xd0] sm:$0xff] %v3088
        %3125 = vst [vmem:[#allocation3 + $0xe8] sm:$0xff] %v3089
        %3126 = vst [vmem:[#allocation3 + $0x100] sm:$0xff] %v3090
        %3127 = vst [vmem:[#allocation3 + $0x118] sm:$0xff] %v3091
        %3128 = vst [vmem:[#allocation3 + $0x130] sm:$0xff] %v3092
        %3129 = vst [vmem:[#allocation3 + $0x148] sm:$0xff] %v3093
        %3130 = vst [vmem:[#allocation3 + $0x160] sm:$0xff] %v3094
        %3131 = vst [vmem:[#allocation3 + $0x178] sm:$0xff] %v3095
        %3132 = vst [vmem:[#allocation3 + $0x190] sm:$0xff] %v3096
        %3133 = vst [vmem:[#allocation3 + $0x1a8] sm:$0xff] %v3097
        %3134 = vst [vmem:[#allocation3 + $0x1c0] sm:$0xff] %v3098
        %3135 = vst [vmem:[#allocation3 + $0x1d8] sm:$0xff] %v3099
        %3136 = vst [vmem:[#allocation3 + $0x1f0] sm:$0xff] %v3100
        %3137 = vst [vmem:[#allocation3 + $0x208] sm:$0xff] %v3101
        %3138 = vst [vmem:[#allocation3 + $0x220] sm:$0xff] %v3102
        %3139 = vst [vmem:[#allocation3 + $0x238] sm:$0xff] %v3103
        %3140 = vst [vmem:[#allocation3 + $0x250] sm:$0xff] %v3104
        %3141 = vst [vmem:[#allocation3 + $0x268] sm:$0xff] %v3105
        %3142 = vst [vmem:[#allocation3 + $0x280] sm:$0xff] %v3106
        %3143 = vst [vmem:[#allocation3 + $0x298] sm:$0xff] %v3107
        %3144 = vst [vmem:[#allocation3 + $0x2b0] sm:$0xff] %v3108
        %3145 = vst [vmem:[#allocation3 + $0x2c8] sm:$0xff] %v3109
        %3146 = vst [vmem:[#allocation3 + $0x2e0] sm:$0xff] %v3110
        %3147 = vst [vmem:[#allocation3 + $0x2f8] sm:$0xff] %v3111
        %3148 = vst [vmem:[#allocation3 + $0x310] sm:$0xff] %v3112
        %3149 = vst [vmem:[#allocation3 + $0x328] sm:$0xff] %v3113
        %3150 = vst [vmem:[#allocation3 + $0x340] sm:$0xff] %v3114
        %3151 = vst [vmem:[#allocation3 + $0x358] sm:$0xff] %v3115
        %v3152 = vld [vmem:[#allocation3] sm:$0xff]
        %v3153 = vld [vmem:[#allocation3 + $0x8] sm:$0xff]
        %v3154 = vld [vmem:[#allocation3 + $0x10] sm:$0xff]
        %v3155 = vld [vmem:[#allocation3 + $0x18] sm:$0xff]
        %v3156 = vld [vmem:[#allocation3 + $0x20] sm:$0xff]
        %v3157 = vld [vmem:[#allocation3 + $0x28] sm:$0xff]
        %v3158 = vld [vmem:[#allocation3 + $0x30] sm:$0xff]
        %v3159 = vld [vmem:[#allocation3 + $0x38] sm:$0xff]
        %v3160 = vld [vmem:[#allocation3 + $0x40] sm:$0xff]
        %v3161 = vld [vmem:[#allocation3 + $0x48] sm:$0xff]
        %v3162 = vld [vmem:[#allocation3 + $0x50] sm:$0xff]
        %v3163 = vld [vmem:[#allocation3 + $0x58] sm:$0xff]
        %v3164 = vld [vmem:[#allocation3 + $0x60] sm:$0xff]
        %v3165 = vld [vmem:[#allocation3 + $0x68] sm:$0xff]
        %v3166 = vld [vmem:[#allocation3 + $0x70] sm:$0xff]
        %v3167 = vld [vmem:[#allocation3 + $0x78] sm:$0xff]
        %v3168 = vld [vmem:[#allocation3 + $0x80] sm:$0xff]
        %v3169 = vld [vmem:[#allocation3 + $0x88] sm:$0xff]
        %v3170 = vld [vmem:[#allocation3 + $0x90] sm:$0xff]
        %v3171 = vld [vmem:[#allocation3 + $0x98] sm:$0xff]
        %v3172 = vld [vmem:[#allocation3 + $0xa0] sm:$0xff]
        %v3173 = vld [vmem:[#allocation3 + $0xa8] sm:$0xff]
        %v3174 = vld [vmem:[#allocation3 + $0xb0] sm:$0xff]
        %v3175 = vld [vmem:[#allocation3 + $0xb8] sm:$0xff]
        %v3176 = vld [vmem:[#allocation3 + $0xc0] sm:$0xff]
        %v3177 = vld [vmem:[#allocation3 + $0xc8] sm:$0xff]
        %v3178 = vld [vmem:[#allocation3 + $0xd0] sm:$0xff]
        %v3179 = vld [vmem:[#allocation3 + $0xd8] sm:$0xff]
        %v3180 = vld [vmem:[#allocation3 + $0xe0] sm:$0xff]
        %v3181 = vld [vmem:[#allocation3 + $0xe8] sm:$0xff]
        %v3182 = vld [vmem:[#allocation3 + $0xf0] sm:$0xff]
        %v3183 = vld [vmem:[#allocation3 + $0xf8] sm:$0xff]
        %v3184 = vld [vmem:[#allocation3 + $0x100] sm:$0xff]
        %v3185 = vld [vmem:[#allocation3 + $0x108] sm:$0xff]
        %v3186 = vld [vmem:[#allocation3 + $0x110] sm:$0xff]
        %v3187 = vld [vmem:[#allocation3 + $0x118] sm:$0xff]
        %v3188 = vld [vmem:[#allocation3 + $0x120] sm:$0xff]
        %v3189 = vld [vmem:[#allocation3 + $0x128] sm:$0xff]
        %v3190 = vld [vmem:[#allocation3 + $0x130] sm:$0xff]
        %v3191 = vld [vmem:[#allocation3 + $0x138] sm:$0xff]
        %v3192 = vld [vmem:[#allocation3 + $0x140] sm:$0xff]
        %v3193 = vld [vmem:[#allocation3 + $0x148] sm:$0xff]
        %v3194 = vld [vmem:[#allocation3 + $0x150] sm:$0xff]
        %v3195 = vld [vmem:[#allocation3 + $0x158] sm:$0xff]
        %v3196 = vld [vmem:[#allocation3 + $0x160] sm:$0xff]
        %v3197 = vld [vmem:[#allocation3 + $0x168] sm:$0xff]
        %v3198 = vld [vmem:[#allocation3 + $0x170] sm:$0xff]
        %v3199 = vld [vmem:[#allocation3 + $0x178] sm:$0xff]
        %v3200 = vld [vmem:[#allocation3 + $0x180] sm:$0xff]
        %v3201 = vld [vmem:[#allocation3 + $0x188] sm:$0xff]
        %v3202 = vld [vmem:[#allocation3 + $0x190] sm:$0xff]
        %v3203 = vld [vmem:[#allocation3 + $0x198] sm:$0xff]
        %v3204 = vld [vmem:[#allocation3 + $0x1a0] sm:$0xff]
        %v3205 = vld [vmem:[#allocation3 + $0x1a8] sm:$0xff]
        %v3206 = vld [vmem:[#allocation3 + $0x1b0] sm:$0xff]
        %v3207 = vld [vmem:[#allocation3 + $0x1b8] sm:$0xff]
        %v3208 = vld [vmem:[#allocation3 + $0x1c0] sm:$0xff]
        %v3209 = vld [vmem:[#allocation3 + $0x1c8] sm:$0xff]
        %v3210 = vld [vmem:[#allocation3 + $0x1d0] sm:$0xff]
        %v3211 = vld [vmem:[#allocation3 + $0x1d8] sm:$0xff]
        %v3212 = vld [vmem:[#allocation3 + $0x1e0] sm:$0xff]
        %v3213 = vld [vmem:[#allocation3 + $0x1e8] sm:$0xff]
        %v3214 = vld [vmem:[#allocation3 + $0x1f0] sm:$0xff]
        %v3215 = vld [vmem:[#allocation3 + $0x1f8] sm:$0xff]
        %v3216 = vld [vmem:[#allocation3 + $0x200] sm:$0xff]
        %v3217 = vld [vmem:[#allocation3 + $0x208] sm:$0xff]
        %v3218 = vld [vmem:[#allocation3 + $0x210] sm:$0xff]
        %v3219 = vld [vmem:[#allocation3 + $0x218] sm:$0xff]
        %v3220 = vld [vmem:[#allocation3 + $0x220] sm:$0xff]
        %v3221 = vld [vmem:[#allocation3 + $0x228] sm:$0xff]
        %v3222 = vld [vmem:[#allocation3 + $0x230] sm:$0xff]
        %v3223 = vld [vmem:[#allocation3 + $0x238] sm:$0xff]
        %v3224 = vld [vmem:[#allocation3 + $0x240] sm:$0xff]
        %v3225 = vld [vmem:[#allocation3 + $0x248] sm:$0xff]
        %v3226 = vld [vmem:[#allocation3 + $0x250] sm:$0xff]
        %v3227 = vld [vmem:[#allocation3 + $0x258] sm:$0xff]
        %v3228 = vld [vmem:[#allocation3 + $0x260] sm:$0xff]
        %v3229 = vld [vmem:[#allocation3 + $0x268] sm:$0xff]
        %v3230 = vld [vmem:[#allocation3 + $0x270] sm:$0xff]
        %v3231 = vld [vmem:[#allocation3 + $0x278] sm:$0xff]
        %v3232 = vld [vmem:[#allocation3 + $0x280] sm:$0xff]
        %v3233 = vld [vmem:[#allocation3 + $0x288] sm:$0xff]
        %v3234 = vld [vmem:[#allocation3 + $0x290] sm:$0xff]
        %v3235 = vld [vmem:[#allocation3 + $0x298] sm:$0xff]
        %v3236 = vld [vmem:[#allocation3 + $0x2a0] sm:$0xff]
        %v3237 = vld [vmem:[#allocation3 + $0x2a8] sm:$0xff]
        %v3238 = vld [vmem:[#allocation3 + $0x2b0] sm:$0xff]
        %v3239 = vld [vmem:[#allocation3 + $0x2b8] sm:$0xff]
        %v3240 = vld [vmem:[#allocation3 + $0x2c0] sm:$0xff]
        %v3241 = vld [vmem:[#allocation3 + $0x2c8] sm:$0xff]
        %v3242 = vld [vmem:[#allocation3 + $0x2d0] sm:$0xff]
        %v3243 = vld [vmem:[#allocation3 + $0x2d8] sm:$0xff]
        %v3244 = vld [vmem:[#allocation3 + $0x2e0] sm:$0xff]
        %v3245 = vld [vmem:[#allocation3 + $0x2e8] sm:$0xff]
        %v3246 = vld [vmem:[#allocation3 + $0x2f0] sm:$0xff]
        %v3247 = vld [vmem:[#allocation3 + $0x2f8] sm:$0xff]
        %v3248 = vld [vmem:[#allocation6] sm:$0xff]
        %v3249 = vld [vmem:[#allocation6 + $0x8] sm:$0xff]
        %v3250 = vld [vmem:[#allocation6 + $0x10] sm:$0xff]
        %v3251 = vld [vmem:[#allocation6 + $0x18] sm:$0xff]
        %v3252 = vld [vmem:[#allocation6 + $0x20] sm:$0xff]
        %v3253 = vld [vmem:[#allocation6 + $0x28] sm:$0xff]
        %v3254 = vld [vmem:[#allocation6 + $0x30] sm:$0xff]
        %v3255 = vld [vmem:[#allocation6 + $0x38] sm:$0xff]
        %v3256 = vld [vmem:[#allocation6 + $0x40] sm:$0xff]
        %v3257 = vld [vmem:[#allocation6 + $0x48] sm:$0xff]
        %v3258 = vld [vmem:[#allocation6 + $0x50] sm:$0xff]
        %v3259 = vld [vmem:[#allocation6 + $0x58] sm:$0xff]
        %v3260 = vld [vmem:[#allocation6 + $0x60] sm:$0xff]
        %v3261 = vld [vmem:[#allocation6 + $0x68] sm:$0xff]
        %v3262 = vld [vmem:[#allocation6 + $0x70] sm:$0xff]
        %v3263 = vld [vmem:[#allocation6 + $0x78] sm:$0xff]
        %v3264 = vld [vmem:[#allocation6 + $0x80] sm:$0xff]
        %v3265 = vld [vmem:[#allocation6 + $0x88] sm:$0xff]
        %v3266 = vld [vmem:[#allocation6 + $0x90] sm:$0xff]
        %v3267 = vld [vmem:[#allocation6 + $0x98] sm:$0xff]
        %v3268 = vld [vmem:[#allocation6 + $0xa0] sm:$0xff]
        %v3269 = vld [vmem:[#allocation6 + $0xa8] sm:$0xff]
        %v3270 = vld [vmem:[#allocation6 + $0xb0] sm:$0xff]
        %v3271 = vld [vmem:[#allocation6 + $0xb8] sm:$0xff]
        %v3272 = vld [vmem:[#allocation6 + $0xc0] sm:$0xff]
        %v3273 = vld [vmem:[#allocation6 + $0xc8] sm:$0xff]
        %v3274 = vld [vmem:[#allocation6 + $0xd0] sm:$0xff]
        %v3275 = vld [vmem:[#allocation6 + $0xd8] sm:$0xff]
        %v3276 = vld [vmem:[#allocation6 + $0xe0] sm:$0xff]
        %v3277 = vld [vmem:[#allocation6 + $0xe8] sm:$0xff]
        %v3278 = vld [vmem:[#allocation6 + $0xf0] sm:$0xff]
        %v3279 = vld [vmem:[#allocation6 + $0xf8] sm:$0xff]
        %v3280 = vld [vmem:[#allocation6 + $0x100] sm:$0xff]
        %v3281 = vld [vmem:[#allocation6 + $0x108] sm:$0xff]
        %v3282 = vld [vmem:[#allocation6 + $0x110] sm:$0xff]
        %v3283 = vld [vmem:[#allocation6 + $0x118] sm:$0xff]
        %v3284 = vld [vmem:[#allocation6 + $0x120] sm:$0xff]
        %v3285 = vld [vmem:[#allocation6 + $0x128] sm:$0xff]
        %v3286 = vld [vmem:[#allocation6 + $0x130] sm:$0xff]
        %v3287 = vld [vmem:[#allocation6 + $0x138] sm:$0xff]
        %v3288 = vld [vmem:[#allocation6 + $0x140] sm:$0xff]
        %v3289 = vld [vmem:[#allocation6 + $0x148] sm:$0xff]
        %v3290 = vld [vmem:[#allocation6 + $0x150] sm:$0xff]
        %v3291 = vld [vmem:[#allocation6 + $0x158] sm:$0xff]
        %v3292 = vld [vmem:[#allocation6 + $0x160] sm:$0xff]
        %v3293 = vld [vmem:[#allocation6 + $0x168] sm:$0xff]
        %v3294 = vld [vmem:[#allocation6 + $0x170] sm:$0xff]
        %v3295 = vld [vmem:[#allocation6 + $0x178] sm:$0xff]
        %v3296 = vld [vmem:[%s1159] sm:$0xff]
        %v3297 = vld [vmem:[%s1159 + $0x8] sm:$0xff]
        %v3298 = vld [vmem:[%s1159 + $0x10] sm:$0xff]
        %v3299 = vld [vmem:[%s1159 + $0x18] sm:$0xff]
        %v3300 = vld [vmem:[%s1159 + $0x20] sm:$0xff]
        %v3301 = vld [vmem:[%s1159 + $0x28] sm:$0xff]
        %v3302 = vld [vmem:[%s1159 + $0x30] sm:$0xff]
        %v3303 = vld [vmem:[%s1159 + $0x38] sm:$0xff]
        %v3304 = vld [vmem:[%s1159 + $0x40] sm:$0xff]
        %v3305 = vld [vmem:[%s1159 + $0x48] sm:$0xff]
        %v3306 = vld [vmem:[%s1159 + $0x50] sm:$0xff]
        %v3307 = vld [vmem:[%s1159 + $0x58] sm:$0xff]
        %v3308 = vld [vmem:[%s1159 + $0x60] sm:$0xff]
        %v3309 = vld [vmem:[%s1159 + $0x68] sm:$0xff]
        %v3310 = vld [vmem:[%s1159 + $0x70] sm:$0xff]
        %v3311 = vld [vmem:[%s1159 + $0x78] sm:$0xff]
        %v3312 = vld [vmem:[%s1159 + $0x80] sm:$0xff]
        %v3313 = vld [vmem:[%s1159 + $0x88] sm:$0xff]
        %v3314 = vld [vmem:[%s1159 + $0x90] sm:$0xff]
        %v3315 = vld [vmem:[%s1159 + $0x98] sm:$0xff]
        %v3316 = vld [vmem:[%s1159 + $0xa0] sm:$0xff]
        %v3317 = vld [vmem:[%s1159 + $0xa8] sm:$0xff]
        %v3318 = vld [vmem:[%s1159 + $0xb0] sm:$0xff]
        %v3319 = vld [vmem:[%s1159 + $0xb8] sm:$0xff]
        %v3320 = vld [vmem:[%s1159 + $0xc0] sm:$0xff]
        %v3321 = vld [vmem:[%s1159 + $0xc8] sm:$0xff]
        %v3322 = vld [vmem:[%s1159 + $0xd0] sm:$0xff]
        %v3323 = vld [vmem:[%s1159 + $0xd8] sm:$0xff]
        %v3324 = vld [vmem:[%s1159 + $0xe0] sm:$0xff]
        %v3325 = vld [vmem:[%s1159 + $0xe8] sm:$0xff]
        %v3326 = vld [vmem:[%s1159 + $0xf0] sm:$0xff]
        %v3327 = vld [vmem:[%s1159 + $0xf8] sm:$0xff]
        %v3328 = vld [vmem:[%s1159 + $0x100] sm:$0xff]
        %v3329 = vld [vmem:[%s1159 + $0x108] sm:$0xff]
        %v3330 = vld [vmem:[%s1159 + $0x110] sm:$0xff]
        %v3331 = vld [vmem:[%s1159 + $0x118] sm:$0xff]
        %v3332 = vld [vmem:[%s1159 + $0x120] sm:$0xff]
        %v3333 = vld [vmem:[%s1159 + $0x128] sm:$0xff]
        %v3334 = vld [vmem:[%s1159 + $0x130] sm:$0xff]
        %v3335 = vld [vmem:[%s1159 + $0x138] sm:$0xff]
        %v3336 = vld [vmem:[%s1159 + $0x140] sm:$0xff]
        %v3337 = vld [vmem:[%s1159 + $0x148] sm:$0xff]
        %v3338 = vld [vmem:[%s1159 + $0x150] sm:$0xff]
        %v3339 = vld [vmem:[%s1159 + $0x158] sm:$0xff]
        %v3340 = vld [vmem:[%s1159 + $0x160] sm:$0xff]
        %v3341 = vld [vmem:[%s1159 + $0x168] sm:$0xff]
        %v3342 = vld [vmem:[%s1159 + $0x170] sm:$0xff]
        %v3343 = vld [vmem:[%s1159 + $0x178] sm:$0xff]
        %v3344 = vld [vmem:[%s1159 + $0x180] sm:$0xff]
        %v3345 = vld [vmem:[%s1159 + $0x188] sm:$0xff]
        %v3346 = vld [vmem:[%s1159 + $0x190] sm:$0xff]
        %v3347 = vld [vmem:[%s1159 + $0x198] sm:$0xff]
        %v3348 = vld [vmem:[%s1159 + $0x1a0] sm:$0xff]
        %v3349 = vld [vmem:[%s1159 + $0x1a8] sm:$0xff]
        %v3350 = vld [vmem:[%s1159 + $0x1b0] sm:$0xff]
        %v3351 = vld [vmem:[%s1159 + $0x1b8] sm:$0xff]
        %v3352 = vld [vmem:[%s1159 + $0x1c0] sm:$0xff]
        %v3353 = vld [vmem:[%s1159 + $0x1c8] sm:$0xff]
        %v3354 = vld [vmem:[%s1159 + $0x1d0] sm:$0xff]
        %v3355 = vld [vmem:[%s1159 + $0x1d8] sm:$0xff]
        %v3356 = vld [vmem:[%s1159 + $0x1e0] sm:$0xff]
        %v3357 = vld [vmem:[%s1159 + $0x1e8] sm:$0xff]
        %v3358 = vld [vmem:[%s1159 + $0x1f0] sm:$0xff]
        %v3359 = vld [vmem:[%s1159 + $0x1f8] sm:$0xff]
        %v3360 = vld [vmem:[%s1159 + $0x200] sm:$0xff]
        %v3361 = vld [vmem:[%s1159 + $0x208] sm:$0xff]
        %v3362 = vld [vmem:[%s1159 + $0x210] sm:$0xff]
        %v3363 = vld [vmem:[%s1159 + $0x218] sm:$0xff]
        %v3364 = vld [vmem:[%s1159 + $0x220] sm:$0xff]
        %v3365 = vld [vmem:[%s1159 + $0x228] sm:$0xff]
        %v3366 = vld [vmem:[%s1159 + $0x230] sm:$0xff]
        %v3367 = vld [vmem:[%s1159 + $0x238] sm:$0xff]
        %v3368 = vld [vmem:[%s1159 + $0x240] sm:$0xff]
        %v3369 = vld [vmem:[%s1159 + $0x248] sm:$0xff]
        %v3370 = vld [vmem:[%s1159 + $0x250] sm:$0xff]
        %v3371 = vld [vmem:[%s1159 + $0x258] sm:$0xff]
        %v3372 = vld [vmem:[%s1159 + $0x260] sm:$0xff]
        %v3373 = vld [vmem:[%s1159 + $0x268] sm:$0xff]
        %v3374 = vld [vmem:[%s1159 + $0x270] sm:$0xff]
        %v3375 = vld [vmem:[%s1159 + $0x278] sm:$0xff]
        %v3376 = vld [vmem:[%s1159 + $0x280] sm:$0xff]
        %v3377 = vld [vmem:[%s1159 + $0x288] sm:$0xff]
        %v3378 = vld [vmem:[%s1159 + $0x290] sm:$0xff]
        %v3379 = vld [vmem:[%s1159 + $0x298] sm:$0xff]
        %v3380 = vld [vmem:[%s1159 + $0x2a0] sm:$0xff]
        %v3381 = vld [vmem:[%s1159 + $0x2a8] sm:$0xff]
        %v3382 = vld [vmem:[%s1159 + $0x2b0] sm:$0xff]
        %v3383 = vld [vmem:[%s1159 + $0x2b8] sm:$0xff]
        %v3384 = vld [vmem:[%s1159 + $0x2c0] sm:$0xff]
        %v3385 = vld [vmem:[%s1159 + $0x2c8] sm:$0xff]
        %v3386 = vld [vmem:[%s1159 + $0x2d0] sm:$0xff]
        %v3387 = vld [vmem:[%s1159 + $0x2d8] sm:$0xff]
        %v3388 = vld [vmem:[%s1159 + $0x2e0] sm:$0xff]
        %v3389 = vld [vmem:[%s1159 + $0x2e8] sm:$0xff]
        %v3390 = vld [vmem:[%s1159 + $0x2f0] sm:$0xff]
        %v3391 = vld [vmem:[%s1159 + $0x2f8] sm:$0xff]
        %s3392 = scalar_lea.vmem [#allocation6], 384
        %v3393 = vld [vmem:[%s3392] sm:$0xff]
        %v3394 = vld [vmem:[%s3392 + $0x8] sm:$0xff]
        %v3395 = vld [vmem:[%s3392 + $0x10] sm:$0xff]
        %v3396 = vld [vmem:[%s3392 + $0x18] sm:$0xff]
        %v3397 = vld [vmem:[%s3392 + $0x20] sm:$0xff]
        %v3398 = vld [vmem:[%s3392 + $0x28] sm:$0xff]
        %v3399 = vld [vmem:[%s3392 + $0x30] sm:$0xff]
        %v3400 = vld [vmem:[%s3392 + $0x38] sm:$0xff]
        %v3401 = vld [vmem:[%s3392 + $0x40] sm:$0xff]
        %v3402 = vld [vmem:[%s3392 + $0x48] sm:$0xff]
        %v3403 = vld [vmem:[%s3392 + $0x50] sm:$0xff]
        %v3404 = vld [vmem:[%s3392 + $0x58] sm:$0xff]
        %v3405 = vld [vmem:[%s3392 + $0x60] sm:$0xff]
        %v3406 = vld [vmem:[%s3392 + $0x68] sm:$0xff]
        %v3407 = vld [vmem:[%s3392 + $0x70] sm:$0xff]
        %v3408 = vld [vmem:[%s3392 + $0x78] sm:$0xff]
        %v3409 = vld [vmem:[%s3392 + $0x80] sm:$0xff]
        %v3410 = vld [vmem:[%s3392 + $0x88] sm:$0xff]
        %v3411 = vld [vmem:[%s3392 + $0x90] sm:$0xff]
        %v3412 = vld [vmem:[%s3392 + $0x98] sm:$0xff]
        %v3413 = vld [vmem:[%s3392 + $0xa0] sm:$0xff]
        %v3414 = vld [vmem:[%s3392 + $0xa8] sm:$0xff]
        %v3415 = vld [vmem:[%s3392 + $0xb0] sm:$0xff]
        %v3416 = vld [vmem:[%s3392 + $0xb8] sm:$0xff]
        %v3417 = vld [vmem:[%s3392 + $0xc0] sm:$0xff]
        %v3418 = vld [vmem:[%s3392 + $0xc8] sm:$0xff]
        %v3419 = vld [vmem:[%s3392 + $0xd0] sm:$0xff]
        %v3420 = vld [vmem:[%s3392 + $0xd8] sm:$0xff]
        %v3421 = vld [vmem:[%s3392 + $0xe0] sm:$0xff]
        %v3422 = vld [vmem:[%s3392 + $0xe8] sm:$0xff]
        %v3423 = vld [vmem:[%s3392 + $0xf0] sm:$0xff]
        %v3424 = vld [vmem:[%s3392 + $0xf8] sm:$0xff]
        %v3425 = vld [vmem:[%s3392 + $0x100] sm:$0xff]
        %v3426 = vld [vmem:[%s3392 + $0x108] sm:$0xff]
        %v3427 = vld [vmem:[%s3392 + $0x110] sm:$0xff]
        %v3428 = vld [vmem:[%s3392 + $0x118] sm:$0xff]
        %v3429 = vld [vmem:[%s3392 + $0x120] sm:$0xff]
        %v3430 = vld [vmem:[%s3392 + $0x128] sm:$0xff]
        %v3431 = vld [vmem:[%s3392 + $0x130] sm:$0xff]
        %v3432 = vld [vmem:[%s3392 + $0x138] sm:$0xff]
        %v3433 = vld [vmem:[%s3392 + $0x140] sm:$0xff]
        %v3434 = vld [vmem:[%s3392 + $0x148] sm:$0xff]
        %v3435 = vld [vmem:[%s3392 + $0x150] sm:$0xff]
        %v3436 = vld [vmem:[%s3392 + $0x158] sm:$0xff]
        %v3437 = vld [vmem:[%s3392 + $0x160] sm:$0xff]
        %v3438 = vld [vmem:[%s3392 + $0x168] sm:$0xff]
        %v3439 = vld [vmem:[%s3392 + $0x170] sm:$0xff]
        %v3440 = vld [vmem:[%s3392 + $0x178] sm:$0xff]
        %3441 = vmatprep.subr.mxu0 0.0
        %3442 = vmatpush1.msra.mxu0 %v3393
        %3443 = vmatprep.subr.mxu0 0.0
        %3444 = vmatpush1.msra.mxu0 %v3394
        %3445 = vmatprep.subr.mxu0 0.0
        %3446 = vmatpush1.msra.mxu0 %v3395
        %3447 = vmatprep.subr.mxu0 0.0
        %3448 = vmatpush1.msra.mxu0 %v3396
        %3449 = vmatprep.subr.mxu0 0.0
        %3450 = vmatpush1.msra.mxu0 %v3397
        %3451 = vmatprep.subr.mxu0 0.0
        %3452 = vmatpush1.msra.mxu0 %v3398
        %3453 = vmatprep.subr.mxu0 0.0
        %3454 = vmatpush1.msra.mxu0 %v3399
        %3455 = vmatprep.subr.mxu0 0.0
        %3456 = vmatpush1.msra.mxu0 %v3400
        %3457 = vmatprep.subr.mxu0 0.0
        %3458 = vmatpush1.msra.mxu0 %v3401
        %3459 = vmatprep.subr.mxu0 0.0
        %3460 = vmatpush1.msra.mxu0 %v3402
        %3461 = vmatprep.subr.mxu0 0.0
        %3462 = vmatpush1.msra.mxu0 %v3403
        %3463 = vmatprep.subr.mxu0 0.0
        %3464 = vmatpush1.msra.mxu0 %v3404
        %3465 = vmatprep.subr.mxu0 0.0
        %3466 = vmatpush1.msra.mxu0 %v3405
        %3467 = vmatprep.subr.mxu0 0.0
        %3468 = vmatpush1.msra.mxu0 %v3406
        %3469 = vmatprep.subr.mxu0 0.0
        %3470 = vmatpush1.msra.mxu0 %v3407
        %3471 = vmatprep.subr.mxu0 0.0
        %3472 = vmatpush1.msra.mxu0 %v3408
        %3473 = vmatprep.subr.mxu0 0.0
        %3474 = vmatpush1.msra.mxu0 %v3409
        %3475 = vmatprep.subr.mxu0 0.0
        %3476 = vmatpush1.msra.mxu0 %v3410
        %3477 = vmatprep.subr.mxu0 0.0
        %3478 = vmatpush1.msra.mxu0 %v3411
        %3479 = vmatprep.subr.mxu0 0.0
        %3480 = vmatpush1.msra.mxu0 %v3412
        %3481 = vmatprep.subr.mxu0 0.0
        %3482 = vmatpush1.msra.mxu0 %v3413
        %3483 = vmatprep.subr.mxu0 0.0
        %3484 = vmatpush1.msra.mxu0 %v3414
        %3485 = vmatprep.subr.mxu0 0.0
        %3486 = vmatpush1.msra.mxu0 %v3415
        %3487 = vmatprep.subr.mxu0 0.0
        %3488 = vmatpush1.msra.mxu0 %v3416
        %3489 = vmatprep.subr.mxu0 0.0
        %3490 = vmatpush1.msra.mxu0 %v3417
        %3491 = vmatprep.subr.mxu0 0.0
        %3492 = vmatpush1.msra.mxu0 %v3418
        %3493 = vmatprep.subr.mxu0 0.0
        %3494 = vmatpush1.msra.mxu0 %v3419
        %3495 = vmatprep.subr.mxu0 0.0
        %3496 = vmatpush1.msra.mxu0 %v3420
        %3497 = vmatprep.subr.mxu0 0.0
        %3498 = vmatpush1.msra.mxu0 %v3421
        %3499 = vmatprep.subr.mxu0 0.0
        %3500 = vmatpush1.msra.mxu0 %v3422
        %3501 = vmatprep.subr.mxu0 0.0
        %3502 = vmatpush1.msra.mxu0 %v3423
        %3503 = vmatprep.subr.mxu0 0.0
        %3504 = vmatpush1.msra.mxu0 %v3424
        %3505 = vmatprep.mubr.f32.mxu0 %v3297
        %3506 = vmatmul.mubr.f32.gmra.mrb[0].mxu0 %v3296
        %v3507 = vpop.f32.mrb[0].mxu0
        %v3508 = vadd.f32 0.0, %v3507
        %v3509 = vpop.f32.mrb[0].mxu0
        %3510 = vmatprep.mubr.f32.mxu0 %v3300
        %3511 = vmatmul.mubr.f32.gmra.mrb[0].mxu0 %v3299
        %v3512 = vpop.f32.mrb[0].mxu0
        %v3513 = vadd.f32 0.0, %v3512
        %v3514 = vpop.f32.mrb[0].mxu0
        %3515 = vmatprep.mubr.f32.mxu0 %v3303
        %3516 = vmatmul.mubr.f32.gmra.mrb[0].mxu0 %v3302
        %v3517 = vpop.f32.mrb[0].mxu0
        %v3518 = vadd.f32 0.0, %v3517
        %v3519 = vpop.f32.mrb[0].mxu0
        %3520 = vmatprep.mubr.f32.mxu0 %v3306
        %3521 = vmatmul.mubr.f32.gmra.mrb[0].mxu0 %v3305
        %v3522 = vpop.f32.mrb[0].mxu0
        %v3523 = vadd.f32 0.0, %v3522
        %v3524 = vpop.f32.mrb[0].mxu0
        %3525 = vmatprep.mubr.f32.mxu0 %v3309
        %3526 = vmatmul.mubr.f32.gmra.mrb[0].mxu0 %v3308
        %v3527 = vpop.f32.mrb[0].mxu0
        %v3528 = vadd.f32 0.0, %v3527
        %v3529 = vpop.f32.mrb[0].mxu0
        %3530 = vmatprep.mubr.f32.mxu0 %v3312
        %3531 = vmatmul.mubr.f32.gmra.mrb[0].mxu0 %v3311
        %v3532 = vpop.f32.mrb[0].mxu0
        %v3533 = vadd.f32 0.0, %v3532
        %v3534 = vpop.f32.mrb[0].mxu0
        %3535 = vmatprep.mubr.f32.mxu0 %v3315
        %3536 = vmatmul.mubr.f32.gmra.mrb[0].mxu0 %v3314
        %v3537 = vpop.f32.mrb[0].mxu0
        %v3538 = vadd.f32 0.0, %v3537
        %v3539 = vpop.f32.mrb[0].mxu0
        %3540 = vmatprep.mubr.f32.mxu0 %v3318
        %3541 = vmatmul.mubr.f32.gmra.mrb[0].mxu0 %v3317
        %v3542 = vpop.f32.mrb[0].mxu0
        %v3543 = vadd.f32 0.0, %v3542
        %v3544 = vpop.f32.mrb[0].mxu0
        %3545 = vmatprep.mubr.f32.mxu0 %v3321
        %3546 = vmatmul.mubr.f32.gmra.mrb[0].mxu0 %v3320
        %v3547 = vpop.f32.mrb[0].mxu0
        %v3548 = vadd.f32 0.0, %v3547
        %v3549 = vpop.f32.mrb[0].mxu0
        %3550 = vmatprep.mubr.f32.mxu0 %v3324
        %3551 = vmatmul.mubr.f32.gmra.mrb[0].mxu0 %v3323
        %v3552 = vpop.f32.mrb[0].mxu0
        %v3553 = vadd.f32 0.0, %v3552
        %v3554 = vpop.f32.mrb[0].mxu0
        %3555 = vmatprep.mubr.f32.mxu0 %v3327
        %3556 = vmatmul.mubr.f32.gmra.mrb[0].mxu0 %v3326
        %v3557 = vpop.f32.mrb[0].mxu0
        %v3558 = vadd.f32 0.0, %v3557
        %v3559 = vpop.f32.mrb[0].mxu0
        %3560 = vmatprep.mubr.f32.mxu0 %v3330
        %3561 = vmatmul.mubr.f32.gmra.mrb[0].mxu0 %v3329
        %v3562 = vpop.f32.mrb[0].mxu0
        %v3563 = vadd.f32 0.0, %v3562
        %v3564 = vpop.f32.mrb[0].mxu0
        %3565 = vmatprep.mubr.f32.mxu0 %v3333
        %3566 = vmatmul.mubr.f32.gmra.mrb[0].mxu0 %v3332
        %v3567 = vpop.f32.mrb[0].mxu0
        %v3568 = vadd.f32 0.0, %v3567
        %v3569 = vpop.f32.mrb[0].mxu0
        %3570 = vmatprep.mubr.f32.mxu0 %v3336
        %3571 = vmatmul.mubr.f32.gmra.mrb[0].mxu0 %v3335
        %v3572 = vpop.f32.mrb[0].mxu0
        %v3573 = vadd.f32 0.0, %v3572
        %v3574 = vpop.f32.mrb[0].mxu0
        %3575 = vmatprep.mubr.f32.mxu0 %v3339
        %3576 = vmatmul.mubr.f32.gmra.mrb[0].mxu0 %v3338
        %v3577 = vpop.f32.mrb[0].mxu0
        %v3578 = vadd.f32 0.0, %v3577
        %v3579 = vpop.f32.mrb[0].mxu0
        %3580 = vmatprep.mubr.f32.mxu0 %v3342
        %3581 = vmatmul.mubr.f32.gmra.mrb[0].mxu0 %v3341
        %v3582 = vpop.f32.mrb[0].mxu0
        %v3583 = vadd.f32 0.0, %v3582
        %v3584 = vpop.f32.mrb[0].mxu0
        %3585 = vmatprep.mubr.f32.mxu0 %v3345
        %3586 = vmatmul.mubr.f32.gmra.mrb[0].mxu0 %v3344
        %v3587 = vpop.f32.mrb[0].mxu0
        %v3588 = vadd.f32 0.0, %v3587
        %v3589 = vpop.f32.mrb[0].mxu0
        %3590 = vmatprep.mubr.f32.mxu0 %v3348
        %3591 = vmatmul.mubr.f32.gmra.mrb[0].mxu0 %v3347
        %v3592 = vpop.f32.mrb[0].mxu0
        %v3593 = vadd.f32 0.0, %v3592
        %v3594 = vpop.f32.mrb[0].mxu0
        %3595 = vmatprep.mubr.f32.mxu0 %v3351
        %3596 = vmatmul.mubr.f32.gmra.mrb[0].mxu0 %v3350
        %v3597 = vpop.f32.mrb[0].mxu0
        %v3598 = vadd.f32 0.0, %v3597
        %v3599 = vpop.f32.mrb[0].mxu0
        %3600 = vmatprep.mubr.f32.mxu0 %v3354
        %3601 = vmatmul.mubr.f32.gmra.mrb[0].mxu0 %v3353
        %v3602 = vpop.f32.mrb[0].mxu0
        %v3603 = vadd.f32 0.0, %v3602
        %v3604 = vpop.f32.mrb[0].mxu0
        %3605 = vmatprep.mubr.f32.mxu0 %v3357
        %3606 = vmatmul.mubr.f32.gmra.mrb[0].mxu0 %v3356
        %v3607 = vpop.f32.mrb[0].mxu0
        %v3608 = vadd.f32 0.0, %v3607
        %v3609 = vpop.f32.mrb[0].mxu0
        %3610 = vmatprep.mubr.f32.mxu0 %v3360
        %3611 = vmatmul.mubr.f32.gmra.mrb[0].mxu0 %v3359
        %v3612 = vpop.f32.mrb[0].mxu0
        %v3613 = vadd.f32 0.0, %v3612
        %v3614 = vpop.f32.mrb[0].mxu0
        %3615 = vmatprep.mubr.f32.mxu0 %v3363
        %3616 = vmatmul.mubr.f32.gmra.mrb[0].mxu0 %v3362
        %v3617 = vpop.f32.mrb[0].mxu0
        %v3618 = vadd.f32 0.0, %v3617
        %v3619 = vpop.f32.mrb[0].mxu0
        %3620 = vmatprep.mubr.f32.mxu0 %v3366
        %3621 = vmatmul.mubr.f32.gmra.mrb[0].mxu0 %v3365
        %v3622 = vpop.f32.mrb[0].mxu0
        %v3623 = vadd.f32 0.0, %v3622
        %v3624 = vpop.f32.mrb[0].mxu0
        %3625 = vmatprep.mubr.f32.mxu0 %v3369
        %3626 = vmatmul.mubr.f32.gmra.mrb[0].mxu0 %v3368
        %v3627 = vpop.f32.mrb[0].mxu0
        %v3628 = vadd.f32 0.0, %v3627
        %v3629 = vpop.f32.mrb[0].mxu0
        %3630 = vmatprep.mubr.f32.mxu0 %v3372
        %3631 = vmatmul.mubr.f32.gmra.mrb[0].mxu0 %v3371
        %v3632 = vpop.f32.mrb[0].mxu0
        %v3633 = vadd.f32 0.0, %v3632
        %v3634 = vpop.f32.mrb[0].mxu0
        %3635 = vmatprep.mubr.f32.mxu0 %v3375
        %3636 = vmatmul.mubr.f32.gmra.mrb[0].mxu0 %v3374
        %v3637 = vpop.f32.mrb[0].mxu0
        %v3638 = vadd.f32 0.0, %v3637
        %v3639 = vpop.f32.mrb[0].mxu0
        %3640 = vmatprep.mubr.f32.mxu0 %v3378
        %3641 = vmatmul.mubr.f32.gmra.mrb[0].mxu0 %v3377
        %v3642 = vpop.f32.mrb[0].mxu0
        %v3643 = vadd.f32 0.0, %v3642
        %v3644 = vpop.f32.mrb[0].mxu0
        %3645 = vmatprep.mubr.f32.mxu0 %v3381
        %3646 = vmatmul.mubr.f32.gmra.mrb[0].mxu0 %v3380
        %v3647 = vpop.f32.mrb[0].mxu0
        %v3648 = vadd.f32 0.0, %v3647
        %v3649 = vpop.f32.mrb[0].mxu0
        %3650 = vmatprep.mubr.f32.mxu0 %v3384
        %3651 = vmatmul.mubr.f32.gmra.mrb[0].mxu0 %v3383
        %v3652 = vpop.f32.mrb[0].mxu0
        %v3653 = vadd.f32 0.0, %v3652
        %v3654 = vpop.f32.mrb[0].mxu0
        %3655 = vmatprep.mubr.f32.mxu0 %v3387
        %3656 = vmatmul.mubr.f32.gmra.mrb[0].mxu0 %v3386
        %v3657 = vpop.f32.mrb[0].mxu0
        %v3658 = vadd.f32 0.0, %v3657
        %v3659 = vpop.f32.mrb[0].mxu0
        %3660 = vmatprep.mubr.f32.mxu0 %v3390
        %3661 = vmatmul.mubr.f32.gmra.mrb[0].mxu0 %v3389
        %v3662 = vpop.f32.mrb[0].mxu0
        %v3663 = vadd.f32 0.0, %v3662
        %v3664 = vpop.f32.mrb[0].mxu0
        %3665 = vdwg.mxu0
        %3666 = vmatprep.subr.mxu0 0.0
        %3667 = vmatpush1.msra.mxu0 %v3425
        %3668 = vmatprep.subr.mxu0 0.0
        %3669 = vmatpush1.msra.mxu0 %v3426
        %3670 = vmatprep.subr.mxu0 0.0
        %3671 = vmatpush1.msra.mxu0 %v3427
        %3672 = vmatprep.subr.mxu0 0.0
        %3673 = vmatpush1.msra.mxu0 %v3428
        %3674 = vmatprep.subr.mxu0 0.0
        %3675 = vmatpush1.msra.mxu0 %v3429
        %3676 = vmatprep.subr.mxu0 0.0
        %3677 = vmatpush1.msra.mxu0 %v3430
        %3678 = vmatprep.subr.mxu0 0.0
        %3679 = vmatpush1.msra.mxu0 %v3431
        %3680 = vmatprep.subr.mxu0 0.0
        %3681 = vmatpush1.msra.mxu0 %v3432
        %3682 = vmatprep.subr.mxu0 0.0
        %3683 = vmatpush1.msra.mxu0 %v3433
        %3684 = vmatprep.subr.mxu0 0.0
        %3685 = vmatpush1.msra.mxu0 %v3434
        %3686 = vmatprep.subr.mxu0 0.0
        %3687 = vmatpush1.msra.mxu0 %v3435
        %3688 = vmatprep.subr.mxu0 0.0
        %3689 = vmatpush1.msra.mxu0 %v3436
        %3690 = vmatprep.subr.mxu0 0.0
        %3691 = vmatpush1.msra.mxu0 %v3437
        %3692 = vmatprep.subr.mxu0 0.0
        %3693 = vmatpush1.msra.mxu0 %v3438
        %3694 = vmatprep.subr.mxu0 0.0
        %3695 = vmatpush1.msra.mxu0 %v3439
        %3696 = vmatprep.subr.mxu0 0.0
        %3697 = vmatpush1.msra.mxu0 %v3440
        %3698 = vmatprep.subr.mxu0 0.0
        %3699 = vmatpush1.msra.mxu0 0.0
        %3700 = vmatprep.subr.mxu0 0.0
        %3701 = vmatpush1.msra.mxu0 0.0
        %3702 = vmatprep.subr.mxu0 0.0
        %3703 = vmatpush1.msra.mxu0 0.0
        %3704 = vmatprep.subr.mxu0 0.0
        %3705 = vmatpush1.msra.mxu0 0.0
        %3706 = vmatprep.subr.mxu0 0.0
        %3707 = vmatpush1.msra.mxu0 0.0
        %3708 = vmatprep.subr.mxu0 0.0
        %3709 = vmatpush1.msra.mxu0 0.0
        %3710 = vmatprep.subr.mxu0 0.0
        %3711 = vmatpush1.msra.mxu0 0.0
        %3712 = vmatprep.subr.mxu0 0.0
        %3713 = vmatpush1.msra.mxu0 0.0
        %3714 = vmatprep.subr.mxu0 0.0
        %3715 = vmatpush1.msra.mxu0 0.0
        %3716 = vmatprep.subr.mxu0 0.0
        %3717 = vmatpush1.msra.mxu0 0.0
        %3718 = vmatprep.subr.mxu0 0.0
        %3719 = vmatpush1.msra.mxu0 0.0
        %3720 = vmatprep.subr.mxu0 0.0
        %3721 = vmatpush1.msra.mxu0 0.0
        %3722 = vmatprep.subr.mxu0 0.0
        %3723 = vmatpush1.msra.mxu0 0.0
        %3724 = vmatprep.subr.mxu0 0.0
        %3725 = vmatpush1.msra.mxu0 0.0
        %3726 = vmatprep.subr.mxu0 0.0
        %3727 = vmatpush1.msra.mxu0 0.0
        %3728 = vmatprep.subr.mxu0 0.0
        %3729 = vmatpush1.msra.mxu0 0.0
        %3730 = vmatprep.mubr.f32.mxu0 0.0
        %3731 = vmatmul.mubr.f32.gmra.mrb[0].mxu0 %v3298
        %v3732 = vpop.f32.mrb[0].mxu0
        %v3733 = vadd.f32 %v3508, %v3732
        %v3734 = vpop.f32.mrb[0].mxu0
        %3735 = vmatprep.mubr.f32.mxu0 0.0
        %3736 = vmatmul.mubr.f32.gmra.mrb[0].mxu0 %v3301
        %v3737 = vpop.f32.mrb[0].mxu0
        %v3738 = vadd.f32 %v3513, %v3737
        %v3739 = vpop.f32.mrb[0].mxu0
        %3740 = vmatprep.mubr.f32.mxu0 0.0
        %3741 = vmatmul.mubr.f32.gmra.mrb[0].mxu0 %v3304
        %v3742 = vpop.f32.mrb[0].mxu0
        %v3743 = vadd.f32 %v3518, %v3742
        %v3744 = vpop.f32.mrb[0].mxu0
        %3745 = vmatprep.mubr.f32.mxu0 0.0
        %3746 = vmatmul.mubr.f32.gmra.mrb[0].mxu0 %v3307
        %v3747 = vpop.f32.mrb[0].mxu0
        %v3748 = vadd.f32 %v3523, %v3747
        %v3749 = vpop.f32.mrb[0].mxu0
        %3750 = vmatprep.mubr.f32.mxu0 0.0
        %3751 = vmatmul.mubr.f32.gmra.mrb[0].mxu0 %v3310
        %v3752 = vpop.f32.mrb[0].mxu0
        %v3753 = vadd.f32 %v3528, %v3752
        %v3754 = vpop.f32.mrb[0].mxu0
        %3755 = vmatprep.mubr.f32.mxu0 0.0
        %3756 = vmatmul.mubr.f32.gmra.mrb[0].mxu0 %v3313
        %v3757 = vpop.f32.mrb[0].mxu0
        %v3758 = vadd.f32 %v3533, %v3757
        %v3759 = vpop.f32.mrb[0].mxu0
        %3760 = vmatprep.mubr.f32.mxu0 0.0
        %3761 = vmatmul.mubr.f32.gmra.mrb[0].mxu0 %v3316
        %v3762 = vpop.f32.mrb[0].mxu0
        %v3763 = vadd.f32 %v3538, %v3762
        %v3764 = vpop.f32.mrb[0].mxu0
        %3765 = vmatprep.mubr.f32.mxu0 0.0
        %3766 = vmatmul.mubr.f32.gmra.mrb[0].mxu0 %v3319
        %v3767 = vpop.f32.mrb[0].mxu0
        %v3768 = vadd.f32 %v3543, %v3767
        %v3769 = vpop.f32.mrb[0].mxu0
        %3770 = vmatprep.mubr.f32.mxu0 0.0
        %3771 = vmatmul.mubr.f32.gmra.mrb[0].mxu0 %v3322
        %v3772 = vpop.f32.mrb[0].mxu0
        %v3773 = vadd.f32 %v3548, %v3772
        %v3774 = vpop.f32.mrb[0].mxu0
        %3775 = vmatprep.mubr.f32.mxu0 0.0
        %3776 = vmatmul.mubr.f32.gmra.mrb[0].mxu0 %v3325
        %v3777 = vpop.f32.mrb[0].mxu0
        %v3778 = vadd.f32 %v3553, %v3777
        %v3779 = vpop.f32.mrb[0].mxu0
        %3780 = vmatprep.mubr.f32.mxu0 0.0
        %3781 = vmatmul.mubr.f32.gmra.mrb[0].mxu0 %v3328
        %v3782 = vpop.f32.mrb[0].mxu0
        %v3783 = vadd.f32 %v3558, %v3782
        %v3784 = vpop.f32.mrb[0].mxu0
        %3785 = vmatprep.mubr.f32.mxu0 0.0
        %3786 = vmatmul.mubr.f32.gmra.mrb[0].mxu0 %v3331
        %v3787 = vpop.f32.mrb[0].mxu0
        %v3788 = vadd.f32 %v3563, %v3787
        %v3789 = vpop.f32.mrb[0].mxu0
        %3790 = vmatprep.mubr.f32.mxu0 0.0
        %3791 = vmatmul.mubr.f32.gmra.mrb[0].mxu0 %v3334
        %v3792 = vpop.f32.mrb[0].mxu0
        %v3793 = vadd.f32 %v3568, %v3792
        %v3794 = vpop.f32.mrb[0].mxu0
        %3795 = vmatprep.mubr.f32.mxu0 0.0
        %3796 = vmatmul.mubr.f32.gmra.mrb[0].mxu0 %v3337
        %v3797 = vpop.f32.mrb[0].mxu0
        %v3798 = vadd.f32 %v3573, %v3797
        %v3799 = vpop.f32.mrb[0].mxu0
        %3800 = vmatprep.mubr.f32.mxu0 0.0
        %3801 = vmatmul.mubr.f32.gmra.mrb[0].mxu0 %v3340
        %v3802 = vpop.f32.mrb[0].mxu0
        %v3803 = vadd.f32 %v3578, %v3802
        %v3804 = vpop.f32.mrb[0].mxu0
        %3805 = vmatprep.mubr.f32.mxu0 0.0
        %3806 = vmatmul.mubr.f32.gmra.mrb[0].mxu0 %v3343
        %v3807 = vpop.f32.mrb[0].mxu0
        %v3808 = vadd.f32 %v3583, %v3807
        %v3809 = vpop.f32.mrb[0].mxu0
        %3810 = vmatprep.mubr.f32.mxu0 0.0
        %3811 = vmatmul.mubr.f32.gmra.mrb[0].mxu0 %v3346
        %v3812 = vpop.f32.mrb[0].mxu0
        %v3813 = vadd.f32 %v3588, %v3812
        %v3814 = vpop.f32.mrb[0].mxu0
        %3815 = vmatprep.mubr.f32.mxu0 0.0
        %3816 = vmatmul.mubr.f32.gmra.mrb[0].mxu0 %v3349
        %v3817 = vpop.f32.mrb[0].mxu0
        %v3818 = vadd.f32 %v3593, %v3817
        %v3819 = vpop.f32.mrb[0].mxu0
        %3820 = vmatprep.mubr.f32.mxu0 0.0
        %3821 = vmatmul.mubr.f32.gmra.mrb[0].mxu0 %v3352
        %v3822 = vpop.f32.mrb[0].mxu0
        %v3823 = vadd.f32 %v3598, %v3822
        %v3824 = vpop.f32.mrb[0].mxu0
        %3825 = vmatprep.mubr.f32.mxu0 0.0
        %3826 = vmatmul.mubr.f32.gmra.mrb[0].mxu0 %v3355
        %v3827 = vpop.f32.mrb[0].mxu0
        %v3828 = vadd.f32 %v3603, %v3827
        %v3829 = vpop.f32.mrb[0].mxu0
        %3830 = vmatprep.mubr.f32.mxu0 0.0
        %3831 = vmatmul.mubr.f32.gmra.mrb[0].mxu0 %v3358
        %v3832 = vpop.f32.mrb[0].mxu0
        %v3833 = vadd.f32 %v3608, %v3832
        %v3834 = vpop.f32.mrb[0].mxu0
        %3835 = vmatprep.mubr.f32.mxu0 0.0
        %3836 = vmatmul.mubr.f32.gmra.mrb[0].mxu0 %v3361
        %v3837 = vpop.f32.mrb[0].mxu0
        %v3838 = vadd.f32 %v3613, %v3837
        %v3839 = vpop.f32.mrb[0].mxu0
        %3840 = vmatprep.mubr.f32.mxu0 0.0
        %3841 = vmatmul.mubr.f32.gmra.mrb[0].mxu0 %v3364
        %v3842 = vpop.f32.mrb[0].mxu0
        %v3843 = vadd.f32 %v3618, %v3842
        %v3844 = vpop.f32.mrb[0].mxu0
        %3845 = vmatprep.mubr.f32.mxu0 0.0
        %3846 = vmatmul.mubr.f32.gmra.mrb[0].mxu0 %v3367
        %v3847 = vpop.f32.mrb[0].mxu0
        %v3848 = vadd.f32 %v3623, %v3847
        %v3849 = vpop.f32.mrb[0].mxu0
        %3850 = vmatprep.mubr.f32.mxu0 0.0
        %3851 = vmatmul.mubr.f32.gmra.mrb[0].mxu0 %v3370
        %v3852 = vpop.f32.mrb[0].mxu0
        %v3853 = vadd.f32 %v3628, %v3852
        %v3854 = vpop.f32.mrb[0].mxu0
        %3855 = vmatprep.mubr.f32.mxu0 0.0
        %3856 = vmatmul.mubr.f32.gmra.mrb[0].mxu0 %v3373
        %v3857 = vpop.f32.mrb[0].mxu0
        %v3858 = vadd.f32 %v3633, %v3857
        %v3859 = vpop.f32.mrb[0].mxu0
        %3860 = vmatprep.mubr.f32.mxu0 0.0
        %3861 = vmatmul.mubr.f32.gmra.mrb[0].mxu0 %v3376
        %v3862 = vpop.f32.mrb[0].mxu0
        %v3863 = vadd.f32 %v3638, %v3862
        %v3864 = vpop.f32.mrb[0].mxu0
        %3865 = vmatprep.mubr.f32.mxu0 0.0
        %3866 = vmatmul.mubr.f32.gmra.mrb[0].mxu0 %v3379
        %v3867 = vpop.f32.mrb[0].mxu0
        %v3868 = vadd.f32 %v3643, %v3867
        %v3869 = vpop.f32.mrb[0].mxu0
        %3870 = vmatprep.mubr.f32.mxu0 0.0
        %3871 = vmatmul.mubr.f32.gmra.mrb[0].mxu0 %v3382
        %v3872 = vpop.f32.mrb[0].mxu0
        %v3873 = vadd.f32 %v3648, %v3872
        %v3874 = vpop.f32.mrb[0].mxu0
        %3875 = vmatprep.mubr.f32.mxu0 0.0
        %3876 = vmatmul.mubr.f32.gmra.mrb[0].mxu0 %v3385
        %v3877 = vpop.f32.mrb[0].mxu0
        %v3878 = vadd.f32 %v3653, %v3877
        %v3879 = vpop.f32.mrb[0].mxu0
        %3880 = vmatprep.mubr.f32.mxu0 0.0
        %3881 = vmatmul.mubr.f32.gmra.mrb[0].mxu0 %v3388
        %v3882 = vpop.f32.mrb[0].mxu0
        %v3883 = vadd.f32 %v3658, %v3882
        %v3884 = vpop.f32.mrb[0].mxu0
        %3885 = vmatprep.mubr.f32.mxu0 0.0
        %3886 = vmatmul.mubr.f32.gmra.mrb[0].mxu0 %v3391
        %v3887 = vpop.f32.mrb[0].mxu0
        %v3888 = vadd.f32 %v3663, %v3887
        %v3889 = vpop.f32.mrb[0].mxu0
        %3890 = vdwg.mxu0
        %3891 = vmatprep.subr.mxu0 0.0
        %3892 = vmatpush1.msra.mxu0 %v3248
        %3893 = vmatprep.subr.mxu0 0.0
        %3894 = vmatpush1.msra.mxu0 %v3249
        %3895 = vmatprep.subr.mxu0 0.0
        %3896 = vmatpush1.msra.mxu0 %v3250
        %3897 = vmatprep.subr.mxu0 0.0
        %3898 = vmatpush1.msra.mxu0 %v3251
        %3899 = vmatprep.subr.mxu0 0.0
        %3900 = vmatpush1.msra.mxu0 %v3252
        %3901 = vmatprep.subr.mxu0 0.0
        %3902 = vmatpush1.msra.mxu0 %v3253
        %3903 = vmatprep.subr.mxu0 0.0
        %3904 = vmatpush1.msra.mxu0 %v3254
        %3905 = vmatprep.subr.mxu0 0.0
        %3906 = vmatpush1.msra.mxu0 %v3255
        %3907 = vmatprep.subr.mxu0 0.0
        %3908 = vmatpush1.msra.mxu0 %v3256
        %3909 = vmatprep.subr.mxu0 0.0
        %3910 = vmatpush1.msra.mxu0 %v3257
        %3911 = vmatprep.subr.mxu0 0.0
        %3912 = vmatpush1.msra.mxu0 %v3258
        %3913 = vmatprep.subr.mxu0 0.0
        %3914 = vmatpush1.msra.mxu0 %v3259
        %3915 = vmatprep.subr.mxu0 0.0
        %3916 = vmatpush1.msra.mxu0 %v3260
        %3917 = vmatprep.subr.mxu0 0.0
        %3918 = vmatpush1.msra.mxu0 %v3261
        %3919 = vmatprep.subr.mxu0 0.0
        %3920 = vmatpush1.msra.mxu0 %v3262
        %3921 = vmatprep.subr.mxu0 0.0
        %3922 = vmatpush1.msra.mxu0 %v3263
        %3923 = vmatprep.subr.mxu0 0.0
        %3924 = vmatpush1.msra.mxu0 %v3264
        %3925 = vmatprep.subr.mxu0 0.0
        %3926 = vmatpush1.msra.mxu0 %v3265
        %3927 = vmatprep.subr.mxu0 0.0
        %3928 = vmatpush1.msra.mxu0 %v3266
        %3929 = vmatprep.subr.mxu0 0.0
        %3930 = vmatpush1.msra.mxu0 %v3267
        %3931 = vmatprep.subr.mxu0 0.0
        %3932 = vmatpush1.msra.mxu0 %v3268
        %3933 = vmatprep.subr.mxu0 0.0
        %3934 = vmatpush1.msra.mxu0 %v3269
        %3935 = vmatprep.subr.mxu0 0.0
        %3936 = vmatpush1.msra.mxu0 %v3270
        %3937 = vmatprep.subr.mxu0 0.0
        %3938 = vmatpush1.msra.mxu0 %v3271
        %3939 = vmatprep.subr.mxu0 0.0
        %3940 = vmatpush1.msra.mxu0 %v3272
        %3941 = vmatprep.subr.mxu0 0.0
        %3942 = vmatpush1.msra.mxu0 %v3273
        %3943 = vmatprep.subr.mxu0 0.0
        %3944 = vmatpush1.msra.mxu0 %v3274
        %3945 = vmatprep.subr.mxu0 0.0
        %3946 = vmatpush1.msra.mxu0 %v3275
        %3947 = vmatprep.subr.mxu0 0.0
        %3948 = vmatpush1.msra.mxu0 %v3276
        %3949 = vmatprep.subr.mxu0 0.0
        %3950 = vmatpush1.msra.mxu0 %v3277
        %3951 = vmatprep.subr.mxu0 0.0
        %3952 = vmatpush1.msra.mxu0 %v3278
        %3953 = vmatprep.subr.mxu0 0.0
        %3954 = vmatpush1.msra.mxu0 %v3279
        %3955 = vmatprep.mubr.f32.mxu0 %v3153
        %3956 = vmatmul.mubr.f32.gmra.mrb[0].mxu0 %v3152
        %v3957 = vpop.f32.mrb[0].mxu0
        %v3958 = vadd.f32 %v3733, %v3957
        %v3959 = vpop.f32.mrb[0].mxu0
        %3960 = vmatprep.mubr.f32.mxu0 %v3156
        %3961 = vmatmul.mubr.f32.gmra.mrb[0].mxu0 %v3155
        %v3962 = vpop.f32.mrb[0].mxu0
        %v3963 = vadd.f32 %v3738, %v3962
        %v3964 = vpop.f32.mrb[0].mxu0
        %3965 = vmatprep.mubr.f32.mxu0 %v3159
        %3966 = vmatmul.mubr.f32.gmra.mrb[0].mxu0 %v3158
        %v3967 = vpop.f32.mrb[0].mxu0
        %v3968 = vadd.f32 %v3743, %v3967
        %v3969 = vpop.f32.mrb[0].mxu0
        %3970 = vmatprep.mubr.f32.mxu0 %v3162
        %3971 = vmatmul.mubr.f32.gmra.mrb[0].mxu0 %v3161
        %v3972 = vpop.f32.mrb[0].mxu0
        %v3973 = vadd.f32 %v3748, %v3972
        %v3974 = vpop.f32.mrb[0].mxu0
        %3975 = vmatprep.mubr.f32.mxu0 %v3165
        %3976 = vmatmul.mubr.f32.gmra.mrb[0].mxu0 %v3164
        %v3977 = vpop.f32.mrb[0].mxu0
        %v3978 = vadd.f32 %v3753, %v3977
        %v3979 = vpop.f32.mrb[0].mxu0
        %3980 = vmatprep.mubr.f32.mxu0 %v3168
        %3981 = vmatmul.mubr.f32.gmra.mrb[0].mxu0 %v3167
        %v3982 = vpop.f32.mrb[0].mxu0
        %v3983 = vadd.f32 %v3758, %v3982
        %v3984 = vpop.f32.mrb[0].mxu0
        %3985 = vmatprep.mubr.f32.mxu0 %v3171
        %3986 = vmatmul.mubr.f32.gmra.mrb[0].mxu0 %v3170
        %v3987 = vpop.f32.mrb[0].mxu0
        %v3988 = vadd.f32 %v3763, %v3987
        %v3989 = vpop.f32.mrb[0].mxu0
        %3990 = vmatprep.mubr.f32.mxu0 %v3174
        %3991 = vmatmul.mubr.f32.gmra.mrb[0].mxu0 %v3173
        %v3992 = vpop.f32.mrb[0].mxu0
        %v3993 = vadd.f32 %v3768, %v3992
        %v3994 = vpop.f32.mrb[0].mxu0
        %3995 = vmatprep.mubr.f32.mxu0 %v3177
        %3996 = vmatmul.mubr.f32.gmra.mrb[0].mxu0 %v3176
        %v3997 = vpop.f32.mrb[0].mxu0
        %v3998 = vadd.f32 %v3773, %v3997
        %v3999 = vpop.f32.mrb[0].mxu0
        %4000 = vmatprep.mubr.f32.mxu0 %v3180
        %4001 = vmatmul.mubr.f32.gmra.mrb[0].mxu0 %v3179
        %v4002 = vpop.f32.mrb[0].mxu0
        %v4003 = vadd.f32 %v3778, %v4002
        %v4004 = vpop.f32.mrb[0].mxu0
        %4005 = vmatprep.mubr.f32.mxu0 %v3183
        %4006 = vmatmul.mubr.f32.gmra.mrb[0].mxu0 %v3182
        %v4007 = vpop.f32.mrb[0].mxu0
        %v4008 = vadd.f32 %v3783, %v4007
        %v4009 = vpop.f32.mrb[0].mxu0
        %4010 = vmatprep.mubr.f32.mxu0 %v3186
        %4011 = vmatmul.mubr.f32.gmra.mrb[0].mxu0 %v3185
        %v4012 = vpop.f32.mrb[0].mxu0
        %v4013 = vadd.f32 %v3788, %v4012
        %v4014 = vpop.f32.mrb[0].mxu0
        %4015 = vmatprep.mubr.f32.mxu0 %v3189
        %4016 = vmatmul.mubr.f32.gmra.mrb[0].mxu0 %v3188
        %v4017 = vpop.f32.mrb[0].mxu0
        %v4018 = vadd.f32 %v3793, %v4017
        %v4019 = vpop.f32.mrb[0].mxu0
        %4020 = vmatprep.mubr.f32.mxu0 %v3192
        %4021 = vmatmul.mubr.f32.gmra.mrb[0].mxu0 %v3191
        %v4022 = vpop.f32.mrb[0].mxu0
        %v4023 = vadd.f32 %v3798, %v4022
        %v4024 = vpop.f32.mrb[0].mxu0
        %4025 = vmatprep.mubr.f32.mxu0 %v3195
        %4026 = vmatmul.mubr.f32.gmra.mrb[0].mxu0 %v3194
        %v4027 = vpop.f32.mrb[0].mxu0
        %v4028 = vadd.f32 %v3803, %v4027
        %v4029 = vpop.f32.mrb[0].mxu0
        %4030 = vmatprep.mubr.f32.mxu0 %v3198
        %4031 = vmatmul.mubr.f32.gmra.mrb[0].mxu0 %v3197
        %v4032 = vpop.f32.mrb[0].mxu0
        %v4033 = vadd.f32 %v3808, %v4032
        %v4034 = vpop.f32.mrb[0].mxu0
        %4035 = vmatprep.mubr.f32.mxu0 %v3201
        %4036 = vmatmul.mubr.f32.gmra.mrb[0].mxu0 %v3200
        %v4037 = vpop.f32.mrb[0].mxu0
        %v4038 = vadd.f32 %v3813, %v4037
        %v4039 = vpop.f32.mrb[0].mxu0
        %4040 = vmatprep.mubr.f32.mxu0 %v3204
        %4041 = vmatmul.mubr.f32.gmra.mrb[0].mxu0 %v3203
        %v4042 = vpop.f32.mrb[0].mxu0
        %v4043 = vadd.f32 %v3818, %v4042
        %v4044 = vpop.f32.mrb[0].mxu0
        %4045 = vmatprep.mubr.f32.mxu0 %v3207
        %4046 = vmatmul.mubr.f32.gmra.mrb[0].mxu0 %v3206
        %v4047 = vpop.f32.mrb[0].mxu0
        %v4048 = vadd.f32 %v3823, %v4047
        %v4049 = vpop.f32.mrb[0].mxu0
        %4050 = vmatprep.mubr.f32.mxu0 %v3210
        %4051 = vmatmul.mubr.f32.gmra.mrb[0].mxu0 %v3209
        %v4052 = vpop.f32.mrb[0].mxu0
        %v4053 = vadd.f32 %v3828, %v4052
        %v4054 = vpop.f32.mrb[0].mxu0
        %4055 = vmatprep.mubr.f32.mxu0 %v3213
        %4056 = vmatmul.mubr.f32.gmra.mrb[0].mxu0 %v3212
        %v4057 = vpop.f32.mrb[0].mxu0
        %v4058 = vadd.f32 %v3833, %v4057
        %v4059 = vpop.f32.mrb[0].mxu0
        %4060 = vmatprep.mubr.f32.mxu0 %v3216
        %4061 = vmatmul.mubr.f32.gmra.mrb[0].mxu0 %v3215
        %v4062 = vpop.f32.mrb[0].mxu0
        %v4063 = vadd.f32 %v3838, %v4062
        %v4064 = vpop.f32.mrb[0].mxu0
        %4065 = vmatprep.mubr.f32.mxu0 %v3219
        %4066 = vmatmul.mubr.f32.gmra.mrb[0].mxu0 %v3218
        %v4067 = vpop.f32.mrb[0].mxu0
        %v4068 = vadd.f32 %v3843, %v4067
        %v4069 = vpop.f32.mrb[0].mxu0
        %4070 = vmatprep.mubr.f32.mxu0 %v3222
        %4071 = vmatmul.mubr.f32.gmra.mrb[0].mxu0 %v3221
        %v4072 = vpop.f32.mrb[0].mxu0
        %v4073 = vadd.f32 %v3848, %v4072
        %v4074 = vpop.f32.mrb[0].mxu0
        %4075 = vmatprep.mubr.f32.mxu0 %v3225
        %4076 = vmatmul.mubr.f32.gmra.mrb[0].mxu0 %v3224
        %v4077 = vpop.f32.mrb[0].mxu0
        %v4078 = vadd.f32 %v3853, %v4077
        %v4079 = vpop.f32.mrb[0].mxu0
        %4080 = vmatprep.mubr.f32.mxu0 %v3228
        %4081 = vmatmul.mubr.f32.gmra.mrb[0].mxu0 %v3227
        %v4082 = vpop.f32.mrb[0].mxu0
        %v4083 = vadd.f32 %v3858, %v4082
        %v4084 = vpop.f32.mrb[0].mxu0
        %4085 = vmatprep.mubr.f32.mxu0 %v3231
        %4086 = vmatmul.mubr.f32.gmra.mrb[0].mxu0 %v3230
        %v4087 = vpop.f32.mrb[0].mxu0
        %v4088 = vadd.f32 %v3863, %v4087
        %v4089 = vpop.f32.mrb[0].mxu0
        %4090 = vmatprep.mubr.f32.mxu0 %v3234
        %4091 = vmatmul.mubr.f32.gmra.mrb[0].mxu0 %v3233
        %v4092 = vpop.f32.mrb[0].mxu0
        %v4093 = vadd.f32 %v3868, %v4092
        %v4094 = vpop.f32.mrb[0].mxu0
        %4095 = vmatprep.mubr.f32.mxu0 %v3237
        %4096 = vmatmul.mubr.f32.gmra.mrb[0].mxu0 %v3236
        %v4097 = vpop.f32.mrb[0].mxu0
        %v4098 = vadd.f32 %v3873, %v4097
        %v4099 = vpop.f32.mrb[0].mxu0
        %4100 = vmatprep.mubr.f32.mxu0 %v3240
        %4101 = vmatmul.mubr.f32.gmra.mrb[0].mxu0 %v3239
        %v4102 = vpop.f32.mrb[0].mxu0
        %v4103 = vadd.f32 %v3878, %v4102
        %v4104 = vpop.f32.mrb[0].mxu0
        %4105 = vmatprep.mubr.f32.mxu0 %v3243
        %4106 = vmatmul.mubr.f32.gmra.mrb[0].mxu0 %v3242
        %v4107 = vpop.f32.mrb[0].mxu0
        %v4108 = vadd.f32 %v3883, %v4107
        %v4109 = vpop.f32.mrb[0].mxu0
        %4110 = vmatprep.mubr.f32.mxu0 %v3246
        %4111 = vmatmul.mubr.f32.gmra.mrb[0].mxu0 %v3245
        %v4112 = vpop.f32.mrb[0].mxu0
        %v4113 = vadd.f32 %v3888, %v4112
        %v4114 = vpop.f32.mrb[0].mxu0
        %4115 = vdwg.mxu0
        %4116 = vmatprep.subr.mxu0 0.0
        %4117 = vmatpush1.msra.mxu0 %v3280
        %4118 = vmatprep.subr.mxu0 0.0
        %4119 = vmatpush1.msra.mxu0 %v3281
        %4120 = vmatprep.subr.mxu0 0.0
        %4121 = vmatpush1.msra.mxu0 %v3282
        %4122 = vmatprep.subr.mxu0 0.0
        %4123 = vmatpush1.msra.mxu0 %v3283
        %4124 = vmatprep.subr.mxu0 0.0
        %4125 = vmatpush1.msra.mxu0 %v3284
        %4126 = vmatprep.subr.mxu0 0.0
        %4127 = vmatpush1.msra.mxu0 %v3285
        %4128 = vmatprep.subr.mxu0 0.0
        %4129 = vmatpush1.msra.mxu0 %v3286
        %4130 = vmatprep.subr.mxu0 0.0
        %4131 = vmatpush1.msra.mxu0 %v3287
        %4132 = vmatprep.subr.mxu0 0.0
        %4133 = vmatpush1.msra.mxu0 %v3288
        %4134 = vmatprep.subr.mxu0 0.0
        %4135 = vmatpush1.msra.mxu0 %v3289
        %4136 = vmatprep.subr.mxu0 0.0
        %4137 = vmatpush1.msra.mxu0 %v3290
        %4138 = vmatprep.subr.mxu0 0.0
        %4139 = vmatpush1.msra.mxu0 %v3291
        %4140 = vmatprep.subr.mxu0 0.0
        %4141 = vmatpush1.msra.mxu0 %v3292
        %4142 = vmatprep.subr.mxu0 0.0
        %4143 = vmatpush1.msra.mxu0 %v3293
        %4144 = vmatprep.subr.mxu0 0.0
        %4145 = vmatpush1.msra.mxu0 %v3294
        %4146 = vmatprep.subr.mxu0 0.0
        %4147 = vmatpush1.msra.mxu0 %v3295
        %4148 = vmatprep.subr.mxu0 0.0
        %4149 = vmatpush1.msra.mxu0 0.0
        %4150 = vmatprep.subr.mxu0 0.0
        %4151 = vmatpush1.msra.mxu0 0.0
        %4152 = vmatprep.subr.mxu0 0.0
        %4153 = vmatpush1.msra.mxu0 0.0
        %4154 = vmatprep.subr.mxu0 0.0
        %4155 = vmatpush1.msra.mxu0 0.0
        %4156 = vmatprep.subr.mxu0 0.0
        %4157 = vmatpush1.msra.mxu0 0.0
        %4158 = vmatprep.subr.mxu0 0.0
        %4159 = vmatpush1.msra.mxu0 0.0
        %4160 = vmatprep.subr.mxu0 0.0
        %4161 = vmatpush1.msra.mxu0 0.0
        %4162 = vmatprep.subr.mxu0 0.0
        %4163 = vmatpush1.msra.mxu0 0.0
        %4164 = vmatprep.subr.mxu0 0.0
        %4165 = vmatpush1.msra.mxu0 0.0
        %4166 = vmatprep.subr.mxu0 0.0
        %4167 = vmatpush1.msra.mxu0 0.0
        %4168 = vmatprep.subr.mxu0 0.0
        %4169 = vmatpush1.msra.mxu0 0.0
        %4170 = vmatprep.subr.mxu0 0.0
        %4171 = vmatpush1.msra.mxu0 0.0
        %4172 = vmatprep.subr.mxu0 0.0
        %4173 = vmatpush1.msra.mxu0 0.0
        %4174 = vmatprep.subr.mxu0 0.0
        %4175 = vmatpush1.msra.mxu0 0.0
        %4176 = vmatprep.subr.mxu0 0.0
        %4177 = vmatpush1.msra.mxu0 0.0
        %4178 = vmatprep.subr.mxu0 0.0
        %4179 = vmatpush1.msra.mxu0 0.0
        %4180 = vmatprep.mubr.f32.mxu0 0.0
        %4181 = vmatmul.mubr.f32.gmra.mrb[0].mxu0 %v3154
        %v4182 = vpop.f32.mrb[0].mxu0
        %v4183 = vadd.f32 %v3958, %v4182
        %v4184 = vpop.f32.mrb[0].mxu0
        %4185 = vmatprep.mubr.f32.mxu0 0.0
        %4186 = vmatmul.mubr.f32.gmra.mrb[0].mxu0 %v3157
        %v4187 = vpop.f32.mrb[0].mxu0
        %v4188 = vadd.f32 %v3963, %v4187
        %v4189 = vpop.f32.mrb[0].mxu0
        %4190 = vmatprep.mubr.f32.mxu0 0.0
        %4191 = vmatmul.mubr.f32.gmra.mrb[0].mxu0 %v3160
        %v4192 = vpop.f32.mrb[0].mxu0
        %v4193 = vadd.f32 %v3968, %v4192
        %v4194 = vpop.f32.mrb[0].mxu0
        %4195 = vmatprep.mubr.f32.mxu0 0.0
        %4196 = vmatmul.mubr.f32.gmra.mrb[0].mxu0 %v3163
        %v4197 = vpop.f32.mrb[0].mxu0
        %v4198 = vadd.f32 %v3973, %v4197
        %v4199 = vpop.f32.mrb[0].mxu0
        %4200 = vmatprep.mubr.f32.mxu0 0.0
        %4201 = vmatmul.mubr.f32.gmra.mrb[0].mxu0 %v3166
        %v4202 = vpop.f32.mrb[0].mxu0
        %v4203 = vadd.f32 %v3978, %v4202
        %v4204 = vpop.f32.mrb[0].mxu0
        %4205 = vmatprep.mubr.f32.mxu0 0.0
        %4206 = vmatmul.mubr.f32.gmra.mrb[0].mxu0 %v3169
        %v4207 = vpop.f32.mrb[0].mxu0
        %v4208 = vadd.f32 %v3983, %v4207
        %v4209 = vpop.f32.mrb[0].mxu0
        %4210 = vmatprep.mubr.f32.mxu0 0.0
        %4211 = vmatmul.mubr.f32.gmra.mrb[0].mxu0 %v3172
        %v4212 = vpop.f32.mrb[0].mxu0
        %v4213 = vadd.f32 %v3988, %v4212
        %v4214 = vpop.f32.mrb[0].mxu0
        %4215 = vmatprep.mubr.f32.mxu0 0.0
        %4216 = vmatmul.mubr.f32.gmra.mrb[0].mxu0 %v3175
        %v4217 = vpop.f32.mrb[0].mxu0
        %v4218 = vadd.f32 %v3993, %v4217
        %v4219 = vpop.f32.mrb[0].mxu0
        %4220 = vmatprep.mubr.f32.mxu0 0.0
        %4221 = vmatmul.mubr.f32.gmra.mrb[0].mxu0 %v3178
        %v4222 = vpop.f32.mrb[0].mxu0
        %v4223 = vadd.f32 %v3998, %v4222
        %v4224 = vpop.f32.mrb[0].mxu0
        %4225 = vmatprep.mubr.f32.mxu0 0.0
        %4226 = vmatmul.mubr.f32.gmra.mrb[0].mxu0 %v3181
        %v4227 = vpop.f32.mrb[0].mxu0
        %v4228 = vadd.f32 %v4003, %v4227
        %v4229 = vpop.f32.mrb[0].mxu0
        %4230 = vmatprep.mubr.f32.mxu0 0.0
        %4231 = vmatmul.mubr.f32.gmra.mrb[0].mxu0 %v3184
        %v4232 = vpop.f32.mrb[0].mxu0
        %v4233 = vadd.f32 %v4008, %v4232
        %v4234 = vpop.f32.mrb[0].mxu0
        %4235 = vmatprep.mubr.f32.mxu0 0.0
        %4236 = vmatmul.mubr.f32.gmra.mrb[0].mxu0 %v3187
        %v4237 = vpop.f32.mrb[0].mxu0
        %v4238 = vadd.f32 %v4013, %v4237
        %v4239 = vpop.f32.mrb[0].mxu0
        %4240 = vmatprep.mubr.f32.mxu0 0.0
        %4241 = vmatmul.mubr.f32.gmra.mrb[0].mxu0 %v3190
        %v4242 = vpop.f32.mrb[0].mxu0
        %v4243 = vadd.f32 %v4018, %v4242
        %v4244 = vpop.f32.mrb[0].mxu0
        %4245 = vmatprep.mubr.f32.mxu0 0.0
        %4246 = vmatmul.mubr.f32.gmra.mrb[0].mxu0 %v3193
        %v4247 = vpop.f32.mrb[0].mxu0
        %v4248 = vadd.f32 %v4023, %v4247
        %v4249 = vpop.f32.mrb[0].mxu0
        %4250 = vmatprep.mubr.f32.mxu0 0.0
        %4251 = vmatmul.mubr.f32.gmra.mrb[0].mxu0 %v3196
        %v4252 = vpop.f32.mrb[0].mxu0
        %v4253 = vadd.f32 %v4028, %v4252
        %v4254 = vpop.f32.mrb[0].mxu0
        %4255 = vmatprep.mubr.f32.mxu0 0.0
        %4256 = vmatmul.mubr.f32.gmra.mrb[0].mxu0 %v3199
        %v4257 = vpop.f32.mrb[0].mxu0
        %v4258 = vadd.f32 %v4033, %v4257
        %v4259 = vpop.f32.mrb[0].mxu0
        %4260 = vmatprep.mubr.f32.mxu0 0.0
        %4261 = vmatmul.mubr.f32.gmra.mrb[0].mxu0 %v3202
        %v4262 = vpop.f32.mrb[0].mxu0
        %v4263 = vadd.f32 %v4038, %v4262
        %v4264 = vpop.f32.mrb[0].mxu0
        %4265 = vmatprep.mubr.f32.mxu0 0.0
        %4266 = vmatmul.mubr.f32.gmra.mrb[0].mxu0 %v3205
        %v4267 = vpop.f32.mrb[0].mxu0
        %v4268 = vadd.f32 %v4043, %v4267
        %v4269 = vpop.f32.mrb[0].mxu0
        %4270 = vmatprep.mubr.f32.mxu0 0.0
        %4271 = vmatmul.mubr.f32.gmra.mrb[0].mxu0 %v3208
        %v4272 = vpop.f32.mrb[0].mxu0
        %v4273 = vadd.f32 %v4048, %v4272
        %v4274 = vpop.f32.mrb[0].mxu0
        %4275 = vmatprep.mubr.f32.mxu0 0.0
        %4276 = vmatmul.mubr.f32.gmra.mrb[0].mxu0 %v3211
        %v4277 = vpop.f32.mrb[0].mxu0
        %v4278 = vadd.f32 %v4053, %v4277
        %v4279 = vpop.f32.mrb[0].mxu0
        %4280 = vmatprep.mubr.f32.mxu0 0.0
        %4281 = vmatmul.mubr.f32.gmra.mrb[0].mxu0 %v3214
        %v4282 = vpop.f32.mrb[0].mxu0
        %v4283 = vadd.f32 %v4058, %v4282
        %v4284 = vpop.f32.mrb[0].mxu0
        %4285 = vmatprep.mubr.f32.mxu0 0.0
        %4286 = vmatmul.mubr.f32.gmra.mrb[0].mxu0 %v3217
        %v4287 = vpop.f32.mrb[0].mxu0
        %v4288 = vadd.f32 %v4063, %v4287
        %v4289 = vpop.f32.mrb[0].mxu0
        %4290 = vmatprep.mubr.f32.mxu0 0.0
        %4291 = vmatmul.mubr.f32.gmra.mrb[0].mxu0 %v3220
        %v4292 = vpop.f32.mrb[0].mxu0
        %v4293 = vadd.f32 %v4068, %v4292
        %v4294 = vpop.f32.mrb[0].mxu0
        %4295 = vmatprep.mubr.f32.mxu0 0.0
        %4296 = vmatmul.mubr.f32.gmra.mrb[0].mxu0 %v3223
        %v4297 = vpop.f32.mrb[0].mxu0
        %v4298 = vadd.f32 %v4073, %v4297
        %v4299 = vpop.f32.mrb[0].mxu0
        %4300 = vmatprep.mubr.f32.mxu0 0.0
        %4301 = vmatmul.mubr.f32.gmra.mrb[0].mxu0 %v3226
        %v4302 = vpop.f32.mrb[0].mxu0
        %v4303 = vadd.f32 %v4078, %v4302
        %v4304 = vpop.f32.mrb[0].mxu0
        %4305 = vmatprep.mubr.f32.mxu0 0.0
        %4306 = vmatmul.mubr.f32.gmra.mrb[0].mxu0 %v3229
        %v4307 = vpop.f32.mrb[0].mxu0
        %v4308 = vadd.f32 %v4083, %v4307
        %v4309 = vpop.f32.mrb[0].mxu0
        %4310 = vmatprep.mubr.f32.mxu0 0.0
        %4311 = vmatmul.mubr.f32.gmra.mrb[0].mxu0 %v3232
        %v4312 = vpop.f32.mrb[0].mxu0
        %v4313 = vadd.f32 %v4088, %v4312
        %v4314 = vpop.f32.mrb[0].mxu0
        %4315 = vmatprep.mubr.f32.mxu0 0.0
        %4316 = vmatmul.mubr.f32.gmra.mrb[0].mxu0 %v3235
        %v4317 = vpop.f32.mrb[0].mxu0
        %v4318 = vadd.f32 %v4093, %v4317
        %v4319 = vpop.f32.mrb[0].mxu0
        %4320 = vmatprep.mubr.f32.mxu0 0.0
        %4321 = vmatmul.mubr.f32.gmra.mrb[0].mxu0 %v3238
        %v4322 = vpop.f32.mrb[0].mxu0
        %v4323 = vadd.f32 %v4098, %v4322
        %v4324 = vpop.f32.mrb[0].mxu0
        %4325 = vmatprep.mubr.f32.mxu0 0.0
        %4326 = vmatmul.mubr.f32.gmra.mrb[0].mxu0 %v3241
        %v4327 = vpop.f32.mrb[0].mxu0
        %v4328 = vadd.f32 %v4103, %v4327
        %v4329 = vpop.f32.mrb[0].mxu0
        %4330 = vmatprep.mubr.f32.mxu0 0.0
        %4331 = vmatmul.mubr.f32.gmra.mrb[0].mxu0 %v3244
        %v4332 = vpop.f32.mrb[0].mxu0
        %v4333 = vadd.f32 %v4108, %v4332
        %v4334 = vpop.f32.mrb[0].mxu0
        %4335 = vmatprep.mubr.f32.mxu0 0.0
        %4336 = vmatmul.mubr.f32.gmra.mrb[0].mxu0 %v3247
        %v4337 = vpop.f32.mrb[0].mxu0
        %v4338 = vadd.f32 %v4113, %v4337
        %v4339 = vpop.f32.mrb[0].mxu0
        %4340 = vdwg.mxu0
        %v4341 = vld [vmem:[%s2205] sm:$0xff]
        %v4342 = vld [vmem:[%s2205 + $0x8] sm:$0xff]
        %v4343 = vld [vmem:[%s2205 + $0x10] sm:$0xff]
        %v4344 = vld [vmem:[%s2205 + $0x18] sm:$0xff]
        %v4345 = vld [vmem:[%s2205 + $0x20] sm:$0xff]
        %v4346 = vld [vmem:[%s2205 + $0x28] sm:$0xff]
        %v4347 = vld [vmem:[%s2205 + $0x30] sm:$0xff]
        %v4348 = vld [vmem:[%s2205 + $0x38] sm:$0xff]
        %v4349 = vld [vmem:[%s2205 + $0x40] sm:$0xff]
        %v4350 = vld [vmem:[%s2205 + $0x48] sm:$0xff]
        %v4351 = vld [vmem:[%s2205 + $0x50] sm:$0xff]
        %v4352 = vld [vmem:[%s2205 + $0x58] sm:$0xff]
        %v4353 = vld [vmem:[%s2205 + $0x60] sm:$0xff]
        %v4354 = vld [vmem:[%s2205 + $0x68] sm:$0xff]
        %v4355 = vld [vmem:[%s2205 + $0x70] sm:$0xff]
        %v4356 = vld [vmem:[%s2205 + $0x78] sm:$0xff]
        %v4357 = vld [vmem:[%s2205 + $0x80] sm:$0xff]
        %v4358 = vld [vmem:[%s2205 + $0x88] sm:$0xff]
        %v4359 = vld [vmem:[%s2205 + $0x90] sm:$0xff]
        %v4360 = vld [vmem:[%s2205 + $0x98] sm:$0xff]
        %v4361 = vld [vmem:[%s2205 + $0xa0] sm:$0xff]
        %v4362 = vld [vmem:[%s2205 + $0xa8] sm:$0xff]
        %v4363 = vld [vmem:[%s2205 + $0xb0] sm:$0xff]
        %v4364 = vld [vmem:[%s2205 + $0xb8] sm:$0xff]
        %v4365 = vld [vmem:[%s2205 + $0xc0] sm:$0xff]
        %v4366 = vld [vmem:[%s2205 + $0xc8] sm:$0xff]
        %v4367 = vld [vmem:[%s2205 + $0xd0] sm:$0xff]
        %v4368 = vld [vmem:[%s2205 + $0xd8] sm:$0xff]
        %v4369 = vld [vmem:[%s2205 + $0xe0] sm:$0xff]
        %v4370 = vld [vmem:[%s2205 + $0xe8] sm:$0xff]
        %v4371 = vld [vmem:[%s2205 + $0xf0] sm:$0xff]
        %v4372 = vld [vmem:[%s2205 + $0xf8] sm:$0xff]
        %v4373 = vld [vmem:[%s2205 + $0x100] sm:$0xff]
        %v4374 = vld [vmem:[%s2205 + $0x108] sm:$0xff]
        %v4375 = vld [vmem:[%s2205 + $0x110] sm:$0xff]
        %v4376 = vld [vmem:[%s2205 + $0x118] sm:$0xff]
        %v4377 = vld [vmem:[%s2205 + $0x120] sm:$0xff]
        %v4378 = vld [vmem:[%s2205 + $0x128] sm:$0xff]
        %v4379 = vld [vmem:[%s2205 + $0x130] sm:$0xff]
        %v4380 = vld [vmem:[%s2205 + $0x138] sm:$0xff]
        %v4381 = vld [vmem:[%s2205 + $0x140] sm:$0xff]
        %v4382 = vld [vmem:[%s2205 + $0x148] sm:$0xff]
        %v4383 = vld [vmem:[%s2205 + $0x150] sm:$0xff]
        %v4384 = vld [vmem:[%s2205 + $0x158] sm:$0xff]
        %v4385 = vld [vmem:[%s2205 + $0x160] sm:$0xff]
        %v4386 = vld [vmem:[%s2205 + $0x168] sm:$0xff]
        %v4387 = vld [vmem:[%s2205 + $0x170] sm:$0xff]
        %v4388 = vld [vmem:[%s2205 + $0x178] sm:$0xff]
        %v4389 = vld [vmem:[%s2205 + $0x180] sm:$0xff]
        %v4390 = vld [vmem:[%s2205 + $0x188] sm:$0xff]
        %v4391 = vld [vmem:[%s2205 + $0x190] sm:$0xff]
        %v4392 = vld [vmem:[%s2205 + $0x198] sm:$0xff]
        %v4393 = vld [vmem:[%s2205 + $0x1a0] sm:$0xff]
        %v4394 = vld [vmem:[%s2205 + $0x1a8] sm:$0xff]
        %v4395 = vld [vmem:[%s2205 + $0x1b0] sm:$0xff]
        %v4396 = vld [vmem:[%s2205 + $0x1b8] sm:$0xff]
        %v4397 = vld [vmem:[%s2205 + $0x1c0] sm:$0xff]
        %v4398 = vld [vmem:[%s2205 + $0x1c8] sm:$0xff]
        %v4399 = vld [vmem:[%s2205 + $0x1d0] sm:$0xff]
        %v4400 = vld [vmem:[%s2205 + $0x1d8] sm:$0xff]
        %v4401 = vld [vmem:[%s2205 + $0x1e0] sm:$0xff]
        %v4402 = vld [vmem:[%s2205 + $0x1e8] sm:$0xff]
        %v4403 = vld [vmem:[%s2205 + $0x1f0] sm:$0xff]
        %v4404 = vld [vmem:[%s2205 + $0x1f8] sm:$0xff]
        %v4405 = vld [vmem:[%s2205 + $0x200] sm:$0xff]
        %v4406 = vld [vmem:[%s2205 + $0x208] sm:$0xff]
        %v4407 = vld [vmem:[%s2205 + $0x210] sm:$0xff]
        %v4408 = vld [vmem:[%s2205 + $0x218] sm:$0xff]
        %v4409 = vld [vmem:[%s2205 + $0x220] sm:$0xff]
        %v4410 = vld [vmem:[%s2205 + $0x228] sm:$0xff]
        %v4411 = vld [vmem:[%s2205 + $0x230] sm:$0xff]
        %v4412 = vld [vmem:[%s2205 + $0x238] sm:$0xff]
        %v4413 = vld [vmem:[%s2205 + $0x240] sm:$0xff]
        %v4414 = vld [vmem:[%s2205 + $0x248] sm:$0xff]
        %v4415 = vld [vmem:[%s2205 + $0x250] sm:$0xff]
        %v4416 = vld [vmem:[%s2205 + $0x258] sm:$0xff]
        %v4417 = vld [vmem:[%s2205 + $0x260] sm:$0xff]
        %v4418 = vld [vmem:[%s2205 + $0x268] sm:$0xff]
        %v4419 = vld [vmem:[%s2205 + $0x270] sm:$0xff]
        %v4420 = vld [vmem:[%s2205 + $0x278] sm:$0xff]
        %v4421 = vld [vmem:[%s2205 + $0x280] sm:$0xff]
        %v4422 = vld [vmem:[%s2205 + $0x288] sm:$0xff]
        %v4423 = vld [vmem:[%s2205 + $0x290] sm:$0xff]
        %v4424 = vld [vmem:[%s2205 + $0x298] sm:$0xff]
        %v4425 = vld [vmem:[%s2205 + $0x2a0] sm:$0xff]
        %v4426 = vld [vmem:[%s2205 + $0x2a8] sm:$0xff]
        %v4427 = vld [vmem:[%s2205 + $0x2b0] sm:$0xff]
        %v4428 = vld [vmem:[%s2205 + $0x2b8] sm:$0xff]
        %v4429 = vld [vmem:[%s2205 + $0x2c0] sm:$0xff]
        %v4430 = vld [vmem:[%s2205 + $0x2c8] sm:$0xff]
        %v4431 = vld [vmem:[%s2205 + $0x2d0] sm:$0xff]
        %v4432 = vld [vmem:[%s2205 + $0x2d8] sm:$0xff]
        %v4433 = vld [vmem:[%s2205 + $0x2e0] sm:$0xff]
        %v4434 = vld [vmem:[%s2205 + $0x2e8] sm:$0xff]
        %v4435 = vld [vmem:[%s2205 + $0x2f0] sm:$0xff]
        %v4436 = vld [vmem:[%s2205 + $0x2f8] sm:$0xff]
        %s4437 = scalar_lea.vmem [#allocation6], 768
        %v4438 = vld [vmem:[%s4437] sm:$0xff]
        %v4439 = vld [vmem:[%s4437 + $0x8] sm:$0xff]
        %v4440 = vld [vmem:[%s4437 + $0x10] sm:$0xff]
        %v4441 = vld [vmem:[%s4437 + $0x18] sm:$0xff]
        %v4442 = vld [vmem:[%s4437 + $0x20] sm:$0xff]
        %v4443 = vld [vmem:[%s4437 + $0x28] sm:$0xff]
        %v4444 = vld [vmem:[%s4437 + $0x30] sm:$0xff]
        %v4445 = vld [vmem:[%s4437 + $0x38] sm:$0xff]
        %v4446 = vld [vmem:[%s4437 + $0x40] sm:$0xff]
        %v4447 = vld [vmem:[%s4437 + $0x48] sm:$0xff]
        %v4448 = vld [vmem:[%s4437 + $0x50] sm:$0xff]
        %v4449 = vld [vmem:[%s4437 + $0x58] sm:$0xff]
        %v4450 = vld [vmem:[%s4437 + $0x60] sm:$0xff]
        %v4451 = vld [vmem:[%s4437 + $0x68] sm:$0xff]
        %v4452 = vld [vmem:[%s4437 + $0x70] sm:$0xff]
        %v4453 = vld [vmem:[%s4437 + $0x78] sm:$0xff]
        %v4454 = vld [vmem:[%s4437 + $0x80] sm:$0xff]
        %v4455 = vld [vmem:[%s4437 + $0x88] sm:$0xff]
        %v4456 = vld [vmem:[%s4437 + $0x90] sm:$0xff]
        %v4457 = vld [vmem:[%s4437 + $0x98] sm:$0xff]
        %v4458 = vld [vmem:[%s4437 + $0xa0] sm:$0xff]
        %v4459 = vld [vmem:[%s4437 + $0xa8] sm:$0xff]
        %v4460 = vld [vmem:[%s4437 + $0xb0] sm:$0xff]
        %v4461 = vld [vmem:[%s4437 + $0xb8] sm:$0xff]
        %v4462 = vld [vmem:[%s4437 + $0xc0] sm:$0xff]
        %v4463 = vld [vmem:[%s4437 + $0xc8] sm:$0xff]
        %v4464 = vld [vmem:[%s4437 + $0xd0] sm:$0xff]
        %v4465 = vld [vmem:[%s4437 + $0xd8] sm:$0xff]
        %v4466 = vld [vmem:[%s4437 + $0xe0] sm:$0xff]
        %v4467 = vld [vmem:[%s4437 + $0xe8] sm:$0xff]
        %v4468 = vld [vmem:[%s4437 + $0xf0] sm:$0xff]
        %v4469 = vld [vmem:[%s4437 + $0xf8] sm:$0xff]
        %v4470 = vld [vmem:[%s4437 + $0x100] sm:$0xff]
        %v4471 = vld [vmem:[%s4437 + $0x108] sm:$0xff]
        %v4472 = vld [vmem:[%s4437 + $0x110] sm:$0xff]
        %v4473 = vld [vmem:[%s4437 + $0x118] sm:$0xff]
        %v4474 = vld [vmem:[%s4437 + $0x120] sm:$0xff]
        %v4475 = vld [vmem:[%s4437 + $0x128] sm:$0xff]
        %v4476 = vld [vmem:[%s4437 + $0x130] sm:$0xff]
        %v4477 = vld [vmem:[%s4437 + $0x138] sm:$0xff]
        %v4478 = vld [vmem:[%s4437 + $0x140] sm:$0xff]
        %v4479 = vld [vmem:[%s4437 + $0x148] sm:$0xff]
        %v4480 = vld [vmem:[%s4437 + $0x150] sm:$0xff]
        %v4481 = vld [vmem:[%s4437 + $0x158] sm:$0xff]
        %v4482 = vld [vmem:[%s4437 + $0x160] sm:$0xff]
        %v4483 = vld [vmem:[%s4437 + $0x168] sm:$0xff]
        %v4484 = vld [vmem:[%s4437 + $0x170] sm:$0xff]
        %v4485 = vld [vmem:[%s4437 + $0x178] sm:$0xff]
        %4486 = vmatprep.subr.mxu0 0.0
        %4487 = vmatpush1.msra.mxu0 %v4438
        %4488 = vmatprep.subr.mxu0 0.0
        %4489 = vmatpush1.msra.mxu0 %v4439
        %4490 = vmatprep.subr.mxu0 0.0
        %4491 = vmatpush1.msra.mxu0 %v4440
        %4492 = vmatprep.subr.mxu0 0.0
        %4493 = vmatpush1.msra.mxu0 %v4441
        %4494 = vmatprep.subr.mxu0 0.0
        %4495 = vmatpush1.msra.mxu0 %v4442
        %4496 = vmatprep.subr.mxu0 0.0
        %4497 = vmatpush1.msra.mxu0 %v4443
        %4498 = vmatprep.subr.mxu0 0.0
        %4499 = vmatpush1.msra.mxu0 %v4444
        %4500 = vmatprep.subr.mxu0 0.0
        %4501 = vmatpush1.msra.mxu0 %v4445
        %4502 = vmatprep.subr.mxu0 0.0
        %4503 = vmatpush1.msra.mxu0 %v4446
        %4504 = vmatprep.subr.mxu0 0.0
        %4505 = vmatpush1.msra.mxu0 %v4447
        %4506 = vmatprep.subr.mxu0 0.0
        %4507 = vmatpush1.msra.mxu0 %v4448
        %4508 = vmatprep.subr.mxu0 0.0
        %4509 = vmatpush1.msra.mxu0 %v4449
        %4510 = vmatprep.subr.mxu0 0.0
        %4511 = vmatpush1.msra.mxu0 %v4450
        %4512 = vmatprep.subr.mxu0 0.0
        %4513 = vmatpush1.msra.mxu0 %v4451
        %4514 = vmatprep.subr.mxu0 0.0
        %4515 = vmatpush1.msra.mxu0 %v4452
        %4516 = vmatprep.subr.mxu0 0.0
        %4517 = vmatpush1.msra.mxu0 %v4453
        %4518 = vmatprep.subr.mxu0 0.0
        %4519 = vmatpush1.msra.mxu0 %v4454
        %4520 = vmatprep.subr.mxu0 0.0
        %4521 = vmatpush1.msra.mxu0 %v4455
        %4522 = vmatprep.subr.mxu0 0.0
        %4523 = vmatpush1.msra.mxu0 %v4456
        %4524 = vmatprep.subr.mxu0 0.0
        %4525 = vmatpush1.msra.mxu0 %v4457
        %4526 = vmatprep.subr.mxu0 0.0
        %4527 = vmatpush1.msra.mxu0 %v4458
        %4528 = vmatprep.subr.mxu0 0.0
        %4529 = vmatpush1.msra.mxu0 %v4459
        %4530 = vmatprep.subr.mxu0 0.0
        %4531 = vmatpush1.msra.mxu0 %v4460
        %4532 = vmatprep.subr.mxu0 0.0
        %4533 = vmatpush1.msra.mxu0 %v4461
        %4534 = vmatprep.subr.mxu0 0.0
        %4535 = vmatpush1.msra.mxu0 %v4462
        %4536 = vmatprep.subr.mxu0 0.0
        %4537 = vmatpush1.msra.mxu0 %v4463
        %4538 = vmatprep.subr.mxu0 0.0
        %4539 = vmatpush1.msra.mxu0 %v4464
        %4540 = vmatprep.subr.mxu0 0.0
        %4541 = vmatpush1.msra.mxu0 %v4465
        %4542 = vmatprep.subr.mxu0 0.0
        %4543 = vmatpush1.msra.mxu0 %v4466
        %4544 = vmatprep.subr.mxu0 0.0
        %4545 = vmatpush1.msra.mxu0 %v4467
        %4546 = vmatprep.subr.mxu0 0.0
        %4547 = vmatpush1.msra.mxu0 %v4468
        %4548 = vmatprep.subr.mxu0 0.0
        %4549 = vmatpush1.msra.mxu0 %v4469
        %4550 = vmatprep.mubr.f32.mxu0 %v4342
        %4551 = vmatmul.mubr.f32.gmra.mrb[0].mxu0 %v4341
        %v4552 = vpop.f32.mrb[0].mxu0
        %v4553 = vadd.f32 0.0, %v4552
        %v4554 = vpop.f32.mrb[0].mxu0
        %4555 = vmatprep.mubr.f32.mxu0 %v4345
        %4556 = vmatmul.mubr.f32.gmra.mrb[0].mxu0 %v4344
        %v4557 = vpop.f32.mrb[0].mxu0
        %v4558 = vadd.f32 0.0, %v4557
        %v4559 = vpop.f32.mrb[0].mxu0
        %4560 = vmatprep.mubr.f32.mxu0 %v4348
        %4561 = vmatmul.mubr.f32.gmra.mrb[0].mxu0 %v4347
        %v4562 = vpop.f32.mrb[0].mxu0
        %v4563 = vadd.f32 0.0, %v4562
        %v4564 = vpop.f32.mrb[0].mxu0
        %4565 = vmatprep.mubr.f32.mxu0 %v4351
        %4566 = vmatmul.mubr.f32.gmra.mrb[0].mxu0 %v4350
        %v4567 = vpop.f32.mrb[0].mxu0
        %v4568 = vadd.f32 0.0, %v4567
        %v4569 = vpop.f32.mrb[0].mxu0
        %4570 = vmatprep.mubr.f32.mxu0 %v4354
        %4571 = vmatmul.mubr.f32.gmra.mrb[0].mxu0 %v4353
        %v4572 = vpop.f32.mrb[0].mxu0
        %v4573 = vadd.f32 0.0, %v4572
        %v4574 = vpop.f32.mrb[0].mxu0
        %4575 = vmatprep.mubr.f32.mxu0 %v4357
        %4576 = vmatmul.mubr.f32.gmra.mrb[0].mxu0 %v4356
        %v4577 = vpop.f32.mrb[0].mxu0
        %v4578 = vadd.f32 0.0, %v4577
        %v4579 = vpop.f32.mrb[0].mxu0
        %4580 = vmatprep.mubr.f32.mxu0 %v4360
        %4581 = vmatmul.mubr.f32.gmra.mrb[0].mxu0 %v4359
        %v4582 = vpop.f32.mrb[0].mxu0
        %v4583 = vadd.f32 0.0, %v4582
        %v4584 = vpop.f32.mrb[0].mxu0
        %4585 = vmatprep.mubr.f32.mxu0 %v4363
        %4586 = vmatmul.mubr.f32.gmra.mrb[0].mxu0 %v4362
        %v4587 = vpop.f32.mrb[0].mxu0
        %v4588 = vadd.f32 0.0, %v4587
        %v4589 = vpop.f32.mrb[0].mxu0
        %4590 = vmatprep.mubr.f32.mxu0 %v4366
        %4591 = vmatmul.mubr.f32.gmra.mrb[0].mxu0 %v4365
        %v4592 = vpop.f32.mrb[0].mxu0
        %v4593 = vadd.f32 0.0, %v4592
        %v4594 = vpop.f32.mrb[0].mxu0
        %4595 = vmatprep.mubr.f32.mxu0 %v4369
        %4596 = vmatmul.mubr.f32.gmra.mrb[0].mxu0 %v4368
        %v4597 = vpop.f32.mrb[0].mxu0
        %v4598 = vadd.f32 0.0, %v4597
        %v4599 = vpop.f32.mrb[0].mxu0
        %4600 = vmatprep.mubr.f32.mxu0 %v4372
        %4601 = vmatmul.mubr.f32.gmra.mrb[0].mxu0 %v4371
        %v4602 = vpop.f32.mrb[0].mxu0
        %v4603 = vadd.f32 0.0, %v4602
        %v4604 = vpop.f32.mrb[0].mxu0
        %4605 = vmatprep.mubr.f32.mxu0 %v4375
        %4606 = vmatmul.mubr.f32.gmra.mrb[0].mxu0 %v4374
        %v4607 = vpop.f32.mrb[0].mxu0
        %v4608 = vadd.f32 0.0, %v4607
        %v4609 = vpop.f32.mrb[0].mxu0
        %4610 = vmatprep.mubr.f32.mxu0 %v4378
        %4611 = vmatmul.mubr.f32.gmra.mrb[0].mxu0 %v4377
        %v4612 = vpop.f32.mrb[0].mxu0
        %v4613 = vadd.f32 0.0, %v4612
        %v4614 = vpop.f32.mrb[0].mxu0
        %4615 = vmatprep.mubr.f32.mxu0 %v4381
        %4616 = vmatmul.mubr.f32.gmra.mrb[0].mxu0 %v4380
        %v4617 = vpop.f32.mrb[0].mxu0
        %v4618 = vadd.f32 0.0, %v4617
        %v4619 = vpop.f32.mrb[0].mxu0
        %4620 = vmatprep.mubr.f32.mxu0 %v4384
        %4621 = vmatmul.mubr.f32.gmra.mrb[0].mxu0 %v4383
        %v4622 = vpop.f32.mrb[0].mxu0
        %v4623 = vadd.f32 0.0, %v4622
        %v4624 = vpop.f32.mrb[0].mxu0
        %4625 = vmatprep.mubr.f32.mxu0 %v4387
        %4626 = vmatmul.mubr.f32.gmra.mrb[0].mxu0 %v4386
        %v4627 = vpop.f32.mrb[0].mxu0
        %v4628 = vadd.f32 0.0, %v4627
        %v4629 = vpop.f32.mrb[0].mxu0
        %4630 = vmatprep.mubr.f32.mxu0 %v4390
        %4631 = vmatmul.mubr.f32.gmra.mrb[0].mxu0 %v4389
        %v4632 = vpop.f32.mrb[0].mxu0
        %v4633 = vadd.f32 0.0, %v4632
        %v4634 = vpop.f32.mrb[0].mxu0
        %4635 = vmatprep.mubr.f32.mxu0 %v4393
        %4636 = vmatmul.mubr.f32.gmra.mrb[0].mxu0 %v4392
        %v4637 = vpop.f32.mrb[0].mxu0
        %v4638 = vadd.f32 0.0, %v4637
        %v4639 = vpop.f32.mrb[0].mxu0
        %4640 = vmatprep.mubr.f32.mxu0 %v4396
        %4641 = vmatmul.mubr.f32.gmra.mrb[0].mxu0 %v4395
        %v4642 = vpop.f32.mrb[0].mxu0
        %v4643 = vadd.f32 0.0, %v4642
        %v4644 = vpop.f32.mrb[0].mxu0
        %4645 = vmatprep.mubr.f32.mxu0 %v4399
        %4646 = vmatmul.mubr.f32.gmra.mrb[0].mxu0 %v4398
        %v4647 = vpop.f32.mrb[0].mxu0
        %v4648 = vadd.f32 0.0, %v4647
        %v4649 = vpop.f32.mrb[0].mxu0
        %4650 = vmatprep.mubr.f32.mxu0 %v4402
        %4651 = vmatmul.mubr.f32.gmra.mrb[0].mxu0 %v4401
        %v4652 = vpop.f32.mrb[0].mxu0
        %v4653 = vadd.f32 0.0, %v4652
        %v4654 = vpop.f32.mrb[0].mxu0
        %4655 = vmatprep.mubr.f32.mxu0 %v4405
        %4656 = vmatmul.mubr.f32.gmra.mrb[0].mxu0 %v4404
        %v4657 = vpop.f32.mrb[0].mxu0
        %v4658 = vadd.f32 0.0, %v4657
        %v4659 = vpop.f32.mrb[0].mxu0
        %4660 = vmatprep.mubr.f32.mxu0 %v4408
        %4661 = vmatmul.mubr.f32.gmra.mrb[0].mxu0 %v4407
        %v4662 = vpop.f32.mrb[0].mxu0
        %v4663 = vadd.f32 0.0, %v4662
        %v4664 = vpop.f32.mrb[0].mxu0
        %4665 = vmatprep.mubr.f32.mxu0 %v4411
        %4666 = vmatmul.mubr.f32.gmra.mrb[0].mxu0 %v4410
        %v4667 = vpop.f32.mrb[0].mxu0
        %v4668 = vadd.f32 0.0, %v4667
        %v4669 = vpop.f32.mrb[0].mxu0
        %4670 = vmatprep.mubr.f32.mxu0 %v4414
        %4671 = vmatmul.mubr.f32.gmra.mrb[0].mxu0 %v4413
        %v4672 = vpop.f32.mrb[0].mxu0
        %v4673 = vadd.f32 0.0, %v4672
        %v4674 = vpop.f32.mrb[0].mxu0
        %4675 = vmatprep.mubr.f32.mxu0 %v4417
        %4676 = vmatmul.mubr.f32.gmra.mrb[0].mxu0 %v4416
        %v4677 = vpop.f32.mrb[0].mxu0
        %v4678 = vadd.f32 0.0, %v4677
        %v4679 = vpop.f32.mrb[0].mxu0
        %4680 = vmatprep.mubr.f32.mxu0 %v4420
        %4681 = vmatmul.mubr.f32.gmra.mrb[0].mxu0 %v4419
        %v4682 = vpop.f32.mrb[0].mxu0
        %v4683 = vadd.f32 0.0, %v4682
        %v4684 = vpop.f32.mrb[0].mxu0
        %4685 = vmatprep.mubr.f32.mxu0 %v4423
        %4686 = vmatmul.mubr.f32.gmra.mrb[0].mxu0 %v4422
        %v4687 = vpop.f32.mrb[0].mxu0
        %v4688 = vadd.f32 0.0, %v4687
        %v4689 = vpop.f32.mrb[0].mxu0
        %4690 = vmatprep.mubr.f32.mxu0 %v4426
        %4691 = vmatmul.mubr.f32.gmra.mrb[0].mxu0 %v4425
        %v4692 = vpop.f32.mrb[0].mxu0
        %v4693 = vadd.f32 0.0, %v4692
        %v4694 = vpop.f32.mrb[0].mxu0
        %4695 = vmatprep.mubr.f32.mxu0 %v4429
        %4696 = vmatmul.mubr.f32.gmra.mrb[0].mxu0 %v4428
        %v4697 = vpop.f32.mrb[0].mxu0
        %v4698 = vadd.f32 0.0, %v4697
        %v4699 = vpop.f32.mrb[0].mxu0
        %4700 = vmatprep.mubr.f32.mxu0 %v4432
        %4701 = vmatmul.mubr.f32.gmra.mrb[0].mxu0 %v4431
        %v4702 = vpop.f32.mrb[0].mxu0
        %v4703 = vadd.f32 0.0, %v4702
        %v4704 = vpop.f32.mrb[0].mxu0
        %4705 = vmatprep.mubr.f32.mxu0 %v4435
        %4706 = vmatmul.mubr.f32.gmra.mrb[0].mxu0 %v4434
        %v4707 = vpop.f32.mrb[0].mxu0
        %v4708 = vadd.f32 0.0, %v4707
        %v4709 = vpop.f32.mrb[0].mxu0
        %4710 = vdwg.mxu0
        %4711 = vmatprep.subr.mxu0 0.0
        %4712 = vmatpush1.msra.mxu0 %v4470
        %4713 = vmatprep.subr.mxu0 0.0
        %4714 = vmatpush1.msra.mxu0 %v4471
        %4715 = vmatprep.subr.mxu0 0.0
        %4716 = vmatpush1.msra.mxu0 %v4472
        %4717 = vmatprep.subr.mxu0 0.0
        %4718 = vmatpush1.msra.mxu0 %v4473
        %4719 = vmatprep.subr.mxu0 0.0
        %4720 = vmatpush1.msra.mxu0 %v4474
        %4721 = vmatprep.subr.mxu0 0.0
        %4722 = vmatpush1.msra.mxu0 %v4475
        %4723 = vmatprep.subr.mxu0 0.0
        %4724 = vmatpush1.msra.mxu0 %v4476
        %4725 = vmatprep.subr.mxu0 0.0
        %4726 = vmatpush1.msra.mxu0 %v4477
        %4727 = vmatprep.subr.mxu0 0.0
        %4728 = vmatpush1.msra.mxu0 %v4478
        %4729 = vmatprep.subr.mxu0 0.0
        %4730 = vmatpush1.msra.mxu0 %v4479
        %4731 = vmatprep.subr.mxu0 0.0
        %4732 = vmatpush1.msra.mxu0 %v4480
        %4733 = vmatprep.subr.mxu0 0.0
        %4734 = vmatpush1.msra.mxu0 %v4481
        %4735 = vmatprep.subr.mxu0 0.0
        %4736 = vmatpush1.msra.mxu0 %v4482
        %4737 = vmatprep.subr.mxu0 0.0
        %4738 = vmatpush1.msra.mxu0 %v4483
        %4739 = vmatprep.subr.mxu0 0.0
        %4740 = vmatpush1.msra.mxu0 %v4484
        %4741 = vmatprep.subr.mxu0 0.0
        %4742 = vmatpush1.msra.mxu0 %v4485
        %4743 = vmatprep.subr.mxu0 0.0
        %4744 = vmatpush1.msra.mxu0 0.0
        %4745 = vmatprep.subr.mxu0 0.0
        %4746 = vmatpush1.msra.mxu0 0.0
        %4747 = vmatprep.subr.mxu0 0.0
        %4748 = vmatpush1.msra.mxu0 0.0
        %4749 = vmatprep.subr.mxu0 0.0
        %4750 = vmatpush1.msra.mxu0 0.0
        %4751 = vmatprep.subr.mxu0 0.0
        %4752 = vmatpush1.msra.mxu0 0.0
        %4753 = vmatprep.subr.mxu0 0.0
        %4754 = vmatpush1.msra.mxu0 0.0
        %4755 = vmatprep.subr.mxu0 0.0
        %4756 = vmatpush1.msra.mxu0 0.0
        %4757 = vmatprep.subr.mxu0 0.0
        %4758 = vmatpush1.msra.mxu0 0.0
        %4759 = vmatprep.subr.mxu0 0.0
        %4760 = vmatpush1.msra.mxu0 0.0
        %4761 = vmatprep.subr.mxu0 0.0
        %4762 = vmatpush1.msra.mxu0 0.0
        %4763 = vmatprep.subr.mxu0 0.0
        %4764 = vmatpush1.msra.mxu0 0.0
        %4765 = vmatprep.subr.mxu0 0.0
        %4766 = vmatpush1.msra.mxu0 0.0
        %4767 = vmatprep.subr.mxu0 0.0
        %4768 = vmatpush1.msra.mxu0 0.0
        %4769 = vmatprep.subr.mxu0 0.0
        %4770 = vmatpush1.msra.mxu0 0.0
        %4771 = vmatprep.subr.mxu0 0.0
        %4772 = vmatpush1.msra.mxu0 0.0
        %4773 = vmatprep.subr.mxu0 0.0
        %4774 = vmatpush1.msra.mxu0 0.0
        %4775 = vmatprep.mubr.f32.mxu0 0.0
        %4776 = vmatmul.mubr.f32.gmra.mrb[0].mxu0 %v4343
        %v4777 = vpop.f32.mrb[0].mxu0
        %v4778 = vadd.f32 %v4553, %v4777
        %v4779 = vpop.f32.mrb[0].mxu0
        %4780 = vmatprep.mubr.f32.mxu0 0.0
        %4781 = vmatmul.mubr.f32.gmra.mrb[0].mxu0 %v4346
        %v4782 = vpop.f32.mrb[0].mxu0
        %v4783 = vadd.f32 %v4558, %v4782
        %v4784 = vpop.f32.mrb[0].mxu0
        %4785 = vmatprep.mubr.f32.mxu0 0.0
        %4786 = vmatmul.mubr.f32.gmra.mrb[0].mxu0 %v4349
        %v4787 = vpop.f32.mrb[0].mxu0
        %v4788 = vadd.f32 %v4563, %v4787
        %v4789 = vpop.f32.mrb[0].mxu0
        %4790 = vmatprep.mubr.f32.mxu0 0.0
        %4791 = vmatmul.mubr.f32.gmra.mrb[0].mxu0 %v4352
        %v4792 = vpop.f32.mrb[0].mxu0
        %v4793 = vadd.f32 %v4568, %v4792
        %v4794 = vpop.f32.mrb[0].mxu0
        %4795 = vmatprep.mubr.f32.mxu0 0.0
        %4796 = vmatmul.mubr.f32.gmra.mrb[0].mxu0 %v4355
        %v4797 = vpop.f32.mrb[0].mxu0
        %v4798 = vadd.f32 %v4573, %v4797
        %v4799 = vpop.f32.mrb[0].mxu0
        %4800 = vmatprep.mubr.f32.mxu0 0.0
        %4801 = vmatmul.mubr.f32.gmra.mrb[0].mxu0 %v4358
        %v4802 = vpop.f32.mrb[0].mxu0
        %v4803 = vadd.f32 %v4578, %v4802
        %v4804 = vpop.f32.mrb[0].mxu0
        %4805 = vmatprep.mubr.f32.mxu0 0.0
        %4806 = vmatmul.mubr.f32.gmra.mrb[0].mxu0 %v4361
        %v4807 = vpop.f32.mrb[0].mxu0
        %v4808 = vadd.f32 %v4583, %v4807
        %v4809 = vpop.f32.mrb[0].mxu0
        %4810 = vmatprep.mubr.f32.mxu0 0.0
        %4811 = vmatmul.mubr.f32.gmra.mrb[0].mxu0 %v4364
        %v4812 = vpop.f32.mrb[0].mxu0
        %v4813 = vadd.f32 %v4588, %v4812
        %v4814 = vpop.f32.mrb[0].mxu0
        %4815 = vmatprep.mubr.f32.mxu0 0.0
        %4816 = vmatmul.mubr.f32.gmra.mrb[0].mxu0 %v4367
        %v4817 = vpop.f32.mrb[0].mxu0
        %v4818 = vadd.f32 %v4593, %v4817
        %v4819 = vpop.f32.mrb[0].mxu0
        %4820 = vmatprep.mubr.f32.mxu0 0.0
        %4821 = vmatmul.mubr.f32.gmra.mrb[0].mxu0 %v4370
        %v4822 = vpop.f32.mrb[0].mxu0
        %v4823 = vadd.f32 %v4598, %v4822
        %v4824 = vpop.f32.mrb[0].mxu0
        %4825 = vmatprep.mubr.f32.mxu0 0.0
        %4826 = vmatmul.mubr.f32.gmra.mrb[0].mxu0 %v4373
        %v4827 = vpop.f32.mrb[0].mxu0
        %v4828 = vadd.f32 %v4603, %v4827
        %v4829 = vpop.f32.mrb[0].mxu0
        %4830 = vmatprep.mubr.f32.mxu0 0.0
        %4831 = vmatmul.mubr.f32.gmra.mrb[0].mxu0 %v4376
        %v4832 = vpop.f32.mrb[0].mxu0
        %v4833 = vadd.f32 %v4608, %v4832
        %v4834 = vpop.f32.mrb[0].mxu0
        %4835 = vmatprep.mubr.f32.mxu0 0.0
        %4836 = vmatmul.mubr.f32.gmra.mrb[0].mxu0 %v4379
        %v4837 = vpop.f32.mrb[0].mxu0
        %v4838 = vadd.f32 %v4613, %v4837
        %v4839 = vpop.f32.mrb[0].mxu0
        %4840 = vmatprep.mubr.f32.mxu0 0.0
        %4841 = vmatmul.mubr.f32.gmra.mrb[0].mxu0 %v4382
        %v4842 = vpop.f32.mrb[0].mxu0
        %v4843 = vadd.f32 %v4618, %v4842
        %v4844 = vpop.f32.mrb[0].mxu0
        %4845 = vmatprep.mubr.f32.mxu0 0.0
        %4846 = vmatmul.mubr.f32.gmra.mrb[0].mxu0 %v4385
        %v4847 = vpop.f32.mrb[0].mxu0
        %v4848 = vadd.f32 %v4623, %v4847
        %v4849 = vpop.f32.mrb[0].mxu0
        %4850 = vmatprep.mubr.f32.mxu0 0.0
        %4851 = vmatmul.mubr.f32.gmra.mrb[0].mxu0 %v4388
        %v4852 = vpop.f32.mrb[0].mxu0
        %v4853 = vadd.f32 %v4628, %v4852
        %v4854 = vpop.f32.mrb[0].mxu0
        %4855 = vmatprep.mubr.f32.mxu0 0.0
        %4856 = vmatmul.mubr.f32.gmra.mrb[0].mxu0 %v4391
        %v4857 = vpop.f32.mrb[0].mxu0
        %v4858 = vadd.f32 %v4633, %v4857
        %v4859 = vpop.f32.mrb[0].mxu0
        %4860 = vmatprep.mubr.f32.mxu0 0.0
        %4861 = vmatmul.mubr.f32.gmra.mrb[0].mxu0 %v4394
        %v4862 = vpop.f32.mrb[0].mxu0
        %v4863 = vadd.f32 %v4638, %v4862
        %v4864 = vpop.f32.mrb[0].mxu0
        %4865 = vmatprep.mubr.f32.mxu0 0.0
        %4866 = vmatmul.mubr.f32.gmra.mrb[0].mxu0 %v4397
        %v4867 = vpop.f32.mrb[0].mxu0
        %v4868 = vadd.f32 %v4643, %v4867
        %v4869 = vpop.f32.mrb[0].mxu0
        %4870 = vmatprep.mubr.f32.mxu0 0.0
        %4871 = vmatmul.mubr.f32.gmra.mrb[0].mxu0 %v4400
        %v4872 = vpop.f32.mrb[0].mxu0
        %v4873 = vadd.f32 %v4648, %v4872
        %v4874 = vpop.f32.mrb[0].mxu0
        %4875 = vmatprep.mubr.f32.mxu0 0.0
        %4876 = vmatmul.mubr.f32.gmra.mrb[0].mxu0 %v4403
        %v4877 = vpop.f32.mrb[0].mxu0
        %v4878 = vadd.f32 %v4653, %v4877
        %v4879 = vpop.f32.mrb[0].mxu0
        %4880 = vmatprep.mubr.f32.mxu0 0.0
        %4881 = vmatmul.mubr.f32.gmra.mrb[0].mxu0 %v4406
        %v4882 = vpop.f32.mrb[0].mxu0
        %v4883 = vadd.f32 %v4658, %v4882
        %v4884 = vpop.f32.mrb[0].mxu0
        %4885 = vmatprep.mubr.f32.mxu0 0.0
        %4886 = vmatmul.mubr.f32.gmra.mrb[0].mxu0 %v4409
        %v4887 = vpop.f32.mrb[0].mxu0
        %v4888 = vadd.f32 %v4663, %v4887
        %v4889 = vpop.f32.mrb[0].mxu0
        %4890 = vmatprep.mubr.f32.mxu0 0.0
        %4891 = vmatmul.mubr.f32.gmra.mrb[0].mxu0 %v4412
        %v4892 = vpop.f32.mrb[0].mxu0
        %v4893 = vadd.f32 %v4668, %v4892
        %v4894 = vpop.f32.mrb[0].mxu0
        %4895 = vmatprep.mubr.f32.mxu0 0.0
        %4896 = vmatmul.mubr.f32.gmra.mrb[0].mxu0 %v4415
        %v4897 = vpop.f32.mrb[0].mxu0
        %v4898 = vadd.f32 %v4673, %v4897
        %v4899 = vpop.f32.mrb[0].mxu0
        %4900 = vmatprep.mubr.f32.mxu0 0.0
        %4901 = vmatmul.mubr.f32.gmra.mrb[0].mxu0 %v4418
        %v4902 = vpop.f32.mrb[0].mxu0
        %v4903 = vadd.f32 %v4678, %v4902
        %v4904 = vpop.f32.mrb[0].mxu0
        %4905 = vmatprep.mubr.f32.mxu0 0.0
        %4906 = vmatmul.mubr.f32.gmra.mrb[0].mxu0 %v4421
        %v4907 = vpop.f32.mrb[0].mxu0
        %v4908 = vadd.f32 %v4683, %v4907
        %v4909 = vpop.f32.mrb[0].mxu0
        %4910 = vmatprep.mubr.f32.mxu0 0.0
        %4911 = vmatmul.mubr.f32.gmra.mrb[0].mxu0 %v4424
        %v4912 = vpop.f32.mrb[0].mxu0
        %v4913 = vadd.f32 %v4688, %v4912
        %v4914 = vpop.f32.mrb[0].mxu0
        %4915 = vmatprep.mubr.f32.mxu0 0.0
        %4916 = vmatmul.mubr.f32.gmra.mrb[0].mxu0 %v4427
        %v4917 = vpop.f32.mrb[0].mxu0
        %v4918 = vadd.f32 %v4693, %v4917
        %v4919 = vpop.f32.mrb[0].mxu0
        %4920 = vmatprep.mubr.f32.mxu0 0.0
        %4921 = vmatmul.mubr.f32.gmra.mrb[0].mxu0 %v4430
        %v4922 = vpop.f32.mrb[0].mxu0
        %v4923 = vadd.f32 %v4698, %v4922
        %v4924 = vpop.f32.mrb[0].mxu0
        %4925 = vmatprep.mubr.f32.mxu0 0.0
        %4926 = vmatmul.mubr.f32.gmra.mrb[0].mxu0 %v4433
        %v4927 = vpop.f32.mrb[0].mxu0
        %v4928 = vadd.f32 %v4703, %v4927
        %v4929 = vpop.f32.mrb[0].mxu0
        %4930 = vmatprep.mubr.f32.mxu0 0.0
        %4931 = vmatmul.mubr.f32.gmra.mrb[0].mxu0 %v4436
        %v4932 = vpop.f32.mrb[0].mxu0
        %v4933 = vadd.f32 %v4708, %v4932
        %v4934 = vpop.f32.mrb[0].mxu0
        %4935 = vdwg.mxu0
        %v4936 = vadd.f32 %v4183, %v4778
        %v4937 = vadd.f32 %v4188, %v4783
        %v4938 = vadd.f32 %v4193, %v4788
        %v4939 = vadd.f32 %v4198, %v4793
        %v4940 = vadd.f32 %v4203, %v4798
        %v4941 = vadd.f32 %v4208, %v4803
        %v4942 = vadd.f32 %v4213, %v4808
        %v4943 = vadd.f32 %v4218, %v4813
        %v4944 = vadd.f32 %v4223, %v4818
        %v4945 = vadd.f32 %v4228, %v4823
        %v4946 = vadd.f32 %v4233, %v4828
        %v4947 = vadd.f32 %v4238, %v4833
        %v4948 = vadd.f32 %v4243, %v4838
        %v4949 = vadd.f32 %v4248, %v4843
        %v4950 = vadd.f32 %v4253, %v4848
        %v4951 = vadd.f32 %v4258, %v4853
        %v4952 = vadd.f32 %v4263, %v4858
        %v4953 = vadd.f32 %v4268, %v4863
        %v4954 = vadd.f32 %v4273, %v4868
        %v4955 = vadd.f32 %v4278, %v4873
        %v4956 = vadd.f32 %v4283, %v4878
        %v4957 = vadd.f32 %v4288, %v4883
        %v4958 = vadd.f32 %v4293, %v4888
        %v4959 = vadd.f32 %v4298, %v4893
        %v4960 = vadd.f32 %v4303, %v4898
        %v4961 = vadd.f32 %v4308, %v4903
        %v4962 = vadd.f32 %v4313, %v4908
        %v4963 = vadd.f32 %v4318, %v4913
        %v4964 = vadd.f32 %v4323, %v4918
        %v4965 = vadd.f32 %v4328, %v4923
        %v4966 = vadd.f32 %v4333, %v4928
        %v4967 = vadd.f32 %v4338, %v4933
        %v4968 = vld [vmem:[%s5] sm:$0x1]
        %v4970 = vlaneseq
        %v4971 = vshrl.u32 %v4970, 7
        %v4972 = vsub.s32 0, %v4971
        %v4973 = vrot.slane %v4968, %v4972
        %v4975 = vadd.f32 %v4936, %v4973
        %v4976 = vadd.f32 %v4937, %v4973
        %v4977 = vadd.f32 %v4938, %v4973
        %v4978 = vadd.f32 %v4939, %v4973
        %v4979 = vadd.f32 %v4940, %v4973
        %v4980 = vadd.f32 %v4941, %v4973
        %v4981 = vadd.f32 %v4942, %v4973
        %v4982 = vadd.f32 %v4943, %v4973
        %v4983 = vadd.f32 %v4944, %v4973
        %v4984 = vadd.f32 %v4945, %v4973
        %v4985 = vadd.f32 %v4946, %v4973
        %v4986 = vadd.f32 %v4947, %v4973
        %v4987 = vadd.f32 %v4948, %v4973
        %v4988 = vadd.f32 %v4949, %v4973
        %v4989 = vadd.f32 %v4950, %v4973
        %v4990 = vadd.f32 %v4951, %v4973
        %v4991 = vadd.f32 %v4952, %v4973
        %v4992 = vadd.f32 %v4953, %v4973
        %v4993 = vadd.f32 %v4954, %v4973
        %v4994 = vadd.f32 %v4955, %v4973
        %v4995 = vadd.f32 %v4956, %v4973
        %v4996 = vadd.f32 %v4957, %v4973
        %v4997 = vadd.f32 %v4958, %v4973
        %v4998 = vadd.f32 %v4959, %v4973
        %v4999 = vadd.f32 %v4960, %v4973
        %v5000 = vadd.f32 %v4961, %v4973
        %v5001 = vadd.f32 %v4962, %v4973
        %v5002 = vadd.f32 %v4963, %v4973
        %v5003 = vadd.f32 %v4964, %v4973
        %v5004 = vadd.f32 %v4965, %v4973
        %v5005 = vadd.f32 %v4966, %v4973
        %v5006 = vadd.f32 %v4967, %v4973
        %v5007 = vmax.f32 %v4975, 0.0
        %v5008 = vmax.f32 %v4976, 0.0
        %v5009 = vmax.f32 %v4977, 0.0
        %v5010 = vmax.f32 %v4978, 0.0
        %v5011 = vmax.f32 %v4979, 0.0
        %v5012 = vmax.f32 %v4980, 0.0
        %v5013 = vmax.f32 %v4981, 0.0
        %v5014 = vmax.f32 %v4982, 0.0
        %v5015 = vmax.f32 %v4983, 0.0
        %v5016 = vmax.f32 %v4984, 0.0
        %v5017 = vmax.f32 %v4985, 0.0
        %v5018 = vmax.f32 %v4986, 0.0
        %v5019 = vmax.f32 %v4987, 0.0
        %v5020 = vmax.f32 %v4988, 0.0
        %v5021 = vmax.f32 %v4989, 0.0
        %v5022 = vmax.f32 %v4990, 0.0
        %v5023 = vmax.f32 %v4991, 0.0
        %v5024 = vmax.f32 %v4992, 0.0
        %v5025 = vmax.f32 %v4993, 0.0
        %v5026 = vmax.f32 %v4994, 0.0
        %v5027 = vmax.f32 %v4995, 0.0
        %v5028 = vmax.f32 %v4996, 0.0
        %v5029 = vmax.f32 %v4997, 0.0
        %v5030 = vmax.f32 %v4998, 0.0
        %v5031 = vmax.f32 %v4999, 0.0
        %v5032 = vmax.f32 %v5000, 0.0
        %v5033 = vmax.f32 %v5001, 0.0
        %v5034 = vmax.f32 %v5002, 0.0
        %v5035 = vmax.f32 %v5003, 0.0
        %v5036 = vmax.f32 %v5004, 0.0
        %v5037 = vmax.f32 %v5005, 0.0
        %v5038 = vmax.f32 %v5006, 0.0
        %5039 = vst [vmem:[%s766 + $0x1] sm:$0xff] %v5007
        %5040 = vst [vmem:[%s766 + $0x9] sm:$0xff] %v5008
        %5041 = vst [vmem:[%s766 + $0x19] sm:$0xff] %v5009
        %5042 = vst [vmem:[%s766 + $0x21] sm:$0xff] %v5010
        %5043 = vst [vmem:[%s766 + $0x31] sm:$0xff] %v5011
        %5044 = vst [vmem:[%s766 + $0x39] sm:$0xff] %v5012
        %5045 = vst [vmem:[%s766 + $0x49] sm:$0xff] %v5013
        %5046 = vst [vmem:[%s766 + $0x51] sm:$0xff] %v5014
        %5047 = vst [vmem:[%s766 + $0x61] sm:$0xff] %v5015
        %5048 = vst [vmem:[%s766 + $0x69] sm:$0xff] %v5016
        %5049 = vst [vmem:[%s766 + $0x79] sm:$0xff] %v5017
        %5050 = vst [vmem:[%s766 + $0x81] sm:$0xff] %v5018
        %5051 = vst [vmem:[%s766 + $0x91] sm:$0xff] %v5019
        %5052 = vst [vmem:[%s766 + $0x99] sm:$0xff] %v5020
        %5053 = vst [vmem:[%s766 + $0xa9] sm:$0xff] %v5021
        %5054 = vst [vmem:[%s766 + $0xb1] sm:$0xff] %v5022
        %5055 = vst [vmem:[%s766 + $0xc1] sm:$0xff] %v5023
        %5056 = vst [vmem:[%s766 + $0xc9] sm:$0xff] %v5024
        %5057 = vst [vmem:[%s766 + $0xd9] sm:$0xff] %v5025
        %5058 = vst [vmem:[%s766 + $0xe1] sm:$0xff] %v5026
        %5059 = vst [vmem:[%s766 + $0xf1] sm:$0xff] %v5027
        %5060 = vst [vmem:[%s766 + $0xf9] sm:$0xff] %v5028
        %5061 = vst [vmem:[%s766 + $0x109] sm:$0xff] %v5029
        %5062 = vst [vmem:[%s766 + $0x111] sm:$0xff] %v5030
        %5063 = vst [vmem:[%s766 + $0x121] sm:$0xff] %v5031
        %5064 = vst [vmem:[%s766 + $0x129] sm:$0xff] %v5032
        %5065 = vst [vmem:[%s766 + $0x139] sm:$0xff] %v5033
        %5066 = vst [vmem:[%s766 + $0x141] sm:$0xff] %v5034
        %5067 = vst [vmem:[%s766 + $0x151] sm:$0xff] %v5035
        %5068 = vst [vmem:[%s766 + $0x159] sm:$0xff] %v5036
        %5069 = vst [vmem:[%s766 + $0x169] sm:$0xff] %v5037
        %5070 = vst [vmem:[%s766 + $0x171] sm:$0xff] %v5038
        %v5071 = vld [vmem:[#allocation2] sm:$0xff]
        %v5072 = vld [vmem:[#allocation2 + $0x8] sm:$0xff]
        %v5073 = vld [vmem:[#allocation2 + $0x18] sm:$0xff]
        %v5074 = vld [vmem:[#allocation2 + $0x20] sm:$0xff]
        %v5075 = vld [vmem:[#allocation2 + $0x30] sm:$0xff]
        %v5076 = vld [vmem:[#allocation2 + $0x38] sm:$0xff]
        %v5077 = vld [vmem:[#allocation2 + $0x48] sm:$0xff]
        %v5078 = vld [vmem:[#allocation2 + $0x50] sm:$0xff]
        %v5079 = vld [vmem:[#allocation2 + $0x60] sm:$0xff]
        %v5080 = vld [vmem:[#allocation2 + $0x68] sm:$0xff]
        %v5081 = vld [vmem:[#allocation2 + $0x78] sm:$0xff]
        %v5082 = vld [vmem:[#allocation2 + $0x80] sm:$0xff]
        %v5083 = vld [vmem:[#allocation2 + $0x90] sm:$0xff]
        %v5084 = vld [vmem:[#allocation2 + $0x98] sm:$0xff]
        %v5085 = vld [vmem:[#allocation2 + $0xa8] sm:$0xff]
        %v5086 = vld [vmem:[#allocation2 + $0xb0] sm:$0xff]
        %v5087 = vld [vmem:[#allocation2 + $0xc0] sm:$0xff]
        %v5088 = vld [vmem:[#allocation2 + $0xc8] sm:$0xff]
        %v5089 = vld [vmem:[#allocation2 + $0xd8] sm:$0xff]
        %v5090 = vld [vmem:[#allocation2 + $0xe0] sm:$0xff]
        %v5091 = vld [vmem:[#allocation2 + $0xf0] sm:$0xff]
        %v5092 = vld [vmem:[#allocation2 + $0xf8] sm:$0xff]
        %v5093 = vld [vmem:[#allocation2 + $0x108] sm:$0xff]
        %v5094 = vld [vmem:[#allocation2 + $0x110] sm:$0xff]
        %v5095 = vld [vmem:[#allocation2 + $0x120] sm:$0xff]
        %v5096 = vld [vmem:[#allocation2 + $0x128] sm:$0xff]
        %v5097 = vld [vmem:[#allocation2 + $0x138] sm:$0xff]
        %v5098 = vld [vmem:[#allocation2 + $0x140] sm:$0xff]
        %v5099 = vld [vmem:[#allocation2 + $0x150] sm:$0xff]
        %v5100 = vld [vmem:[#allocation2 + $0x158] sm:$0xff]
        %v5101 = vld [vmem:[#allocation2 + $0x168] sm:$0xff]
        %v5102 = vld [vmem:[#allocation2 + $0x170] sm:$0xff]
        %v5103 = vld [vmem:[#allocation2 + $0x180] sm:$0xff]
        %v5104 = vld [vmem:[#allocation2 + $0x188] sm:$0xff]
        %v5105 = vld [vmem:[#allocation2 + $0x198] sm:$0xff]
        %v5106 = vld [vmem:[#allocation2 + $0x1a0] sm:$0xff]
        %5107 = vst [vmem:[#allocation3] sm:$0xff] %v5071
        %5108 = vst [vmem:[#allocation3 + $0x18] sm:$0xff] %v5072
        %5109 = vst [vmem:[#allocation3 + $0x30] sm:$0xff] %v5073
        %5110 = vst [vmem:[#allocation3 + $0x48] sm:$0xff] %v5074
        %5111 = vst [vmem:[#allocation3 + $0x60] sm:$0xff] %v5075
        %5112 = vst [vmem:[#allocation3 + $0x78] sm:$0xff] %v5076
        %5113 = vst [vmem:[#allocation3 + $0x90] sm:$0xff] %v5077
        %5114 = vst [vmem:[#allocation3 + $0xa8] sm:$0xff] %v5078
        %5115 = vst [vmem:[#allocation3 + $0xc0] sm:$0xff] %v5079
        %5116 = vst [vmem:[#allocation3 + $0xd8] sm:$0xff] %v5080
        %5117 = vst [vmem:[#allocation3 + $0xf0] sm:$0xff] %v5081
        %5118 = vst [vmem:[#allocation3 + $0x108] sm:$0xff] %v5082
        %5119 = vst [vmem:[#allocation3 + $0x120] sm:$0xff] %v5083
        %5120 = vst [vmem:[#allocation3 + $0x138] sm:$0xff] %v5084
        %5121 = vst [vmem:[#allocation3 + $0x150] sm:$0xff] %v5085
        %5122 = vst [vmem:[#allocation3 + $0x168] sm:$0xff] %v5086
        %5123 = vst [vmem:[#allocation3 + $0x180] sm:$0xff] %v5087
        %5124 = vst [vmem:[#allocation3 + $0x198] sm:$0xff] %v5088
        %5125 = vst [vmem:[#allocation3 + $0x1b0] sm:$0xff] %v5089
        %5126 = vst [vmem:[#allocation3 + $0x1c8] sm:$0xff] %v5090
        %5127 = vst [vmem:[#allocation3 + $0x1e0] sm:$0xff] %v5091
        %5128 = vst [vmem:[#allocation3 + $0x1f8] sm:$0xff] %v5092
        %5129 = vst [vmem:[#allocation3 + $0x210] sm:$0xff] %v5093
        %5130 = vst [vmem:[#allocation3 + $0x228] sm:$0xff] %v5094
        %5131 = vst [vmem:[#allocation3 + $0x240] sm:$0xff] %v5095
        %5132 = vst [vmem:[#allocation3 + $0x258] sm:$0xff] %v5096
        %5133 = vst [vmem:[#allocation3 + $0x270] sm:$0xff] %v5097
        %5134 = vst [vmem:[#allocation3 + $0x288] sm:$0xff] %v5098
        %5135 = vst [vmem:[#allocation3 + $0x2a0] sm:$0xff] %v5099
        %5136 = vst [vmem:[#allocation3 + $0x2b8] sm:$0xff] %v5100
        %5137 = vst [vmem:[#allocation3 + $0x2d0] sm:$0xff] %v5101
        %5138 = vst [vmem:[#allocation3 + $0x2e8] sm:$0xff] %v5102
        %5139 = vst [vmem:[#allocation3 + $0x300] sm:$0xff] %v5103
        %5140 = vst [vmem:[#allocation3 + $0x318] sm:$0xff] %v5104
        %5141 = vst [vmem:[#allocation3 + $0x330] sm:$0xff] %v5105
        %5142 = vst [vmem:[#allocation3 + $0x348] sm:$0xff] %v5106
        %v5143 = vld [vmem:[#allocation2 + $0x1] sm:$0xff]
        %v5144 = vld [vmem:[#allocation2 + $0x9] sm:$0xff]
        %v5145 = vld [vmem:[#allocation2 + $0x19] sm:$0xff]
        %v5146 = vld [vmem:[#allocation2 + $0x21] sm:$0xff]
        %v5147 = vld [vmem:[#allocation2 + $0x31] sm:$0xff]
        %v5148 = vld [vmem:[#allocation2 + $0x39] sm:$0xff]
        %v5149 = vld [vmem:[#allocation2 + $0x49] sm:$0xff]
        %v5150 = vld [vmem:[#allocation2 + $0x51] sm:$0xff]
        %v5151 = vld [vmem:[#allocation2 + $0x61] sm:$0xff]
        %v5152 = vld [vmem:[#allocation2 + $0x69] sm:$0xff]
        %v5153 = vld [vmem:[#allocation2 + $0x79] sm:$0xff]
        %v5154 = vld [vmem:[#allocation2 + $0x81] sm:$0xff]
        %v5155 = vld [vmem:[#allocation2 + $0x91] sm:$0xff]
        %v5156 = vld [vmem:[#allocation2 + $0x99] sm:$0xff]
        %v5157 = vld [vmem:[#allocation2 + $0xa9] sm:$0xff]
        %v5158 = vld [vmem:[#allocation2 + $0xb1] sm:$0xff]
        %v5159 = vld [vmem:[#allocation2 + $0xc1] sm:$0xff]
        %v5160 = vld [vmem:[#allocation2 + $0xc9] sm:$0xff]
        %v5161 = vld [vmem:[#allocation2 + $0xd9] sm:$0xff]
        %v5162 = vld [vmem:[#allocation2 + $0xe1] sm:$0xff]
        %v5163 = vld [vmem:[#allocation2 + $0xf1] sm:$0xff]
        %v5164 = vld [vmem:[#allocation2 + $0xf9] sm:$0xff]
        %v5165 = vld [vmem:[#allocation2 + $0x109] sm:$0xff]
        %v5166 = vld [vmem:[#allocation2 + $0x111] sm:$0xff]
        %v5167 = vld [vmem:[#allocation2 + $0x121] sm:$0xff]
        %v5168 = vld [vmem:[#allocation2 + $0x129] sm:$0xff]
        %v5169 = vld [vmem:[#allocation2 + $0x139] sm:$0xff]
        %v5170 = vld [vmem:[#allocation2 + $0x141] sm:$0xff]
        %v5171 = vld [vmem:[#allocation2 + $0x151] sm:$0xff]
        %v5172 = vld [vmem:[#allocation2 + $0x159] sm:$0xff]
        %v5173 = vld [vmem:[#allocation2 + $0x169] sm:$0xff]
        %v5174 = vld [vmem:[#allocation2 + $0x171] sm:$0xff]
        %v5175 = vld [vmem:[#allocation2 + $0x181] sm:$0xff]
        %v5176 = vld [vmem:[#allocation2 + $0x189] sm:$0xff]
        %v5177 = vld [vmem:[#allocation2 + $0x199] sm:$0xff]
        %v5178 = vld [vmem:[#allocation2 + $0x1a1] sm:$0xff]
        %5179 = vst [vmem:[#allocation3 + $0x8] sm:$0xff] %v5143
        %5180 = vst [vmem:[#allocation3 + $0x20] sm:$0xff] %v5144
        %5181 = vst [vmem:[#allocation3 + $0x38] sm:$0xff] %v5145
        %5182 = vst [vmem:[#allocation3 + $0x50] sm:$0xff] %v5146
        %5183 = vst [vmem:[#allocation3 + $0x68] sm:$0xff] %v5147
        %5184 = vst [vmem:[#allocation3 + $0x80] sm:$0xff] %v5148
        %5185 = vst [vmem:[#allocation3 + $0x98] sm:$0xff] %v5149
        %5186 = vst [vmem:[#allocation3 + $0xb0] sm:$0xff] %v5150
        %5187 = vst [vmem:[#allocation3 + $0xc8] sm:$0xff] %v5151
        %5188 = vst [vmem:[#allocation3 + $0xe0] sm:$0xff] %v5152
        %5189 = vst [vmem:[#allocation3 + $0xf8] sm:$0xff] %v5153
        %5190 = vst [vmem:[#allocation3 + $0x110] sm:$0xff] %v5154
        %5191 = vst [vmem:[#allocation3 + $0x128] sm:$0xff] %v5155
        %5192 = vst [vmem:[#allocation3 + $0x140] sm:$0xff] %v5156
        %5193 = vst [vmem:[#allocation3 + $0x158] sm:$0xff] %v5157
        %5194 = vst [vmem:[#allocation3 + $0x170] sm:$0xff] %v5158
        %5195 = vst [vmem:[#allocation3 + $0x188] sm:$0xff] %v5159
        %5196 = vst [vmem:[#allocation3 + $0x1a0] sm:$0xff] %v5160
        %5197 = vst [vmem:[#allocation3 + $0x1b8] sm:$0xff] %v5161
        %5198 = vst [vmem:[#allocation3 + $0x1d0] sm:$0xff] %v5162
        %5199 = vst [vmem:[#allocation3 + $0x1e8] sm:$0xff] %v5163
        %5200 = vst [vmem:[#allocation3 + $0x200] sm:$0xff] %v5164
        %5201 = vst [vmem:[#allocation3 + $0x218] sm:$0xff] %v5165
        %5202 = vst [vmem:[#allocation3 + $0x230] sm:$0xff] %v5166
        %5203 = vst [vmem:[#allocation3 + $0x248] sm:$0xff] %v5167
        %5204 = vst [vmem:[#allocation3 + $0x260] sm:$0xff] %v5168
        %5205 = vst [vmem:[#allocation3 + $0x278] sm:$0xff] %v5169
        %5206 = vst [vmem:[#allocation3 + $0x290] sm:$0xff] %v5170
        %5207 = vst [vmem:[#allocation3 + $0x2a8] sm:$0xff] %v5171
        %5208 = vst [vmem:[#allocation3 + $0x2c0] sm:$0xff] %v5172
        %5209 = vst [vmem:[#allocation3 + $0x2d8] sm:$0xff] %v5173
        %5210 = vst [vmem:[#allocation3 + $0x2f0] sm:$0xff] %v5174
        %5211 = vst [vmem:[#allocation3 + $0x308] sm:$0xff] %v5175
        %5212 = vst [vmem:[#allocation3 + $0x320] sm:$0xff] %v5176
        %5213 = vst [vmem:[#allocation3 + $0x338] sm:$0xff] %v5177
        %5214 = vst [vmem:[#allocation3 + $0x350] sm:$0xff] %v5178
        %v5215 = vld [vmem:[#allocation2 + $0x2] sm:$0xff]
        %v5216 = vld [vmem:[#allocation2 + $0xa] sm:$0xff]
        %v5217 = vld [vmem:[#allocation2 + $0x1a] sm:$0xff]
        %v5218 = vld [vmem:[#allocation2 + $0x22] sm:$0xff]
        %v5219 = vld [vmem:[#allocation2 + $0x32] sm:$0xff]
        %v5220 = vld [vmem:[#allocation2 + $0x3a] sm:$0xff]
        %v5221 = vld [vmem:[#allocation2 + $0x4a] sm:$0xff]
        %v5222 = vld [vmem:[#allocation2 + $0x52] sm:$0xff]
        %v5223 = vld [vmem:[#allocation2 + $0x62] sm:$0xff]
        %v5224 = vld [vmem:[#allocation2 + $0x6a] sm:$0xff]
        %v5225 = vld [vmem:[#allocation2 + $0x7a] sm:$0xff]
        %v5226 = vld [vmem:[#allocation2 + $0x82] sm:$0xff]
        %v5227 = vld [vmem:[#allocation2 + $0x92] sm:$0xff]
        %v5228 = vld [vmem:[#allocation2 + $0x9a] sm:$0xff]
        %v5229 = vld [vmem:[#allocation2 + $0xaa] sm:$0xff]
        %v5230 = vld [vmem:[#allocation2 + $0xb2] sm:$0xff]
        %v5231 = vld [vmem:[#allocation2 + $0xc2] sm:$0xff]
        %v5232 = vld [vmem:[#allocation2 + $0xca] sm:$0xff]
        %v5233 = vld [vmem:[#allocation2 + $0xda] sm:$0xff]
        %v5234 = vld [vmem:[#allocation2 + $0xe2] sm:$0xff]
        %v5235 = vld [vmem:[#allocation2 + $0xf2] sm:$0xff]
        %v5236 = vld [vmem:[#allocation2 + $0xfa] sm:$0xff]
        %v5237 = vld [vmem:[#allocation2 + $0x10a] sm:$0xff]
        %v5238 = vld [vmem:[#allocation2 + $0x112] sm:$0xff]
        %v5239 = vld [vmem:[#allocation2 + $0x122] sm:$0xff]
        %v5240 = vld [vmem:[#allocation2 + $0x12a] sm:$0xff]
        %v5241 = vld [vmem:[#allocation2 + $0x13a] sm:$0xff]
        %v5242 = vld [vmem:[#allocation2 + $0x142] sm:$0xff]
        %v5243 = vld [vmem:[#allocation2 + $0x152] sm:$0xff]
        %v5244 = vld [vmem:[#allocation2 + $0x15a] sm:$0xff]
        %v5245 = vld [vmem:[#allocation2 + $0x16a] sm:$0xff]
        %v5246 = vld [vmem:[#allocation2 + $0x172] sm:$0xff]
        %v5247 = vld [vmem:[#allocation2 + $0x182] sm:$0xff]
        %v5248 = vld [vmem:[#allocation2 + $0x18a] sm:$0xff]
        %v5249 = vld [vmem:[#allocation2 + $0x19a] sm:$0xff]
        %v5250 = vld [vmem:[#allocation2 + $0x1a2] sm:$0xff]
        %5251 = vst [vmem:[#allocation3 + $0x10] sm:$0xff] %v5215
        %5252 = vst [vmem:[#allocation3 + $0x28] sm:$0xff] %v5216
        %5253 = vst [vmem:[#allocation3 + $0x40] sm:$0xff] %v5217
        %5254 = vst [vmem:[#allocation3 + $0x58] sm:$0xff] %v5218
        %5255 = vst [vmem:[#allocation3 + $0x70] sm:$0xff] %v5219
        %5256 = vst [vmem:[#allocation3 + $0x88] sm:$0xff] %v5220
        %5257 = vst [vmem:[#allocation3 + $0xa0] sm:$0xff] %v5221
        %5258 = vst [vmem:[#allocation3 + $0xb8] sm:$0xff] %v5222
        %5259 = vst [vmem:[#allocation3 + $0xd0] sm:$0xff] %v5223
        %5260 = vst [vmem:[#allocation3 + $0xe8] sm:$0xff] %v5224
        %5261 = vst [vmem:[#allocation3 + $0x100] sm:$0xff] %v5225
        %5262 = vst [vmem:[#allocation3 + $0x118] sm:$0xff] %v5226
        %5263 = vst [vmem:[#allocation3 + $0x130] sm:$0xff] %v5227
        %5264 = vst [vmem:[#allocation3 + $0x148] sm:$0xff] %v5228
        %5265 = vst [vmem:[#allocation3 + $0x160] sm:$0xff] %v5229
        %5266 = vst [vmem:[#allocation3 + $0x178] sm:$0xff] %v5230
        %5267 = vst [vmem:[#allocation3 + $0x190] sm:$0xff] %v5231
        %5268 = vst [vmem:[#allocation3 + $0x1a8] sm:$0xff] %v5232
        %5269 = vst [vmem:[#allocation3 + $0x1c0] sm:$0xff] %v5233
        %5270 = vst [vmem:[#allocation3 + $0x1d8] sm:$0xff] %v5234
        %5271 = vst [vmem:[#allocation3 + $0x1f0] sm:$0xff] %v5235
        %5272 = vst [vmem:[#allocation3 + $0x208] sm:$0xff] %v5236
        %5273 = vst [vmem:[#allocation3 + $0x220] sm:$0xff] %v5237
        %5274 = vst [vmem:[#allocation3 + $0x238] sm:$0xff] %v5238
        %5275 = vst [vmem:[#allocation3 + $0x250] sm:$0xff] %v5239
        %5276 = vst [vmem:[#allocation3 + $0x268] sm:$0xff] %v5240
        %5277 = vst [vmem:[#allocation3 + $0x280] sm:$0xff] %v5241
        %5278 = vst [vmem:[#allocation3 + $0x298] sm:$0xff] %v5242
        %5279 = vst [vmem:[#allocation3 + $0x2b0] sm:$0xff] %v5243
        %5280 = vst [vmem:[#allocation3 + $0x2c8] sm:$0xff] %v5244
        %5281 = vst [vmem:[#allocation3 + $0x2e0] sm:$0xff] %v5245
        %5282 = vst [vmem:[#allocation3 + $0x2f8] sm:$0xff] %v5246
        %5283 = vst [vmem:[#allocation3 + $0x310] sm:$0xff] %v5247
        %5284 = vst [vmem:[#allocation3 + $0x328] sm:$0xff] %v5248
        %5285 = vst [vmem:[#allocation3 + $0x340] sm:$0xff] %v5249
        %5286 = vst [vmem:[#allocation3 + $0x358] sm:$0xff] %v5250
        %v5287 = vld [vmem:[#allocation3] sm:$0xff]
        %v5288 = vld [vmem:[#allocation3 + $0x8] sm:$0xff]
        %v5289 = vld [vmem:[#allocation3 + $0x10] sm:$0xff]
        %v5290 = vld [vmem:[#allocation3 + $0x18] sm:$0xff]
        %v5291 = vld [vmem:[#allocation3 + $0x20] sm:$0xff]
        %v5292 = vld [vmem:[#allocation3 + $0x28] sm:$0xff]
        %v5293 = vld [vmem:[#allocation3 + $0x30] sm:$0xff]
        %v5294 = vld [vmem:[#allocation3 + $0x38] sm:$0xff]
        %v5295 = vld [vmem:[#allocation3 + $0x40] sm:$0xff]
        %v5296 = vld [vmem:[#allocation3 + $0x48] sm:$0xff]
        %v5297 = vld [vmem:[#allocation3 + $0x50] sm:$0xff]
        %v5298 = vld [vmem:[#allocation3 + $0x58] sm:$0xff]
        %v5299 = vld [vmem:[#allocation3 + $0x60] sm:$0xff]
        %v5300 = vld [vmem:[#allocation3 + $0x68] sm:$0xff]
        %v5301 = vld [vmem:[#allocation3 + $0x70] sm:$0xff]
        %v5302 = vld [vmem:[#allocation3 + $0x78] sm:$0xff]
        %v5303 = vld [vmem:[#allocation3 + $0x80] sm:$0xff]
        %v5304 = vld [vmem:[#allocation3 + $0x88] sm:$0xff]
        %v5305 = vld [vmem:[#allocation3 + $0x90] sm:$0xff]
        %v5306 = vld [vmem:[#allocation3 + $0x98] sm:$0xff]
        %v5307 = vld [vmem:[#allocation3 + $0xa0] sm:$0xff]
        %v5308 = vld [vmem:[#allocation3 + $0xa8] sm:$0xff]
        %v5309 = vld [vmem:[#allocation3 + $0xb0] sm:$0xff]
        %v5310 = vld [vmem:[#allocation3 + $0xb8] sm:$0xff]
        %v5311 = vld [vmem:[#allocation3 + $0xc0] sm:$0xff]
        %v5312 = vld [vmem:[#allocation3 + $0xc8] sm:$0xff]
        %v5313 = vld [vmem:[#allocation3 + $0xd0] sm:$0xff]
        %v5314 = vld [vmem:[#allocation3 + $0xd8] sm:$0xff]
        %v5315 = vld [vmem:[#allocation3 + $0xe0] sm:$0xff]
        %v5316 = vld [vmem:[#allocation3 + $0xe8] sm:$0xff]
        %v5317 = vld [vmem:[#allocation3 + $0xf0] sm:$0xff]
        %v5318 = vld [vmem:[#allocation3 + $0xf8] sm:$0xff]
        %v5319 = vld [vmem:[#allocation3 + $0x100] sm:$0xff]
        %v5320 = vld [vmem:[#allocation3 + $0x108] sm:$0xff]
        %v5321 = vld [vmem:[#allocation3 + $0x110] sm:$0xff]
        %v5322 = vld [vmem:[#allocation3 + $0x118] sm:$0xff]
        %v5323 = vld [vmem:[#allocation3 + $0x120] sm:$0xff]
        %v5324 = vld [vmem:[#allocation3 + $0x128] sm:$0xff]
        %v5325 = vld [vmem:[#allocation3 + $0x130] sm:$0xff]
        %v5326 = vld [vmem:[#allocation3 + $0x138] sm:$0xff]
        %v5327 = vld [vmem:[#allocation3 + $0x140] sm:$0xff]
        %v5328 = vld [vmem:[#allocation3 + $0x148] sm:$0xff]
        %v5329 = vld [vmem:[#allocation3 + $0x150] sm:$0xff]
        %v5330 = vld [vmem:[#allocation3 + $0x158] sm:$0xff]
        %v5331 = vld [vmem:[#allocation3 + $0x160] sm:$0xff]
        %v5332 = vld [vmem:[#allocation3 + $0x168] sm:$0xff]
        %v5333 = vld [vmem:[#allocation3 + $0x170] sm:$0xff]
        %v5334 = vld [vmem:[#allocation3 + $0x178] sm:$0xff]
        %v5335 = vld [vmem:[#allocation3 + $0x180] sm:$0xff]
        %v5336 = vld [vmem:[#allocation3 + $0x188] sm:$0xff]
        %v5337 = vld [vmem:[#allocation3 + $0x190] sm:$0xff]
        %v5338 = vld [vmem:[#allocation3 + $0x198] sm:$0xff]
        %v5339 = vld [vmem:[#allocation3 + $0x1a0] sm:$0xff]
        %v5340 = vld [vmem:[#allocation3 + $0x1a8] sm:$0xff]
        %v5341 = vld [vmem:[#allocation3 + $0x1b0] sm:$0xff]
        %v5342 = vld [vmem:[#allocation3 + $0x1b8] sm:$0xff]
        %v5343 = vld [vmem:[#allocation3 + $0x1c0] sm:$0xff]
        %v5344 = vld [vmem:[#allocation3 + $0x1c8] sm:$0xff]
        %v5345 = vld [vmem:[#allocation3 + $0x1d0] sm:$0xff]
        %v5346 = vld [vmem:[#allocation3 + $0x1d8] sm:$0xff]
        %v5347 = vld [vmem:[#allocation3 + $0x1e0] sm:$0xff]
        %v5348 = vld [vmem:[#allocation3 + $0x1e8] sm:$0xff]
        %v5349 = vld [vmem:[#allocation3 + $0x1f0] sm:$0xff]
        %v5350 = vld [vmem:[#allocation3 + $0x1f8] sm:$0xff]
        %v5351 = vld [vmem:[#allocation3 + $0x200] sm:$0xff]
        %v5352 = vld [vmem:[#allocation3 + $0x208] sm:$0xff]
        %v5353 = vld [vmem:[#allocation3 + $0x210] sm:$0xff]
        %v5354 = vld [vmem:[#allocation3 + $0x218] sm:$0xff]
        %v5355 = vld [vmem:[#allocation3 + $0x220] sm:$0xff]
        %v5356 = vld [vmem:[#allocation3 + $0x228] sm:$0xff]
        %v5357 = vld [vmem:[#allocation3 + $0x230] sm:$0xff]
        %v5358 = vld [vmem:[#allocation3 + $0x238] sm:$0xff]
        %v5359 = vld [vmem:[#allocation3 + $0x240] sm:$0xff]
        %v5360 = vld [vmem:[#allocation3 + $0x248] sm:$0xff]
        %v5361 = vld [vmem:[#allocation3 + $0x250] sm:$0xff]
        %v5362 = vld [vmem:[#allocation3 + $0x258] sm:$0xff]
        %v5363 = vld [vmem:[#allocation3 + $0x260] sm:$0xff]
        %v5364 = vld [vmem:[#allocation3 + $0x268] sm:$0xff]
        %v5365 = vld [vmem:[#allocation3 + $0x270] sm:$0xff]
        %v5366 = vld [vmem:[#allocation3 + $0x278] sm:$0xff]
        %v5367 = vld [vmem:[#allocation3 + $0x280] sm:$0xff]
        %v5368 = vld [vmem:[#allocation3 + $0x288] sm:$0xff]
        %v5369 = vld [vmem:[#allocation3 + $0x290] sm:$0xff]
        %v5370 = vld [vmem:[#allocation3 + $0x298] sm:$0xff]
        %v5371 = vld [vmem:[#allocation3 + $0x2a0] sm:$0xff]
        %v5372 = vld [vmem:[#allocation3 + $0x2a8] sm:$0xff]
        %v5373 = vld [vmem:[#allocation3 + $0x2b0] sm:$0xff]
        %v5374 = vld [vmem:[#allocation3 + $0x2b8] sm:$0xff]
        %v5375 = vld [vmem:[#allocation3 + $0x2c0] sm:$0xff]
        %v5376 = vld [vmem:[#allocation3 + $0x2c8] sm:$0xff]
        %v5377 = vld [vmem:[#allocation3 + $0x2d0] sm:$0xff]
        %v5378 = vld [vmem:[#allocation3 + $0x2d8] sm:$0xff]
        %v5379 = vld [vmem:[#allocation3 + $0x2e0] sm:$0xff]
        %v5380 = vld [vmem:[#allocation3 + $0x2e8] sm:$0xff]
        %v5381 = vld [vmem:[#allocation3 + $0x2f0] sm:$0xff]
        %v5382 = vld [vmem:[#allocation3 + $0x2f8] sm:$0xff]
        %v5383 = vld [vmem:[#allocation8] sm:$0xff]
        %v5384 = vld [vmem:[#allocation8 + $0x8] sm:$0xff]
        %v5385 = vld [vmem:[#allocation8 + $0x10] sm:$0xff]
        %v5386 = vld [vmem:[#allocation8 + $0x18] sm:$0xff]
        %v5387 = vld [vmem:[#allocation8 + $0x20] sm:$0xff]
        %v5388 = vld [vmem:[#allocation8 + $0x28] sm:$0xff]
        %v5389 = vld [vmem:[#allocation8 + $0x30] sm:$0xff]
        %v5390 = vld [vmem:[#allocation8 + $0x38] sm:$0xff]
        %v5391 = vld [vmem:[#allocation8 + $0x40] sm:$0xff]
        %v5392 = vld [vmem:[#allocation8 + $0x48] sm:$0xff]
        %v5393 = vld [vmem:[#allocation8 + $0x50] sm:$0xff]
        %v5394 = vld [vmem:[#allocation8 + $0x58] sm:$0xff]
        %v5395 = vld [vmem:[#allocation8 + $0x60] sm:$0xff]
        %v5396 = vld [vmem:[#allocation8 + $0x68] sm:$0xff]
        %v5397 = vld [vmem:[#allocation8 + $0x70] sm:$0xff]
        %v5398 = vld [vmem:[#allocation8 + $0x78] sm:$0xff]
        %v5399 = vld [vmem:[#allocation8 + $0x80] sm:$0xff]
        %v5400 = vld [vmem:[#allocation8 + $0x88] sm:$0xff]
        %v5401 = vld [vmem:[#allocation8 + $0x90] sm:$0xff]
        %v5402 = vld [vmem:[#allocation8 + $0x98] sm:$0xff]
        %v5403 = vld [vmem:[#allocation8 + $0xa0] sm:$0xff]
        %v5404 = vld [vmem:[#allocation8 + $0xa8] sm:$0xff]
        %v5405 = vld [vmem:[#allocation8 + $0xb0] sm:$0xff]
        %v5406 = vld [vmem:[#allocation8 + $0xb8] sm:$0xff]
        %v5407 = vld [vmem:[#allocation8 + $0xc0] sm:$0xff]
        %v5408 = vld [vmem:[#allocation8 + $0xc8] sm:$0xff]
        %v5409 = vld [vmem:[#allocation8 + $0xd0] sm:$0xff]
        %v5410 = vld [vmem:[#allocation8 + $0xd8] sm:$0xff]
        %v5411 = vld [vmem:[#allocation8 + $0xe0] sm:$0xff]
        %v5412 = vld [vmem:[#allocation8 + $0xe8] sm:$0xff]
        %v5413 = vld [vmem:[#allocation8 + $0xf0] sm:$0xff]
        %v5414 = vld [vmem:[#allocation8 + $0xf8] sm:$0xff]
        %v5415 = vld [vmem:[#allocation8 + $0x100] sm:$0xff]
        %v5416 = vld [vmem:[#allocation8 + $0x108] sm:$0xff]
        %v5417 = vld [vmem:[#allocation8 + $0x110] sm:$0xff]
        %v5418 = vld [vmem:[#allocation8 + $0x118] sm:$0xff]
        %v5419 = vld [vmem:[#allocation8 + $0x120] sm:$0xff]
        %v5420 = vld [vmem:[#allocation8 + $0x128] sm:$0xff]
        %v5421 = vld [vmem:[#allocation8 + $0x130] sm:$0xff]
        %v5422 = vld [vmem:[#allocation8 + $0x138] sm:$0xff]
        %v5423 = vld [vmem:[#allocation8 + $0x140] sm:$0xff]
        %v5424 = vld [vmem:[#allocation8 + $0x148] sm:$0xff]
        %v5425 = vld [vmem:[#allocation8 + $0x150] sm:$0xff]
        %v5426 = vld [vmem:[#allocation8 + $0x158] sm:$0xff]
        %v5427 = vld [vmem:[#allocation8 + $0x160] sm:$0xff]
        %v5428 = vld [vmem:[#allocation8 + $0x168] sm:$0xff]
        %v5429 = vld [vmem:[#allocation8 + $0x170] sm:$0xff]
        %v5430 = vld [vmem:[#allocation8 + $0x178] sm:$0xff]
        %v5431 = vld [vmem:[%s1159] sm:$0xff]
        %v5432 = vld [vmem:[%s1159 + $0x8] sm:$0xff]
        %v5433 = vld [vmem:[%s1159 + $0x10] sm:$0xff]
        %v5434 = vld [vmem:[%s1159 + $0x18] sm:$0xff]
        %v5435 = vld [vmem:[%s1159 + $0x20] sm:$0xff]
        %v5436 = vld [vmem:[%s1159 + $0x28] sm:$0xff]
        %v5437 = vld [vmem:[%s1159 + $0x30] sm:$0xff]
        %v5438 = vld [vmem:[%s1159 + $0x38] sm:$0xff]
        %v5439 = vld [vmem:[%s1159 + $0x40] sm:$0xff]
        %v5440 = vld [vmem:[%s1159 + $0x48] sm:$0xff]
        %v5441 = vld [vmem:[%s1159 + $0x50] sm:$0xff]
        %v5442 = vld [vmem:[%s1159 + $0x58] sm:$0xff]
        %v5443 = vld [vmem:[%s1159 + $0x60] sm:$0xff]
        %v5444 = vld [vmem:[%s1159 + $0x68] sm:$0xff]
        %v5445 = vld [vmem:[%s1159 + $0x70] sm:$0xff]
        %v5446 = vld [vmem:[%s1159 + $0x78] sm:$0xff]
        %v5447 = vld [vmem:[%s1159 + $0x80] sm:$0xff]
        %v5448 = vld [vmem:[%s1159 + $0x88] sm:$0xff]
        %v5449 = vld [vmem:[%s1159 + $0x90] sm:$0xff]
        %v5450 = vld [vmem:[%s1159 + $0x98] sm:$0xff]
        %v5451 = vld [vmem:[%s1159 + $0xa0] sm:$0xff]
        %v5452 = vld [vmem:[%s1159 + $0xa8] sm:$0xff]
        %v5453 = vld [vmem:[%s1159 + $0xb0] sm:$0xff]
        %v5454 = vld [vmem:[%s1159 + $0xb8] sm:$0xff]
        %v5455 = vld [vmem:[%s1159 + $0xc0] sm:$0xff]
        %v5456 = vld [vmem:[%s1159 + $0xc8] sm:$0xff]
        %v5457 = vld [vmem:[%s1159 + $0xd0] sm:$0xff]
        %v5458 = vld [vmem:[%s1159 + $0xd8] sm:$0xff]
        %v5459 = vld [vmem:[%s1159 + $0xe0] sm:$0xff]
        %v5460 = vld [vmem:[%s1159 + $0xe8] sm:$0xff]
        %v5461 = vld [vmem:[%s1159 + $0xf0] sm:$0xff]
        %v5462 = vld [vmem:[%s1159 + $0xf8] sm:$0xff]
        %v5463 = vld [vmem:[%s1159 + $0x100] sm:$0xff]
        %v5464 = vld [vmem:[%s1159 + $0x108] sm:$0xff]
        %v5465 = vld [vmem:[%s1159 + $0x110] sm:$0xff]
        %v5466 = vld [vmem:[%s1159 + $0x118] sm:$0xff]
        %v5467 = vld [vmem:[%s1159 + $0x120] sm:$0xff]
        %v5468 = vld [vmem:[%s1159 + $0x128] sm:$0xff]
        %v5469 = vld [vmem:[%s1159 + $0x130] sm:$0xff]
        %v5470 = vld [vmem:[%s1159 + $0x138] sm:$0xff]
        %v5471 = vld [vmem:[%s1159 + $0x140] sm:$0xff]
        %v5472 = vld [vmem:[%s1159 + $0x148] sm:$0xff]
        %v5473 = vld [vmem:[%s1159 + $0x150] sm:$0xff]
        %v5474 = vld [vmem:[%s1159 + $0x158] sm:$0xff]
        %v5475 = vld [vmem:[%s1159 + $0x160] sm:$0xff]
        %v5476 = vld [vmem:[%s1159 + $0x168] sm:$0xff]
        %v5477 = vld [vmem:[%s1159 + $0x170] sm:$0xff]
        %v5478 = vld [vmem:[%s1159 + $0x178] sm:$0xff]
        %v5479 = vld [vmem:[%s1159 + $0x180] sm:$0xff]
        %v5480 = vld [vmem:[%s1159 + $0x188] sm:$0xff]
        %v5481 = vld [vmem:[%s1159 + $0x190] sm:$0xff]
        %v5482 = vld [vmem:[%s1159 + $0x198] sm:$0xff]
        %v5483 = vld [vmem:[%s1159 + $0x1a0] sm:$0xff]
        %v5484 = vld [vmem:[%s1159 + $0x1a8] sm:$0xff]
        %v5485 = vld [vmem:[%s1159 + $0x1b0] sm:$0xff]
        %v5486 = vld [vmem:[%s1159 + $0x1b8] sm:$0xff]
        %v5487 = vld [vmem:[%s1159 + $0x1c0] sm:$0xff]
        %v5488 = vld [vmem:[%s1159 + $0x1c8] sm:$0xff]
        %v5489 = vld [vmem:[%s1159 + $0x1d0] sm:$0xff]
        %v5490 = vld [vmem:[%s1159 + $0x1d8] sm:$0xff]
        %v5491 = vld [vmem:[%s1159 + $0x1e0] sm:$0xff]
        %v5492 = vld [vmem:[%s1159 + $0x1e8] sm:$0xff]
        %v5493 = vld [vmem:[%s1159 + $0x1f0] sm:$0xff]
        %v5494 = vld [vmem:[%s1159 + $0x1f8] sm:$0xff]
        %v5495 = vld [vmem:[%s1159 + $0x200] sm:$0xff]
        %v5496 = vld [vmem:[%s1159 + $0x208] sm:$0xff]
        %v5497 = vld [vmem:[%s1159 + $0x210] sm:$0xff]
        %v5498 = vld [vmem:[%s1159 + $0x218] sm:$0xff]
        %v5499 = vld [vmem:[%s1159 + $0x220] sm:$0xff]
        %v5500 = vld [vmem:[%s1159 + $0x228] sm:$0xff]
        %v5501 = vld [vmem:[%s1159 + $0x230] sm:$0xff]
        %v5502 = vld [vmem:[%s1159 + $0x238] sm:$0xff]
        %v5503 = vld [vmem:[%s1159 + $0x240] sm:$0xff]
        %v5504 = vld [vmem:[%s1159 + $0x248] sm:$0xff]
        %v5505 = vld [vmem:[%s1159 + $0x250] sm:$0xff]
        %v5506 = vld [vmem:[%s1159 + $0x258] sm:$0xff]
        %v5507 = vld [vmem:[%s1159 + $0x260] sm:$0xff]
        %v5508 = vld [vmem:[%s1159 + $0x268] sm:$0xff]
        %v5509 = vld [vmem:[%s1159 + $0x270] sm:$0xff]
        %v5510 = vld [vmem:[%s1159 + $0x278] sm:$0xff]
        %v5511 = vld [vmem:[%s1159 + $0x280] sm:$0xff]
        %v5512 = vld [vmem:[%s1159 + $0x288] sm:$0xff]
        %v5513 = vld [vmem:[%s1159 + $0x290] sm:$0xff]
        %v5514 = vld [vmem:[%s1159 + $0x298] sm:$0xff]
        %v5515 = vld [vmem:[%s1159 + $0x2a0] sm:$0xff]
        %v5516 = vld [vmem:[%s1159 + $0x2a8] sm:$0xff]
        %v5517 = vld [vmem:[%s1159 + $0x2b0] sm:$0xff]
        %v5518 = vld [vmem:[%s1159 + $0x2b8] sm:$0xff]
        %v5519 = vld [vmem:[%s1159 + $0x2c0] sm:$0xff]
        %v5520 = vld [vmem:[%s1159 + $0x2c8] sm:$0xff]
        %v5521 = vld [vmem:[%s1159 + $0x2d0] sm:$0xff]
        %v5522 = vld [vmem:[%s1159 + $0x2d8] sm:$0xff]
        %v5523 = vld [vmem:[%s1159 + $0x2e0] sm:$0xff]
        %v5524 = vld [vmem:[%s1159 + $0x2e8] sm:$0xff]
        %v5525 = vld [vmem:[%s1159 + $0x2f0] sm:$0xff]
        %v5526 = vld [vmem:[%s1159 + $0x2f8] sm:$0xff]
        %s5527 = scalar_lea.vmem [#allocation8], 384
        %v5528 = vld [vmem:[%s5527] sm:$0xff]
        %v5529 = vld [vmem:[%s5527 + $0x8] sm:$0xff]
        %v5530 = vld [vmem:[%s5527 + $0x10] sm:$0xff]
        %v5531 = vld [vmem:[%s5527 + $0x18] sm:$0xff]
        %v5532 = vld [vmem:[%s5527 + $0x20] sm:$0xff]
        %v5533 = vld [vmem:[%s5527 + $0x28] sm:$0xff]
        %v5534 = vld [vmem:[%s5527 + $0x30] sm:$0xff]
        %v5535 = vld [vmem:[%s5527 + $0x38] sm:$0xff]
        %v5536 = vld [vmem:[%s5527 + $0x40] sm:$0xff]
        %v5537 = vld [vmem:[%s5527 + $0x48] sm:$0xff]
        %v5538 = vld [vmem:[%s5527 + $0x50] sm:$0xff]
        %v5539 = vld [vmem:[%s5527 + $0x58] sm:$0xff]
        %v5540 = vld [vmem:[%s5527 + $0x60] sm:$0xff]
        %v5541 = vld [vmem:[%s5527 + $0x68] sm:$0xff]
        %v5542 = vld [vmem:[%s5527 + $0x70] sm:$0xff]
        %v5543 = vld [vmem:[%s5527 + $0x78] sm:$0xff]
        %v5544 = vld [vmem:[%s5527 + $0x80] sm:$0xff]
        %v5545 = vld [vmem:[%s5527 + $0x88] sm:$0xff]
        %v5546 = vld [vmem:[%s5527 + $0x90] sm:$0xff]
        %v5547 = vld [vmem:[%s5527 + $0x98] sm:$0xff]
        %v5548 = vld [vmem:[%s5527 + $0xa0] sm:$0xff]
        %v5549 = vld [vmem:[%s5527 + $0xa8] sm:$0xff]
        %v5550 = vld [vmem:[%s5527 + $0xb0] sm:$0xff]
        %v5551 = vld [vmem:[%s5527 + $0xb8] sm:$0xff]
        %v5552 = vld [vmem:[%s5527 + $0xc0] sm:$0xff]
        %v5553 = vld [vmem:[%s5527 + $0xc8] sm:$0xff]
        %v5554 = vld [vmem:[%s5527 + $0xd0] sm:$0xff]
        %v5555 = vld [vmem:[%s5527 + $0xd8] sm:$0xff]
        %v5556 = vld [vmem:[%s5527 + $0xe0] sm:$0xff]
        %v5557 = vld [vmem:[%s5527 + $0xe8] sm:$0xff]
        %v5558 = vld [vmem:[%s5527 + $0xf0] sm:$0xff]
        %v5559 = vld [vmem:[%s5527 + $0xf8] sm:$0xff]
        %v5560 = vld [vmem:[%s5527 + $0x100] sm:$0xff]
        %v5561 = vld [vmem:[%s5527 + $0x108] sm:$0xff]
        %v5562 = vld [vmem:[%s5527 + $0x110] sm:$0xff]
        %v5563 = vld [vmem:[%s5527 + $0x118] sm:$0xff]
        %v5564 = vld [vmem:[%s5527 + $0x120] sm:$0xff]
        %v5565 = vld [vmem:[%s5527 + $0x128] sm:$0xff]
        %v5566 = vld [vmem:[%s5527 + $0x130] sm:$0xff]
        %v5567 = vld [vmem:[%s5527 + $0x138] sm:$0xff]
        %v5568 = vld [vmem:[%s5527 + $0x140] sm:$0xff]
        %v5569 = vld [vmem:[%s5527 + $0x148] sm:$0xff]
        %v5570 = vld [vmem:[%s5527 + $0x150] sm:$0xff]
        %v5571 = vld [vmem:[%s5527 + $0x158] sm:$0xff]
        %v5572 = vld [vmem:[%s5527 + $0x160] sm:$0xff]
        %v5573 = vld [vmem:[%s5527 + $0x168] sm:$0xff]
        %v5574 = vld [vmem:[%s5527 + $0x170] sm:$0xff]
        %v5575 = vld [vmem:[%s5527 + $0x178] sm:$0xff]
        %5576 = vmatprep.subr.mxu0 0.0
        %5577 = vmatpush1.msra.mxu0 %v5528
        %5578 = vmatprep.subr.mxu0 0.0
        %5579 = vmatpush1.msra.mxu0 %v5529
        %5580 = vmatprep.subr.mxu0 0.0
        %5581 = vmatpush1.msra.mxu0 %v5530
        %5582 = vmatprep.subr.mxu0 0.0
        %5583 = vmatpush1.msra.mxu0 %v5531
        %5584 = vmatprep.subr.mxu0 0.0
        %5585 = vmatpush1.msra.mxu0 %v5532
        %5586 = vmatprep.subr.mxu0 0.0
        %5587 = vmatpush1.msra.mxu0 %v5533
        %5588 = vmatprep.subr.mxu0 0.0
        %5589 = vmatpush1.msra.mxu0 %v5534
        %5590 = vmatprep.subr.mxu0 0.0
        %5591 = vmatpush1.msra.mxu0 %v5535
        %5592 = vmatprep.subr.mxu0 0.0
        %5593 = vmatpush1.msra.mxu0 %v5536
        %5594 = vmatprep.subr.mxu0 0.0
        %5595 = vmatpush1.msra.mxu0 %v5537
        %5596 = vmatprep.subr.mxu0 0.0
        %5597 = vmatpush1.msra.mxu0 %v5538
        %5598 = vmatprep.subr.mxu0 0.0
        %5599 = vmatpush1.msra.mxu0 %v5539
        %5600 = vmatprep.subr.mxu0 0.0
        %5601 = vmatpush1.msra.mxu0 %v5540
        %5602 = vmatprep.subr.mxu0 0.0
        %5603 = vmatpush1.msra.mxu0 %v5541
        %5604 = vmatprep.subr.mxu0 0.0
        %5605 = vmatpush1.msra.mxu0 %v5542
        %5606 = vmatprep.subr.mxu0 0.0
        %5607 = vmatpush1.msra.mxu0 %v5543
        %5608 = vmatprep.subr.mxu0 0.0
        %5609 = vmatpush1.msra.mxu0 %v5544
        %5610 = vmatprep.subr.mxu0 0.0
        %5611 = vmatpush1.msra.mxu0 %v5545
        %5612 = vmatprep.subr.mxu0 0.0
        %5613 = vmatpush1.msra.mxu0 %v5546
        %5614 = vmatprep.subr.mxu0 0.0
        %5615 = vmatpush1.msra.mxu0 %v5547
        %5616 = vmatprep.subr.mxu0 0.0
        %5617 = vmatpush1.msra.mxu0 %v5548
        %5618 = vmatprep.subr.mxu0 0.0
        %5619 = vmatpush1.msra.mxu0 %v5549
        %5620 = vmatprep.subr.mxu0 0.0
        %5621 = vmatpush1.msra.mxu0 %v5550
        %5622 = vmatprep.subr.mxu0 0.0
        %5623 = vmatpush1.msra.mxu0 %v5551
        %5624 = vmatprep.subr.mxu0 0.0
        %5625 = vmatpush1.msra.mxu0 %v5552
        %5626 = vmatprep.subr.mxu0 0.0
        %5627 = vmatpush1.msra.mxu0 %v5553
        %5628 = vmatprep.subr.mxu0 0.0
        %5629 = vmatpush1.msra.mxu0 %v5554
        %5630 = vmatprep.subr.mxu0 0.0
        %5631 = vmatpush1.msra.mxu0 %v5555
        %5632 = vmatprep.subr.mxu0 0.0
        %5633 = vmatpush1.msra.mxu0 %v5556
        %5634 = vmatprep.subr.mxu0 0.0
        %5635 = vmatpush1.msra.mxu0 %v5557
        %5636 = vmatprep.subr.mxu0 0.0
        %5637 = vmatpush1.msra.mxu0 %v5558
        %5638 = vmatprep.subr.mxu0 0.0
        %5639 = vmatpush1.msra.mxu0 %v5559
        %5640 = vmatprep.mubr.f32.mxu0 %v5432
        %5641 = vmatmul.mubr.f32.gmra.mrb[0].mxu0 %v5431
        %v5642 = vpop.f32.mrb[0].mxu0
        %v5643 = vadd.f32 0.0, %v5642
        %v5644 = vpop.f32.mrb[0].mxu0
        %5645 = vmatprep.mubr.f32.mxu0 %v5435
        %5646 = vmatmul.mubr.f32.gmra.mrb[0].mxu0 %v5434
        %v5647 = vpop.f32.mrb[0].mxu0
        %v5648 = vadd.f32 0.0, %v5647
        %v5649 = vpop.f32.mrb[0].mxu0
        %5650 = vmatprep.mubr.f32.mxu0 %v5438
        %5651 = vmatmul.mubr.f32.gmra.mrb[0].mxu0 %v5437
        %v5652 = vpop.f32.mrb[0].mxu0
        %v5653 = vadd.f32 0.0, %v5652
        %v5654 = vpop.f32.mrb[0].mxu0
        %5655 = vmatprep.mubr.f32.mxu0 %v5441
        %5656 = vmatmul.mubr.f32.gmra.mrb[0].mxu0 %v5440
        %v5657 = vpop.f32.mrb[0].mxu0
        %v5658 = vadd.f32 0.0, %v5657
        %v5659 = vpop.f32.mrb[0].mxu0
        %5660 = vmatprep.mubr.f32.mxu0 %v5444
        %5661 = vmatmul.mubr.f32.gmra.mrb[0].mxu0 %v5443
        %v5662 = vpop.f32.mrb[0].mxu0
        %v5663 = vadd.f32 0.0, %v5662
        %v5664 = vpop.f32.mrb[0].mxu0
        %5665 = vmatprep.mubr.f32.mxu0 %v5447
        %5666 = vmatmul.mubr.f32.gmra.mrb[0].mxu0 %v5446
        %v5667 = vpop.f32.mrb[0].mxu0
        %v5668 = vadd.f32 0.0, %v5667
        %v5669 = vpop.f32.mrb[0].mxu0
        %5670 = vmatprep.mubr.f32.mxu0 %v5450
        %5671 = vmatmul.mubr.f32.gmra.mrb[0].mxu0 %v5449
        %v5672 = vpop.f32.mrb[0].mxu0
        %v5673 = vadd.f32 0.0, %v5672
        %v5674 = vpop.f32.mrb[0].mxu0
        %5675 = vmatprep.mubr.f32.mxu0 %v5453
        %5676 = vmatmul.mubr.f32.gmra.mrb[0].mxu0 %v5452
        %v5677 = vpop.f32.mrb[0].mxu0
        %v5678 = vadd.f32 0.0, %v5677
        %v5679 = vpop.f32.mrb[0].mxu0
        %5680 = vmatprep.mubr.f32.mxu0 %v5456
        %5681 = vmatmul.mubr.f32.gmra.mrb[0].mxu0 %v5455
        %v5682 = vpop.f32.mrb[0].mxu0
        %v5683 = vadd.f32 0.0, %v5682
        %v5684 = vpop.f32.mrb[0].mxu0
        %5685 = vmatprep.mubr.f32.mxu0 %v5459
        %5686 = vmatmul.mubr.f32.gmra.mrb[0].mxu0 %v5458
        %v5687 = vpop.f32.mrb[0].mxu0
        %v5688 = vadd.f32 0.0, %v5687
        %v5689 = vpop.f32.mrb[0].mxu0
        %5690 = vmatprep.mubr.f32.mxu0 %v5462
        %5691 = vmatmul.mubr.f32.gmra.mrb[0].mxu0 %v5461
        %v5692 = vpop.f32.mrb[0].mxu0
        %v5693 = vadd.f32 0.0, %v5692
        %v5694 = vpop.f32.mrb[0].mxu0
        %5695 = vmatprep.mubr.f32.mxu0 %v5465
        %5696 = vmatmul.mubr.f32.gmra.mrb[0].mxu0 %v5464
        %v5697 = vpop.f32.mrb[0].mxu0
        %v5698 = vadd.f32 0.0, %v5697
        %v5699 = vpop.f32.mrb[0].mxu0
        %5700 = vmatprep.mubr.f32.mxu0 %v5468
        %5701 = vmatmul.mubr.f32.gmra.mrb[0].mxu0 %v5467
        %v5702 = vpop.f32.mrb[0].mxu0
        %v5703 = vadd.f32 0.0, %v5702
        %v5704 = vpop.f32.mrb[0].mxu0
        %5705 = vmatprep.mubr.f32.mxu0 %v5471
        %5706 = vmatmul.mubr.f32.gmra.mrb[0].mxu0 %v5470
        %v5707 = vpop.f32.mrb[0].mxu0
        %v5708 = vadd.f32 0.0, %v5707
        %v5709 = vpop.f32.mrb[0].mxu0
        %5710 = vmatprep.mubr.f32.mxu0 %v5474
        %5711 = vmatmul.mubr.f32.gmra.mrb[0].mxu0 %v5473
        %v5712 = vpop.f32.mrb[0].mxu0
        %v5713 = vadd.f32 0.0, %v5712
        %v5714 = vpop.f32.mrb[0].mxu0
        %5715 = vmatprep.mubr.f32.mxu0 %v5477
        %5716 = vmatmul.mubr.f32.gmra.mrb[0].mxu0 %v5476
        %v5717 = vpop.f32.mrb[0].mxu0
        %v5718 = vadd.f32 0.0, %v5717
        %v5719 = vpop.f32.mrb[0].mxu0
        %5720 = vmatprep.mubr.f32.mxu0 %v5480
        %5721 = vmatmul.mubr.f32.gmra.mrb[0].mxu0 %v5479
        %v5722 = vpop.f32.mrb[0].mxu0
        %v5723 = vadd.f32 0.0, %v5722
        %v5724 = vpop.f32.mrb[0].mxu0
        %5725 = vmatprep.mubr.f32.mxu0 %v5483
        %5726 = vmatmul.mubr.f32.gmra.mrb[0].mxu0 %v5482
        %v5727 = vpop.f32.mrb[0].mxu0
        %v5728 = vadd.f32 0.0, %v5727
        %v5729 = vpop.f32.mrb[0].mxu0
        %5730 = vmatprep.mubr.f32.mxu0 %v5486
        %5731 = vmatmul.mubr.f32.gmra.mrb[0].mxu0 %v5485
        %v5732 = vpop.f32.mrb[0].mxu0
        %v5733 = vadd.f32 0.0, %v5732
        %v5734 = vpop.f32.mrb[0].mxu0
        %5735 = vmatprep.mubr.f32.mxu0 %v5489
        %5736 = vmatmul.mubr.f32.gmra.mrb[0].mxu0 %v5488
        %v5737 = vpop.f32.mrb[0].mxu0
        %v5738 = vadd.f32 0.0, %v5737
        %v5739 = vpop.f32.mrb[0].mxu0
        %5740 = vmatprep.mubr.f32.mxu0 %v5492
        %5741 = vmatmul.mubr.f32.gmra.mrb[0].mxu0 %v5491
        %v5742 = vpop.f32.mrb[0].mxu0
        %v5743 = vadd.f32 0.0, %v5742
        %v5744 = vpop.f32.mrb[0].mxu0
        %5745 = vmatprep.mubr.f32.mxu0 %v5495
        %5746 = vmatmul.mubr.f32.gmra.mrb[0].mxu0 %v5494
        %v5747 = vpop.f32.mrb[0].mxu0
        %v5748 = vadd.f32 0.0, %v5747
        %v5749 = vpop.f32.mrb[0].mxu0
        %5750 = vmatprep.mubr.f32.mxu0 %v5498
        %5751 = vmatmul.mubr.f32.gmra.mrb[0].mxu0 %v5497
        %v5752 = vpop.f32.mrb[0].mxu0
        %v5753 = vadd.f32 0.0, %v5752
        %v5754 = vpop.f32.mrb[0].mxu0
        %5755 = vmatprep.mubr.f32.mxu0 %v5501
        %5756 = vmatmul.mubr.f32.gmra.mrb[0].mxu0 %v5500
        %v5757 = vpop.f32.mrb[0].mxu0
        %v5758 = vadd.f32 0.0, %v5757
        %v5759 = vpop.f32.mrb[0].mxu0
        %5760 = vmatprep.mubr.f32.mxu0 %v5504
        %5761 = vmatmul.mubr.f32.gmra.mrb[0].mxu0 %v5503
        %v5762 = vpop.f32.mrb[0].mxu0
        %v5763 = vadd.f32 0.0, %v5762
        %v5764 = vpop.f32.mrb[0].mxu0
        %5765 = vmatprep.mubr.f32.mxu0 %v5507
        %5766 = vmatmul.mubr.f32.gmra.mrb[0].mxu0 %v5506
        %v5767 = vpop.f32.mrb[0].mxu0
        %v5768 = vadd.f32 0.0, %v5767
        %v5769 = vpop.f32.mrb[0].mxu0
        %5770 = vmatprep.mubr.f32.mxu0 %v5510
        %5771 = vmatmul.mubr.f32.gmra.mrb[0].mxu0 %v5509
        %v5772 = vpop.f32.mrb[0].mxu0
        %v5773 = vadd.f32 0.0, %v5772
        %v5774 = vpop.f32.mrb[0].mxu0
        %5775 = vmatprep.mubr.f32.mxu0 %v5513
        %5776 = vmatmul.mubr.f32.gmra.mrb[0].mxu0 %v5512
        %v5777 = vpop.f32.mrb[0].mxu0
        %v5778 = vadd.f32 0.0, %v5777
        %v5779 = vpop.f32.mrb[0].mxu0
        %5780 = vmatprep.mubr.f32.mxu0 %v5516
        %5781 = vmatmul.mubr.f32.gmra.mrb[0].mxu0 %v5515
        %v5782 = vpop.f32.mrb[0].mxu0
        %v5783 = vadd.f32 0.0, %v5782
        %v5784 = vpop.f32.mrb[0].mxu0
        %5785 = vmatprep.mubr.f32.mxu0 %v5519
        %5786 = vmatmul.mubr.f32.gmra.mrb[0].mxu0 %v5518
        %v5787 = vpop.f32.mrb[0].mxu0
        %v5788 = vadd.f32 0.0, %v5787
        %v5789 = vpop.f32.mrb[0].mxu0
        %5790 = vmatprep.mubr.f32.mxu0 %v5522
        %5791 = vmatmul.mubr.f32.gmra.mrb[0].mxu0 %v5521
        %v5792 = vpop.f32.mrb[0].mxu0
        %v5793 = vadd.f32 0.0, %v5792
        %v5794 = vpop.f32.mrb[0].mxu0
        %5795 = vmatprep.mubr.f32.mxu0 %v5525
        %5796 = vmatmul.mubr.f32.gmra.mrb[0].mxu0 %v5524
        %v5797 = vpop.f32.mrb[0].mxu0
        %v5798 = vadd.f32 0.0, %v5797
        %v5799 = vpop.f32.mrb[0].mxu0
        %5800 = vdwg.mxu0
        %5801 = vmatprep.subr.mxu0 0.0
        %5802 = vmatpush1.msra.mxu0 %v5560
        %5803 = vmatprep.subr.mxu0 0.0
        %5804 = vmatpush1.msra.mxu0 %v5561
        %5805 = vmatprep.subr.mxu0 0.0
        %5806 = vmatpush1.msra.mxu0 %v5562
        %5807 = vmatprep.subr.mxu0 0.0
        %5808 = vmatpush1.msra.mxu0 %v5563
        %5809 = vmatprep.subr.mxu0 0.0
        %5810 = vmatpush1.msra.mxu0 %v5564
        %5811 = vmatprep.subr.mxu0 0.0
        %5812 = vmatpush1.msra.mxu0 %v5565
        %5813 = vmatprep.subr.mxu0 0.0
        %5814 = vmatpush1.msra.mxu0 %v5566
        %5815 = vmatprep.subr.mxu0 0.0
        %5816 = vmatpush1.msra.mxu0 %v5567
        %5817 = vmatprep.subr.mxu0 0.0
        %5818 = vmatpush1.msra.mxu0 %v5568
        %5819 = vmatprep.subr.mxu0 0.0
        %5820 = vmatpush1.msra.mxu0 %v5569
        %5821 = vmatprep.subr.mxu0 0.0
        %5822 = vmatpush1.msra.mxu0 %v5570
        %5823 = vmatprep.subr.mxu0 0.0
        %5824 = vmatpush1.msra.mxu0 %v5571
        %5825 = vmatprep.subr.mxu0 0.0
        %5826 = vmatpush1.msra.mxu0 %v5572
        %5827 = vmatprep.subr.mxu0 0.0
        %5828 = vmatpush1.msra.mxu0 %v5573
        %5829 = vmatprep.subr.mxu0 0.0
        %5830 = vmatpush1.msra.mxu0 %v5574
        %5831 = vmatprep.subr.mxu0 0.0
        %5832 = vmatpush1.msra.mxu0 %v5575
        %5833 = vmatprep.subr.mxu0 0.0
        %5834 = vmatpush1.msra.mxu0 0.0
        %5835 = vmatprep.subr.mxu0 0.0
        %5836 = vmatpush1.msra.mxu0 0.0
        %5837 = vmatprep.subr.mxu0 0.0
        %5838 = vmatpush1.msra.mxu0 0.0
        %5839 = vmatprep.subr.mxu0 0.0
        %5840 = vmatpush1.msra.mxu0 0.0
        %5841 = vmatprep.subr.mxu0 0.0
        %5842 = vmatpush1.msra.mxu0 0.0
        %5843 = vmatprep.subr.mxu0 0.0
        %5844 = vmatpush1.msra.mxu0 0.0
        %5845 = vmatprep.subr.mxu0 0.0
        %5846 = vmatpush1.msra.mxu0 0.0
        %5847 = vmatprep.subr.mxu0 0.0
        %5848 = vmatpush1.msra.mxu0 0.0
        %5849 = vmatprep.subr.mxu0 0.0
        %5850 = vmatpush1.msra.mxu0 0.0
        %5851 = vmatprep.subr.mxu0 0.0
        %5852 = vmatpush1.msra.mxu0 0.0
        %5853 = vmatprep.subr.mxu0 0.0
        %5854 = vmatpush1.msra.mxu0 0.0
        %5855 = vmatprep.subr.mxu0 0.0
        %5856 = vmatpush1.msra.mxu0 0.0
        %5857 = vmatprep.subr.mxu0 0.0
        %5858 = vmatpush1.msra.mxu0 0.0
        %5859 = vmatprep.subr.mxu0 0.0
        %5860 = vmatpush1.msra.mxu0 0.0
        %5861 = vmatprep.subr.mxu0 0.0
        %5862 = vmatpush1.msra.mxu0 0.0
        %5863 = vmatprep.subr.mxu0 0.0
        %5864 = vmatpush1.msra.mxu0 0.0
        %5865 = vmatprep.mubr.f32.mxu0 0.0
        %5866 = vmatmul.mubr.f32.gmra.mrb[0].mxu0 %v5433
        %v5867 = vpop.f32.mrb[0].mxu0
        %v5868 = vadd.f32 %v5643, %v5867
        %v5869 = vpop.f32.mrb[0].mxu0
        %5870 = vmatprep.mubr.f32.mxu0 0.0
        %5871 = vmatmul.mubr.f32.gmra.mrb[0].mxu0 %v5436
        %v5872 = vpop.f32.mrb[0].mxu0
        %v5873 = vadd.f32 %v5648, %v5872
        %v5874 = vpop.f32.mrb[0].mxu0
        %5875 = vmatprep.mubr.f32.mxu0 0.0
        %5876 = vmatmul.mubr.f32.gmra.mrb[0].mxu0 %v5439
        %v5877 = vpop.f32.mrb[0].mxu0
        %v5878 = vadd.f32 %v5653, %v5877
        %v5879 = vpop.f32.mrb[0].mxu0
        %5880 = vmatprep.mubr.f32.mxu0 0.0
        %5881 = vmatmul.mubr.f32.gmra.mrb[0].mxu0 %v5442
        %v5882 = vpop.f32.mrb[0].mxu0
        %v5883 = vadd.f32 %v5658, %v5882
        %v5884 = vpop.f32.mrb[0].mxu0
        %5885 = vmatprep.mubr.f32.mxu0 0.0
        %5886 = vmatmul.mubr.f32.gmra.mrb[0].mxu0 %v5445
        %v5887 = vpop.f32.mrb[0].mxu0
        %v5888 = vadd.f32 %v5663, %v5887
        %v5889 = vpop.f32.mrb[0].mxu0
        %5890 = vmatprep.mubr.f32.mxu0 0.0
        %5891 = vmatmul.mubr.f32.gmra.mrb[0].mxu0 %v5448
        %v5892 = vpop.f32.mrb[0].mxu0
        %v5893 = vadd.f32 %v5668, %v5892
        %v5894 = vpop.f32.mrb[0].mxu0
        %5895 = vmatprep.mubr.f32.mxu0 0.0
        %5896 = vmatmul.mubr.f32.gmra.mrb[0].mxu0 %v5451
        %v5897 = vpop.f32.mrb[0].mxu0
        %v5898 = vadd.f32 %v5673, %v5897
        %v5899 = vpop.f32.mrb[0].mxu0
        %5900 = vmatprep.mubr.f32.mxu0 0.0
        %5901 = vmatmul.mubr.f32.gmra.mrb[0].mxu0 %v5454
        %v5902 = vpop.f32.mrb[0].mxu0
        %v5903 = vadd.f32 %v5678, %v5902
        %v5904 = vpop.f32.mrb[0].mxu0
        %5905 = vmatprep.mubr.f32.mxu0 0.0
        %5906 = vmatmul.mubr.f32.gmra.mrb[0].mxu0 %v5457
        %v5907 = vpop.f32.mrb[0].mxu0
        %v5908 = vadd.f32 %v5683, %v5907
        %v5909 = vpop.f32.mrb[0].mxu0
        %5910 = vmatprep.mubr.f32.mxu0 0.0
        %5911 = vmatmul.mubr.f32.gmra.mrb[0].mxu0 %v5460
        %v5912 = vpop.f32.mrb[0].mxu0
        %v5913 = vadd.f32 %v5688, %v5912
        %v5914 = vpop.f32.mrb[0].mxu0
        %5915 = vmatprep.mubr.f32.mxu0 0.0
        %5916 = vmatmul.mubr.f32.gmra.mrb[0].mxu0 %v5463
        %v5917 = vpop.f32.mrb[0].mxu0
        %v5918 = vadd.f32 %v5693, %v5917
        %v5919 = vpop.f32.mrb[0].mxu0
        %5920 = vmatprep.mubr.f32.mxu0 0.0
        %5921 = vmatmul.mubr.f32.gmra.mrb[0].mxu0 %v5466
        %v5922 = vpop.f32.mrb[0].mxu0
        %v5923 = vadd.f32 %v5698, %v5922
        %v5924 = vpop.f32.mrb[0].mxu0
        %5925 = vmatprep.mubr.f32.mxu0 0.0
        %5926 = vmatmul.mubr.f32.gmra.mrb[0].mxu0 %v5469
        %v5927 = vpop.f32.mrb[0].mxu0
        %v5928 = vadd.f32 %v5703, %v5927
        %v5929 = vpop.f32.mrb[0].mxu0
        %5930 = vmatprep.mubr.f32.mxu0 0.0
        %5931 = vmatmul.mubr.f32.gmra.mrb[0].mxu0 %v5472
        %v5932 = vpop.f32.mrb[0].mxu0
        %v5933 = vadd.f32 %v5708, %v5932
        %v5934 = vpop.f32.mrb[0].mxu0
        %5935 = vmatprep.mubr.f32.mxu0 0.0
        %5936 = vmatmul.mubr.f32.gmra.mrb[0].mxu0 %v5475
        %v5937 = vpop.f32.mrb[0].mxu0
        %v5938 = vadd.f32 %v5713, %v5937
        %v5939 = vpop.f32.mrb[0].mxu0
        %5940 = vmatprep.mubr.f32.mxu0 0.0
        %5941 = vmatmul.mubr.f32.gmra.mrb[0].mxu0 %v5478
        %v5942 = vpop.f32.mrb[0].mxu0
        %v5943 = vadd.f32 %v5718, %v5942
        %v5944 = vpop.f32.mrb[0].mxu0
        %5945 = vmatprep.mubr.f32.mxu0 0.0
        %5946 = vmatmul.mubr.f32.gmra.mrb[0].mxu0 %v5481
        %v5947 = vpop.f32.mrb[0].mxu0
        %v5948 = vadd.f32 %v5723, %v5947
        %v5949 = vpop.f32.mrb[0].mxu0
        %5950 = vmatprep.mubr.f32.mxu0 0.0
        %5951 = vmatmul.mubr.f32.gmra.mrb[0].mxu0 %v5484
        %v5952 = vpop.f32.mrb[0].mxu0
        %v5953 = vadd.f32 %v5728, %v5952
        %v5954 = vpop.f32.mrb[0].mxu0
        %5955 = vmatprep.mubr.f32.mxu0 0.0
        %5956 = vmatmul.mubr.f32.gmra.mrb[0].mxu0 %v5487
        %v5957 = vpop.f32.mrb[0].mxu0
        %v5958 = vadd.f32 %v5733, %v5957
        %v5959 = vpop.f32.mrb[0].mxu0
        %5960 = vmatprep.mubr.f32.mxu0 0.0
        %5961 = vmatmul.mubr.f32.gmra.mrb[0].mxu0 %v5490
        %v5962 = vpop.f32.mrb[0].mxu0
        %v5963 = vadd.f32 %v5738, %v5962
        %v5964 = vpop.f32.mrb[0].mxu0
        %5965 = vmatprep.mubr.f32.mxu0 0.0
        %5966 = vmatmul.mubr.f32.gmra.mrb[0].mxu0 %v5493
        %v5967 = vpop.f32.mrb[0].mxu0
        %v5968 = vadd.f32 %v5743, %v5967
        %v5969 = vpop.f32.mrb[0].mxu0
        %5970 = vmatprep.mubr.f32.mxu0 0.0
        %5971 = vmatmul.mubr.f32.gmra.mrb[0].mxu0 %v5496
        %v5972 = vpop.f32.mrb[0].mxu0
        %v5973 = vadd.f32 %v5748, %v5972
        %v5974 = vpop.f32.mrb[0].mxu0
        %5975 = vmatprep.mubr.f32.mxu0 0.0
        %5976 = vmatmul.mubr.f32.gmra.mrb[0].mxu0 %v5499
        %v5977 = vpop.f32.mrb[0].mxu0
        %v5978 = vadd.f32 %v5753, %v5977
        %v5979 = vpop.f32.mrb[0].mxu0
        %5980 = vmatprep.mubr.f32.mxu0 0.0
        %5981 = vmatmul.mubr.f32.gmra.mrb[0].mxu0 %v5502
        %v5982 = vpop.f32.mrb[0].mxu0
        %v5983 = vadd.f32 %v5758, %v5982
        %v5984 = vpop.f32.mrb[0].mxu0
        %5985 = vmatprep.mubr.f32.mxu0 0.0
        %5986 = vmatmul.mubr.f32.gmra.mrb[0].mxu0 %v5505
        %v5987 = vpop.f32.mrb[0].mxu0
        %v5988 = vadd.f32 %v5763, %v5987
        %v5989 = vpop.f32.mrb[0].mxu0
        %5990 = vmatprep.mubr.f32.mxu0 0.0
        %5991 = vmatmul.mubr.f32.gmra.mrb[0].mxu0 %v5508
        %v5992 = vpop.f32.mrb[0].mxu0
        %v5993 = vadd.f32 %v5768, %v5992
        %v5994 = vpop.f32.mrb[0].mxu0
        %5995 = vmatprep.mubr.f32.mxu0 0.0
        %5996 = vmatmul.mubr.f32.gmra.mrb[0].mxu0 %v5511
        %v5997 = vpop.f32.mrb[0].mxu0
        %v5998 = vadd.f32 %v5773, %v5997
        %v5999 = vpop.f32.mrb[0].mxu0
        %6000 = vmatprep.mubr.f32.mxu0 0.0
        %6001 = vmatmul.mubr.f32.gmra.mrb[0].mxu0 %v5514
        %v6002 = vpop.f32.mrb[0].mxu0
        %v6003 = vadd.f32 %v5778, %v6002
        %v6004 = vpop.f32.mrb[0].mxu0
        %6005 = vmatprep.mubr.f32.mxu0 0.0
        %6006 = vmatmul.mubr.f32.gmra.mrb[0].mxu0 %v5517
        %v6007 = vpop.f32.mrb[0].mxu0
        %v6008 = vadd.f32 %v5783, %v6007
        %v6009 = vpop.f32.mrb[0].mxu0
        %6010 = vmatprep.mubr.f32.mxu0 0.0
        %6011 = vmatmul.mubr.f32.gmra.mrb[0].mxu0 %v5520
        %v6012 = vpop.f32.mrb[0].mxu0
        %v6013 = vadd.f32 %v5788, %v6012
        %v6014 = vpop.f32.mrb[0].mxu0
        %6015 = vmatprep.mubr.f32.mxu0 0.0
        %6016 = vmatmul.mubr.f32.gmra.mrb[0].mxu0 %v5523
        %v6017 = vpop.f32.mrb[0].mxu0
        %v6018 = vadd.f32 %v5793, %v6017
        %v6019 = vpop.f32.mrb[0].mxu0
        %6020 = vmatprep.mubr.f32.mxu0 0.0
        %6021 = vmatmul.mubr.f32.gmra.mrb[0].mxu0 %v5526
        %v6022 = vpop.f32.mrb[0].mxu0
        %v6023 = vadd.f32 %v5798, %v6022
        %v6024 = vpop.f32.mrb[0].mxu0
        %6025 = vdwg.mxu0
        %6026 = vmatprep.subr.mxu0 0.0
        %6027 = vmatpush1.msra.mxu0 %v5383
        %6028 = vmatprep.subr.mxu0 0.0
        %6029 = vmatpush1.msra.mxu0 %v5384
        %6030 = vmatprep.subr.mxu0 0.0
        %6031 = vmatpush1.msra.mxu0 %v5385
        %6032 = vmatprep.subr.mxu0 0.0
        %6033 = vmatpush1.msra.mxu0 %v5386
        %6034 = vmatprep.subr.mxu0 0.0
        %6035 = vmatpush1.msra.mxu0 %v5387
        %6036 = vmatprep.subr.mxu0 0.0
        %6037 = vmatpush1.msra.mxu0 %v5388
        %6038 = vmatprep.subr.mxu0 0.0
        %6039 = vmatpush1.msra.mxu0 %v5389
        %6040 = vmatprep.subr.mxu0 0.0
        %6041 = vmatpush1.msra.mxu0 %v5390
        %6042 = vmatprep.subr.mxu0 0.0
        %6043 = vmatpush1.msra.mxu0 %v5391
        %6044 = vmatprep.subr.mxu0 0.0
        %6045 = vmatpush1.msra.mxu0 %v5392
        %6046 = vmatprep.subr.mxu0 0.0
        %6047 = vmatpush1.msra.mxu0 %v5393
        %6048 = vmatprep.subr.mxu0 0.0
        %6049 = vmatpush1.msra.mxu0 %v5394
        %6050 = vmatprep.subr.mxu0 0.0
        %6051 = vmatpush1.msra.mxu0 %v5395
        %6052 = vmatprep.subr.mxu0 0.0
        %6053 = vmatpush1.msra.mxu0 %v5396
        %6054 = vmatprep.subr.mxu0 0.0
        %6055 = vmatpush1.msra.mxu0 %v5397
        %6056 = vmatprep.subr.mxu0 0.0
        %6057 = vmatpush1.msra.mxu0 %v5398
        %6058 = vmatprep.subr.mxu0 0.0
        %6059 = vmatpush1.msra.mxu0 %v5399
        %6060 = vmatprep.subr.mxu0 0.0
        %6061 = vmatpush1.msra.mxu0 %v5400
        %6062 = vmatprep.subr.mxu0 0.0
        %6063 = vmatpush1.msra.mxu0 %v5401
        %6064 = vmatprep.subr.mxu0 0.0
        %6065 = vmatpush1.msra.mxu0 %v5402
        %6066 = vmatprep.subr.mxu0 0.0
        %6067 = vmatpush1.msra.mxu0 %v5403
        %6068 = vmatprep.subr.mxu0 0.0
        %6069 = vmatpush1.msra.mxu0 %v5404
        %6070 = vmatprep.subr.mxu0 0.0
        %6071 = vmatpush1.msra.mxu0 %v5405
        %6072 = vmatprep.subr.mxu0 0.0
        %6073 = vmatpush1.msra.mxu0 %v5406
        %6074 = vmatprep.subr.mxu0 0.0
        %6075 = vmatpush1.msra.mxu0 %v5407
        %6076 = vmatprep.subr.mxu0 0.0
        %6077 = vmatpush1.msra.mxu0 %v5408
        %6078 = vmatprep.subr.mxu0 0.0
        %6079 = vmatpush1.msra.mxu0 %v5409
        %6080 = vmatprep.subr.mxu0 0.0
        %6081 = vmatpush1.msra.mxu0 %v5410
        %6082 = vmatprep.subr.mxu0 0.0
        %6083 = vmatpush1.msra.mxu0 %v5411
        %6084 = vmatprep.subr.mxu0 0.0
        %6085 = vmatpush1.msra.mxu0 %v5412
        %6086 = vmatprep.subr.mxu0 0.0
        %6087 = vmatpush1.msra.mxu0 %v5413
        %6088 = vmatprep.subr.mxu0 0.0
        %6089 = vmatpush1.msra.mxu0 %v5414
        %6090 = vmatprep.mubr.f32.mxu0 %v5288
        %6091 = vmatmul.mubr.f32.gmra.mrb[0].mxu0 %v5287
        %v6092 = vpop.f32.mrb[0].mxu0
        %v6093 = vadd.f32 %v5868, %v6092
        %v6094 = vpop.f32.mrb[0].mxu0
        %6095 = vmatprep.mubr.f32.mxu0 %v5291
        %6096 = vmatmul.mubr.f32.gmra.mrb[0].mxu0 %v5290
        %v6097 = vpop.f32.mrb[0].mxu0
        %v6098 = vadd.f32 %v5873, %v6097
        %v6099 = vpop.f32.mrb[0].mxu0
        %6100 = vmatprep.mubr.f32.mxu0 %v5294
        %6101 = vmatmul.mubr.f32.gmra.mrb[0].mxu0 %v5293
        %v6102 = vpop.f32.mrb[0].mxu0
        %v6103 = vadd.f32 %v5878, %v6102
        %v6104 = vpop.f32.mrb[0].mxu0
        %6105 = vmatprep.mubr.f32.mxu0 %v5297
        %6106 = vmatmul.mubr.f32.gmra.mrb[0].mxu0 %v5296
        %v6107 = vpop.f32.mrb[0].mxu0
        %v6108 = vadd.f32 %v5883, %v6107
        %v6109 = vpop.f32.mrb[0].mxu0
        %6110 = vmatprep.mubr.f32.mxu0 %v5300
        %6111 = vmatmul.mubr.f32.gmra.mrb[0].mxu0 %v5299
        %v6112 = vpop.f32.mrb[0].mxu0
        %v6113 = vadd.f32 %v5888, %v6112
        %v6114 = vpop.f32.mrb[0].mxu0
        %6115 = vmatprep.mubr.f32.mxu0 %v5303
        %6116 = vmatmul.mubr.f32.gmra.mrb[0].mxu0 %v5302
        %v6117 = vpop.f32.mrb[0].mxu0
        %v6118 = vadd.f32 %v5893, %v6117
        %v6119 = vpop.f32.mrb[0].mxu0
        %6120 = vmatprep.mubr.f32.mxu0 %v5306
        %6121 = vmatmul.mubr.f32.gmra.mrb[0].mxu0 %v5305
        %v6122 = vpop.f32.mrb[0].mxu0
        %v6123 = vadd.f32 %v5898, %v6122
        %v6124 = vpop.f32.mrb[0].mxu0
        %6125 = vmatprep.mubr.f32.mxu0 %v5309
        %6126 = vmatmul.mubr.f32.gmra.mrb[0].mxu0 %v5308
        %v6127 = vpop.f32.mrb[0].mxu0
        %v6128 = vadd.f32 %v5903, %v6127
        %v6129 = vpop.f32.mrb[0].mxu0
        %6130 = vmatprep.mubr.f32.mxu0 %v5312
        %6131 = vmatmul.mubr.f32.gmra.mrb[0].mxu0 %v5311
        %v6132 = vpop.f32.mrb[0].mxu0
        %v6133 = vadd.f32 %v5908, %v6132
        %v6134 = vpop.f32.mrb[0].mxu0
        %6135 = vmatprep.mubr.f32.mxu0 %v5315
        %6136 = vmatmul.mubr.f32.gmra.mrb[0].mxu0 %v5314
        %v6137 = vpop.f32.mrb[0].mxu0
        %v6138 = vadd.f32 %v5913, %v6137
        %v6139 = vpop.f32.mrb[0].mxu0
        %6140 = vmatprep.mubr.f32.mxu0 %v5318
        %6141 = vmatmul.mubr.f32.gmra.mrb[0].mxu0 %v5317
        %v6142 = vpop.f32.mrb[0].mxu0
        %v6143 = vadd.f32 %v5918, %v6142
        %v6144 = vpop.f32.mrb[0].mxu0
        %6145 = vmatprep.mubr.f32.mxu0 %v5321
        %6146 = vmatmul.mubr.f32.gmra.mrb[0].mxu0 %v5320
        %v6147 = vpop.f32.mrb[0].mxu0
        %v6148 = vadd.f32 %v5923, %v6147
        %v6149 = vpop.f32.mrb[0].mxu0
        %6150 = vmatprep.mubr.f32.mxu0 %v5324
        %6151 = vmatmul.mubr.f32.gmra.mrb[0].mxu0 %v5323
        %v6152 = vpop.f32.mrb[0].mxu0
        %v6153 = vadd.f32 %v5928, %v6152
        %v6154 = vpop.f32.mrb[0].mxu0
        %6155 = vmatprep.mubr.f32.mxu0 %v5327
        %6156 = vmatmul.mubr.f32.gmra.mrb[0].mxu0 %v5326
        %v6157 = vpop.f32.mrb[0].mxu0
        %v6158 = vadd.f32 %v5933, %v6157
        %v6159 = vpop.f32.mrb[0].mxu0
        %6160 = vmatprep.mubr.f32.mxu0 %v5330
        %6161 = vmatmul.mubr.f32.gmra.mrb[0].mxu0 %v5329
        %v6162 = vpop.f32.mrb[0].mxu0
        %v6163 = vadd.f32 %v5938, %v6162
        %v6164 = vpop.f32.mrb[0].mxu0
        %6165 = vmatprep.mubr.f32.mxu0 %v5333
        %6166 = vmatmul.mubr.f32.gmra.mrb[0].mxu0 %v5332
        %v6167 = vpop.f32.mrb[0].mxu0
        %v6168 = vadd.f32 %v5943, %v6167
        %v6169 = vpop.f32.mrb[0].mxu0
        %6170 = vmatprep.mubr.f32.mxu0 %v5336
        %6171 = vmatmul.mubr.f32.gmra.mrb[0].mxu0 %v5335
        %v6172 = vpop.f32.mrb[0].mxu0
        %v6173 = vadd.f32 %v5948, %v6172
        %v6174 = vpop.f32.mrb[0].mxu0
        %6175 = vmatprep.mubr.f32.mxu0 %v5339
        %6176 = vmatmul.mubr.f32.gmra.mrb[0].mxu0 %v5338
        %v6177 = vpop.f32.mrb[0].mxu0
        %v6178 = vadd.f32 %v5953, %v6177
        %v6179 = vpop.f32.mrb[0].mxu0
        %6180 = vmatprep.mubr.f32.mxu0 %v5342
        %6181 = vmatmul.mubr.f32.gmra.mrb[0].mxu0 %v5341
        %v6182 = vpop.f32.mrb[0].mxu0
        %v6183 = vadd.f32 %v5958, %v6182
        %v6184 = vpop.f32.mrb[0].mxu0
        %6185 = vmatprep.mubr.f32.mxu0 %v5345
        %6186 = vmatmul.mubr.f32.gmra.mrb[0].mxu0 %v5344
        %v6187 = vpop.f32.mrb[0].mxu0
        %v6188 = vadd.f32 %v5963, %v6187
        %v6189 = vpop.f32.mrb[0].mxu0
        %6190 = vmatprep.mubr.f32.mxu0 %v5348
        %6191 = vmatmul.mubr.f32.gmra.mrb[0].mxu0 %v5347
        %v6192 = vpop.f32.mrb[0].mxu0
        %v6193 = vadd.f32 %v5968, %v6192
        %v6194 = vpop.f32.mrb[0].mxu0
        %6195 = vmatprep.mubr.f32.mxu0 %v5351
        %6196 = vmatmul.mubr.f32.gmra.mrb[0].mxu0 %v5350
        %v6197 = vpop.f32.mrb[0].mxu0
        %v6198 = vadd.f32 %v5973, %v6197
        %v6199 = vpop.f32.mrb[0].mxu0
        %6200 = vmatprep.mubr.f32.mxu0 %v5354
        %6201 = vmatmul.mubr.f32.gmra.mrb[0].mxu0 %v5353
        %v6202 = vpop.f32.mrb[0].mxu0
        %v6203 = vadd.f32 %v5978, %v6202
        %v6204 = vpop.f32.mrb[0].mxu0
        %6205 = vmatprep.mubr.f32.mxu0 %v5357
        %6206 = vmatmul.mubr.f32.gmra.mrb[0].mxu0 %v5356
        %v6207 = vpop.f32.mrb[0].mxu0
        %v6208 = vadd.f32 %v5983, %v6207
        %v6209 = vpop.f32.mrb[0].mxu0
        %6210 = vmatprep.mubr.f32.mxu0 %v5360
        %6211 = vmatmul.mubr.f32.gmra.mrb[0].mxu0 %v5359
        %v6212 = vpop.f32.mrb[0].mxu0
        %v6213 = vadd.f32 %v5988, %v6212
        %v6214 = vpop.f32.mrb[0].mxu0
        %6215 = vmatprep.mubr.f32.mxu0 %v5363
        %6216 = vmatmul.mubr.f32.gmra.mrb[0].mxu0 %v5362
        %v6217 = vpop.f32.mrb[0].mxu0
        %v6218 = vadd.f32 %v5993, %v6217
        %v6219 = vpop.f32.mrb[0].mxu0
        %6220 = vmatprep.mubr.f32.mxu0 %v5366
        %6221 = vmatmul.mubr.f32.gmra.mrb[0].mxu0 %v5365
        %v6222 = vpop.f32.mrb[0].mxu0
        %v6223 = vadd.f32 %v5998, %v6222
        %v6224 = vpop.f32.mrb[0].mxu0
        %6225 = vmatprep.mubr.f32.mxu0 %v5369
        %6226 = vmatmul.mubr.f32.gmra.mrb[0].mxu0 %v5368
        %v6227 = vpop.f32.mrb[0].mxu0
        %v6228 = vadd.f32 %v6003, %v6227
        %v6229 = vpop.f32.mrb[0].mxu0
        %6230 = vmatprep.mubr.f32.mxu0 %v5372
        %6231 = vmatmul.mubr.f32.gmra.mrb[0].mxu0 %v5371
        %v6232 = vpop.f32.mrb[0].mxu0
        %v6233 = vadd.f32 %v6008, %v6232
        %v6234 = vpop.f32.mrb[0].mxu0
        %6235 = vmatprep.mubr.f32.mxu0 %v5375
        %6236 = vmatmul.mubr.f32.gmra.mrb[0].mxu0 %v5374
        %v6237 = vpop.f32.mrb[0].mxu0
        %v6238 = vadd.f32 %v6013, %v6237
        %v6239 = vpop.f32.mrb[0].mxu0
        %6240 = vmatprep.mubr.f32.mxu0 %v5378
        %6241 = vmatmul.mubr.f32.gmra.mrb[0].mxu0 %v5377
        %v6242 = vpop.f32.mrb[0].mxu0
        %v6243 = vadd.f32 %v6018, %v6242
        %v6244 = vpop.f32.mrb[0].mxu0
        %6245 = vmatprep.mubr.f32.mxu0 %v5381
        %6246 = vmatmul.mubr.f32.gmra.mrb[0].mxu0 %v5380
        %v6247 = vpop.f32.mrb[0].mxu0
        %v6248 = vadd.f32 %v6023, %v6247
        %v6249 = vpop.f32.mrb[0].mxu0
        %6250 = vdwg.mxu0
        %6251 = vmatprep.subr.mxu0 0.0
        %6252 = vmatpush1.msra.mxu0 %v5415
        %6253 = vmatprep.subr.mxu0 0.0
        %6254 = vmatpush1.msra.mxu0 %v5416
        %6255 = vmatprep.subr.mxu0 0.0
        %6256 = vmatpush1.msra.mxu0 %v5417
        %6257 = vmatprep.subr.mxu0 0.0
        %6258 = vmatpush1.msra.mxu0 %v5418
        %6259 = vmatprep.subr.mxu0 0.0
        %6260 = vmatpush1.msra.mxu0 %v5419
        %6261 = vmatprep.subr.mxu0 0.0
        %6262 = vmatpush1.msra.mxu0 %v5420
        %6263 = vmatprep.subr.mxu0 0.0
        %6264 = vmatpush1.msra.mxu0 %v5421
        %6265 = vmatprep.subr.mxu0 0.0
        %6266 = vmatpush1.msra.mxu0 %v5422
        %6267 = vmatprep.subr.mxu0 0.0
        %6268 = vmatpush1.msra.mxu0 %v5423
        %6269 = vmatprep.subr.mxu0 0.0
        %6270 = vmatpush1.msra.mxu0 %v5424
        %6271 = vmatprep.subr.mxu0 0.0
        %6272 = vmatpush1.msra.mxu0 %v5425
        %6273 = vmatprep.subr.mxu0 0.0
        %6274 = vmatpush1.msra.mxu0 %v5426
        %6275 = vmatprep.subr.mxu0 0.0
        %6276 = vmatpush1.msra.mxu0 %v5427
        %6277 = vmatprep.subr.mxu0 0.0
        %6278 = vmatpush1.msra.mxu0 %v5428
        %6279 = vmatprep.subr.mxu0 0.0
        %6280 = vmatpush1.msra.mxu0 %v5429
        %6281 = vmatprep.subr.mxu0 0.0
        %6282 = vmatpush1.msra.mxu0 %v5430
        %6283 = vmatprep.subr.mxu0 0.0
        %6284 = vmatpush1.msra.mxu0 0.0
        %6285 = vmatprep.subr.mxu0 0.0
        %6286 = vmatpush1.msra.mxu0 0.0
        %6287 = vmatprep.subr.mxu0 0.0
        %6288 = vmatpush1.msra.mxu0 0.0
        %6289 = vmatprep.subr.mxu0 0.0
        %6290 = vmatpush1.msra.mxu0 0.0
        %6291 = vmatprep.subr.mxu0 0.0
        %6292 = vmatpush1.msra.mxu0 0.0
        %6293 = vmatprep.subr.mxu0 0.0
        %6294 = vmatpush1.msra.mxu0 0.0
        %6295 = vmatprep.subr.mxu0 0.0
        %6296 = vmatpush1.msra.mxu0 0.0
        %6297 = vmatprep.subr.mxu0 0.0
        %6298 = vmatpush1.msra.mxu0 0.0
        %6299 = vmatprep.subr.mxu0 0.0
        %6300 = vmatpush1.msra.mxu0 0.0
        %6301 = vmatprep.subr.mxu0 0.0
        %6302 = vmatpush1.msra.mxu0 0.0
        %6303 = vmatprep.subr.mxu0 0.0
        %6304 = vmatpush1.msra.mxu0 0.0
        %6305 = vmatprep.subr.mxu0 0.0
        %6306 = vmatpush1.msra.mxu0 0.0
        %6307 = vmatprep.subr.mxu0 0.0
        %6308 = vmatpush1.msra.mxu0 0.0
        %6309 = vmatprep.subr.mxu0 0.0
        %6310 = vmatpush1.msra.mxu0 0.0
        %6311 = vmatprep.subr.mxu0 0.0
        %6312 = vmatpush1.msra.mxu0 0.0
        %6313 = vmatprep.subr.mxu0 0.0
        %6314 = vmatpush1.msra.mxu0 0.0
        %6315 = vmatprep.mubr.f32.mxu0 0.0
        %6316 = vmatmul.mubr.f32.gmra.mrb[0].mxu0 %v5289
        %v6317 = vpop.f32.mrb[0].mxu0
        %v6318 = vadd.f32 %v6093, %v6317
        %v6319 = vpop.f32.mrb[0].mxu0
        %6320 = vmatprep.mubr.f32.mxu0 0.0
        %6321 = vmatmul.mubr.f32.gmra.mrb[0].mxu0 %v5292
        %v6322 = vpop.f32.mrb[0].mxu0
        %v6323 = vadd.f32 %v6098, %v6322
        %v6324 = vpop.f32.mrb[0].mxu0
        %6325 = vmatprep.mubr.f32.mxu0 0.0
        %6326 = vmatmul.mubr.f32.gmra.mrb[0].mxu0 %v5295
        %v6327 = vpop.f32.mrb[0].mxu0
        %v6328 = vadd.f32 %v6103, %v6327
        %v6329 = vpop.f32.mrb[0].mxu0
        %6330 = vmatprep.mubr.f32.mxu0 0.0
        %6331 = vmatmul.mubr.f32.gmra.mrb[0].mxu0 %v5298
        %v6332 = vpop.f32.mrb[0].mxu0
        %v6333 = vadd.f32 %v6108, %v6332
        %v6334 = vpop.f32.mrb[0].mxu0
        %6335 = vmatprep.mubr.f32.mxu0 0.0
        %6336 = vmatmul.mubr.f32.gmra.mrb[0].mxu0 %v5301
        %v6337 = vpop.f32.mrb[0].mxu0
        %v6338 = vadd.f32 %v6113, %v6337
        %v6339 = vpop.f32.mrb[0].mxu0
        %6340 = vmatprep.mubr.f32.mxu0 0.0
        %6341 = vmatmul.mubr.f32.gmra.mrb[0].mxu0 %v5304
        %v6342 = vpop.f32.mrb[0].mxu0
        %v6343 = vadd.f32 %v6118, %v6342
        %v6344 = vpop.f32.mrb[0].mxu0
        %6345 = vmatprep.mubr.f32.mxu0 0.0
        %6346 = vmatmul.mubr.f32.gmra.mrb[0].mxu0 %v5307
        %v6347 = vpop.f32.mrb[0].mxu0
        %v6348 = vadd.f32 %v6123, %v6347
        %v6349 = vpop.f32.mrb[0].mxu0
        %6350 = vmatprep.mubr.f32.mxu0 0.0
        %6351 = vmatmul.mubr.f32.gmra.mrb[0].mxu0 %v5310
        %v6352 = vpop.f32.mrb[0].mxu0
        %v6353 = vadd.f32 %v6128, %v6352
        %v6354 = vpop.f32.mrb[0].mxu0
        %6355 = vmatprep.mubr.f32.mxu0 0.0
        %6356 = vmatmul.mubr.f32.gmra.mrb[0].mxu0 %v5313
        %v6357 = vpop.f32.mrb[0].mxu0
        %v6358 = vadd.f32 %v6133, %v6357
        %v6359 = vpop.f32.mrb[0].mxu0
        %6360 = vmatprep.mubr.f32.mxu0 0.0
        %6361 = vmatmul.mubr.f32.gmra.mrb[0].mxu0 %v5316
        %v6362 = vpop.f32.mrb[0].mxu0
        %v6363 = vadd.f32 %v6138, %v6362
        %v6364 = vpop.f32.mrb[0].mxu0
        %6365 = vmatprep.mubr.f32.mxu0 0.0
        %6366 = vmatmul.mubr.f32.gmra.mrb[0].mxu0 %v5319
        %v6367 = vpop.f32.mrb[0].mxu0
        %v6368 = vadd.f32 %v6143, %v6367
        %v6369 = vpop.f32.mrb[0].mxu0
        %6370 = vmatprep.mubr.f32.mxu0 0.0
        %6371 = vmatmul.mubr.f32.gmra.mrb[0].mxu0 %v5322
        %v6372 = vpop.f32.mrb[0].mxu0
        %v6373 = vadd.f32 %v6148, %v6372
        %v6374 = vpop.f32.mrb[0].mxu0
        %6375 = vmatprep.mubr.f32.mxu0 0.0
        %6376 = vmatmul.mubr.f32.gmra.mrb[0].mxu0 %v5325
        %v6377 = vpop.f32.mrb[0].mxu0
        %v6378 = vadd.f32 %v6153, %v6377
        %v6379 = vpop.f32.mrb[0].mxu0
        %6380 = vmatprep.mubr.f32.mxu0 0.0
        %6381 = vmatmul.mubr.f32.gmra.mrb[0].mxu0 %v5328
        %v6382 = vpop.f32.mrb[0].mxu0
        %v6383 = vadd.f32 %v6158, %v6382
        %v6384 = vpop.f32.mrb[0].mxu0
        %6385 = vmatprep.mubr.f32.mxu0 0.0
        %6386 = vmatmul.mubr.f32.gmra.mrb[0].mxu0 %v5331
        %v6387 = vpop.f32.mrb[0].mxu0
        %v6388 = vadd.f32 %v6163, %v6387
        %v6389 = vpop.f32.mrb[0].mxu0
        %6390 = vmatprep.mubr.f32.mxu0 0.0
        %6391 = vmatmul.mubr.f32.gmra.mrb[0].mxu0 %v5334
        %v6392 = vpop.f32.mrb[0].mxu0
        %v6393 = vadd.f32 %v6168, %v6392
        %v6394 = vpop.f32.mrb[0].mxu0
        %6395 = vmatprep.mubr.f32.mxu0 0.0
        %6396 = vmatmul.mubr.f32.gmra.mrb[0].mxu0 %v5337
        %v6397 = vpop.f32.mrb[0].mxu0
        %v6398 = vadd.f32 %v6173, %v6397
        %v6399 = vpop.f32.mrb[0].mxu0
        %6400 = vmatprep.mubr.f32.mxu0 0.0
        %6401 = vmatmul.mubr.f32.gmra.mrb[0].mxu0 %v5340
        %v6402 = vpop.f32.mrb[0].mxu0
        %v6403 = vadd.f32 %v6178, %v6402
        %v6404 = vpop.f32.mrb[0].mxu0
        %6405 = vmatprep.mubr.f32.mxu0 0.0
        %6406 = vmatmul.mubr.f32.gmra.mrb[0].mxu0 %v5343
        %v6407 = vpop.f32.mrb[0].mxu0
        %v6408 = vadd.f32 %v6183, %v6407
        %v6409 = vpop.f32.mrb[0].mxu0
        %6410 = vmatprep.mubr.f32.mxu0 0.0
        %6411 = vmatmul.mubr.f32.gmra.mrb[0].mxu0 %v5346
        %v6412 = vpop.f32.mrb[0].mxu0
        %v6413 = vadd.f32 %v6188, %v6412
        %v6414 = vpop.f32.mrb[0].mxu0
        %6415 = vmatprep.mubr.f32.mxu0 0.0
        %6416 = vmatmul.mubr.f32.gmra.mrb[0].mxu0 %v5349
        %v6417 = vpop.f32.mrb[0].mxu0
        %v6418 = vadd.f32 %v6193, %v6417
        %v6419 = vpop.f32.mrb[0].mxu0
        %6420 = vmatprep.mubr.f32.mxu0 0.0
        %6421 = vmatmul.mubr.f32.gmra.mrb[0].mxu0 %v5352
        %v6422 = vpop.f32.mrb[0].mxu0
        %v6423 = vadd.f32 %v6198, %v6422
        %v6424 = vpop.f32.mrb[0].mxu0
        %6425 = vmatprep.mubr.f32.mxu0 0.0
        %6426 = vmatmul.mubr.f32.gmra.mrb[0].mxu0 %v5355
        %v6427 = vpop.f32.mrb[0].mxu0
        %v6428 = vadd.f32 %v6203, %v6427
        %v6429 = vpop.f32.mrb[0].mxu0
        %6430 = vmatprep.mubr.f32.mxu0 0.0
        %6431 = vmatmul.mubr.f32.gmra.mrb[0].mxu0 %v5358
        %v6432 = vpop.f32.mrb[0].mxu0
        %v6433 = vadd.f32 %v6208, %v6432
        %v6434 = vpop.f32.mrb[0].mxu0
        %6435 = vmatprep.mubr.f32.mxu0 0.0
        %6436 = vmatmul.mubr.f32.gmra.mrb[0].mxu0 %v5361
        %v6437 = vpop.f32.mrb[0].mxu0
        %v6438 = vadd.f32 %v6213, %v6437
        %v6439 = vpop.f32.mrb[0].mxu0
        %6440 = vmatprep.mubr.f32.mxu0 0.0
        %6441 = vmatmul.mubr.f32.gmra.mrb[0].mxu0 %v5364
        %v6442 = vpop.f32.mrb[0].mxu0
        %v6443 = vadd.f32 %v6218, %v6442
        %v6444 = vpop.f32.mrb[0].mxu0
        %6445 = vmatprep.mubr.f32.mxu0 0.0
        %6446 = vmatmul.mubr.f32.gmra.mrb[0].mxu0 %v5367
        %v6447 = vpop.f32.mrb[0].mxu0
        %v6448 = vadd.f32 %v6223, %v6447
        %v6449 = vpop.f32.mrb[0].mxu0
        %6450 = vmatprep.mubr.f32.mxu0 0.0
        %6451 = vmatmul.mubr.f32.gmra.mrb[0].mxu0 %v5370
        %v6452 = vpop.f32.mrb[0].mxu0
        %v6453 = vadd.f32 %v6228, %v6452
        %v6454 = vpop.f32.mrb[0].mxu0
        %6455 = vmatprep.mubr.f32.mxu0 0.0
        %6456 = vmatmul.mubr.f32.gmra.mrb[0].mxu0 %v5373
        %v6457 = vpop.f32.mrb[0].mxu0
        %v6458 = vadd.f32 %v6233, %v6457
        %v6459 = vpop.f32.mrb[0].mxu0
        %6460 = vmatprep.mubr.f32.mxu0 0.0
        %6461 = vmatmul.mubr.f32.gmra.mrb[0].mxu0 %v5376
        %v6462 = vpop.f32.mrb[0].mxu0
        %v6463 = vadd.f32 %v6238, %v6462
        %v6464 = vpop.f32.mrb[0].mxu0
        %6465 = vmatprep.mubr.f32.mxu0 0.0
        %6466 = vmatmul.mubr.f32.gmra.mrb[0].mxu0 %v5379
        %v6467 = vpop.f32.mrb[0].mxu0
        %v6468 = vadd.f32 %v6243, %v6467
        %v6469 = vpop.f32.mrb[0].mxu0
        %6470 = vmatprep.mubr.f32.mxu0 0.0
        %6471 = vmatmul.mubr.f32.gmra.mrb[0].mxu0 %v5382
        %v6472 = vpop.f32.mrb[0].mxu0
        %v6473 = vadd.f32 %v6248, %v6472
        %v6474 = vpop.f32.mrb[0].mxu0
        %6475 = vdwg.mxu0
        %v6476 = vld [vmem:[%s2205] sm:$0xff]
        %v6477 = vld [vmem:[%s2205 + $0x8] sm:$0xff]
        %v6478 = vld [vmem:[%s2205 + $0x10] sm:$0xff]
        %v6479 = vld [vmem:[%s2205 + $0x18] sm:$0xff]
        %v6480 = vld [vmem:[%s2205 + $0x20] sm:$0xff]
        %v6481 = vld [vmem:[%s2205 + $0x28] sm:$0xff]
        %v6482 = vld [vmem:[%s2205 + $0x30] sm:$0xff]
        %v6483 = vld [vmem:[%s2205 + $0x38] sm:$0xff]
        %v6484 = vld [vmem:[%s2205 + $0x40] sm:$0xff]
        %v6485 = vld [vmem:[%s2205 + $0x48] sm:$0xff]
        %v6486 = vld [vmem:[%s2205 + $0x50] sm:$0xff]
        %v6487 = vld [vmem:[%s2205 + $0x58] sm:$0xff]
        %v6488 = vld [vmem:[%s2205 + $0x60] sm:$0xff]
        %v6489 = vld [vmem:[%s2205 + $0x68] sm:$0xff]
        %v6490 = vld [vmem:[%s2205 + $0x70] sm:$0xff]
        %v6491 = vld [vmem:[%s2205 + $0x78] sm:$0xff]
        %v6492 = vld [vmem:[%s2205 + $0x80] sm:$0xff]
        %v6493 = vld [vmem:[%s2205 + $0x88] sm:$0xff]
        %v6494 = vld [vmem:[%s2205 + $0x90] sm:$0xff]
        %v6495 = vld [vmem:[%s2205 + $0x98] sm:$0xff]
        %v6496 = vld [vmem:[%s2205 + $0xa0] sm:$0xff]
        %v6497 = vld [vmem:[%s2205 + $0xa8] sm:$0xff]
        %v6498 = vld [vmem:[%s2205 + $0xb0] sm:$0xff]
        %v6499 = vld [vmem:[%s2205 + $0xb8] sm:$0xff]
        %v6500 = vld [vmem:[%s2205 + $0xc0] sm:$0xff]
        %v6501 = vld [vmem:[%s2205 + $0xc8] sm:$0xff]
        %v6502 = vld [vmem:[%s2205 + $0xd0] sm:$0xff]
        %v6503 = vld [vmem:[%s2205 + $0xd8] sm:$0xff]
        %v6504 = vld [vmem:[%s2205 + $0xe0] sm:$0xff]
        %v6505 = vld [vmem:[%s2205 + $0xe8] sm:$0xff]
        %v6506 = vld [vmem:[%s2205 + $0xf0] sm:$0xff]
        %v6507 = vld [vmem:[%s2205 + $0xf8] sm:$0xff]
        %v6508 = vld [vmem:[%s2205 + $0x100] sm:$0xff]
        %v6509 = vld [vmem:[%s2205 + $0x108] sm:$0xff]
        %v6510 = vld [vmem:[%s2205 + $0x110] sm:$0xff]
        %v6511 = vld [vmem:[%s2205 + $0x118] sm:$0xff]
        %v6512 = vld [vmem:[%s2205 + $0x120] sm:$0xff]
        %v6513 = vld [vmem:[%s2205 + $0x128] sm:$0xff]
        %v6514 = vld [vmem:[%s2205 + $0x130] sm:$0xff]
        %v6515 = vld [vmem:[%s2205 + $0x138] sm:$0xff]
        %v6516 = vld [vmem:[%s2205 + $0x140] sm:$0xff]
        %v6517 = vld [vmem:[%s2205 + $0x148] sm:$0xff]
        %v6518 = vld [vmem:[%s2205 + $0x150] sm:$0xff]
        %v6519 = vld [vmem:[%s2205 + $0x158] sm:$0xff]
        %v6520 = vld [vmem:[%s2205 + $0x160] sm:$0xff]
        %v6521 = vld [vmem:[%s2205 + $0x168] sm:$0xff]
        %v6522 = vld [vmem:[%s2205 + $0x170] sm:$0xff]
        %v6523 = vld [vmem:[%s2205 + $0x178] sm:$0xff]
        %v6524 = vld [vmem:[%s2205 + $0x180] sm:$0xff]
        %v6525 = vld [vmem:[%s2205 + $0x188] sm:$0xff]
        %v6526 = vld [vmem:[%s2205 + $0x190] sm:$0xff]
        %v6527 = vld [vmem:[%s2205 + $0x198] sm:$0xff]
        %v6528 = vld [vmem:[%s2205 + $0x1a0] sm:$0xff]
        %v6529 = vld [vmem:[%s2205 + $0x1a8] sm:$0xff]
        %v6530 = vld [vmem:[%s2205 + $0x1b0] sm:$0xff]
        %v6531 = vld [vmem:[%s2205 + $0x1b8] sm:$0xff]
        %v6532 = vld [vmem:[%s2205 + $0x1c0] sm:$0xff]
        %v6533 = vld [vmem:[%s2205 + $0x1c8] sm:$0xff]
        %v6534 = vld [vmem:[%s2205 + $0x1d0] sm:$0xff]
        %v6535 = vld [vmem:[%s2205 + $0x1d8] sm:$0xff]
        %v6536 = vld [vmem:[%s2205 + $0x1e0] sm:$0xff]
        %v6537 = vld [vmem:[%s2205 + $0x1e8] sm:$0xff]
        %v6538 = vld [vmem:[%s2205 + $0x1f0] sm:$0xff]
        %v6539 = vld [vmem:[%s2205 + $0x1f8] sm:$0xff]
        %v6540 = vld [vmem:[%s2205 + $0x200] sm:$0xff]
        %v6541 = vld [vmem:[%s2205 + $0x208] sm:$0xff]
        %v6542 = vld [vmem:[%s2205 + $0x210] sm:$0xff]
        %v6543 = vld [vmem:[%s2205 + $0x218] sm:$0xff]
        %v6544 = vld [vmem:[%s2205 + $0x220] sm:$0xff]
        %v6545 = vld [vmem:[%s2205 + $0x228] sm:$0xff]
        %v6546 = vld [vmem:[%s2205 + $0x230] sm:$0xff]
        %v6547 = vld [vmem:[%s2205 + $0x238] sm:$0xff]
        %v6548 = vld [vmem:[%s2205 + $0x240] sm:$0xff]
        %v6549 = vld [vmem:[%s2205 + $0x248] sm:$0xff]
        %v6550 = vld [vmem:[%s2205 + $0x250] sm:$0xff]
        %v6551 = vld [vmem:[%s2205 + $0x258] sm:$0xff]
        %v6552 = vld [vmem:[%s2205 + $0x260] sm:$0xff]
        %v6553 = vld [vmem:[%s2205 + $0x268] sm:$0xff]
        %v6554 = vld [vmem:[%s2205 + $0x270] sm:$0xff]
        %v6555 = vld [vmem:[%s2205 + $0x278] sm:$0xff]
        %v6556 = vld [vmem:[%s2205 + $0x280] sm:$0xff]
        %v6557 = vld [vmem:[%s2205 + $0x288] sm:$0xff]
        %v6558 = vld [vmem:[%s2205 + $0x290] sm:$0xff]
        %v6559 = vld [vmem:[%s2205 + $0x298] sm:$0xff]
        %v6560 = vld [vmem:[%s2205 + $0x2a0] sm:$0xff]
        %v6561 = vld [vmem:[%s2205 + $0x2a8] sm:$0xff]
        %v6562 = vld [vmem:[%s2205 + $0x2b0] sm:$0xff]
        %v6563 = vld [vmem:[%s2205 + $0x2b8] sm:$0xff]
        %v6564 = vld [vmem:[%s2205 + $0x2c0] sm:$0xff]
        %v6565 = vld [vmem:[%s2205 + $0x2c8] sm:$0xff]
        %v6566 = vld [vmem:[%s2205 + $0x2d0] sm:$0xff]
        %v6567 = vld [vmem:[%s2205 + $0x2d8] sm:$0xff]
        %v6568 = vld [vmem:[%s2205 + $0x2e0] sm:$0xff]
        %v6569 = vld [vmem:[%s2205 + $0x2e8] sm:$0xff]
        %v6570 = vld [vmem:[%s2205 + $0x2f0] sm:$0xff]
        %v6571 = vld [vmem:[%s2205 + $0x2f8] sm:$0xff]
        %s6572 = scalar_lea.vmem [#allocation8], 768
        %v6573 = vld [vmem:[%s6572] sm:$0xff]
        %v6574 = vld [vmem:[%s6572 + $0x8] sm:$0xff]
        %v6575 = vld [vmem:[%s6572 + $0x10] sm:$0xff]
        %v6576 = vld [vmem:[%s6572 + $0x18] sm:$0xff]
        %v6577 = vld [vmem:[%s6572 + $0x20] sm:$0xff]
        %v6578 = vld [vmem:[%s6572 + $0x28] sm:$0xff]
        %v6579 = vld [vmem:[%s6572 + $0x30] sm:$0xff]
        %v6580 = vld [vmem:[%s6572 + $0x38] sm:$0xff]
        %v6581 = vld [vmem:[%s6572 + $0x40] sm:$0xff]
        %v6582 = vld [vmem:[%s6572 + $0x48] sm:$0xff]
        %v6583 = vld [vmem:[%s6572 + $0x50] sm:$0xff]
        %v6584 = vld [vmem:[%s6572 + $0x58] sm:$0xff]
        %v6585 = vld [vmem:[%s6572 + $0x60] sm:$0xff]
        %v6586 = vld [vmem:[%s6572 + $0x68] sm:$0xff]
        %v6587 = vld [vmem:[%s6572 + $0x70] sm:$0xff]
        %v6588 = vld [vmem:[%s6572 + $0x78] sm:$0xff]
        %v6589 = vld [vmem:[%s6572 + $0x80] sm:$0xff]
        %v6590 = vld [vmem:[%s6572 + $0x88] sm:$0xff]
        %v6591 = vld [vmem:[%s6572 + $0x90] sm:$0xff]
        %v6592 = vld [vmem:[%s6572 + $0x98] sm:$0xff]
        %v6593 = vld [vmem:[%s6572 + $0xa0] sm:$0xff]
        %v6594 = vld [vmem:[%s6572 + $0xa8] sm:$0xff]
        %v6595 = vld [vmem:[%s6572 + $0xb0] sm:$0xff]
        %v6596 = vld [vmem:[%s6572 + $0xb8] sm:$0xff]
        %v6597 = vld [vmem:[%s6572 + $0xc0] sm:$0xff]
        %v6598 = vld [vmem:[%s6572 + $0xc8] sm:$0xff]
        %v6599 = vld [vmem:[%s6572 + $0xd0] sm:$0xff]
        %v6600 = vld [vmem:[%s6572 + $0xd8] sm:$0xff]
        %v6601 = vld [vmem:[%s6572 + $0xe0] sm:$0xff]
        %v6602 = vld [vmem:[%s6572 + $0xe8] sm:$0xff]
        %v6603 = vld [vmem:[%s6572 + $0xf0] sm:$0xff]
        %v6604 = vld [vmem:[%s6572 + $0xf8] sm:$0xff]
        %v6605 = vld [vmem:[%s6572 + $0x100] sm:$0xff]
        %v6606 = vld [vmem:[%s6572 + $0x108] sm:$0xff]
        %v6607 = vld [vmem:[%s6572 + $0x110] sm:$0xff]
        %v6608 = vld [vmem:[%s6572 + $0x118] sm:$0xff]
        %v6609 = vld [vmem:[%s6572 + $0x120] sm:$0xff]
        %v6610 = vld [vmem:[%s6572 + $0x128] sm:$0xff]
        %v6611 = vld [vmem:[%s6572 + $0x130] sm:$0xff]
        %v6612 = vld [vmem:[%s6572 + $0x138] sm:$0xff]
        %v6613 = vld [vmem:[%s6572 + $0x140] sm:$0xff]
        %v6614 = vld [vmem:[%s6572 + $0x148] sm:$0xff]
        %v6615 = vld [vmem:[%s6572 + $0x150] sm:$0xff]
        %v6616 = vld [vmem:[%s6572 + $0x158] sm:$0xff]
        %v6617 = vld [vmem:[%s6572 + $0x160] sm:$0xff]
        %v6618 = vld [vmem:[%s6572 + $0x168] sm:$0xff]
        %v6619 = vld [vmem:[%s6572 + $0x170] sm:$0xff]
        %v6620 = vld [vmem:[%s6572 + $0x178] sm:$0xff]
        %6621 = vmatprep.subr.mxu0 0.0
        %6622 = vmatpush1.msra.mxu0 %v6573
        %6623 = vmatprep.subr.mxu0 0.0
        %6624 = vmatpush1.msra.mxu0 %v6574
        %6625 = vmatprep.subr.mxu0 0.0
        %6626 = vmatpush1.msra.mxu0 %v6575
        %6627 = vmatprep.subr.mxu0 0.0
        %6628 = vmatpush1.msra.mxu0 %v6576
        %6629 = vmatprep.subr.mxu0 0.0
        %6630 = vmatpush1.msra.mxu0 %v6577
        %6631 = vmatprep.subr.mxu0 0.0
        %6632 = vmatpush1.msra.mxu0 %v6578
        %6633 = vmatprep.subr.mxu0 0.0
        %6634 = vmatpush1.msra.mxu0 %v6579
        %6635 = vmatprep.subr.mxu0 0.0
        %6636 = vmatpush1.msra.mxu0 %v6580
        %6637 = vmatprep.subr.mxu0 0.0
        %6638 = vmatpush1.msra.mxu0 %v6581
        %6639 = vmatprep.subr.mxu0 0.0
        %6640 = vmatpush1.msra.mxu0 %v6582
        %6641 = vmatprep.subr.mxu0 0.0
        %6642 = vmatpush1.msra.mxu0 %v6583
        %6643 = vmatprep.subr.mxu0 0.0
        %6644 = vmatpush1.msra.mxu0 %v6584
        %6645 = vmatprep.subr.mxu0 0.0
        %6646 = vmatpush1.msra.mxu0 %v6585
        %6647 = vmatprep.subr.mxu0 0.0
        %6648 = vmatpush1.msra.mxu0 %v6586
        %6649 = vmatprep.subr.mxu0 0.0
        %6650 = vmatpush1.msra.mxu0 %v6587
        %6651 = vmatprep.subr.mxu0 0.0
        %6652 = vmatpush1.msra.mxu0 %v6588
        %6653 = vmatprep.subr.mxu0 0.0
        %6654 = vmatpush1.msra.mxu0 %v6589
        %6655 = vmatprep.subr.mxu0 0.0
        %6656 = vmatpush1.msra.mxu0 %v6590
        %6657 = vmatprep.subr.mxu0 0.0
        %6658 = vmatpush1.msra.mxu0 %v6591
        %6659 = vmatprep.subr.mxu0 0.0
        %6660 = vmatpush1.msra.mxu0 %v6592
        %6661 = vmatprep.subr.mxu0 0.0
        %6662 = vmatpush1.msra.mxu0 %v6593
        %6663 = vmatprep.subr.mxu0 0.0
        %6664 = vmatpush1.msra.mxu0 %v6594
        %6665 = vmatprep.subr.mxu0 0.0
        %6666 = vmatpush1.msra.mxu0 %v6595
        %6667 = vmatprep.subr.mxu0 0.0
        %6668 = vmatpush1.msra.mxu0 %v6596
        %6669 = vmatprep.subr.mxu0 0.0
        %6670 = vmatpush1.msra.mxu0 %v6597
        %6671 = vmatprep.subr.mxu0 0.0
        %6672 = vmatpush1.msra.mxu0 %v6598
        %6673 = vmatprep.subr.mxu0 0.0
        %6674 = vmatpush1.msra.mxu0 %v6599
        %6675 = vmatprep.subr.mxu0 0.0
        %6676 = vmatpush1.msra.mxu0 %v6600
        %6677 = vmatprep.subr.mxu0 0.0
        %6678 = vmatpush1.msra.mxu0 %v6601
        %6679 = vmatprep.subr.mxu0 0.0
        %6680 = vmatpush1.msra.mxu0 %v6602
        %6681 = vmatprep.subr.mxu0 0.0
        %6682 = vmatpush1.msra.mxu0 %v6603
        %6683 = vmatprep.subr.mxu0 0.0
        %6684 = vmatpush1.msra.mxu0 %v6604
        %6685 = vmatprep.mubr.f32.mxu0 %v6477
        %6686 = vmatmul.mubr.f32.gmra.mrb[0].mxu0 %v6476
        %v6687 = vpop.f32.mrb[0].mxu0
        %v6688 = vadd.f32 0.0, %v6687
        %v6689 = vpop.f32.mrb[0].mxu0
        %6690 = vmatprep.mubr.f32.mxu0 %v6480
        %6691 = vmatmul.mubr.f32.gmra.mrb[0].mxu0 %v6479
        %v6692 = vpop.f32.mrb[0].mxu0
        %v6693 = vadd.f32 0.0, %v6692
        %v6694 = vpop.f32.mrb[0].mxu0
        %6695 = vmatprep.mubr.f32.mxu0 %v6483
        %6696 = vmatmul.mubr.f32.gmra.mrb[0].mxu0 %v6482
        %v6697 = vpop.f32.mrb[0].mxu0
        %v6698 = vadd.f32 0.0, %v6697
        %v6699 = vpop.f32.mrb[0].mxu0
        %6700 = vmatprep.mubr.f32.mxu0 %v6486
        %6701 = vmatmul.mubr.f32.gmra.mrb[0].mxu0 %v6485
        %v6702 = vpop.f32.mrb[0].mxu0
        %v6703 = vadd.f32 0.0, %v6702
        %v6704 = vpop.f32.mrb[0].mxu0
        %6705 = vmatprep.mubr.f32.mxu0 %v6489
        %6706 = vmatmul.mubr.f32.gmra.mrb[0].mxu0 %v6488
        %v6707 = vpop.f32.mrb[0].mxu0
        %v6708 = vadd.f32 0.0, %v6707
        %v6709 = vpop.f32.mrb[0].mxu0
        %6710 = vmatprep.mubr.f32.mxu0 %v6492
        %6711 = vmatmul.mubr.f32.gmra.mrb[0].mxu0 %v6491
        %v6712 = vpop.f32.mrb[0].mxu0
        %v6713 = vadd.f32 0.0, %v6712
        %v6714 = vpop.f32.mrb[0].mxu0
        %6715 = vmatprep.mubr.f32.mxu0 %v6495
        %6716 = vmatmul.mubr.f32.gmra.mrb[0].mxu0 %v6494
        %v6717 = vpop.f32.mrb[0].mxu0
        %v6718 = vadd.f32 0.0, %v6717
        %v6719 = vpop.f32.mrb[0].mxu0
        %6720 = vmatprep.mubr.f32.mxu0 %v6498
        %6721 = vmatmul.mubr.f32.gmra.mrb[0].mxu0 %v6497
        %v6722 = vpop.f32.mrb[0].mxu0
        %v6723 = vadd.f32 0.0, %v6722
        %v6724 = vpop.f32.mrb[0].mxu0
        %6725 = vmatprep.mubr.f32.mxu0 %v6501
        %6726 = vmatmul.mubr.f32.gmra.mrb[0].mxu0 %v6500
        %v6727 = vpop.f32.mrb[0].mxu0
        %v6728 = vadd.f32 0.0, %v6727
        %v6729 = vpop.f32.mrb[0].mxu0
        %6730 = vmatprep.mubr.f32.mxu0 %v6504
        %6731 = vmatmul.mubr.f32.gmra.mrb[0].mxu0 %v6503
        %v6732 = vpop.f32.mrb[0].mxu0
        %v6733 = vadd.f32 0.0, %v6732
        %v6734 = vpop.f32.mrb[0].mxu0
        %6735 = vmatprep.mubr.f32.mxu0 %v6507
        %6736 = vmatmul.mubr.f32.gmra.mrb[0].mxu0 %v6506
        %v6737 = vpop.f32.mrb[0].mxu0
        %v6738 = vadd.f32 0.0, %v6737
        %v6739 = vpop.f32.mrb[0].mxu0
        %6740 = vmatprep.mubr.f32.mxu0 %v6510
        %6741 = vmatmul.mubr.f32.gmra.mrb[0].mxu0 %v6509
        %v6742 = vpop.f32.mrb[0].mxu0
        %v6743 = vadd.f32 0.0, %v6742
        %v6744 = vpop.f32.mrb[0].mxu0
        %6745 = vmatprep.mubr.f32.mxu0 %v6513
        %6746 = vmatmul.mubr.f32.gmra.mrb[0].mxu0 %v6512
        %v6747 = vpop.f32.mrb[0].mxu0
        %v6748 = vadd.f32 0.0, %v6747
        %v6749 = vpop.f32.mrb[0].mxu0
        %6750 = vmatprep.mubr.f32.mxu0 %v6516
        %6751 = vmatmul.mubr.f32.gmra.mrb[0].mxu0 %v6515
        %v6752 = vpop.f32.mrb[0].mxu0
        %v6753 = vadd.f32 0.0, %v6752
        %v6754 = vpop.f32.mrb[0].mxu0
        %6755 = vmatprep.mubr.f32.mxu0 %v6519
        %6756 = vmatmul.mubr.f32.gmra.mrb[0].mxu0 %v6518
        %v6757 = vpop.f32.mrb[0].mxu0
        %v6758 = vadd.f32 0.0, %v6757
        %v6759 = vpop.f32.mrb[0].mxu0
        %6760 = vmatprep.mubr.f32.mxu0 %v6522
        %6761 = vmatmul.mubr.f32.gmra.mrb[0].mxu0 %v6521
        %v6762 = vpop.f32.mrb[0].mxu0
        %v6763 = vadd.f32 0.0, %v6762
        %v6764 = vpop.f32.mrb[0].mxu0
        %6765 = vmatprep.mubr.f32.mxu0 %v6525
        %6766 = vmatmul.mubr.f32.gmra.mrb[0].mxu0 %v6524
        %v6767 = vpop.f32.mrb[0].mxu0
        %v6768 = vadd.f32 0.0, %v6767
        %v6769 = vpop.f32.mrb[0].mxu0
        %6770 = vmatprep.mubr.f32.mxu0 %v6528
        %6771 = vmatmul.mubr.f32.gmra.mrb[0].mxu0 %v6527
        %v6772 = vpop.f32.mrb[0].mxu0
        %v6773 = vadd.f32 0.0, %v6772
        %v6774 = vpop.f32.mrb[0].mxu0
        %6775 = vmatprep.mubr.f32.mxu0 %v6531
        %6776 = vmatmul.mubr.f32.gmra.mrb[0].mxu0 %v6530
        %v6777 = vpop.f32.mrb[0].mxu0
        %v6778 = vadd.f32 0.0, %v6777
        %v6779 = vpop.f32.mrb[0].mxu0
        %6780 = vmatprep.mubr.f32.mxu0 %v6534
        %6781 = vmatmul.mubr.f32.gmra.mrb[0].mxu0 %v6533
        %v6782 = vpop.f32.mrb[0].mxu0
        %v6783 = vadd.f32 0.0, %v6782
        %v6784 = vpop.f32.mrb[0].mxu0
        %6785 = vmatprep.mubr.f32.mxu0 %v6537
        %6786 = vmatmul.mubr.f32.gmra.mrb[0].mxu0 %v6536
        %v6787 = vpop.f32.mrb[0].mxu0
        %v6788 = vadd.f32 0.0, %v6787
        %v6789 = vpop.f32.mrb[0].mxu0
        %6790 = vmatprep.mubr.f32.mxu0 %v6540
        %6791 = vmatmul.mubr.f32.gmra.mrb[0].mxu0 %v6539
        %v6792 = vpop.f32.mrb[0].mxu0
        %v6793 = vadd.f32 0.0, %v6792
        %v6794 = vpop.f32.mrb[0].mxu0
        %6795 = vmatprep.mubr.f32.mxu0 %v6543
        %6796 = vmatmul.mubr.f32.gmra.mrb[0].mxu0 %v6542
        %v6797 = vpop.f32.mrb[0].mxu0
        %v6798 = vadd.f32 0.0, %v6797
        %v6799 = vpop.f32.mrb[0].mxu0
        %6800 = vmatprep.mubr.f32.mxu0 %v6546
        %6801 = vmatmul.mubr.f32.gmra.mrb[0].mxu0 %v6545
        %v6802 = vpop.f32.mrb[0].mxu0
        %v6803 = vadd.f32 0.0, %v6802
        %v6804 = vpop.f32.mrb[0].mxu0
        %6805 = vmatprep.mubr.f32.mxu0 %v6549
        %6806 = vmatmul.mubr.f32.gmra.mrb[0].mxu0 %v6548
        %v6807 = vpop.f32.mrb[0].mxu0
        %v6808 = vadd.f32 0.0, %v6807
        %v6809 = vpop.f32.mrb[0].mxu0
        %6810 = vmatprep.mubr.f32.mxu0 %v6552
        %6811 = vmatmul.mubr.f32.gmra.mrb[0].mxu0 %v6551
        %v6812 = vpop.f32.mrb[0].mxu0
        %v6813 = vadd.f32 0.0, %v6812
        %v6814 = vpop.f32.mrb[0].mxu0
        %6815 = vmatprep.mubr.f32.mxu0 %v6555
        %6816 = vmatmul.mubr.f32.gmra.mrb[0].mxu0 %v6554
        %v6817 = vpop.f32.mrb[0].mxu0
        %v6818 = vadd.f32 0.0, %v6817
        %v6819 = vpop.f32.mrb[0].mxu0
        %6820 = vmatprep.mubr.f32.mxu0 %v6558
        %6821 = vmatmul.mubr.f32.gmra.mrb[0].mxu0 %v6557
        %v6822 = vpop.f32.mrb[0].mxu0
        %v6823 = vadd.f32 0.0, %v6822
        %v6824 = vpop.f32.mrb[0].mxu0
        %6825 = vmatprep.mubr.f32.mxu0 %v6561
        %6826 = vmatmul.mubr.f32.gmra.mrb[0].mxu0 %v6560
        %v6827 = vpop.f32.mrb[0].mxu0
        %v6828 = vadd.f32 0.0, %v6827
        %v6829 = vpop.f32.mrb[0].mxu0
        %6830 = vmatprep.mubr.f32.mxu0 %v6564
        %6831 = vmatmul.mubr.f32.gmra.mrb[0].mxu0 %v6563
        %v6832 = vpop.f32.mrb[0].mxu0
        %v6833 = vadd.f32 0.0, %v6832
        %v6834 = vpop.f32.mrb[0].mxu0
        %6835 = vmatprep.mubr.f32.mxu0 %v6567
        %6836 = vmatmul.mubr.f32.gmra.mrb[0].mxu0 %v6566
        %v6837 = vpop.f32.mrb[0].mxu0
        %v6838 = vadd.f32 0.0, %v6837
        %v6839 = vpop.f32.mrb[0].mxu0
        %6840 = vmatprep.mubr.f32.mxu0 %v6570
        %6841 = vmatmul.mubr.f32.gmra.mrb[0].mxu0 %v6569
        %v6842 = vpop.f32.mrb[0].mxu0
        %v6843 = vadd.f32 0.0, %v6842
        %v6844 = vpop.f32.mrb[0].mxu0
        %6845 = vdwg.mxu0
        %6846 = vmatprep.subr.mxu0 0.0
        %6847 = vmatpush1.msra.mxu0 %v6605
        %6848 = vmatprep.subr.mxu0 0.0
        %6849 = vmatpush1.msra.mxu0 %v6606
        %6850 = vmatprep.subr.mxu0 0.0
        %6851 = vmatpush1.msra.mxu0 %v6607
        %6852 = vmatprep.subr.mxu0 0.0
        %6853 = vmatpush1.msra.mxu0 %v6608
        %6854 = vmatprep.subr.mxu0 0.0
        %6855 = vmatpush1.msra.mxu0 %v6609
        %6856 = vmatprep.subr.mxu0 0.0
        %6857 = vmatpush1.msra.mxu0 %v6610
        %6858 = vmatprep.subr.mxu0 0.0
        %6859 = vmatpush1.msra.mxu0 %v6611
        %6860 = vmatprep.subr.mxu0 0.0
        %6861 = vmatpush1.msra.mxu0 %v6612
        %6862 = vmatprep.subr.mxu0 0.0
        %6863 = vmatpush1.msra.mxu0 %v6613
        %6864 = vmatprep.subr.mxu0 0.0
        %6865 = vmatpush1.msra.mxu0 %v6614
        %6866 = vmatprep.subr.mxu0 0.0
        %6867 = vmatpush1.msra.mxu0 %v6615
        %6868 = vmatprep.subr.mxu0 0.0
        %6869 = vmatpush1.msra.mxu0 %v6616
        %6870 = vmatprep.subr.mxu0 0.0
        %6871 = vmatpush1.msra.mxu0 %v6617
        %6872 = vmatprep.subr.mxu0 0.0
        %6873 = vmatpush1.msra.mxu0 %v6618
        %6874 = vmatprep.subr.mxu0 0.0
        %6875 = vmatpush1.msra.mxu0 %v6619
        %6876 = vmatprep.subr.mxu0 0.0
        %6877 = vmatpush1.msra.mxu0 %v6620
        %6878 = vmatprep.subr.mxu0 0.0
        %6879 = vmatpush1.msra.mxu0 0.0
        %6880 = vmatprep.subr.mxu0 0.0
        %6881 = vmatpush1.msra.mxu0 0.0
        %6882 = vmatprep.subr.mxu0 0.0
        %6883 = vmatpush1.msra.mxu0 0.0
        %6884 = vmatprep.subr.mxu0 0.0
        %6885 = vmatpush1.msra.mxu0 0.0
        %6886 = vmatprep.subr.mxu0 0.0
        %6887 = vmatpush1.msra.mxu0 0.0
        %6888 = vmatprep.subr.mxu0 0.0
        %6889 = vmatpush1.msra.mxu0 0.0
        %6890 = vmatprep.subr.mxu0 0.0
        %6891 = vmatpush1.msra.mxu0 0.0
        %6892 = vmatprep.subr.mxu0 0.0
        %6893 = vmatpush1.msra.mxu0 0.0
        %6894 = vmatprep.subr.mxu0 0.0
        %6895 = vmatpush1.msra.mxu0 0.0
        %6896 = vmatprep.subr.mxu0 0.0
        %6897 = vmatpush1.msra.mxu0 0.0
        %6898 = vmatprep.subr.mxu0 0.0
        %6899 = vmatpush1.msra.mxu0 0.0
        %6900 = vmatprep.subr.mxu0 0.0
        %6901 = vmatpush1.msra.mxu0 0.0
        %6902 = vmatprep.subr.mxu0 0.0
        %6903 = vmatpush1.msra.mxu0 0.0
        %6904 = vmatprep.subr.mxu0 0.0
        %6905 = vmatpush1.msra.mxu0 0.0
        %6906 = vmatprep.subr.mxu0 0.0
        %6907 = vmatpush1.msra.mxu0 0.0
        %6908 = vmatprep.subr.mxu0 0.0
        %6909 = vmatpush1.msra.mxu0 0.0
        %6910 = vmatprep.mubr.f32.mxu0 0.0
        %6911 = vmatmul.mubr.f32.gmra.mrb[0].mxu0 %v6478
        %v6912 = vpop.f32.mrb[0].mxu0
        %v6913 = vadd.f32 %v6688, %v6912
        %v6914 = vpop.f32.mrb[0].mxu0
        %6915 = vmatprep.mubr.f32.mxu0 0.0
        %6916 = vmatmul.mubr.f32.gmra.mrb[0].mxu0 %v6481
        %v6917 = vpop.f32.mrb[0].mxu0
        %v6918 = vadd.f32 %v6693, %v6917
        %v6919 = vpop.f32.mrb[0].mxu0
        %6920 = vmatprep.mubr.f32.mxu0 0.0
        %6921 = vmatmul.mubr.f32.gmra.mrb[0].mxu0 %v6484
        %v6922 = vpop.f32.mrb[0].mxu0
        %v6923 = vadd.f32 %v6698, %v6922
        %v6924 = vpop.f32.mrb[0].mxu0
        %6925 = vmatprep.mubr.f32.mxu0 0.0
        %6926 = vmatmul.mubr.f32.gmra.mrb[0].mxu0 %v6487
        %v6927 = vpop.f32.mrb[0].mxu0
        %v6928 = vadd.f32 %v6703, %v6927
        %v6929 = vpop.f32.mrb[0].mxu0
        %6930 = vmatprep.mubr.f32.mxu0 0.0
        %6931 = vmatmul.mubr.f32.gmra.mrb[0].mxu0 %v6490
        %v6932 = vpop.f32.mrb[0].mxu0
        %v6933 = vadd.f32 %v6708, %v6932
        %v6934 = vpop.f32.mrb[0].mxu0
        %6935 = vmatprep.mubr.f32.mxu0 0.0
        %6936 = vmatmul.mubr.f32.gmra.mrb[0].mxu0 %v6493
        %v6937 = vpop.f32.mrb[0].mxu0
        %v6938 = vadd.f32 %v6713, %v6937
        %v6939 = vpop.f32.mrb[0].mxu0
        %6940 = vmatprep.mubr.f32.mxu0 0.0
        %6941 = vmatmul.mubr.f32.gmra.mrb[0].mxu0 %v6496
        %v6942 = vpop.f32.mrb[0].mxu0
        %v6943 = vadd.f32 %v6718, %v6942
        %v6944 = vpop.f32.mrb[0].mxu0
        %6945 = vmatprep.mubr.f32.mxu0 0.0
        %6946 = vmatmul.mubr.f32.gmra.mrb[0].mxu0 %v6499
        %v6947 = vpop.f32.mrb[0].mxu0
        %v6948 = vadd.f32 %v6723, %v6947
        %v6949 = vpop.f32.mrb[0].mxu0
        %6950 = vmatprep.mubr.f32.mxu0 0.0
        %6951 = vmatmul.mubr.f32.gmra.mrb[0].mxu0 %v6502
        %v6952 = vpop.f32.mrb[0].mxu0
        %v6953 = vadd.f32 %v6728, %v6952
        %v6954 = vpop.f32.mrb[0].mxu0
        %6955 = vmatprep.mubr.f32.mxu0 0.0
        %6956 = vmatmul.mubr.f32.gmra.mrb[0].mxu0 %v6505
        %v6957 = vpop.f32.mrb[0].mxu0
        %v6958 = vadd.f32 %v6733, %v6957
        %v6959 = vpop.f32.mrb[0].mxu0
        %6960 = vmatprep.mubr.f32.mxu0 0.0
        %6961 = vmatmul.mubr.f32.gmra.mrb[0].mxu0 %v6508
        %v6962 = vpop.f32.mrb[0].mxu0
        %v6963 = vadd.f32 %v6738, %v6962
        %v6964 = vpop.f32.mrb[0].mxu0
        %6965 = vmatprep.mubr.f32.mxu0 0.0
        %6966 = vmatmul.mubr.f32.gmra.mrb[0].mxu0 %v6511
        %v6967 = vpop.f32.mrb[0].mxu0
        %v6968 = vadd.f32 %v6743, %v6967
        %v6969 = vpop.f32.mrb[0].mxu0
        %6970 = vmatprep.mubr.f32.mxu0 0.0
        %6971 = vmatmul.mubr.f32.gmra.mrb[0].mxu0 %v6514
        %v6972 = vpop.f32.mrb[0].mxu0
        %v6973 = vadd.f32 %v6748, %v6972
        %v6974 = vpop.f32.mrb[0].mxu0
        %6975 = vmatprep.mubr.f32.mxu0 0.0
        %6976 = vmatmul.mubr.f32.gmra.mrb[0].mxu0 %v6517
        %v6977 = vpop.f32.mrb[0].mxu0
        %v6978 = vadd.f32 %v6753, %v6977
        %v6979 = vpop.f32.mrb[0].mxu0
        %6980 = vmatprep.mubr.f32.mxu0 0.0
        %6981 = vmatmul.mubr.f32.gmra.mrb[0].mxu0 %v6520
        %v6982 = vpop.f32.mrb[0].mxu0
        %v6983 = vadd.f32 %v6758, %v6982
        %v6984 = vpop.f32.mrb[0].mxu0
        %6985 = vmatprep.mubr.f32.mxu0 0.0
        %6986 = vmatmul.mubr.f32.gmra.mrb[0].mxu0 %v6523
        %v6987 = vpop.f32.mrb[0].mxu0
        %v6988 = vadd.f32 %v6763, %v6987
        %v6989 = vpop.f32.mrb[0].mxu0
        %6990 = vmatprep.mubr.f32.mxu0 0.0
        %6991 = vmatmul.mubr.f32.gmra.mrb[0].mxu0 %v6526
        %v6992 = vpop.f32.mrb[0].mxu0
        %v6993 = vadd.f32 %v6768, %v6992
        %v6994 = vpop.f32.mrb[0].mxu0
        %6995 = vmatprep.mubr.f32.mxu0 0.0
        %6996 = vmatmul.mubr.f32.gmra.mrb[0].mxu0 %v6529
        %v6997 = vpop.f32.mrb[0].mxu0
        %v6998 = vadd.f32 %v6773, %v6997
        %v6999 = vpop.f32.mrb[0].mxu0
        %7000 = vmatprep.mubr.f32.mxu0 0.0
        %7001 = vmatmul.mubr.f32.gmra.mrb[0].mxu0 %v6532
        %v7002 = vpop.f32.mrb[0].mxu0
        %v7003 = vadd.f32 %v6778, %v7002
        %v7004 = vpop.f32.mrb[0].mxu0
        %7005 = vmatprep.mubr.f32.mxu0 0.0
        %7006 = vmatmul.mubr.f32.gmra.mrb[0].mxu0 %v6535
        %v7007 = vpop.f32.mrb[0].mxu0
        %v7008 = vadd.f32 %v6783, %v7007
        %v7009 = vpop.f32.mrb[0].mxu0
        %7010 = vmatprep.mubr.f32.mxu0 0.0
        %7011 = vmatmul.mubr.f32.gmra.mrb[0].mxu0 %v6538
        %v7012 = vpop.f32.mrb[0].mxu0
        %v7013 = vadd.f32 %v6788, %v7012
        %v7014 = vpop.f32.mrb[0].mxu0
        %7015 = vmatprep.mubr.f32.mxu0 0.0
        %7016 = vmatmul.mubr.f32.gmra.mrb[0].mxu0 %v6541
        %v7017 = vpop.f32.mrb[0].mxu0
        %v7018 = vadd.f32 %v6793, %v7017
        %v7019 = vpop.f32.mrb[0].mxu0
        %7020 = vmatprep.mubr.f32.mxu0 0.0
        %7021 = vmatmul.mubr.f32.gmra.mrb[0].mxu0 %v6544
        %v7022 = vpop.f32.mrb[0].mxu0
        %v7023 = vadd.f32 %v6798, %v7022
        %v7024 = vpop.f32.mrb[0].mxu0
        %7025 = vmatprep.mubr.f32.mxu0 0.0
        %7026 = vmatmul.mubr.f32.gmra.mrb[0].mxu0 %v6547
        %v7027 = vpop.f32.mrb[0].mxu0
        %v7028 = vadd.f32 %v6803, %v7027
        %v7029 = vpop.f32.mrb[0].mxu0
        %7030 = vmatprep.mubr.f32.mxu0 0.0
        %7031 = vmatmul.mubr.f32.gmra.mrb[0].mxu0 %v6550
        %v7032 = vpop.f32.mrb[0].mxu0
        %v7033 = vadd.f32 %v6808, %v7032
        %v7034 = vpop.f32.mrb[0].mxu0
        %7035 = vmatprep.mubr.f32.mxu0 0.0
        %7036 = vmatmul.mubr.f32.gmra.mrb[0].mxu0 %v6553
        %v7037 = vpop.f32.mrb[0].mxu0
        %v7038 = vadd.f32 %v6813, %v7037
        %v7039 = vpop.f32.mrb[0].mxu0
        %7040 = vmatprep.mubr.f32.mxu0 0.0
        %7041 = vmatmul.mubr.f32.gmra.mrb[0].mxu0 %v6556
        %v7042 = vpop.f32.mrb[0].mxu0
        %v7043 = vadd.f32 %v6818, %v7042
        %v7044 = vpop.f32.mrb[0].mxu0
        %7045 = vmatprep.mubr.f32.mxu0 0.0
        %7046 = vmatmul.mubr.f32.gmra.mrb[0].mxu0 %v6559
        %v7047 = vpop.f32.mrb[0].mxu0
        %v7048 = vadd.f32 %v6823, %v7047
        %v7049 = vpop.f32.mrb[0].mxu0
        %7050 = vmatprep.mubr.f32.mxu0 0.0
        %7051 = vmatmul.mubr.f32.gmra.mrb[0].mxu0 %v6562
        %v7052 = vpop.f32.mrb[0].mxu0
        %v7053 = vadd.f32 %v6828, %v7052
        %v7054 = vpop.f32.mrb[0].mxu0
        %7055 = vmatprep.mubr.f32.mxu0 0.0
        %7056 = vmatmul.mubr.f32.gmra.mrb[0].mxu0 %v6565
        %v7057 = vpop.f32.mrb[0].mxu0
        %v7058 = vadd.f32 %v6833, %v7057
        %v7059 = vpop.f32.mrb[0].mxu0
        %7060 = vmatprep.mubr.f32.mxu0 0.0
        %7061 = vmatmul.mubr.f32.gmra.mrb[0].mxu0 %v6568
        %v7062 = vpop.f32.mrb[0].mxu0
        %v7063 = vadd.f32 %v6838, %v7062
        %v7064 = vpop.f32.mrb[0].mxu0
        %7065 = vmatprep.mubr.f32.mxu0 0.0
        %7066 = vmatmul.mubr.f32.gmra.mrb[0].mxu0 %v6571
        %v7067 = vpop.f32.mrb[0].mxu0
        %v7068 = vadd.f32 %v6843, %v7067
        %v7069 = vpop.f32.mrb[0].mxu0
        %7070 = vdwg.mxu0
        %v7071 = vadd.f32 %v6318, %v6913
        %v7072 = vadd.f32 %v6323, %v6918
        %v7073 = vadd.f32 %v6328, %v6923
        %v7074 = vadd.f32 %v6333, %v6928
        %v7075 = vadd.f32 %v6338, %v6933
        %v7076 = vadd.f32 %v6343, %v6938
        %v7077 = vadd.f32 %v6348, %v6943
        %v7078 = vadd.f32 %v6353, %v6948
        %v7079 = vadd.f32 %v6358, %v6953
        %v7080 = vadd.f32 %v6363, %v6958
        %v7081 = vadd.f32 %v6368, %v6963
        %v7082 = vadd.f32 %v6373, %v6968
        %v7083 = vadd.f32 %v6378, %v6973
        %v7084 = vadd.f32 %v6383, %v6978
        %v7085 = vadd.f32 %v6388, %v6983
        %v7086 = vadd.f32 %v6393, %v6988
        %v7087 = vadd.f32 %v6398, %v6993
        %v7088 = vadd.f32 %v6403, %v6998
        %v7089 = vadd.f32 %v6408, %v7003
        %v7090 = vadd.f32 %v6413, %v7008
        %v7091 = vadd.f32 %v6418, %v7013
        %v7092 = vadd.f32 %v6423, %v7018
        %v7093 = vadd.f32 %v6428, %v7023
        %v7094 = vadd.f32 %v6433, %v7028
        %v7095 = vadd.f32 %v6438, %v7033
        %v7096 = vadd.f32 %v6443, %v7038
        %v7097 = vadd.f32 %v6448, %v7043
        %v7098 = vadd.f32 %v6453, %v7048
        %v7099 = vadd.f32 %v6458, %v7053
        %v7100 = vadd.f32 %v6463, %v7058
        %v7101 = vadd.f32 %v6468, %v7063
        %v7102 = vadd.f32 %v6473, %v7068
        %v7103 = vld [vmem:[%s7] sm:$0x1]
        %v7105 = vlaneseq
        %v7106 = vshrl.u32 %v7105, 7
        %v7107 = vsub.s32 0, %v7106
        %v7108 = vrot.slane %v7103, %v7107
        %v7110 = vadd.f32 %v7071, %v7108
        %v7111 = vadd.f32 %v7072, %v7108
        %v7112 = vadd.f32 %v7073, %v7108
        %v7113 = vadd.f32 %v7074, %v7108
        %v7114 = vadd.f32 %v7075, %v7108
        %v7115 = vadd.f32 %v7076, %v7108
        %v7116 = vadd.f32 %v7077, %v7108
        %v7117 = vadd.f32 %v7078, %v7108
        %v7118 = vadd.f32 %v7079, %v7108
        %v7119 = vadd.f32 %v7080, %v7108
        %v7120 = vadd.f32 %v7081, %v7108
        %v7121 = vadd.f32 %v7082, %v7108
        %v7122 = vadd.f32 %v7083, %v7108
        %v7123 = vadd.f32 %v7084, %v7108
        %v7124 = vadd.f32 %v7085, %v7108
        %v7125 = vadd.f32 %v7086, %v7108
        %v7126 = vadd.f32 %v7087, %v7108
        %v7127 = vadd.f32 %v7088, %v7108
        %v7128 = vadd.f32 %v7089, %v7108
        %v7129 = vadd.f32 %v7090, %v7108
        %v7130 = vadd.f32 %v7091, %v7108
        %v7131 = vadd.f32 %v7092, %v7108
        %v7132 = vadd.f32 %v7093, %v7108
        %v7133 = vadd.f32 %v7094, %v7108
        %v7134 = vadd.f32 %v7095, %v7108
        %v7135 = vadd.f32 %v7096, %v7108
        %v7136 = vadd.f32 %v7097, %v7108
        %v7137 = vadd.f32 %v7098, %v7108
        %v7138 = vadd.f32 %v7099, %v7108
        %v7139 = vadd.f32 %v7100, %v7108
        %v7140 = vadd.f32 %v7101, %v7108
        %v7141 = vadd.f32 %v7102, %v7108
        %v7142 = vmax.f32 %v7110, 0.0
        %v7143 = vmax.f32 %v7111, 0.0
        %v7144 = vmax.f32 %v7112, 0.0
        %v7145 = vmax.f32 %v7113, 0.0
        %v7146 = vmax.f32 %v7114, 0.0
        %v7147 = vmax.f32 %v7115, 0.0
        %v7148 = vmax.f32 %v7116, 0.0
        %v7149 = vmax.f32 %v7117, 0.0
        %v7150 = vmax.f32 %v7118, 0.0
        %v7151 = vmax.f32 %v7119, 0.0
        %v7152 = vmax.f32 %v7120, 0.0
        %v7153 = vmax.f32 %v7121, 0.0
        %v7154 = vmax.f32 %v7122, 0.0
        %v7155 = vmax.f32 %v7123, 0.0
        %v7156 = vmax.f32 %v7124, 0.0
        %v7157 = vmax.f32 %v7125, 0.0
        %v7158 = vmax.f32 %v7126, 0.0
        %v7159 = vmax.f32 %v7127, 0.0
        %v7160 = vmax.f32 %v7128, 0.0
        %v7161 = vmax.f32 %v7129, 0.0
        %v7162 = vmax.f32 %v7130, 0.0
        %v7163 = vmax.f32 %v7131, 0.0
        %v7164 = vmax.f32 %v7132, 0.0
        %v7165 = vmax.f32 %v7133, 0.0
        %v7166 = vmax.f32 %v7134, 0.0
        %v7167 = vmax.f32 %v7135, 0.0
        %v7168 = vmax.f32 %v7136, 0.0
        %v7169 = vmax.f32 %v7137, 0.0
        %v7170 = vmax.f32 %v7138, 0.0
        %v7171 = vmax.f32 %v7139, 0.0
        %v7172 = vmax.f32 %v7140, 0.0
        %v7173 = vmax.f32 %v7141, 0.0
        %7174 = vst [vmem:[%s349] sm:$0xff] %v7142
        %7175 = vst [vmem:[%s349 + $0x8] sm:$0xff] %v7143
        %7176 = vst [vmem:[%s349 + $0x10] sm:$0xff] %v7144
        %7177 = vst [vmem:[%s349 + $0x18] sm:$0xff] %v7145
        %7178 = vst [vmem:[%s349 + $0x20] sm:$0xff] %v7146
        %7179 = vst [vmem:[%s349 + $0x28] sm:$0xff] %v7147
        %7180 = vst [vmem:[%s349 + $0x30] sm:$0xff] %v7148
        %7181 = vst [vmem:[%s349 + $0x38] sm:$0xff] %v7149
        %7182 = vst [vmem:[%s349 + $0x40] sm:$0xff] %v7150
        %7183 = vst [vmem:[%s349 + $0x48] sm:$0xff] %v7151
        %7184 = vst [vmem:[%s349 + $0x50] sm:$0xff] %v7152
        %7185 = vst [vmem:[%s349 + $0x58] sm:$0xff] %v7153
        %7186 = vst [vmem:[%s349 + $0x60] sm:$0xff] %v7154
        %7187 = vst [vmem:[%s349 + $0x68] sm:$0xff] %v7155
        %7188 = vst [vmem:[%s349 + $0x70] sm:$0xff] %v7156
        %7189 = vst [vmem:[%s349 + $0x78] sm:$0xff] %v7157
        %7190 = vst [vmem:[%s349 + $0x80] sm:$0xff] %v7158
        %7191 = vst [vmem:[%s349 + $0x88] sm:$0xff] %v7159
        %7192 = vst [vmem:[%s349 + $0x90] sm:$0xff] %v7160
        %7193 = vst [vmem:[%s349 + $0x98] sm:$0xff] %v7161
        %7194 = vst [vmem:[%s349 + $0xa0] sm:$0xff] %v7162
        %7195 = vst [vmem:[%s349 + $0xa8] sm:$0xff] %v7163
        %7196 = vst [vmem:[%s349 + $0xb0] sm:$0xff] %v7164
        %7197 = vst [vmem:[%s349 + $0xb8] sm:$0xff] %v7165
        %7198 = vst [vmem:[%s349 + $0xc0] sm:$0xff] %v7166
        %7199 = vst [vmem:[%s349 + $0xc8] sm:$0xff] %v7167
        %7200 = vst [vmem:[%s349 + $0xd0] sm:$0xff] %v7168
        %7201 = vst [vmem:[%s349 + $0xd8] sm:$0xff] %v7169
        %7202 = vst [vmem:[%s349 + $0xe0] sm:$0xff] %v7170
        %7203 = vst [vmem:[%s349 + $0xe8] sm:$0xff] %v7171
        %7204 = vst [vmem:[%s349 + $0xf0] sm:$0xff] %v7172
        %7205 = vst [vmem:[%s349 + $0xf8] sm:$0xff] %v7173
        %p7206 = scmp.lt.s32.totalorder %s21, 1
        %s7207 = scalar_select %p7206, %s21, 1
        %s7208 = smul.addr %s7207, 32
        %s7209 = smul.addr %s7208, 8
        %s7210 = scalar_lea.vmem %s8, %s7209
        // Predicated region
        $region65: #{segnet_up3_forward.1} parent=51 // pred_check
          %p7211 = pneg %p212
        $region66: #{segnet_up3_forward.1} parent=51 // pred_check_branch
          %7213 = sbr.rel (%p7211) target = $region68
        $region67: #{segnet_up3_forward.1} parent=51 // pred_region
          _
        $region68: #{segnet_up3_forward.1} parent=51 // pred_fallthru
          _
      $region52: #{segnet_up3_forward.1} parent=5 // pred_fallthru
        _
      %p7214 = scmp.le.s32.totalorder 2, %s16
      // Predicated region
      $region69: #{segnet_up3_forward.1} parent=5 // pred_check
        %p7215 = pneg %p7214
      $region70: #{segnet_up3_forward.1} parent=5 // pred_check_branch
        %7217 = sbr.rel (%p7215) target = $region72
      $region71: #{segnet_up3_forward.1} parent=5 // pred_region
        %s7218 = ssub.s32 %s16, 2
        // Predicated region
        $region73: #{segnet_up3_forward.1} parent=71 // pred_check
          %p7219 = pneg %p218
        $region74: #{segnet_up3_forward.1} parent=71 // pred_check_branch
          %7221 = sbr.rel (%p7219) target = $region76
        $region75: #{segnet_up3_forward.1} parent=71 // pred_region
          %p7222 = scmp.lt.s32.totalorder %s22, 1
          %s7223 = scalar_select %p7222, %s22, 1
          %s7224 = smul.addr %s7223, 32
          %s7225 = smul.addr %s7224, 8
          %s7226 = scalar_lea.vmem %s8, %s7225
        $region76: #{segnet_up3_forward.1} parent=71 // pred_fallthru
          _
      $region72: #{segnet_up3_forward.1} parent=5 // pred_fallthru
        _
    $region6: #{segnet_up3_forward.1} parent=1 // loop_footer
      %s20 = sadd.s32 1, %s16
    $region7: #{segnet_up3_forward.1} parent=1 // loop_footer_branch
      %15 = sbr.rel target = $region3
    $region8: #{segnet_up3_forward.1} parent=1 // loop_exit
      _
    %7227 = vsyncpa [#allocation5], 1
    %s7228 = scalar_lea.sflag [#allocation5], 1
    %7229 = vsyncpa %s7228, 1
    %7230 = vsyncpa [#allocation7], 1

</llo_original>
